<compile_context>
chip_gen: v5e
topology: v5e:2x2
jax: 0.10.0
libtpu: 0.0.40
codegen_flags: <defaults>
</compile_context>

<pallas_src>
import functools

import jax
import jax.numpy as jnp
from jax.experimental import pallas as pl
from jax.experimental.pallas import tpu as pltpu


def _round_up(x, m):
    return (x + m - 1) // m * m


# --------------------------------------------------------------------------
# Pallas kernels
# --------------------------------------------------------------------------
def _gemm_bias_act_kernel(x_ref, w_ref, b_ref, o_ref, *, act):
    # x:(TM,Kp) bf16, w:(Kp,Np) bf16, b:(1,Np) f32  ->  o:(TM,Np) f32
    acc = jnp.dot(x_ref[...], w_ref[...], preferred_element_type=jnp.float32)
    acc = acc + b_ref[...]                      # (1, Np) broadcasts over rows
    if act == "relu":
        acc = jnp.maximum(acc, 0.0)
    elif act == "sigmoid":
        acc = jax.nn.sigmoid(acc)
    o_ref[...] = acc.astype(o_ref.dtype)


def _fc_pair_kernel(x_ref, w1_ref, b1_ref, w2_ref, b2_ref, z_ref, h_ref):
    # z = x@w1 + b1 ; h = z@w2 + b2  (z never leaves VMEM for the 2nd matmul)
    z = jnp.dot(x_ref[...], w1_ref[...], preferred_element_type=jnp.float32)
    z = z + b1_ref[...]
    z_ref[...] = z.astype(z_ref.dtype)
    h = jnp.dot(z.astype(jnp.bfloat16), w2_ref[...],
                preferred_element_type=jnp.float32)
    h = h + b2_ref[...]
    h_ref[...] = h.astype(h_ref.dtype)


# --------------------------------------------------------------------------
# GEMM wrappers: pad to lane/sublane-aligned shapes, bf16 MXU inputs
# --------------------------------------------------------------------------
def pallas_gemm(x, w, b, act="none", block_m=256):
    """act(x @ w + b); x:(M,K), w:(K,N), b:(N,)."""
    M, K = x.shape
    Kw, N = w.shape
    assert K == Kw
    Kp = _round_up(K, 128)
    Np = _round_up(N, 128)
    if M <= 2 * block_m:
        TM = _round_up(M, 8)
        Mp = TM
    else:
        TM = block_m
        Mp = _round_up(M, TM)

    xp = jnp.pad(x.astype(jnp.bfloat16), ((0, Mp - M), (0, Kp - K)))
    wp = jnp.pad(w.astype(jnp.bfloat16), ((0, Kp - K), (0, Np - N)))
    bp = jnp.pad(b.astype(jnp.float32), (0, Np - N)).reshape(1, Np)

    out = pl.pallas_call(
        functools.partial(_gemm_bias_act_kernel, act=act),
        out_shape=jax.ShapeDtypeStruct((Mp, Np), jnp.float32),
        grid=(Mp // TM,),
        in_specs=[
            pl.BlockSpec((TM, Kp), lambda i: (i, 0)),
            pl.BlockSpec((Kp, Np), lambda i: (0, 0)),   # weight stays resident
            pl.BlockSpec((1, Np), lambda i: (0, 0)),
        ],
        out_specs=pl.BlockSpec((TM, Np), lambda i: (i, 0)),
        compiler_params=pltpu.CompilerParams(
            dimension_semantics=("parallel",)),
    )(xp, wp, bp)
    return out[:M, :N]


def pallas_fc_pair(x, w1, b1, w2, b2):
    """(z, h) with z = x@w1+b1, h = z@w2+b2, fused in one Pallas call."""
    M, K1 = x.shape
    K1w, N1 = w1.shape
    K2, N2 = w2.shape
    assert K1 == K1w and K2 == N1
    Mp = _round_up(M, 8)
    K1p = _round_up(K1, 128)
    N1p = _round_up(N1, 128)
    N2p = _round_up(N2, 128)

    xp = jnp.pad(x.astype(jnp.bfloat16), ((0, Mp - M), (0, K1p - K1)))
    w1p = jnp.pad(w1.astype(jnp.bfloat16), ((0, K1p - K1), (0, N1p - N1)))
    b1p = jnp.pad(b1.astype(jnp.float32), (0, N1p - N1)).reshape(1, N1p)
    # zero-padded z columns (>= N1) hit zero-padded w2 rows -> exact result
    w2p = jnp.pad(w2.astype(jnp.bfloat16), ((0, N1p - K2), (0, N2p - N2)))
    b2p = jnp.pad(b2.astype(jnp.float32), (0, N2p - N2)).reshape(1, N2p)

    z, h = pl.pallas_call(
        _fc_pair_kernel,
        out_shape=(jax.ShapeDtypeStruct((Mp, N1p), jnp.float32),
                   jax.ShapeDtypeStruct((Mp, N2p), jnp.float32)),
        grid=(1,),
        in_specs=[
            pl.BlockSpec((Mp, K1p), lambda i: (0, 0)),
            pl.BlockSpec((K1p, N1p), lambda i: (0, 0)),
            pl.BlockSpec((1, N1p), lambda i: (0, 0)),
            pl.BlockSpec((N1p, N2p), lambda i: (0, 0)),
            pl.BlockSpec((1, N2p), lambda i: (0, 0)),
        ],
        out_specs=(pl.BlockSpec((Mp, N1p), lambda i: (0, 0)),
                   pl.BlockSpec((Mp, N2p), lambda i: (0, 0))),
    )(xp, w1p, b1p, w2p, b2p)
    return z[:M, :N1], h[:M, :N2]


# --------------------------------------------------------------------------
# NHWC conv / conv-transpose lowering (all GEMMs run in the Pallas kernels)
# --------------------------------------------------------------------------
def _im2col_nhwc(x, kh, kw, stride):
    # x: (B, H, W, C) -> patches (B*Ho*Wo, kh*kw*C); feature order (i, j, c)
    B, H, W, C = x.shape
    Ho = (H - kh) // stride + 1
    Wo = (W - kw) // stride + 1
    taps = []
    for i in range(kh):
        for j in range(kw):
            taps.append(x[:, i:i + Ho * stride:stride,
                          j:j + Wo * stride:stride, :])
    p = jnp.stack(taps, axis=3)                       # (B, Ho, Wo, kh*kw, C)
    return p.reshape(B * Ho * Wo, kh * kw * C), Ho, Wo


def conv2d_nhwc(x, w, b, stride, act):
    # x: (B,H,W,Cin) NHWC, w: (Cout,Cin,kh,kw) (PyTorch nn.Conv2d layout)
    Cout, Cin, kh, kw = w.shape
    B = x.shape[0]
    patches, Ho, Wo = _im2col_nhwc(x, kh, kw, stride)
    wm = w.transpose(2, 3, 1, 0).reshape(kh * kw * Cin, Cout)   # [(i,j,ci),co]
    y = pallas_gemm(patches, wm, b, act)              # (B*Ho*Wo, Cout)
    return y.reshape(B, Ho, Wo, Cout)


def conv_transpose2d_s1_nhwc(x, w, b, act):
    # stride-1 ConvTranspose == pad(k-1) + conv with flipped, channel-swapped w
    Cin, Cout, kh, kw = w.shape
    xp = jnp.pad(x, ((0, 0), (kh - 1, kh - 1), (kw - 1, kw - 1), (0, 0)))
    w_conv = jnp.flip(w, axis=(2, 3)).transpose(1, 0, 2, 3)   # (Cout,Cin,kh,kw)
    return conv2d_nhwc(xp, w_conv, b, 1, act)


def conv_transpose2d_s2_nhwc(x, w, b, act):
    # stride-2, k=4 ConvTranspose via sub-pixel (phase) decomposition:
    # one GEMM with K = 2*2*Cin, N = 4*Cout (all four output phases at once).
    Cin, Cout, kh, kw = w.shape          # kh = kw = 4
    B, H, W, _ = x.shape
    xp = jnp.pad(x, ((0, 0), (1, 1), (1, 1), (0, 0)))          # (B,H+2,W+2,Cin)
    patches, Ho, Wo = _im2col_nhwc(xp, 2, 2, 1)                # Ho=H+1, Wo=W+1
    # w[ci,co,i,j], i = 2*di + py, j = 2*dj + px ; tap ti = 1 - di, tj = 1 - dj
    wr = w.reshape(Cin, Cout, 2, 2, 2, 2)        # (ci, co, di, py, dj, px)
    wr = jnp.flip(wr, axis=(2, 4))               # (ci, co, ti, py, tj, px)
    wm = wr.transpose(2, 4, 0, 3, 5, 1).reshape(4 * Cin, 4 * Cout)
    bm = jnp.tile(b, 4)                          # same bias for every phase
    y = pallas_gemm(patches, wm, bm, act)        # (B*(H+1)*(W+1), 4*Cout)
    y = y.reshape(B, Ho, Wo, 2, 2, Cout)         # (..., py, px, co)
    y = y.transpose(0, 1, 3, 2, 4, 5).reshape(B, 2 * Ho, 2 * Wo, Cout)
    return y                                     # out[:, 2r+py, 2c+px, :]


# --------------------------------------------------------------------------
# Deterministic parameter construction (shapes per AutoEncoder.__init__)
# --------------------------------------------------------------------------
def init_params(key, image_dim=28, latent_dim=100):
    lls = int(image_dim / 4 - 3)                      # getShape()
    flat = 32 * lls * lls

    def uni(k, shape, fan_in):
        bound = float(fan_in) ** -0.5
        return jax.random.uniform(k, shape, jnp.float32, -bound, bound)

    keys = iter(jax.random.split(key, 24))
    p = {}
    # encoder: Conv2d(3,32,4,1) Conv2d(32,32,4,1) Conv2d(32,32,4,2) Conv2d(32,32,4,2)
    enc_cfg = [(3, 32), (32, 32), (32, 32), (32, 32)]
    for n, (cin, cout) in enumerate(enc_cfg):
        fan = cin * 4 * 4
        p[f"enc{n}_w"] = uni(next(keys), (cout, cin, 4, 4), fan)
        p[f"enc{n}_b"] = uni(next(keys), (cout,), fan)
    # fc1 / fc2 (stored as (K, N) matrices)
    p["fc1_w"] = uni(next(keys), (flat, latent_dim), flat)
    p["fc1_b"] = uni(next(keys), (latent_dim,), flat)
    p["fc2_w"] = uni(next(keys), (latent_dim, flat), latent_dim)
    p["fc2_b"] = uni(next(keys), (flat,), latent_dim)
    # decoder: ConvT(32,32,4,2) ConvT(32,32,4,2) ConvT(32,32,4,1) ConvT(32,3,4,1)
    dec_cfg = [(32, 32), (32, 32), (32, 32), (32, 3)]
    for n, (cin, cout) in enumerate(dec_cfg):
        fan = cout * 4 * 4
        p[f"dec{n}_w"] = uni(next(keys), (cin, cout, 4, 4), fan)
        p[f"dec{n}_b"] = uni(next(keys), (cout,), fan)
    return p, lls, latent_dim


# --------------------------------------------------------------------------
# Forward pass (matches AutoEncoder.forward: returns (z, x_hat))
# --------------------------------------------------------------------------
def autoencoder_forward(params, x, lls):
    B = x.shape[0]
    flat = 32 * lls * lls

    h = x.transpose(0, 2, 3, 1)                       # NCHW -> NHWC (once)

    # encoder
    h = conv2d_nhwc(h, params["enc0_w"], params["enc0_b"], 1, "relu")
    h = conv2d_nhwc(h, params["enc1_w"], params["enc1_b"], 1, "relu")
    h = conv2d_nhwc(h, params["enc2_w"], params["enc2_b"], 2, "relu")
    h = conv2d_nhwc(h, params["enc3_w"], params["enc3_b"], 2, "relu")

    # flatten exactly like PyTorch's NCHW .view(-1, 32*lls*lls)
    h = h.transpose(0, 3, 1, 2).reshape(B, flat)

    # fc1 + fc2 fused in one Pallas call
    z, d = pallas_fc_pair(h, params["fc1_w"], params["fc1_b"],
                          params["fc2_w"], params["fc2_b"])

    # back to NHWC for the decoder (PyTorch view is NCHW)
    d = d.reshape(B, 32, lls, lls).transpose(0, 2, 3, 1)

    # decoder
    d = conv_transpose2d_s2_nhwc(d, params["dec0_w"], params["dec0_b"], "relu")
    d = conv_transpose2d_s2_nhwc(d, params["dec1_w"], params["dec1_b"], "relu")
    d = conv_transpose2d_s1_nhwc(d, params["dec2_w"], params["dec2_b"], "relu")
    d = conv_transpose2d_s1_nhwc(d, params["dec3_w"], params["dec3_b"], "sigmoid")

    x_hat = d.transpose(0, 3, 1, 2)                   # NHWC -> NCHW (once)
    return z, x_hat


if __name__ == "__main__":
    IMAGE_DIM = 28      # getShape() requires image_dim/4 - 3 to be a positive int
    LATENT_DIM = 100
    BATCH = 2

    key = jax.random.PRNGKey(0)
    pkey, xkey = jax.random.split(key)
    params, lls, latent_dim = init_params(pkey, IMAGE_DIM, LATENT_DIM)

    x = jax.random.normal(xkey, (BATCH, 3, IMAGE_DIM, IMAGE_DIM), jnp.float32)

    fwd = jax.jit(functools.partial(autoencoder_forward, lls=lls))
    z, x_hat = fwd(params, x)
    jax.block_until_ready((z, x_hat))

    assert z.shape == (BATCH, LATENT_DIM), z.shape
    assert x_hat.shape == (BATCH, 3, IMAGE_DIM, IMAGE_DIM), x_hat.shape
    assert bool(jnp.all(jnp.isfinite(z))) and bool(jnp.all(jnp.isfinite(x_hat)))
    assert bool(jnp.all(x_hat >= 0.0)) and bool(jnp.all(x_hat <= 1.0))  # sigmoid output
    print("KERNEL_OK")
</pallas_src>

<mosaic_0001>
module attributes {stable_mosaic.version = 11 : i64} {
  func.func @_gemm_bias_act_kernel(%arg0: i32, %arg1: memref<256x128xbf16, #tpu.memory_space<vmem>>, %arg2: memref<128x128xbf16, #tpu.memory_space<vmem>>, %arg3: memref<1x128xf32, #tpu.memory_space<vmem>>, %arg4: memref<256x128xf32, #tpu.memory_space<vmem>>) attributes {dimension_semantics = [#tpu.dimension_semantics<parallel>], iteration_bounds = array<i64: 5>, scalar_prefetch = 0 : i64, scratch_operands = 0 : i64, tpu.core_type = #tpu.core_type<tc>, window_params = [{transform_indices = @transform_0, window_bounds = array<i64: 256, 128>}, {pipeline_mode = #tpu.pipeline_mode<synchronous>, transform_indices = @transform_1, window_bounds = array<i64: 128, 128>}, {pipeline_mode = #tpu.pipeline_mode<synchronous>, transform_indices = @transform_2, window_bounds = array<i64: 1, 128>}, {transform_indices = @transform_3, window_bounds = array<i64: 256, 128>}]} {
    %c0 = arith.constant 0 : index
    %c0_0 = arith.constant 0 : index
    %0 = vector.load %arg1[%c0, %c0_0] : memref<256x128xbf16, #tpu.memory_space<vmem>>, vector<256x128xbf16>
    %c0_1 = arith.constant 0 : index
    %c0_2 = arith.constant 0 : index
    %1 = vector.load %arg2[%c0_1, %c0_2] : memref<128x128xbf16, #tpu.memory_space<vmem>>, vector<128x128xbf16>
    %cst = arith.constant dense<0.000000e+00> : vector<256x128xf32>
    %2 = tpu.matmul %0, %1, %cst {dimension_numbers = #tpu.dot_dimension_numbers<[1], [0], [0], [1], [0, 0, 1, 1], [], []>} : vector<256x128xbf16>, vector<128x128xbf16>, vector<256x128xf32> -> vector<256x128xf32>
    %c0_3 = arith.constant 0 : index
    %c0_4 = arith.constant 0 : index
    %3 = vector.load %arg3[%c0_3, %c0_4] : memref<1x128xf32, #tpu.memory_space<vmem>>, vector<1x128xf32>
    %4 = vector.broadcast %3 : vector<1x128xf32> to vector<256x128xf32>
    %5 = arith.addf %2, %4 : vector<256x128xf32>
    %cst_5 = arith.constant 0.000000e+00 : f32
    %6 = vector.broadcast %cst_5 : f32 to vector<256x128xf32>
    %7 = arith.maximumf %5, %6 : vector<256x128xf32>
    %c0_6 = arith.constant 0 : index
    %c0_7 = arith.constant 0 : index
    %8 = vector.load %arg4[%c0_6, %c0_7] : memref<256x128xf32, #tpu.memory_space<vmem>>, vector<256x128xf32>
    tpu.vector_store %arg4[%c0_6, %c0_7], %7 {strides = array<i32>} : memref<256x128xf32, #tpu.memory_space<vmem>>, vector<256x128xf32>,
    return
  }
  func.func @transform_0(%arg0: i32) -> (i32, i32) {
    %c0_i32 = arith.constant 0 : i32
    %c0_i32_0 = arith.constant 0 : i32
    return %arg0, %c0_i32 : i32, i32
  }
  func.func @transform_1(%arg0: i32) -> (i32, i32) {
    %c0_i32 = arith.constant 0 : i32
    %c0_i32_0 = arith.constant 0 : i32
    %c0_i32_1 = arith.constant 0 : i32
    return %c0_i32, %c0_i32_0 : i32, i32
  }
  func.func @transform_2(%arg0: i32) -> (i32, i32) {
    %c0_i32 = arith.constant 0 : i32
    %c0_i32_0 = arith.constant 0 : i32
    %c0_i32_1 = arith.constant 0 : i32
    return %c0_i32, %c0_i32_0 : i32, i32
  }
  func.func @transform_3(%arg0: i32) -> (i32, i32) {
    %c0_i32 = arith.constant 0 : i32
    %c0_i32_0 = arith.constant 0 : i32
    return %arg0, %c0_i32 : i32, i32
  }
}

module attributes {stable_mosaic.version = 11 : i64} {
  func.func @_gemm_bias_act_kernel(%arg0: i32, %arg1: memref<256x512xbf16, #tpu.memory_space<vmem>>, %arg2: memref<512x128xbf16, #tpu.memory_space<vmem>>, %arg3: memref<1x128xf32, #tpu.memory_space<vmem>>, %arg4: memref<256x128xf32, #tpu.memory_space<vmem>>) attributes {dimension_semantics = [#tpu.dimension_semantics<parallel>], iteration_bounds = array<i64: 4>, scalar_prefetch = 0 : i64, scratch_operands = 0 : i64, tpu.core_type = #tpu.core_type<tc>, window_params = [{transform_indices = @transform_0, window_bounds = array<i64: 256, 512>}, {pipeline_mode = #tpu.pipeline_mode<synchronous>, transform_indices = @transform_1, window_bounds = array<i64: 512, 128>}, {pipeline_mode = #tpu.pipeline_mode<synchronous>, transform_indices = @transform_2, window_bounds = array<i64: 1, 128>}, {transform_indices = @transform_3, window_bounds = array<i64: 256, 128>}]} {
    %c0 = arith.constant 0 : index
    %c0_0 = arith.constant 0 : index
    %0 = vector.load %arg1[%c0, %c0_0] : memref<256x512xbf16, #tpu.memory_space<vmem>>, vector<256x512xbf16>
    %c0_1 = arith.constant 0 : index
    %c0_2 = arith.constant 0 : index
    %1 = vector.load %arg2[%c0_1, %c0_2] : memref<512x128xbf16, #tpu.memory_space<vmem>>, vector<512x128xbf16>
    %cst = arith.constant dense<0.000000e+00> : vector<256x128xf32>
    %2 = tpu.matmul %0, %1, %cst {dimension_numbers = #tpu.dot_dimension_numbers<[1], [0], [0], [1], [0, 0, 1, 1], [], []>} : vector<256x512xbf16>, vector<512x128xbf16>, vector<256x128xf32> -> vector<256x128xf32>
    %c0_3 = arith.constant 0 : index
    %c0_4 = arith.constant 0 : index
    %3 = vector.load %arg3[%c0_3, %c0_4] : memref<1x128xf32, #tpu.memory_space<vmem>>, vector<1x128xf32>
    %4 = vector.broadcast %3 : vector<1x128xf32> to vector<256x128xf32>
    %5 = arith.addf %2, %4 : vector<256x128xf32>
    %cst_5 = arith.constant 0.000000e+00 : f32
    %6 = vector.broadcast %cst_5 : f32 to vector<256x128xf32>
    %7 = arith.maximumf %5, %6 : vector<256x128xf32>
    %c0_6 = arith.constant 0 : index
    %c0_7 = arith.constant 0 : index
    %8 = vector.load %arg4[%c0_6, %c0_7] : memref<256x128xf32, #tpu.memory_space<vmem>>, vector<256x128xf32>
    tpu.vector_store %arg4[%c0_6, %c0_7], %7 {strides = array<i32>} : memref<256x128xf32, #tpu.memory_space<vmem>>, vector<256x128xf32>,
    return
  }
  func.func @transform_0(%arg0: i32) -> (i32, i32) {
    %c0_i32 = arith.constant 0 : i32
    %c0_i32_0 = arith.constant 0 : i32
    return %arg0, %c0_i32 : i32, i32
  }
  func.func @transform_1(%arg0: i32) -> (i32, i32) {
    %c0_i32 = arith.constant 0 : i32
    %c0_i32_0 = arith.constant 0 : i32
    %c0_i32_1 = arith.constant 0 : i32
    return %c0_i32, %c0_i32_0 : i32, i32
  }
  func.func @transform_2(%arg0: i32) -> (i32, i32) {
    %c0_i32 = arith.constant 0 : i32
    %c0_i32_0 = arith.constant 0 : i32
    %c0_i32_1 = arith.constant 0 : i32
    return %c0_i32, %c0_i32_0 : i32, i32
  }
  func.func @transform_3(%arg0: i32) -> (i32, i32) {
    %c0_i32 = arith.constant 0 : i32
    %c0_i32_0 = arith.constant 0 : i32
    return %arg0, %c0_i32 : i32, i32
  }
}

module attributes {stable_mosaic.version = 11 : i64} {
  func.func @_gemm_bias_act_kernel(%arg0: i32, %arg1: memref<200x512xbf16, #tpu.memory_space<vmem>>, %arg2: memref<512x128xbf16, #tpu.memory_space<vmem>>, %arg3: memref<1x128xf32, #tpu.memory_space<vmem>>, %arg4: memref<200x128xf32, #tpu.memory_space<vmem>>) attributes {dimension_semantics = [#tpu.dimension_semantics<parallel>], iteration_bounds = array<i64: 1>, scalar_prefetch = 0 : i64, scratch_operands = 0 : i64, tpu.core_type = #tpu.core_type<tc>, window_params = [{transform_indices = @transform_0, window_bounds = array<i64: 200, 512>}, {pipeline_mode = #tpu.pipeline_mode<synchronous>, transform_indices = @transform_1, window_bounds = array<i64: 512, 128>}, {pipeline_mode = #tpu.pipeline_mode<synchronous>, transform_indices = @transform_2, window_bounds = array<i64: 1, 128>}, {transform_indices = @transform_3, window_bounds = array<i64: 200, 128>}]} {
    %c0 = arith.constant 0 : index
    %c0_0 = arith.constant 0 : index
    %0 = vector.load %arg1[%c0, %c0_0] : memref<200x512xbf16, #tpu.memory_space<vmem>>, vector<200x512xbf16>
    %c0_1 = arith.constant 0 : index
    %c0_2 = arith.constant 0 : index
    %1 = vector.load %arg2[%c0_1, %c0_2] : memref<512x128xbf16, #tpu.memory_space<vmem>>, vector<512x128xbf16>
    %cst = arith.constant dense<0.000000e+00> : vector<200x128xf32>
    %2 = tpu.matmul %0, %1, %cst {dimension_numbers = #tpu.dot_dimension_numbers<[1], [0], [0], [1], [0, 0, 1, 1], [], []>} : vector<200x512xbf16>, vector<512x128xbf16>, vector<200x128xf32> -> vector<200x128xf32>
    %c0_3 = arith.constant 0 : index
    %c0_4 = arith.constant 0 : index
    %3 = vector.load %arg3[%c0_3, %c0_4] : memref<1x128xf32, #tpu.memory_space<vmem>>, vector<1x128xf32>
    %4 = vector.broadcast %3 : vector<1x128xf32> to vector<200x128xf32>
    %5 = arith.addf %2, %4 : vector<200x128xf32>
    %cst_5 = arith.constant 0.000000e+00 : f32
    %6 = vector.broadcast %cst_5 : f32 to vector<200x128xf32>
    %7 = arith.maximumf %5, %6 : vector<200x128xf32>
    %c0_6 = arith.constant 0 : index
    %c0_7 = arith.constant 0 : index
    %8 = vector.load %arg4[%c0_6, %c0_7] : memref<200x128xf32, #tpu.memory_space<vmem>>, vector<200x128xf32>
    tpu.vector_store %arg4[%c0_6, %c0_7], %7 {strides = array<i32>} : memref<200x128xf32, #tpu.memory_space<vmem>>, vector<200x128xf32>,
    return
  }
  func.func @transform_0(%arg0: i32) -> (i32, i32) {
    %c0_i32 = arith.constant 0 : i32
    %c0_i32_0 = arith.constant 0 : i32
    return %arg0, %c0_i32 : i32, i32
  }
  func.func @transform_1(%arg0: i32) -> (i32, i32) {
    %c0_i32 = arith.constant 0 : i32
    %c0_i32_0 = arith.constant 0 : i32
    %c0_i32_1 = arith.constant 0 : i32
    return %c0_i32, %c0_i32_0 : i32, i32
  }
  func.func @transform_2(%arg0: i32) -> (i32, i32) {
    %c0_i32 = arith.constant 0 : i32
    %c0_i32_0 = arith.constant 0 : i32
    %c0_i32_1 = arith.constant 0 : i32
    return %c0_i32, %c0_i32_0 : i32, i32
  }
  func.func @transform_3(%arg0: i32) -> (i32, i32) {
    %c0_i32 = arith.constant 0 : i32
    %c0_i32_0 = arith.constant 0 : i32
    return %arg0, %c0_i32 : i32, i32
  }
}

module attributes {stable_mosaic.version = 11 : i64} {
  func.func @_gemm_bias_act_kernel(%arg0: i32, %arg1: memref<32x512xbf16, #tpu.memory_space<vmem>>, %arg2: memref<512x128xbf16, #tpu.memory_space<vmem>>, %arg3: memref<1x128xf32, #tpu.memory_space<vmem>>, %arg4: memref<32x128xf32, #tpu.memory_space<vmem>>) attributes {dimension_semantics = [#tpu.dimension_semantics<parallel>], iteration_bounds = array<i64: 1>, scalar_prefetch = 0 : i64, scratch_operands = 0 : i64, tpu.core_type = #tpu.core_type<tc>, window_params = [{transform_indices = @transform_0, window_bounds = array<i64: 32, 512>}, {pipeline_mode = #tpu.pipeline_mode<synchronous>, transform_indices = @transform_1, window_bounds = array<i64: 512, 128>}, {pipeline_mode = #tpu.pipeline_mode<synchronous>, transform_indices = @transform_2, window_bounds = array<i64: 1, 128>}, {transform_indices = @transform_3, window_bounds = array<i64: 32, 128>}]} {
    %c0 = arith.constant 0 : index
    %c0_0 = arith.constant 0 : index
    %0 = vector.load %arg1[%c0, %c0_0] : memref<32x512xbf16, #tpu.memory_space<vmem>>, vector<32x512xbf16>
    %c0_1 = arith.constant 0 : index
    %c0_2 = arith.constant 0 : index
    %1 = vector.load %arg2[%c0_1, %c0_2] : memref<512x128xbf16, #tpu.memory_space<vmem>>, vector<512x128xbf16>
    %cst = arith.constant dense<0.000000e+00> : vector<32x128xf32>
    %2 = tpu.matmul %0, %1, %cst {dimension_numbers = #tpu.dot_dimension_numbers<[1], [0], [0], [1], [0, 0, 1, 1], [], []>} : vector<32x512xbf16>, vector<512x128xbf16>, vector<32x128xf32> -> vector<32x128xf32>
    %c0_3 = arith.constant 0 : index
    %c0_4 = arith.constant 0 : index
    %3 = vector.load %arg3[%c0_3, %c0_4] : memref<1x128xf32, #tpu.memory_space<vmem>>, vector<1x128xf32>
    %4 = vector.broadcast %3 : vector<1x128xf32> to vector<32x128xf32>
    %5 = arith.addf %2, %4 : vector<32x128xf32>
    %cst_5 = arith.constant 0.000000e+00 : f32
    %6 = vector.broadcast %cst_5 : f32 to vector<32x128xf32>
    %7 = arith.maximumf %5, %6 : vector<32x128xf32>
    %c0_6 = arith.constant 0 : index
    %c0_7 = arith.constant 0 : index
    %8 = vector.load %arg4[%c0_6, %c0_7] : memref<32x128xf32, #tpu.memory_space<vmem>>, vector<32x128xf32>
    tpu.vector_store %arg4[%c0_6, %c0_7], %7 {strides = array<i32>} : memref<32x128xf32, #tpu.memory_space<vmem>>, vector<32x128xf32>,
    return
  }
  func.func @transform_0(%arg0: i32) -> (i32, i32) {
    %c0_i32 = arith.constant 0 : i32
    %c0_i32_0 = arith.constant 0 : i32
    return %arg0, %c0_i32 : i32, i32
  }
  func.func @transform_1(%arg0: i32) -> (i32, i32) {
    %c0_i32 = arith.constant 0 : i32
    %c0_i32_0 = arith.constant 0 : i32
    %c0_i32_1 = arith.constant 0 : i32
    return %c0_i32, %c0_i32_0 : i32, i32
  }
  func.func @transform_2(%arg0: i32) -> (i32, i32) {
    %c0_i32 = arith.constant 0 : i32
    %c0_i32_0 = arith.constant 0 : i32
    %c0_i32_1 = arith.constant 0 : i32
    return %c0_i32, %c0_i32_0 : i32, i32
  }
  func.func @transform_3(%arg0: i32) -> (i32, i32) {
    %c0_i32 = arith.constant 0 : i32
    %c0_i32_0 = arith.constant 0 : i32
    return %arg0, %c0_i32 : i32, i32
  }
}

module attributes {stable_mosaic.version = 11 : i64} {
  func.func @_fc_pair_kernel(%arg0: i32, %arg1: memref<8x512xbf16, #tpu.memory_space<vmem>>, %arg2: memref<512x128xbf16, #tpu.memory_space<vmem>>, %arg3: memref<1x128xf32, #tpu.memory_space<vmem>>, %arg4: memref<128x512xbf16, #tpu.memory_space<vmem>>, %arg5: memref<1x512xf32, #tpu.memory_space<vmem>>, %arg6: memref<8x128xf32, #tpu.memory_space<vmem>>, %arg7: memref<8x512xf32, #tpu.memory_space<vmem>>) attributes {dimension_semantics = [#tpu.dimension_semantics<arbitrary>], iteration_bounds = array<i64: 1>, scalar_prefetch = 0 : i64, scratch_operands = 0 : i64, tpu.core_type = #tpu.core_type<tc>, window_params = [{pipeline_mode = #tpu.pipeline_mode<synchronous>, transform_indices = @transform_0, window_bounds = array<i64: 8, 512>}, {pipeline_mode = #tpu.pipeline_mode<synchronous>, transform_indices = @transform_1, window_bounds = array<i64: 512, 128>}, {pipeline_mode = #tpu.pipeline_mode<synchronous>, transform_indices = @transform_2, window_bounds = array<i64: 1, 128>}, {pipeline_mode = #tpu.pipeline_mode<synchronous>, transform_indices = @transform_3, window_bounds = array<i64: 128, 512>}, {pipeline_mode = #tpu.pipeline_mode<synchronous>, transform_indices = @transform_4, window_bounds = array<i64: 1, 512>}, {pipeline_mode = #tpu.pipeline_mode<synchronous>, transform_indices = @transform_5, window_bounds = array<i64: 8, 128>}, {pipeline_mode = #tpu.pipeline_mode<synchronous>, transform_indices = @transform_6, window_bounds = array<i64: 8, 512>}]} {
    %c0 = arith.constant 0 : index
    %c0_0 = arith.constant 0 : index
    %0 = vector.load %arg1[%c0, %c0_0] : memref<8x512xbf16, #tpu.memory_space<vmem>>, vector<8x512xbf16>
    %c0_1 = arith.constant 0 : index
    %c0_2 = arith.constant 0 : index
    %1 = vector.load %arg2[%c0_1, %c0_2] : memref<512x128xbf16, #tpu.memory_space<vmem>>, vector<512x128xbf16>
    %cst = arith.constant dense<0.000000e+00> : vector<8x128xf32>
    %2 = tpu.matmul %0, %1, %cst {dimension_numbers = #tpu.dot_dimension_numbers<[1], [0], [0], [1], [0, 0, 1, 1], [], []>} : vector<8x512xbf16>, vector<512x128xbf16>, vector<8x128xf32> -> vector<8x128xf32>
    %c0_3 = arith.constant 0 : index
    %c0_4 = arith.constant 0 : index
    %3 = vector.load %arg3[%c0_3, %c0_4] : memref<1x128xf32, #tpu.memory_space<vmem>>, vector<1x128xf32>
    %4 = vector.broadcast %3 : vector<1x128xf32> to vector<8x128xf32>
    %5 = arith.addf %2, %4 : vector<8x128xf32>
    %c0_5 = arith.constant 0 : index
    %c0_6 = arith.constant 0 : index
    %6 = vector.load %arg6[%c0_5, %c0_6] : memref<8x128xf32, #tpu.memory_space<vmem>>, vector<8x128xf32>
    tpu.vector_store %arg6[%c0_5, %c0_6], %5 {strides = array<i32>} : memref<8x128xf32, #tpu.memory_space<vmem>>, vector<8x128xf32>,
    %7 = arith.truncf %5 : vector<8x128xf32> to vector<8x128xbf16>
    %c0_7 = arith.constant 0 : index
    %c0_8 = arith.constant 0 : index
    %8 = vector.load %arg4[%c0_7, %c0_8] : memref<128x512xbf16, #tpu.memory_space<vmem>>, vector<128x512xbf16>
    %cst_9 = arith.constant dense<0.000000e+00> : vector<8x512xf32>
    %9 = tpu.matmul %7, %8, %cst_9 {dimension_numbers = #tpu.dot_dimension_numbers<[1], [0], [0], [1], [0, 0, 1, 1], [], []>} : vector<8x128xbf16>, vector<128x512xbf16>, vector<8x512xf32> -> vector<8x512xf32>
    %c0_10 = arith.constant 0 : index
    %c0_11 = arith.constant 0 : index
    %10 = vector.load %arg5[%c0_10, %c0_11] : memref<1x512xf32, #tpu.memory_space<vmem>>, vector<1x512xf32>
    %11 = vector.broadcast %10 : vector<1x512xf32> to vector<8x512xf32>
    %12 = arith.addf %9, %11 : vector<8x512xf32>
    %c0_12 = arith.constant 0 : index
    %c0_13 = arith.constant 0 : index
    %13 = vector.load %arg7[%c0_12, %c0_13] : memref<8x512xf32, #tpu.memory_space<vmem>>, vector<8x512xf32>
    tpu.vector_store %arg7[%c0_12, %c0_13], %12 {strides = array<i32>} : memref<8x512xf32, #tpu.memory_space<vmem>>, vector<8x512xf32>,
    return
  }
  func.func @transform_0(%arg0: i32) -> (i32, i32) {
    %c0_i32 = arith.constant 0 : i32
    %c0_i32_0 = arith.constant 0 : i32
    %c0_i32_1 = arith.constant 0 : i32
    return %c0_i32, %c0_i32_0 : i32, i32
  }
  func.func @transform_1(%arg0: i32) -> (i32, i32) {
    %c0_i32 = arith.constant 0 : i32
    %c0_i32_0 = arith.constant 0 : i32
    %c0_i32_1 = arith.constant 0 : i32
    return %c0_i32, %c0_i32_0 : i32, i32
  }
  func.func @transform_2(%arg0: i32) -> (i32, i32) {
    %c0_i32 = arith.constant 0 : i32
    %c0_i32_0 = arith.constant 0 : i32
    %c0_i32_1 = arith.constant 0 : i32
    return %c0_i32, %c0_i32_0 : i32, i32
  }
  func.func @transform_3(%arg0: i32) -> (i32, i32) {
    %c0_i32 = arith.constant 0 : i32
    %c0_i32_0 = arith.constant 0 : i32
    %c0_i32_1 = arith.constant 0 : i32
    return %c0_i32, %c0_i32_0 : i32, i32
  }
  func.func @transform_4(%arg0: i32) -> (i32, i32) {
    %c0_i32 = arith.constant 0 : i32
    %c0_i32_0 = arith.constant 0 : i32
    %c0_i32_1 = arith.constant 0 : i32
    return %c0_i32, %c0_i32_0 : i32, i32
  }
  func.func @transform_5(%arg0: i32) -> (i32, i32) {
    %c0_i32 = arith.constant 0 : i32
    %c0_i32_0 = arith.constant 0 : i32
    %c0_i32_1 = arith.constant 0 : i32
    return %c0_i32, %c0_i32_0 : i32, i32
  }
  func.func @transform_6(%arg0: i32) -> (i32, i32) {
    %c0_i32 = arith.constant 0 : i32
    %c0_i32_0 = arith.constant 0 : i32
    %c0_i32_1 = arith.constant 0 : i32
    return %c0_i32, %c0_i32_0 : i32, i32
  }
}

module attributes {stable_mosaic.version = 11 : i64} {
  func.func @_gemm_bias_act_kernel(%arg0: i32, %arg1: memref<56x128xbf16, #tpu.memory_space<vmem>>, %arg2: memref<128x128xbf16, #tpu.memory_space<vmem>>, %arg3: memref<1x128xf32, #tpu.memory_space<vmem>>, %arg4: memref<56x128xf32, #tpu.memory_space<vmem>>) attributes {dimension_semantics = [#tpu.dimension_semantics<parallel>], iteration_bounds = array<i64: 1>, scalar_prefetch = 0 : i64, scratch_operands = 0 : i64, tpu.core_type = #tpu.core_type<tc>, window_params = [{transform_indices = @transform_0, window_bounds = array<i64: 56, 128>}, {pipeline_mode = #tpu.pipeline_mode<synchronous>, transform_indices = @transform_1, window_bounds = array<i64: 128, 128>}, {pipeline_mode = #tpu.pipeline_mode<synchronous>, transform_indices = @transform_2, window_bounds = array<i64: 1, 128>}, {transform_indices = @transform_3, window_bounds = array<i64: 56, 128>}]} {
    %c0 = arith.constant 0 : index
    %c0_0 = arith.constant 0 : index
    %0 = vector.load %arg1[%c0, %c0_0] : memref<56x128xbf16, #tpu.memory_space<vmem>>, vector<56x128xbf16>
    %c0_1 = arith.constant 0 : index
    %c0_2 = arith.constant 0 : index
    %1 = vector.load %arg2[%c0_1, %c0_2] : memref<128x128xbf16, #tpu.memory_space<vmem>>, vector<128x128xbf16>
    %cst = arith.constant dense<0.000000e+00> : vector<56x128xf32>
    %2 = tpu.matmul %0, %1, %cst {dimension_numbers = #tpu.dot_dimension_numbers<[1], [0], [0], [1], [0, 0, 1, 1], [], []>} : vector<56x128xbf16>, vector<128x128xbf16>, vector<56x128xf32> -> vector<56x128xf32>
    %c0_3 = arith.constant 0 : index
    %c0_4 = arith.constant 0 : index
    %3 = vector.load %arg3[%c0_3, %c0_4] : memref<1x128xf32, #tpu.memory_space<vmem>>, vector<1x128xf32>
    %4 = vector.broadcast %3 : vector<1x128xf32> to vector<56x128xf32>
    %5 = arith.addf %2, %4 : vector<56x128xf32>
    %cst_5 = arith.constant 0.000000e+00 : f32
    %6 = vector.broadcast %cst_5 : f32 to vector<56x128xf32>
    %7 = arith.maximumf %5, %6 : vector<56x128xf32>
    %c0_6 = arith.constant 0 : index
    %c0_7 = arith.constant 0 : index
    %8 = vector.load %arg4[%c0_6, %c0_7] : memref<56x128xf32, #tpu.memory_space<vmem>>, vector<56x128xf32>
    tpu.vector_store %arg4[%c0_6, %c0_7], %7 {strides = array<i32>} : memref<56x128xf32, #tpu.memory_space<vmem>>, vector<56x128xf32>,
    return
  }
  func.func @transform_0(%arg0: i32) -> (i32, i32) {
    %c0_i32 = arith.constant 0 : i32
    %c0_i32_0 = arith.constant 0 : i32
    return %arg0, %c0_i32 : i32, i32
  }
  func.func @transform_1(%arg0: i32) -> (i32, i32) {
    %c0_i32 = arith.constant 0 : i32
    %c0_i32_0 = arith.constant 0 : i32
    %c0_i32_1 = arith.constant 0 : i32
    return %c0_i32, %c0_i32_0 : i32, i32
  }
  func.func @transform_2(%arg0: i32) -> (i32, i32) {
    %c0_i32 = arith.constant 0 : i32
    %c0_i32_0 = arith.constant 0 : i32
    %c0_i32_1 = arith.constant 0 : i32
    return %c0_i32, %c0_i32_0 : i32, i32
  }
  func.func @transform_3(%arg0: i32) -> (i32, i32) {
    %c0_i32 = arith.constant 0 : i32
    %c0_i32_0 = arith.constant 0 : i32
    return %arg0, %c0_i32 : i32, i32
  }
}

module attributes {stable_mosaic.version = 11 : i64} {
  func.func @_gemm_bias_act_kernel(%arg0: i32, %arg1: memref<248x128xbf16, #tpu.memory_space<vmem>>, %arg2: memref<128x128xbf16, #tpu.memory_space<vmem>>, %arg3: memref<1x128xf32, #tpu.memory_space<vmem>>, %arg4: memref<248x128xf32, #tpu.memory_space<vmem>>) attributes {dimension_semantics = [#tpu.dimension_semantics<parallel>], iteration_bounds = array<i64: 1>, scalar_prefetch = 0 : i64, scratch_operands = 0 : i64, tpu.core_type = #tpu.core_type<tc>, window_params = [{transform_indices = @transform_0, window_bounds = array<i64: 248, 128>}, {pipeline_mode = #tpu.pipeline_mode<synchronous>, transform_indices = @transform_1, window_bounds = array<i64: 128, 128>}, {pipeline_mode = #tpu.pipeline_mode<synchronous>, transform_indices = @transform_2, window_bounds = array<i64: 1, 128>}, {transform_indices = @transform_3, window_bounds = array<i64: 248, 128>}]} {
    %c0 = arith.constant 0 : index
    %c0_0 = arith.constant 0 : index
    %0 = vector.load %arg1[%c0, %c0_0] : memref<248x128xbf16, #tpu.memory_space<vmem>>, vector<248x128xbf16>
    %c0_1 = arith.constant 0 : index
    %c0_2 = arith.constant 0 : index
    %1 = vector.load %arg2[%c0_1, %c0_2] : memref<128x128xbf16, #tpu.memory_space<vmem>>, vector<128x128xbf16>
    %cst = arith.constant dense<0.000000e+00> : vector<248x128xf32>
    %2 = tpu.matmul %0, %1, %cst {dimension_numbers = #tpu.dot_dimension_numbers<[1], [0], [0], [1], [0, 0, 1, 1], [], []>} : vector<248x128xbf16>, vector<128x128xbf16>, vector<248x128xf32> -> vector<248x128xf32>
    %c0_3 = arith.constant 0 : index
    %c0_4 = arith.constant 0 : index
    %3 = vector.load %arg3[%c0_3, %c0_4] : memref<1x128xf32, #tpu.memory_space<vmem>>, vector<1x128xf32>
    %4 = vector.broadcast %3 : vector<1x128xf32> to vector<248x128xf32>
    %5 = arith.addf %2, %4 : vector<248x128xf32>
    %cst_5 = arith.constant 0.000000e+00 : f32
    %6 = vector.broadcast %cst_5 : f32 to vector<248x128xf32>
    %7 = arith.maximumf %5, %6 : vector<248x128xf32>
    %c0_6 = arith.constant 0 : index
    %c0_7 = arith.constant 0 : index
    %8 = vector.load %arg4[%c0_6, %c0_7] : memref<248x128xf32, #tpu.memory_space<vmem>>, vector<248x128xf32>
    tpu.vector_store %arg4[%c0_6, %c0_7], %7 {strides = array<i32>} : memref<248x128xf32, #tpu.memory_space<vmem>>, vector<248x128xf32>,
    return
  }
  func.func @transform_0(%arg0: i32) -> (i32, i32) {
    %c0_i32 = arith.constant 0 : i32
    %c0_i32_0 = arith.constant 0 : i32
    return %arg0, %c0_i32 : i32, i32
  }
  func.func @transform_1(%arg0: i32) -> (i32, i32) {
    %c0_i32 = arith.constant 0 : i32
    %c0_i32_0 = arith.constant 0 : i32
    %c0_i32_1 = arith.constant 0 : i32
    return %c0_i32, %c0_i32_0 : i32, i32
  }
  func.func @transform_2(%arg0: i32) -> (i32, i32) {
    %c0_i32 = arith.constant 0 : i32
    %c0_i32_0 = arith.constant 0 : i32
    %c0_i32_1 = arith.constant 0 : i32
    return %c0_i32, %c0_i32_0 : i32, i32
  }
  func.func @transform_3(%arg0: i32) -> (i32, i32) {
    %c0_i32 = arith.constant 0 : i32
    %c0_i32_0 = arith.constant 0 : i32
    return %arg0, %c0_i32 : i32, i32
  }
}

module attributes {stable_mosaic.version = 11 : i64} {
  func.func @_gemm_bias_act_kernel(%arg0: i32, %arg1: memref<256x512xbf16, #tpu.memory_space<vmem>>, %arg2: memref<512x128xbf16, #tpu.memory_space<vmem>>, %arg3: memref<1x128xf32, #tpu.memory_space<vmem>>, %arg4: memref<256x128xf32, #tpu.memory_space<vmem>>) attributes {dimension_semantics = [#tpu.dimension_semantics<parallel>], iteration_bounds = array<i64: 5>, scalar_prefetch = 0 : i64, scratch_operands = 0 : i64, tpu.core_type = #tpu.core_type<tc>, window_params = [{transform_indices = @transform_0, window_bounds = array<i64: 256, 512>}, {pipeline_mode = #tpu.pipeline_mode<synchronous>, transform_indices = @transform_1, window_bounds = array<i64: 512, 128>}, {pipeline_mode = #tpu.pipeline_mode<synchronous>, transform_indices = @transform_2, window_bounds = array<i64: 1, 128>}, {transform_indices = @transform_3, window_bounds = array<i64: 256, 128>}]} {
    %c0 = arith.constant 0 : index
    %c0_0 = arith.constant 0 : index
    %0 = vector.load %arg1[%c0, %c0_0] : memref<256x512xbf16, #tpu.memory_space<vmem>>, vector<256x512xbf16>
    %c0_1 = arith.constant 0 : index
    %c0_2 = arith.constant 0 : index
    %1 = vector.load %arg2[%c0_1, %c0_2] : memref<512x128xbf16, #tpu.memory_space<vmem>>, vector<512x128xbf16>
    %cst = arith.constant dense<0.000000e+00> : vector<256x128xf32>
    %2 = tpu.matmul %0, %1, %cst {dimension_numbers = #tpu.dot_dimension_numbers<[1], [0], [0], [1], [0, 0, 1, 1], [], []>} : vector<256x512xbf16>, vector<512x128xbf16>, vector<256x128xf32> -> vector<256x128xf32>
    %c0_3 = arith.constant 0 : index
    %c0_4 = arith.constant 0 : index
    %3 = vector.load %arg3[%c0_3, %c0_4] : memref<1x128xf32, #tpu.memory_space<vmem>>, vector<1x128xf32>
    %4 = vector.broadcast %3 : vector<1x128xf32> to vector<256x128xf32>
    %5 = arith.addf %2, %4 : vector<256x128xf32>
    %cst_5 = arith.constant 0.000000e+00 : f32
    %6 = vector.broadcast %cst_5 : f32 to vector<256x128xf32>
    %7 = arith.maximumf %5, %6 : vector<256x128xf32>
    %c0_6 = arith.constant 0 : index
    %c0_7 = arith.constant 0 : index
    %8 = vector.load %arg4[%c0_6, %c0_7] : memref<256x128xf32, #tpu.memory_space<vmem>>, vector<256x128xf32>
    tpu.vector_store %arg4[%c0_6, %c0_7], %7 {strides = array<i32>} : memref<256x128xf32, #tpu.memory_space<vmem>>, vector<256x128xf32>,
    return
  }
  func.func @transform_0(%arg0: i32) -> (i32, i32) {
    %c0_i32 = arith.constant 0 : i32
    %c0_i32_0 = arith.constant 0 : i32
    return %arg0, %c0_i32 : i32, i32
  }
  func.func @transform_1(%arg0: i32) -> (i32, i32) {
    %c0_i32 = arith.constant 0 : i32
    %c0_i32_0 = arith.constant 0 : i32
    %c0_i32_1 = arith.constant 0 : i32
    return %c0_i32, %c0_i32_0 : i32, i32
  }
  func.func @transform_2(%arg0: i32) -> (i32, i32) {
    %c0_i32 = arith.constant 0 : i32
    %c0_i32_0 = arith.constant 0 : i32
    %c0_i32_1 = arith.constant 0 : i32
    return %c0_i32, %c0_i32_0 : i32, i32
  }
  func.func @transform_3(%arg0: i32) -> (i32, i32) {
    %c0_i32 = arith.constant 0 : i32
    %c0_i32_0 = arith.constant 0 : i32
    return %arg0, %c0_i32 : i32, i32
  }
}

module attributes {stable_mosaic.version = 11 : i64} {
  func.func @_gemm_bias_act_kernel(%arg0: i32, %arg1: memref<256x512xbf16, #tpu.memory_space<vmem>>, %arg2: memref<512x128xbf16, #tpu.memory_space<vmem>>, %arg3: memref<1x128xf32, #tpu.memory_space<vmem>>, %arg4: memref<256x128xf32, #tpu.memory_space<vmem>>) attributes {dimension_semantics = [#tpu.dimension_semantics<parallel>], iteration_bounds = array<i64: 7>, scalar_prefetch = 0 : i64, scratch_operands = 0 : i64, tpu.core_type = #tpu.core_type<tc>, window_params = [{transform_indices = @transform_0, window_bounds = array<i64: 256, 512>}, {pipeline_mode = #tpu.pipeline_mode<synchronous>, transform_indices = @transform_1, window_bounds = array<i64: 512, 128>}, {pipeline_mode = #tpu.pipeline_mode<synchronous>, transform_indices = @transform_2, window_bounds = array<i64: 1, 128>}, {transform_indices = @transform_3, window_bounds = array<i64: 256, 128>}]} {
    %c0 = arith.constant 0 : index
    %c0_0 = arith.constant 0 : index
    %0 = vector.load %arg1[%c0, %c0_0] : memref<256x512xbf16, #tpu.memory_space<vmem>>, vector<256x512xbf16>
    %c0_1 = arith.constant 0 : index
    %c0_2 = arith.constant 0 : index
    %1 = vector.load %arg2[%c0_1, %c0_2] : memref<512x128xbf16, #tpu.memory_space<vmem>>, vector<512x128xbf16>
    %cst = arith.constant dense<0.000000e+00> : vector<256x128xf32>
    %2 = tpu.matmul %0, %1, %cst {dimension_numbers = #tpu.dot_dimension_numbers<[1], [0], [0], [1], [0, 0, 1, 1], [], []>} : vector<256x512xbf16>, vector<512x128xbf16>, vector<256x128xf32> -> vector<256x128xf32>
    %c0_3 = arith.constant 0 : index
    %c0_4 = arith.constant 0 : index
    %3 = vector.load %arg3[%c0_3, %c0_4] : memref<1x128xf32, #tpu.memory_space<vmem>>, vector<1x128xf32>
    %4 = vector.broadcast %3 : vector<1x128xf32> to vector<256x128xf32>
    %5 = arith.addf %2, %4 : vector<256x128xf32>
    %6 = arith.negf %5 : vector<256x128xf32>
    %7 = math.exp %6 : vector<256x128xf32>
    %cst_5 = arith.constant 1.000000e+00 : f32
    %8 = vector.broadcast %cst_5 : f32 to vector<256x128xf32>
    %9 = arith.addf %8, %7 : vector<256x128xf32>
    %10 = arith.divf %8, %9 : vector<256x128xf32>
    %c0_6 = arith.constant 0 : index
    %c0_7 = arith.constant 0 : index
    %11 = vector.load %arg4[%c0_6, %c0_7] : memref<256x128xf32, #tpu.memory_space<vmem>>, vector<256x128xf32>
    tpu.vector_store %arg4[%c0_6, %c0_7], %10 {strides = array<i32>} : memref<256x128xf32, #tpu.memory_space<vmem>>, vector<256x128xf32>,
    return
  }
  func.func @transform_0(%arg0: i32) -> (i32, i32) {
    %c0_i32 = arith.constant 0 : i32
    %c0_i32_0 = arith.constant 0 : i32
    return %arg0, %c0_i32 : i32, i32
  }
  func.func @transform_1(%arg0: i32) -> (i32, i32) {
    %c0_i32 = arith.constant 0 : i32
    %c0_i32_0 = arith.constant 0 : i32
    %c0_i32_1 = arith.constant 0 : i32
    return %c0_i32, %c0_i32_0 : i32, i32
  }
  func.func @transform_2(%arg0: i32) -> (i32, i32) {
    %c0_i32 = arith.constant 0 : i32
    %c0_i32_0 = arith.constant 0 : i32
    %c0_i32_1 = arith.constant 0 : i32
    return %c0_i32, %c0_i32_0 : i32, i32
  }
  func.func @transform_3(%arg0: i32) -> (i32, i32) {
    %c0_i32 = arith.constant 0 : i32
    %c0_i32_0 = arith.constant 0 : i32
    return %arg0, %c0_i32 : i32, i32
  }
}

</mosaic_0001>

<llo_original>
// kernel: autoencoder_forward.9
$region0: #{autoencoder_forward.9}
  #allocation0 [shape = 'u32[]', space=smem, size = 0x4, offset = 0x4, fixed_abs, tag = 'smem constant byte address 0x4 - core index']
  #allocation1 [shape = 'u32[72,128]{1,0:T(1,128)}', space=vmem, size = 0x9000, scoped, tag = 'internal scratch']
  %s0 = inlined_call_operand.vmem [shape: bf16[1280,128], index: 0, kind: input, shape index: {}]
  %s1 = inlined_call_operand.vmem [shape: bf16[128,128], index: 1, kind: input, shape index: {}]
  %s2 = inlined_call_operand.vmem [shape: f32[1,128], index: 2, kind: input, shape index: {}]
  %s3 = inlined_call_operand.vmem [shape: f32[1280,128], index: 3, kind: output, shape index: {}]
  %s4 = sld [smem:[#allocation0]]
  $region45: #{autoencoder_forward.9} parent=0
    _
  %s6 = ssub.s32 1, %s4
  %s7 = scalar_select 0, %s6, %s4
  loop: start=0, step=1, limit=7
  $region2: #{autoencoder_forward.9} parent=0 // loop_pre_header
    _
  $region3: #{autoencoder_forward.9} parent=0 // loop_header
    %s9 = sphi 0, %s13
    %p10 = scmp.ge.s32.totalorder %s9, 7
    %s19 = sphi 0, %s21
    %s22 = sphi 0, %s19
    %s23 = sphi 0, %s22
    %s39 = sphi 0, %s23
    %s43 = sphi 0, %s43
    %s45 = sphi 0, %s43
    %s46 = sphi 0, %s45
    %s60 = sphi 0, %s46
    %s64 = sphi 0, %s64
    %s66 = sphi 0, %s64
    %s67 = sphi 0, %s66
    %s81 = sphi 0, %s67
    %s87 = sphi 0, %s89
    %s90 = sphi 0, %s87
    %s91 = sphi 0, %s90
    %s107 = sphi 0, %s91
  $region4: #{autoencoder_forward.9} parent=0 // loop_header_branch
    %12 = sbr.rel (%p10) target = $region8
  $region5: #{autoencoder_forward.9} parent=0 // loop_body
    %s14 = ssub.s32 %s9, 1
    %s15 = ssub.s32 %s9, 2
    %s16 = sadd.s32 %s9, 1
    %s17 = ssub.s32 %s9, %s16
    %p18 = scmp.eq.s32.totalorder %s17, 0
    %s20 = sadd.s32 %s19, 1
    %s21 = scalar_select %p18, %s19, %s20
    %p24 = pneg %p18
    %p25 = scmp.eq.s32.totalorder %s9, 4
    %p26 = por %p24, %p25
    %p27 = scmp.ne.s32.totalorder %s19, %s22
    %p28 = scmp.eq.s32.totalorder %s9, 0
    %p29 = por %p27, %p28
    %p30 = scmp.ne.s32.totalorder %s19, %s22
    %p31 = scmp.eq.s32.totalorder %s14, 4
    %p32 = por %p30, %p31
    %p33 = scmp.ne.s32.totalorder %s22, %s23
    %p34 = scmp.eq.s32.totalorder %s14, 0
    %p35 = por %p33, %p34
    %p36 = scmp.ne.s32.totalorder %s22, %s23
    %p37 = scmp.eq.s32.totalorder %s15, 4
    %p38 = por %p36, %p37
    %p40 = scmp.ne.s32.totalorder %s23, %s39
    %p41 = scmp.eq.s32.totalorder %s15, 0
    %p42 = por %p40, %p41
    %s44 = sadd.s32 %s43, 1
    %p47 = scmp.eq.s32.totalorder %s9, 4
    %p48 = scmp.ne.s32.totalorder %s43, %s45
    %p49 = scmp.eq.s32.totalorder %s9, 0
    %p50 = por %p48, %p49
    %p51 = scmp.ne.s32.totalorder %s43, %s45
    %p52 = scmp.eq.s32.totalorder %s14, 4
    %p53 = por %p51, %p52
    %p54 = scmp.ne.s32.totalorder %s45, %s46
    %p55 = scmp.eq.s32.totalorder %s14, 0
    %p56 = por %p54, %p55
    %p57 = scmp.ne.s32.totalorder %s45, %s46
    %p58 = scmp.eq.s32.totalorder %s15, 4
    %p59 = por %p57, %p58
    %p61 = scmp.ne.s32.totalorder %s46, %s60
    %p62 = scmp.eq.s32.totalorder %s15, 0
    %p63 = por %p61, %p62
    %s65 = sadd.s32 %s64, 1
    %p68 = scmp.eq.s32.totalorder %s9, 4
    %p69 = scmp.ne.s32.totalorder %s64, %s66
    %p70 = scmp.eq.s32.totalorder %s9, 0
    %p71 = por %p69, %p70
    %p72 = scmp.ne.s32.totalorder %s64, %s66
    %p73 = scmp.eq.s32.totalorder %s14, 4
    %p74 = por %p72, %p73
    %p75 = scmp.ne.s32.totalorder %s66, %s67
    %p76 = scmp.eq.s32.totalorder %s14, 0
    %p77 = por %p75, %p76
    %p78 = scmp.ne.s32.totalorder %s66, %s67
    %p79 = scmp.eq.s32.totalorder %s15, 4
    %p80 = por %p78, %p79
    %p82 = scmp.ne.s32.totalorder %s67, %s81
    %p83 = scmp.eq.s32.totalorder %s15, 0
    %p84 = por %p82, %p83
    %s85 = ssub.s32 %s9, %s16
    %p86 = scmp.eq.s32.totalorder %s85, 0
    %s88 = sadd.s32 %s87, 1
    %s89 = scalar_select %p86, %s87, %s88
    %p92 = pneg %p86
    %p93 = scmp.eq.s32.totalorder %s9, 4
    %p94 = por %p92, %p93
    %p95 = scmp.ne.s32.totalorder %s87, %s90
    %p96 = scmp.eq.s32.totalorder %s9, 0
    %p97 = por %p95, %p96
    %p98 = scmp.ne.s32.totalorder %s87, %s90
    %p99 = scmp.eq.s32.totalorder %s14, 4
    %p100 = por %p98, %p99
    %p101 = scmp.ne.s32.totalorder %s90, %s91
    %p102 = scmp.eq.s32.totalorder %s14, 0
    %p103 = por %p101, %p102
    %p104 = scmp.ne.s32.totalorder %s90, %s91
    %p105 = scmp.eq.s32.totalorder %s15, 4
    %p106 = por %p104, %p105
    %p108 = scmp.ne.s32.totalorder %s91, %s107
    %p109 = scmp.eq.s32.totalorder %s15, 0
    %p110 = por %p108, %p109
    %p111 = scmp.le.s32.totalorder 1, %s9
    %p112 = scmp.lt.s32.totalorder %s9, 6
    %p113 = pnand %p111, %p112
    %p114 = pneg %p113
    // Predicated region
    $region9: #{autoencoder_forward.9} parent=5 // pred_check
      _
    $region10: #{autoencoder_forward.9} parent=5 // pred_check_branch
      %116 = sbr.rel (%p113) target = $region12
    $region11: #{autoencoder_forward.9} parent=5 // pred_region
      %s117 = ssub.s32 %s9, 1
      // Predicated region
      $region13: #{autoencoder_forward.9} parent=11 // pred_check
        %p118 = pneg %p56
      $region14: #{autoencoder_forward.9} parent=11 // pred_check_branch
        %120 = sbr.rel (%p118) target = $region16
      $region15: #{autoencoder_forward.9} parent=11 // pred_region
        _
      $region16: #{autoencoder_forward.9} parent=11 // pred_fallthru
        _
      // Predicated region
      $region17: #{autoencoder_forward.9} parent=11 // pred_check
        %p121 = pneg %p77
      $region18: #{autoencoder_forward.9} parent=11 // pred_check_branch
        %123 = sbr.rel (%p121) target = $region20
      $region19: #{autoencoder_forward.9} parent=11 // pred_region
        _
      $region20: #{autoencoder_forward.9} parent=11 // pred_fallthru
        _
    $region12: #{autoencoder_forward.9} parent=5 // pred_fallthru
      _
    %p124 = scmp.lt.s32.totalorder %s9, 5
    // Predicated region
    $region21: #{autoencoder_forward.9} parent=5 // pred_check
      %p125 = pneg %p124
    $region22: #{autoencoder_forward.9} parent=5 // pred_check_branch
      %127 = sbr.rel (%p125) target = $region24
    $region23: #{autoencoder_forward.9} parent=5 // pred_region
      // Predicated region
      $region25: #{autoencoder_forward.9} parent=23 // pred_check
        %p128 = pneg %p29
      $region26: #{autoencoder_forward.9} parent=23 // pred_check_branch
        %130 = sbr.rel (%p128) target = $region28
      $region27: #{autoencoder_forward.9} parent=23 // pred_region
        %s131 = smul.u32 32, %s9
        %p132 = scmp.lt.s32.totalorder %s131, 159
        %s133 = scalar_select %p132, %s131, 159
        %s134 = smul.addr %s133, 4
        %s135 = scalar_lea.vmem %s0, %s134
        %s136 = smul.u32 32, %s9
      $region28: #{autoencoder_forward.9} parent=23 // pred_fallthru
        _
    $region24: #{autoencoder_forward.9} parent=5 // pred_fallthru
      _
    %p137 = scmp.le.s32.totalorder 1, %s9
    %p138 = scmp.lt.s32.totalorder %s9, 6
    %p139 = pnand %p137, %p138
    %p140 = pneg %p139
    // Predicated region
    $region29: #{autoencoder_forward.9} parent=5 // pred_check
      _
    $region30: #{autoencoder_forward.9} parent=5 // pred_check_branch
      %142 = sbr.rel (%p139) target = $region32
    $region31: #{autoencoder_forward.9} parent=5 // pred_region
      %s143 = ssub.s32 %s9, 1
      %s144 = smul.u32 32, %s14
      %p145 = scmp.lt.s32.totalorder %s144, 159
      %s146 = scalar_select %p145, %s144, 159
      %s147 = smul.addr %s146, 4
      %s148 = scalar_lea.vmem %s0, %s147
      %p149 = pneg %p35
      %p150 = pneg %p32
      %p151 = pneg %p56
      %p152 = pneg %p53
      %p153 = pneg %p77
      %p154 = pneg %p74
      %p155 = pneg %p103
      %p156 = pneg %p100
      %s157 = smul.u32 32, %s14
      %p158 = scmp.lt.s32.totalorder %s157, 159
      %s159 = scalar_select %p158, %s157, 159
      %s160 = smul.addr %s159, 8
      %s161 = scalar_lea.vmem %s3, %s160
      %s162 = smul.u32 32, %s14
      %p163 = scmp.lt.s32.totalorder %s162, 159
      %s164 = scalar_select %p163, %s162, 159
      %s165 = smul.addr %s164, 4
      %s166 = scalar_lea.vmem %s0, %s165
      %s167 = smul.u32 32, %s14
      %s168 = smul.u32 32, %s14
      %p169 = scmp.lt.s32.totalorder %s168, 159
      %s170 = scalar_select %p169, %s168, 159
      %s171 = smul.addr %s170, 8
      %s172 = scalar_lea.vmem %s3, %s171
      %s173 = smul.u32 32, %s14
      %v174 = vld [vmem:[%s166] sm:$0xf]
      %v175 = vld [vmem:[%s166 + $0x4] sm:$0xf]
      %v176 = vld [vmem:[%s166 + $0x8] sm:$0xf]
      %v177 = vld [vmem:[%s166 + $0xc] sm:$0xf]
      %v178 = vld [vmem:[%s166 + $0x10] sm:$0xf]
      %v179 = vld [vmem:[%s166 + $0x14] sm:$0xf]
      %v180 = vld [vmem:[%s166 + $0x18] sm:$0xf]
      %v181 = vld [vmem:[%s166 + $0x1c] sm:$0xf]
      %v182 = vld [vmem:[%s166 + $0x20] sm:$0xf]
      %v183 = vld [vmem:[%s166 + $0x24] sm:$0xf]
      %v184 = vld [vmem:[%s166 + $0x28] sm:$0xf]
      %v185 = vld [vmem:[%s166 + $0x2c] sm:$0xf]
      %v186 = vld [vmem:[%s166 + $0x30] sm:$0xf]
      %v187 = vld [vmem:[%s166 + $0x34] sm:$0xf]
      %v188 = vld [vmem:[%s166 + $0x38] sm:$0xf]
      %v189 = vld [vmem:[%s166 + $0x3c] sm:$0xf]
      %v190 = vld [vmem:[%s166 + $0x40] sm:$0xf]
      %v191 = vld [vmem:[%s166 + $0x44] sm:$0xf]
      %v192 = vld [vmem:[%s166 + $0x48] sm:$0xf]
      %v193 = vld [vmem:[%s166 + $0x4c] sm:$0xf]
      %v194 = vld [vmem:[%s166 + $0x50] sm:$0xf]
      %v195 = vld [vmem:[%s166 + $0x54] sm:$0xf]
      %v196 = vld [vmem:[%s166 + $0x58] sm:$0xf]
      %v197 = vld [vmem:[%s166 + $0x5c] sm:$0xf]
      %v198 = vld [vmem:[%s166 + $0x60] sm:$0xf]
      %v199 = vld [vmem:[%s166 + $0x64] sm:$0xf]
      %v200 = vld [vmem:[%s166 + $0x68] sm:$0xf]
      %v201 = vld [vmem:[%s166 + $0x6c] sm:$0xf]
      %v202 = vld [vmem:[%s166 + $0x70] sm:$0xf]
      %v203 = vld [vmem:[%s166 + $0x74] sm:$0xf]
      %v204 = vld [vmem:[%s166 + $0x78] sm:$0xf]
      %v205 = vld [vmem:[%s166 + $0x7c] sm:$0xf]
      %v206 = vld [vmem:[%s1] sm:$0xf]
      %v207 = vld [vmem:[%s1 + $0x4] sm:$0xf]
      %v208 = vld [vmem:[%s1 + $0x8] sm:$0xf]
      %v209 = vld [vmem:[%s1 + $0xc] sm:$0xf]
      %v210 = vld [vmem:[%s1 + $0x10] sm:$0xf]
      %v211 = vld [vmem:[%s1 + $0x14] sm:$0xf]
      %v212 = vld [vmem:[%s1 + $0x18] sm:$0xf]
      %v213 = vld [vmem:[%s1 + $0x1c] sm:$0xf]
      %v214 = vld [vmem:[%s1 + $0x20] sm:$0xf]
      %v215 = vld [vmem:[%s1 + $0x24] sm:$0xf]
      %v216 = vld [vmem:[%s1 + $0x28] sm:$0xf]
      %v217 = vld [vmem:[%s1 + $0x2c] sm:$0xf]
      %v218 = vld [vmem:[%s1 + $0x30] sm:$0xf]
      %v219 = vld [vmem:[%s1 + $0x34] sm:$0xf]
      %v220 = vld [vmem:[%s1 + $0x38] sm:$0xf]
      %v221 = vld [vmem:[%s1 + $0x3c] sm:$0xf]
      %v222 = vld [vmem:[%s2] sm:$0x1]
      %v224 = vperm.slane %v222, 0
      %v258 = vunpack.c.l.b16 %v174
      %v259 = vunpack.c.l.b16 %v175
      %v260 = vunpack.c.l.b16 %v176
      %v261 = vunpack.c.l.b16 %v177
      %v262 = vunpack.c.l.b16 %v178
      %v263 = vunpack.c.l.b16 %v179
      %v264 = vunpack.c.l.b16 %v180
      %v265 = vunpack.c.l.b16 %v181
      %v266 = vunpack.c.l.b16 %v182
      %v267 = vunpack.c.l.b16 %v183
      %v268 = vunpack.c.l.b16 %v184
      %v269 = vunpack.c.l.b16 %v185
      %v270 = vunpack.c.l.b16 %v186
      %v271 = vunpack.c.l.b16 %v187
      %v272 = vunpack.c.l.b16 %v188
      %v273 = vunpack.c.l.b16 %v189
      %v274 = vunpack.c.l.b16 %v190
      %v275 = vunpack.c.l.b16 %v191
      %v276 = vunpack.c.l.b16 %v192
      %v277 = vunpack.c.l.b16 %v193
      %v278 = vunpack.c.l.b16 %v194
      %v279 = vunpack.c.l.b16 %v195
      %v280 = vunpack.c.l.b16 %v196
      %v281 = vunpack.c.l.b16 %v197
      %v282 = vunpack.c.l.b16 %v198
      %v283 = vunpack.c.l.b16 %v199
      %v284 = vunpack.c.l.b16 %v200
      %v285 = vunpack.c.l.b16 %v201
      %v286 = vunpack.c.l.b16 %v202
      %v287 = vunpack.c.l.b16 %v203
      %v288 = vunpack.c.l.b16 %v204
      %v289 = vunpack.c.l.b16 %v205
      %v290 = vpack.c.b16 %v259, %v258
      %v291 = vpack.c.b16 %v261, %v260
      %v292 = vpack.c.b16 %v263, %v262
      %v293 = vpack.c.b16 %v265, %v264
      %v294 = vpack.c.b16 %v267, %v266
      %v295 = vpack.c.b16 %v269, %v268
      %v296 = vpack.c.b16 %v271, %v270
      %v297 = vpack.c.b16 %v273, %v272
      %v298 = vpack.c.b16 %v275, %v274
      %v299 = vpack.c.b16 %v277, %v276
      %v300 = vpack.c.b16 %v279, %v278
      %v301 = vpack.c.b16 %v281, %v280
      %v302 = vpack.c.b16 %v283, %v282
      %v303 = vpack.c.b16 %v285, %v284
      %v304 = vpack.c.b16 %v287, %v286
      %v305 = vpack.c.b16 %v289, %v288
      %v338 = vunpack.c.l.b16 %v206
      %v339 = vunpack.c.l.b16 %v207
      %v340 = vunpack.c.l.b16 %v208
      %v341 = vunpack.c.l.b16 %v209
      %v342 = vunpack.c.l.b16 %v210
      %v343 = vunpack.c.l.b16 %v211
      %v344 = vunpack.c.l.b16 %v212
      %v345 = vunpack.c.l.b16 %v213
      %v346 = vunpack.c.l.b16 %v214
      %v347 = vunpack.c.l.b16 %v215
      %v348 = vunpack.c.l.b16 %v216
      %v349 = vunpack.c.l.b16 %v217
      %v350 = vunpack.c.l.b16 %v218
      %v351 = vunpack.c.l.b16 %v219
      %v352 = vunpack.c.l.b16 %v220
      %v353 = vunpack.c.l.b16 %v221
      %v354 = vpack.c.b16 %v339, %v338
      %v355 = vpack.c.b16 %v341, %v340
      %v356 = vpack.c.b16 %v343, %v342
      %v357 = vpack.c.b16 %v345, %v344
      %v358 = vpack.c.b16 %v347, %v346
      %v359 = vpack.c.b16 %v349, %v348
      %v360 = vpack.c.b16 %v351, %v350
      %v361 = vpack.c.b16 %v353, %v352
      %370 = vmatpush.bf16.msra.mxu0 %v361
      %371 = vmatpush.bf16.msra.mxu0 %v360
      %372 = vmatpush.bf16.msra.mxu0 %v359
      %373 = vmatpush.bf16.msra.mxu0 %v358
      %374 = vmatpush.bf16.msra.mxu0 %v357
      %375 = vmatpush.bf16.msra.mxu0 %v356
      %376 = vmatpush.bf16.msra.mxu0 %v355
      %377 = vmatpush.bf16.msra.mxu0 %v354
      %378 = vmatmul.bf16.gmra.mxu0 %v290
      %v379 = vpop.f32.mrf.mxu0
      %v380 = vadd.f32 %v224, %v379
      %v381 = vpop.f32.mrf.mxu0
      %v382 = vadd.f32 %v224, %v381
      %383 = vmatmul.bf16.gmra.mxu0 %v291
      %v384 = vpop.f32.mrf.mxu0
      %v385 = vadd.f32 %v224, %v384
      %v386 = vpop.f32.mrf.mxu0
      %v387 = vadd.f32 %v224, %v386
      %388 = vmatmul.bf16.gmra.mxu0 %v292
      %v389 = vpop.f32.mrf.mxu0
      %v390 = vadd.f32 %v224, %v389
      %v391 = vpop.f32.mrf.mxu0
      %v392 = vadd.f32 %v224, %v391
      %393 = vmatmul.bf16.gmra.mxu0 %v293
      %v394 = vpop.f32.mrf.mxu0
      %v395 = vadd.f32 %v224, %v394
      %v396 = vpop.f32.mrf.mxu0
      %v397 = vadd.f32 %v224, %v396
      %398 = vmatmul.bf16.gmra.mxu0 %v294
      %v399 = vpop.f32.mrf.mxu0
      %v400 = vadd.f32 %v224, %v399
      %v401 = vpop.f32.mrf.mxu0
      %v402 = vadd.f32 %v224, %v401
      %403 = vmatmul.bf16.gmra.mxu0 %v295
      %v404 = vpop.f32.mrf.mxu0
      %v405 = vadd.f32 %v224, %v404
      %v406 = vpop.f32.mrf.mxu0
      %v407 = vadd.f32 %v224, %v406
      %408 = vmatmul.bf16.gmra.mxu0 %v296
      %v409 = vpop.f32.mrf.mxu0
      %v410 = vadd.f32 %v224, %v409
      %v411 = vpop.f32.mrf.mxu0
      %v412 = vadd.f32 %v224, %v411
      %413 = vmatmul.bf16.gmra.mxu0 %v297
      %v414 = vpop.f32.mrf.mxu0
      %v415 = vadd.f32 %v224, %v414
      %v416 = vpop.f32.mrf.mxu0
      %v417 = vadd.f32 %v224, %v416
      %418 = vmatmul.bf16.gmra.mxu0 %v298
      %v419 = vpop.f32.mrf.mxu0
      %v420 = vadd.f32 %v224, %v419
      %v421 = vpop.f32.mrf.mxu0
      %v422 = vadd.f32 %v224, %v421
      %423 = vmatmul.bf16.gmra.mxu0 %v299
      %v424 = vpop.f32.mrf.mxu0
      %v425 = vadd.f32 %v224, %v424
      %v426 = vpop.f32.mrf.mxu0
      %v427 = vadd.f32 %v224, %v426
      %428 = vmatmul.bf16.gmra.mxu0 %v300
      %v429 = vpop.f32.mrf.mxu0
      %v430 = vadd.f32 %v224, %v429
      %v431 = vpop.f32.mrf.mxu0
      %v432 = vadd.f32 %v224, %v431
      %433 = vmatmul.bf16.gmra.mxu0 %v301
      %v434 = vpop.f32.mrf.mxu0
      %v435 = vadd.f32 %v224, %v434
      %v436 = vpop.f32.mrf.mxu0
      %v437 = vadd.f32 %v224, %v436
      %438 = vmatmul.bf16.gmra.mxu0 %v302
      %v439 = vpop.f32.mrf.mxu0
      %v440 = vadd.f32 %v224, %v439
      %v441 = vpop.f32.mrf.mxu0
      %v442 = vadd.f32 %v224, %v441
      %443 = vmatmul.bf16.gmra.mxu0 %v303
      %v444 = vpop.f32.mrf.mxu0
      %v445 = vadd.f32 %v224, %v444
      %v446 = vpop.f32.mrf.mxu0
      %v447 = vadd.f32 %v224, %v446
      %448 = vmatmul.bf16.gmra.mxu0 %v304
      %v449 = vpop.f32.mrf.mxu0
      %v450 = vadd.f32 %v224, %v449
      %v451 = vpop.f32.mrf.mxu0
      %v452 = vadd.f32 %v224, %v451
      %453 = vmatmul.bf16.gmra.mxu0 %v305
      %v454 = vpop.f32.mrf.mxu0
      %v455 = vadd.f32 %v224, %v454
      %v456 = vpop.f32.mrf.mxu0
      %v457 = vadd.f32 %v224, %v456
      %458 = vdwg.mxu0
      %v459 = vmax.f32 %v380, 0.0
      %v460 = vmax.f32 %v382, 0.0
      %v461 = vmax.f32 %v385, 0.0
      %v462 = vmax.f32 %v387, 0.0
      %v463 = vmax.f32 %v390, 0.0
      %v464 = vmax.f32 %v392, 0.0
      %v465 = vmax.f32 %v395, 0.0
      %v466 = vmax.f32 %v397, 0.0
      %v467 = vmax.f32 %v400, 0.0
      %v468 = vmax.f32 %v402, 0.0
      %v469 = vmax.f32 %v405, 0.0
      %v470 = vmax.f32 %v407, 0.0
      %v471 = vmax.f32 %v410, 0.0
      %v472 = vmax.f32 %v412, 0.0
      %v473 = vmax.f32 %v415, 0.0
      %v474 = vmax.f32 %v417, 0.0
      %v475 = vmax.f32 %v420, 0.0
      %v476 = vmax.f32 %v422, 0.0
      %v477 = vmax.f32 %v425, 0.0
      %v478 = vmax.f32 %v427, 0.0
      %v479 = vmax.f32 %v430, 0.0
      %v480 = vmax.f32 %v432, 0.0
      %v481 = vmax.f32 %v435, 0.0
      %v482 = vmax.f32 %v437, 0.0
      %v483 = vmax.f32 %v440, 0.0
      %v484 = vmax.f32 %v442, 0.0
      %v485 = vmax.f32 %v445, 0.0
      %v486 = vmax.f32 %v447, 0.0
      %v487 = vmax.f32 %v450, 0.0
      %v488 = vmax.f32 %v452, 0.0
      %v489 = vmax.f32 %v455, 0.0
      %v490 = vmax.f32 %v457, 0.0
      %491 = vst [vmem:[%s172] sm:$0xff] %v459
      %492 = vst [vmem:[%s172 + $0x8] sm:$0xff] %v460
      %493 = vst [vmem:[%s172 + $0x10] sm:$0xff] %v461
      %494 = vst [vmem:[%s172 + $0x18] sm:$0xff] %v462
      %495 = vst [vmem:[%s172 + $0x20] sm:$0xff] %v463
      %496 = vst [vmem:[%s172 + $0x28] sm:$0xff] %v464
      %497 = vst [vmem:[%s172 + $0x30] sm:$0xff] %v465
      %498 = vst [vmem:[%s172 + $0x38] sm:$0xff] %v466
      %499 = vst [vmem:[%s172 + $0x40] sm:$0xff] %v467
      %500 = vst [vmem:[%s172 + $0x48] sm:$0xff] %v468
      %501 = vst [vmem:[%s172 + $0x50] sm:$0xff] %v469
      %502 = vst [vmem:[%s172 + $0x58] sm:$0xff] %v470
      %503 = vst [vmem:[%s172 + $0x60] sm:$0xff] %v471
      %504 = vst [vmem:[%s172 + $0x68] sm:$0xff] %v472
      %505 = vst [vmem:[%s172 + $0x70] sm:$0xff] %v473
      %506 = vst [vmem:[%s172 + $0x78] sm:$0xff] %v474
      %507 = vst [vmem:[%s172 + $0x80] sm:$0xff] %v475
      %508 = vst [vmem:[%s172 + $0x88] sm:$0xff] %v476
      %509 = vst [vmem:[%s172 + $0x90] sm:$0xff] %v477
      %510 = vst [vmem:[%s172 + $0x98] sm:$0xff] %v478
      %511 = vst [vmem:[%s172 + $0xa0] sm:$0xff] %v479
      %512 = vst [vmem:[%s172 + $0xa8] sm:$0xff] %v480
      %513 = vst [vmem:[%s172 + $0xb0] sm:$0xff] %v481
      %514 = vst [vmem:[%s172 + $0xb8] sm:$0xff] %v482
      %515 = vst [vmem:[%s172 + $0xc0] sm:$0xff] %v483
      %516 = vst [vmem:[%s172 + $0xc8] sm:$0xff] %v484
      %517 = vst [vmem:[%s172 + $0xd0] sm:$0xff] %v485
      %518 = vst [vmem:[%s172 + $0xd8] sm:$0xff] %v486
      %519 = vst [vmem:[%s172 + $0xe0] sm:$0xff] %v487
      %520 = vst [vmem:[%s172 + $0xe8] sm:$0xff] %v488
      %521 = vst [vmem:[%s172 + $0xf0] sm:$0xff] %v489
      %522 = vst [vmem:[%s172 + $0xf8] sm:$0xff] %v490
      %s523 = smul.u32 32, %s14
      %p524 = scmp.lt.s32.totalorder %s523, 159
      %s525 = scalar_select %p524, %s523, 159
      %s526 = smul.addr %s525, 8
      %s527 = scalar_lea.vmem %s3, %s526
      // Predicated region
      $region33: #{autoencoder_forward.9} parent=31 // pred_check
        %p528 = pneg %p100
      $region34: #{autoencoder_forward.9} parent=31 // pred_check_branch
        %530 = sbr.rel (%p528) target = $region36
      $region35: #{autoencoder_forward.9} parent=31 // pred_region
        %s531 = smul.u32 32, %s14
      $region36: #{autoencoder_forward.9} parent=31 // pred_fallthru
        _
    $region32: #{autoencoder_forward.9} parent=5 // pred_fallthru
      _
    %p532 = scmp.le.s32.totalorder 2, %s9
    // Predicated region
    $region37: #{autoencoder_forward.9} parent=5 // pred_check
      %p533 = pneg %p532
    $region38: #{autoencoder_forward.9} parent=5 // pred_check_branch
      %535 = sbr.rel (%p533) target = $region40
    $region39: #{autoencoder_forward.9} parent=5 // pred_region
      %s536 = ssub.s32 %s9, 2
      // Predicated region
      $region41: #{autoencoder_forward.9} parent=39 // pred_check
        %p537 = pneg %p106
      $region42: #{autoencoder_forward.9} parent=39 // pred_check_branch
        %539 = sbr.rel (%p537) target = $region44
      $region43: #{autoencoder_forward.9} parent=39 // pred_region
        %s540 = smul.u32 32, %s15
        %p541 = scmp.lt.s32.totalorder %s540, 159
        %s542 = scalar_select %p541, %s540, 159
        %s543 = smul.addr %s542, 8
        %s544 = scalar_lea.vmem %s3, %s543
      $region44: #{autoencoder_forward.9} parent=39 // pred_fallthru
        _
    $region40: #{autoencoder_forward.9} parent=5 // pred_fallthru
      _
  $region6: #{autoencoder_forward.9} parent=0 // loop_footer
    %s13 = sadd.s32 1, %s9
  $region7: #{autoencoder_forward.9} parent=0 // loop_footer_branch
    %8 = sbr.rel target = $region3
  $region8: #{autoencoder_forward.9} parent=0 // loop_exit
    _

// kernel: autoencoder_forward.10
$region0: #{autoencoder_forward.10}
  #allocation0 [shape = 'u32[]', space=smem, size = 0x4, offset = 0x4, fixed_abs, tag = 'smem constant byte address 0x4 - core index']
  #allocation1 [shape = 'u32[72,128]{1,0:T(1,128)}', space=vmem, size = 0x9000, scoped, tag = 'internal scratch']
  %s0 = inlined_call_operand.vmem [shape: bf16[1024,512], index: 0, kind: input, shape index: {}]
  %s1 = inlined_call_operand.vmem [shape: bf16[512,128], index: 1, kind: input, shape index: {}]
  %s2 = inlined_call_operand.vmem [shape: f32[1,128], index: 2, kind: input, shape index: {}]
  %s3 = inlined_call_operand.vmem [shape: f32[1024,128], index: 3, kind: output, shape index: {}]
  %s4 = sld [smem:[#allocation0]]
  $region45: #{autoencoder_forward.10} parent=0
    _
  %s6 = ssub.s32 1, %s4
  %s7 = scalar_select 0, %s6, %s4
  loop: start=0, step=1, limit=6
  $region2: #{autoencoder_forward.10} parent=0 // loop_pre_header
    _
  $region3: #{autoencoder_forward.10} parent=0 // loop_header
    %s9 = sphi 0, %s13
    %p10 = scmp.ge.s32.totalorder %s9, 6
    %s19 = sphi 0, %s21
    %s22 = sphi 0, %s19
    %s23 = sphi 0, %s22
    %s39 = sphi 0, %s23
    %s43 = sphi 0, %s43
    %s45 = sphi 0, %s43
    %s46 = sphi 0, %s45
    %s60 = sphi 0, %s46
    %s64 = sphi 0, %s64
    %s66 = sphi 0, %s64
    %s67 = sphi 0, %s66
    %s81 = sphi 0, %s67
    %s87 = sphi 0, %s89
    %s90 = sphi 0, %s87
    %s91 = sphi 0, %s90
    %s107 = sphi 0, %s91
  $region4: #{autoencoder_forward.10} parent=0 // loop_header_branch
    %12 = sbr.rel (%p10) target = $region8
  $region5: #{autoencoder_forward.10} parent=0 // loop_body
    %s14 = ssub.s32 %s9, 1
    %s15 = ssub.s32 %s9, 2
    %s16 = sadd.s32 %s9, 1
    %s17 = ssub.s32 %s9, %s16
    %p18 = scmp.eq.s32.totalorder %s17, 0
    %s20 = sadd.s32 %s19, 1
    %s21 = scalar_select %p18, %s19, %s20
    %p24 = pneg %p18
    %p25 = scmp.eq.s32.totalorder %s9, 3
    %p26 = por %p24, %p25
    %p27 = scmp.ne.s32.totalorder %s19, %s22
    %p28 = scmp.eq.s32.totalorder %s9, 0
    %p29 = por %p27, %p28
    %p30 = scmp.ne.s32.totalorder %s19, %s22
    %p31 = scmp.eq.s32.totalorder %s14, 3
    %p32 = por %p30, %p31
    %p33 = scmp.ne.s32.totalorder %s22, %s23
    %p34 = scmp.eq.s32.totalorder %s14, 0
    %p35 = por %p33, %p34
    %p36 = scmp.ne.s32.totalorder %s22, %s23
    %p37 = scmp.eq.s32.totalorder %s15, 3
    %p38 = por %p36, %p37
    %p40 = scmp.ne.s32.totalorder %s23, %s39
    %p41 = scmp.eq.s32.totalorder %s15, 0
    %p42 = por %p40, %p41
    %s44 = sadd.s32 %s43, 1
    %p47 = scmp.eq.s32.totalorder %s9, 3
    %p48 = scmp.ne.s32.totalorder %s43, %s45
    %p49 = scmp.eq.s32.totalorder %s9, 0
    %p50 = por %p48, %p49
    %p51 = scmp.ne.s32.totalorder %s43, %s45
    %p52 = scmp.eq.s32.totalorder %s14, 3
    %p53 = por %p51, %p52
    %p54 = scmp.ne.s32.totalorder %s45, %s46
    %p55 = scmp.eq.s32.totalorder %s14, 0
    %p56 = por %p54, %p55
    %p57 = scmp.ne.s32.totalorder %s45, %s46
    %p58 = scmp.eq.s32.totalorder %s15, 3
    %p59 = por %p57, %p58
    %p61 = scmp.ne.s32.totalorder %s46, %s60
    %p62 = scmp.eq.s32.totalorder %s15, 0
    %p63 = por %p61, %p62
    %s65 = sadd.s32 %s64, 1
    %p68 = scmp.eq.s32.totalorder %s9, 3
    %p69 = scmp.ne.s32.totalorder %s64, %s66
    %p70 = scmp.eq.s32.totalorder %s9, 0
    %p71 = por %p69, %p70
    %p72 = scmp.ne.s32.totalorder %s64, %s66
    %p73 = scmp.eq.s32.totalorder %s14, 3
    %p74 = por %p72, %p73
    %p75 = scmp.ne.s32.totalorder %s66, %s67
    %p76 = scmp.eq.s32.totalorder %s14, 0
    %p77 = por %p75, %p76
    %p78 = scmp.ne.s32.totalorder %s66, %s67
    %p79 = scmp.eq.s32.totalorder %s15, 3
    %p80 = por %p78, %p79
    %p82 = scmp.ne.s32.totalorder %s67, %s81
    %p83 = scmp.eq.s32.totalorder %s15, 0
    %p84 = por %p82, %p83
    %s85 = ssub.s32 %s9, %s16
    %p86 = scmp.eq.s32.totalorder %s85, 0
    %s88 = sadd.s32 %s87, 1
    %s89 = scalar_select %p86, %s87, %s88
    %p92 = pneg %p86
    %p93 = scmp.eq.s32.totalorder %s9, 3
    %p94 = por %p92, %p93
    %p95 = scmp.ne.s32.totalorder %s87, %s90
    %p96 = scmp.eq.s32.totalorder %s9, 0
    %p97 = por %p95, %p96
    %p98 = scmp.ne.s32.totalorder %s87, %s90
    %p99 = scmp.eq.s32.totalorder %s14, 3
    %p100 = por %p98, %p99
    %p101 = scmp.ne.s32.totalorder %s90, %s91
    %p102 = scmp.eq.s32.totalorder %s14, 0
    %p103 = por %p101, %p102
    %p104 = scmp.ne.s32.totalorder %s90, %s91
    %p105 = scmp.eq.s32.totalorder %s15, 3
    %p106 = por %p104, %p105
    %p108 = scmp.ne.s32.totalorder %s91, %s107
    %p109 = scmp.eq.s32.totalorder %s15, 0
    %p110 = por %p108, %p109
    %p111 = scmp.le.s32.totalorder 1, %s9
    %p112 = scmp.lt.s32.totalorder %s9, 5
    %p113 = pnand %p111, %p112
    %p114 = pneg %p113
    // Predicated region
    $region9: #{autoencoder_forward.10} parent=5 // pred_check
      _
    $region10: #{autoencoder_forward.10} parent=5 // pred_check_branch
      %116 = sbr.rel (%p113) target = $region12
    $region11: #{autoencoder_forward.10} parent=5 // pred_region
      %s117 = ssub.s32 %s9, 1
      // Predicated region
      $region13: #{autoencoder_forward.10} parent=11 // pred_check
        %p118 = pneg %p56
      $region14: #{autoencoder_forward.10} parent=11 // pred_check_branch
        %120 = sbr.rel (%p118) target = $region16
      $region15: #{autoencoder_forward.10} parent=11 // pred_region
        _
      $region16: #{autoencoder_forward.10} parent=11 // pred_fallthru
        _
      // Predicated region
      $region17: #{autoencoder_forward.10} parent=11 // pred_check
        %p121 = pneg %p77
      $region18: #{autoencoder_forward.10} parent=11 // pred_check_branch
        %123 = sbr.rel (%p121) target = $region20
      $region19: #{autoencoder_forward.10} parent=11 // pred_region
        _
      $region20: #{autoencoder_forward.10} parent=11 // pred_fallthru
        _
    $region12: #{autoencoder_forward.10} parent=5 // pred_fallthru
      _
    %p124 = scmp.lt.s32.totalorder %s9, 4
    // Predicated region
    $region21: #{autoencoder_forward.10} parent=5 // pred_check
      %p125 = pneg %p124
    $region22: #{autoencoder_forward.10} parent=5 // pred_check_branch
      %127 = sbr.rel (%p125) target = $region24
    $region23: #{autoencoder_forward.10} parent=5 // pred_region
      // Predicated region
      $region25: #{autoencoder_forward.10} parent=23 // pred_check
        %p128 = pneg %p29
      $region26: #{autoencoder_forward.10} parent=23 // pred_check_branch
        %130 = sbr.rel (%p128) target = $region28
      $region27: #{autoencoder_forward.10} parent=23 // pred_region
        %s131 = smul.u32 32, %s9
        %p132 = scmp.lt.s32.totalorder %s131, 127
        %s133 = scalar_select %p132, %s131, 127
        %s134 = smul.addr %s133, 4
        %s135 = smul.addr %s134, 4
        %s136 = scalar_lea.vmem %s0, %s135
        %s137 = smul.u32 32, %s9
      $region28: #{autoencoder_forward.10} parent=23 // pred_fallthru
        _
    $region24: #{autoencoder_forward.10} parent=5 // pred_fallthru
      _
    %p138 = scmp.le.s32.totalorder 1, %s9
    %p139 = scmp.lt.s32.totalorder %s9, 5
    %p140 = pnand %p138, %p139
    %p141 = pneg %p140
    // Predicated region
    $region29: #{autoencoder_forward.10} parent=5 // pred_check
      _
    $region30: #{autoencoder_forward.10} parent=5 // pred_check_branch
      %143 = sbr.rel (%p140) target = $region32
    $region31: #{autoencoder_forward.10} parent=5 // pred_region
      %s144 = ssub.s32 %s9, 1
      %s145 = smul.u32 32, %s14
      %p146 = scmp.lt.s32.totalorder %s145, 127
      %s147 = scalar_select %p146, %s145, 127
      %s148 = smul.addr %s147, 4
      %s149 = smul.addr %s148, 4
      %s150 = scalar_lea.vmem %s0, %s149
      %p151 = pneg %p35
      %p152 = pneg %p32
      %p153 = pneg %p56
      %p154 = pneg %p53
      %p155 = pneg %p77
      %p156 = pneg %p74
      %p157 = pneg %p103
      %p158 = pneg %p100
      %s159 = smul.u32 32, %s14
      %p160 = scmp.lt.s32.totalorder %s159, 127
      %s161 = scalar_select %p160, %s159, 127
      %s162 = smul.addr %s161, 8
      %s163 = scalar_lea.vmem %s3, %s162
      %s164 = smul.u32 32, %s14
      %p165 = scmp.lt.s32.totalorder %s164, 127
      %s166 = scalar_select %p165, %s164, 127
      %s167 = smul.addr %s166, 4
      %s168 = smul.addr %s167, 4
      %s169 = scalar_lea.vmem %s0, %s168
      %s170 = smul.u32 32, %s14
      %s171 = smul.u32 32, %s14
      %p172 = scmp.lt.s32.totalorder %s171, 127
      %s173 = scalar_select %p172, %s171, 127
      %s174 = smul.addr %s173, 8
      %s175 = scalar_lea.vmem %s3, %s174
      %s176 = smul.u32 32, %s14
      %v177 = vld [vmem:[%s169] sm:$0xff]
      %v178 = vld [vmem:[%s169 + $0x8] sm:$0xff]
      %v179 = vld [vmem:[%s169 + $0x10] sm:$0xff]
      %v180 = vld [vmem:[%s169 + $0x18] sm:$0xff]
      %v181 = vld [vmem:[%s169 + $0x20] sm:$0xff]
      %v182 = vld [vmem:[%s169 + $0x28] sm:$0xff]
      %v183 = vld [vmem:[%s169 + $0x30] sm:$0xff]
      %v184 = vld [vmem:[%s169 + $0x38] sm:$0xff]
      %v185 = vld [vmem:[%s169 + $0x40] sm:$0xff]
      %v186 = vld [vmem:[%s169 + $0x48] sm:$0xff]
      %v187 = vld [vmem:[%s169 + $0x50] sm:$0xff]
      %v188 = vld [vmem:[%s169 + $0x58] sm:$0xff]
      %v189 = vld [vmem:[%s169 + $0x60] sm:$0xff]
      %v190 = vld [vmem:[%s169 + $0x68] sm:$0xff]
      %v191 = vld [vmem:[%s169 + $0x70] sm:$0xff]
      %v192 = vld [vmem:[%s169 + $0x78] sm:$0xff]
      %v193 = vld [vmem:[%s169 + $0x80] sm:$0xff]
      %v194 = vld [vmem:[%s169 + $0x88] sm:$0xff]
      %v195 = vld [vmem:[%s169 + $0x90] sm:$0xff]
      %v196 = vld [vmem:[%s169 + $0x98] sm:$0xff]
      %v197 = vld [vmem:[%s169 + $0xa0] sm:$0xff]
      %v198 = vld [vmem:[%s169 + $0xa8] sm:$0xff]
      %v199 = vld [vmem:[%s169 + $0xb0] sm:$0xff]
      %v200 = vld [vmem:[%s169 + $0xb8] sm:$0xff]
      %v201 = vld [vmem:[%s169 + $0xc0] sm:$0xff]
      %v202 = vld [vmem:[%s169 + $0xc8] sm:$0xff]
      %v203 = vld [vmem:[%s169 + $0xd0] sm:$0xff]
      %v204 = vld [vmem:[%s169 + $0xd8] sm:$0xff]
      %v205 = vld [vmem:[%s169 + $0xe0] sm:$0xff]
      %v206 = vld [vmem:[%s169 + $0xe8] sm:$0xff]
      %v207 = vld [vmem:[%s169 + $0xf0] sm:$0xff]
      %v208 = vld [vmem:[%s169 + $0xf8] sm:$0xff]
      %v209 = vld [vmem:[%s169 + $0x100] sm:$0xff]
      %v210 = vld [vmem:[%s169 + $0x108] sm:$0xff]
      %v211 = vld [vmem:[%s169 + $0x110] sm:$0xff]
      %v212 = vld [vmem:[%s169 + $0x118] sm:$0xff]
      %v213 = vld [vmem:[%s169 + $0x120] sm:$0xff]
      %v214 = vld [vmem:[%s169 + $0x128] sm:$0xff]
      %v215 = vld [vmem:[%s169 + $0x130] sm:$0xff]
      %v216 = vld [vmem:[%s169 + $0x138] sm:$0xff]
      %v217 = vld [vmem:[%s169 + $0x140] sm:$0xff]
      %v218 = vld [vmem:[%s169 + $0x148] sm:$0xff]
      %v219 = vld [vmem:[%s169 + $0x150] sm:$0xff]
      %v220 = vld [vmem:[%s169 + $0x158] sm:$0xff]
      %v221 = vld [vmem:[%s169 + $0x160] sm:$0xff]
      %v222 = vld [vmem:[%s169 + $0x168] sm:$0xff]
      %v223 = vld [vmem:[%s169 + $0x170] sm:$0xff]
      %v224 = vld [vmem:[%s169 + $0x178] sm:$0xff]
      %v225 = vld [vmem:[%s169 + $0x180] sm:$0xff]
      %v226 = vld [vmem:[%s169 + $0x188] sm:$0xff]
      %v227 = vld [vmem:[%s169 + $0x190] sm:$0xff]
      %v228 = vld [vmem:[%s169 + $0x198] sm:$0xff]
      %v229 = vld [vmem:[%s169 + $0x1a0] sm:$0xff]
      %v230 = vld [vmem:[%s169 + $0x1a8] sm:$0xff]
      %v231 = vld [vmem:[%s169 + $0x1b0] sm:$0xff]
      %v232 = vld [vmem:[%s169 + $0x1b8] sm:$0xff]
      %v233 = vld [vmem:[%s169 + $0x1c0] sm:$0xff]
      %v234 = vld [vmem:[%s169 + $0x1c8] sm:$0xff]
      %v235 = vld [vmem:[%s169 + $0x1d0] sm:$0xff]
      %v236 = vld [vmem:[%s169 + $0x1d8] sm:$0xff]
      %v237 = vld [vmem:[%s169 + $0x1e0] sm:$0xff]
      %v238 = vld [vmem:[%s169 + $0x1e8] sm:$0xff]
      %v239 = vld [vmem:[%s169 + $0x1f0] sm:$0xff]
      %v240 = vld [vmem:[%s169 + $0x1f8] sm:$0xff]
      %v241 = vld [vmem:[%s1] sm:$0xf]
      %v242 = vld [vmem:[%s1 + $0x4] sm:$0xf]
      %v243 = vld [vmem:[%s1 + $0x8] sm:$0xf]
      %v244 = vld [vmem:[%s1 + $0xc] sm:$0xf]
      %v245 = vld [vmem:[%s1 + $0x10] sm:$0xf]
      %v246 = vld [vmem:[%s1 + $0x14] sm:$0xf]
      %v247 = vld [vmem:[%s1 + $0x18] sm:$0xf]
      %v248 = vld [vmem:[%s1 + $0x1c] sm:$0xf]
      %v249 = vld [vmem:[%s1 + $0x20] sm:$0xf]
      %v250 = vld [vmem:[%s1 + $0x24] sm:$0xf]
      %v251 = vld [vmem:[%s1 + $0x28] sm:$0xf]
      %v252 = vld [vmem:[%s1 + $0x2c] sm:$0xf]
      %v253 = vld [vmem:[%s1 + $0x30] sm:$0xf]
      %v254 = vld [vmem:[%s1 + $0x34] sm:$0xf]
      %v255 = vld [vmem:[%s1 + $0x38] sm:$0xf]
      %v256 = vld [vmem:[%s1 + $0x3c] sm:$0xf]
      %v257 = vld [vmem:[%s1 + $0x40] sm:$0xf]
      %v258 = vld [vmem:[%s1 + $0x44] sm:$0xf]
      %v259 = vld [vmem:[%s1 + $0x48] sm:$0xf]
      %v260 = vld [vmem:[%s1 + $0x4c] sm:$0xf]
      %v261 = vld [vmem:[%s1 + $0x50] sm:$0xf]
      %v262 = vld [vmem:[%s1 + $0x54] sm:$0xf]
      %v263 = vld [vmem:[%s1 + $0x58] sm:$0xf]
      %v264 = vld [vmem:[%s1 + $0x5c] sm:$0xf]
      %v265 = vld [vmem:[%s1 + $0x60] sm:$0xf]
      %v266 = vld [vmem:[%s1 + $0x64] sm:$0xf]
      %v267 = vld [vmem:[%s1 + $0x68] sm:$0xf]
      %v268 = vld [vmem:[%s1 + $0x6c] sm:$0xf]
      %v269 = vld [vmem:[%s1 + $0x70] sm:$0xf]
      %v270 = vld [vmem:[%s1 + $0x74] sm:$0xf]
      %v271 = vld [vmem:[%s1 + $0x78] sm:$0xf]
      %v272 = vld [vmem:[%s1 + $0x7c] sm:$0xf]
      %v273 = vld [vmem:[%s1 + $0x80] sm:$0xf]
      %v274 = vld [vmem:[%s1 + $0x84] sm:$0xf]
      %v275 = vld [vmem:[%s1 + $0x88] sm:$0xf]
      %v276 = vld [vmem:[%s1 + $0x8c] sm:$0xf]
      %v277 = vld [vmem:[%s1 + $0x90] sm:$0xf]
      %v278 = vld [vmem:[%s1 + $0x94] sm:$0xf]
      %v279 = vld [vmem:[%s1 + $0x98] sm:$0xf]
      %v280 = vld [vmem:[%s1 + $0x9c] sm:$0xf]
      %v281 = vld [vmem:[%s1 + $0xa0] sm:$0xf]
      %v282 = vld [vmem:[%s1 + $0xa4] sm:$0xf]
      %v283 = vld [vmem:[%s1 + $0xa8] sm:$0xf]
      %v284 = vld [vmem:[%s1 + $0xac] sm:$0xf]
      %v285 = vld [vmem:[%s1 + $0xb0] sm:$0xf]
      %v286 = vld [vmem:[%s1 + $0xb4] sm:$0xf]
      %v287 = vld [vmem:[%s1 + $0xb8] sm:$0xf]
      %v288 = vld [vmem:[%s1 + $0xbc] sm:$0xf]
      %v289 = vld [vmem:[%s1 + $0xc0] sm:$0xf]
      %v290 = vld [vmem:[%s1 + $0xc4] sm:$0xf]
      %v291 = vld [vmem:[%s1 + $0xc8] sm:$0xf]
      %v292 = vld [vmem:[%s1 + $0xcc] sm:$0xf]
      %v293 = vld [vmem:[%s1 + $0xd0] sm:$0xf]
      %v294 = vld [vmem:[%s1 + $0xd4] sm:$0xf]
      %v295 = vld [vmem:[%s1 + $0xd8] sm:$0xf]
      %v296 = vld [vmem:[%s1 + $0xdc] sm:$0xf]
      %v297 = vld [vmem:[%s1 + $0xe0] sm:$0xf]
      %v298 = vld [vmem:[%s1 + $0xe4] sm:$0xf]
      %v299 = vld [vmem:[%s1 + $0xe8] sm:$0xf]
      %v300 = vld [vmem:[%s1 + $0xec] sm:$0xf]
      %v301 = vld [vmem:[%s1 + $0xf0] sm:$0xf]
      %v302 = vld [vmem:[%s1 + $0xf4] sm:$0xf]
      %v303 = vld [vmem:[%s1 + $0xf8] sm:$0xf]
      %v304 = vld [vmem:[%s1 + $0xfc] sm:$0xf]
      %v305 = vld [vmem:[%s2] sm:$0x1]
      %v307 = vperm.slane %v305, 0
      %v373 = vunpack.c.l.b16 %v177
      %v374 = vunpack.c.h.b16 %v177
      %v375 = vunpack.c.l.b16 %v178
      %v376 = vunpack.c.h.b16 %v178
      %v377 = vunpack.c.l.b16 %v179
      %v378 = vunpack.c.h.b16 %v179
      %v379 = vunpack.c.l.b16 %v180
      %v380 = vunpack.c.h.b16 %v180
      %v381 = vunpack.c.l.b16 %v181
      %v382 = vunpack.c.h.b16 %v181
      %v383 = vunpack.c.l.b16 %v182
      %v384 = vunpack.c.h.b16 %v182
      %v385 = vunpack.c.l.b16 %v183
      %v386 = vunpack.c.h.b16 %v183
      %v387 = vunpack.c.l.b16 %v184
      %v388 = vunpack.c.h.b16 %v184
      %v389 = vunpack.c.l.b16 %v185
      %v390 = vunpack.c.h.b16 %v185
      %v391 = vunpack.c.l.b16 %v186
      %v392 = vunpack.c.h.b16 %v186
      %v393 = vunpack.c.l.b16 %v187
      %v394 = vunpack.c.h.b16 %v187
      %v395 = vunpack.c.l.b16 %v188
      %v396 = vunpack.c.h.b16 %v188
      %v397 = vunpack.c.l.b16 %v189
      %v398 = vunpack.c.h.b16 %v189
      %v399 = vunpack.c.l.b16 %v190
      %v400 = vunpack.c.h.b16 %v190
      %v401 = vunpack.c.l.b16 %v191
      %v402 = vunpack.c.h.b16 %v191
      %v403 = vunpack.c.l.b16 %v192
      %v404 = vunpack.c.h.b16 %v192
      %v405 = vunpack.c.l.b16 %v193
      %v406 = vunpack.c.h.b16 %v193
      %v407 = vunpack.c.l.b16 %v194
      %v408 = vunpack.c.h.b16 %v194
      %v409 = vunpack.c.l.b16 %v195
      %v410 = vunpack.c.h.b16 %v195
      %v411 = vunpack.c.l.b16 %v196
      %v412 = vunpack.c.h.b16 %v196
      %v413 = vunpack.c.l.b16 %v197
      %v414 = vunpack.c.h.b16 %v197
      %v415 = vunpack.c.l.b16 %v198
      %v416 = vunpack.c.h.b16 %v198
      %v417 = vunpack.c.l.b16 %v199
      %v418 = vunpack.c.h.b16 %v199
      %v419 = vunpack.c.l.b16 %v200
      %v420 = vunpack.c.h.b16 %v200
      %v421 = vunpack.c.l.b16 %v201
      %v422 = vunpack.c.h.b16 %v201
      %v423 = vunpack.c.l.b16 %v202
      %v424 = vunpack.c.h.b16 %v202
      %v425 = vunpack.c.l.b16 %v203
      %v426 = vunpack.c.h.b16 %v203
      %v427 = vunpack.c.l.b16 %v204
      %v428 = vunpack.c.h.b16 %v204
      %v429 = vunpack.c.l.b16 %v205
      %v430 = vunpack.c.h.b16 %v205
      %v431 = vunpack.c.l.b16 %v206
      %v432 = vunpack.c.h.b16 %v206
      %v433 = vunpack.c.l.b16 %v207
      %v434 = vunpack.c.h.b16 %v207
      %v435 = vunpack.c.l.b16 %v208
      %v436 = vunpack.c.h.b16 %v208
      %v437 = vunpack.c.l.b16 %v209
      %v438 = vunpack.c.h.b16 %v209
      %v439 = vunpack.c.l.b16 %v210
      %v440 = vunpack.c.h.b16 %v210
      %v441 = vunpack.c.l.b16 %v211
      %v442 = vunpack.c.h.b16 %v211
      %v443 = vunpack.c.l.b16 %v212
      %v444 = vunpack.c.h.b16 %v212
      %v445 = vunpack.c.l.b16 %v213
      %v446 = vunpack.c.h.b16 %v213
      %v447 = vunpack.c.l.b16 %v214
      %v448 = vunpack.c.h.b16 %v214
      %v449 = vunpack.c.l.b16 %v215
      %v450 = vunpack.c.h.b16 %v215
      %v451 = vunpack.c.l.b16 %v216
      %v452 = vunpack.c.h.b16 %v216
      %v453 = vunpack.c.l.b16 %v217
      %v454 = vunpack.c.h.b16 %v217
      %v455 = vunpack.c.l.b16 %v218
      %v456 = vunpack.c.h.b16 %v218
      %v457 = vunpack.c.l.b16 %v219
      %v458 = vunpack.c.h.b16 %v219
      %v459 = vunpack.c.l.b16 %v220
      %v460 = vunpack.c.h.b16 %v220
      %v461 = vunpack.c.l.b16 %v221
      %v462 = vunpack.c.h.b16 %v221
      %v463 = vunpack.c.l.b16 %v222
      %v464 = vunpack.c.h.b16 %v222
      %v465 = vunpack.c.l.b16 %v223
      %v466 = vunpack.c.h.b16 %v223
      %v467 = vunpack.c.l.b16 %v224
      %v468 = vunpack.c.h.b16 %v224
      %v469 = vunpack.c.l.b16 %v225
      %v470 = vunpack.c.h.b16 %v225
      %v471 = vunpack.c.l.b16 %v226
      %v472 = vunpack.c.h.b16 %v226
      %v473 = vunpack.c.l.b16 %v227
      %v474 = vunpack.c.h.b16 %v227
      %v475 = vunpack.c.l.b16 %v228
      %v476 = vunpack.c.h.b16 %v228
      %v477 = vunpack.c.l.b16 %v229
      %v478 = vunpack.c.h.b16 %v229
      %v479 = vunpack.c.l.b16 %v230
      %v480 = vunpack.c.h.b16 %v230
      %v481 = vunpack.c.l.b16 %v231
      %v482 = vunpack.c.h.b16 %v231
      %v483 = vunpack.c.l.b16 %v232
      %v484 = vunpack.c.h.b16 %v232
      %v485 = vunpack.c.l.b16 %v233
      %v486 = vunpack.c.h.b16 %v233
      %v487 = vunpack.c.l.b16 %v234
      %v488 = vunpack.c.h.b16 %v234
      %v489 = vunpack.c.l.b16 %v235
      %v490 = vunpack.c.h.b16 %v235
      %v491 = vunpack.c.l.b16 %v236
      %v492 = vunpack.c.h.b16 %v236
      %v493 = vunpack.c.l.b16 %v237
      %v494 = vunpack.c.h.b16 %v237
      %v495 = vunpack.c.l.b16 %v238
      %v496 = vunpack.c.h.b16 %v238
      %v497 = vunpack.c.l.b16 %v239
      %v498 = vunpack.c.h.b16 %v239
      %v499 = vunpack.c.l.b16 %v240
      %v500 = vunpack.c.h.b16 %v240
      %v501 = vpack.c.b16 %v377, %v373
      %v502 = vpack.c.b16 %v378, %v374
      %v503 = vpack.c.b16 %v379, %v375
      %v504 = vpack.c.b16 %v380, %v376
      %v505 = vpack.c.b16 %v385, %v381
      %v506 = vpack.c.b16 %v386, %v382
      %v507 = vpack.c.b16 %v387, %v383
      %v508 = vpack.c.b16 %v388, %v384
      %v509 = vpack.c.b16 %v393, %v389
      %v510 = vpack.c.b16 %v394, %v390
      %v511 = vpack.c.b16 %v395, %v391
      %v512 = vpack.c.b16 %v396, %v392
      %v513 = vpack.c.b16 %v401, %v397
      %v514 = vpack.c.b16 %v402, %v398
      %v515 = vpack.c.b16 %v403, %v399
      %v516 = vpack.c.b16 %v404, %v400
      %v517 = vpack.c.b16 %v409, %v405
      %v518 = vpack.c.b16 %v410, %v406
      %v519 = vpack.c.b16 %v411, %v407
      %v520 = vpack.c.b16 %v412, %v408
      %v521 = vpack.c.b16 %v417, %v413
      %v522 = vpack.c.b16 %v418, %v414
      %v523 = vpack.c.b16 %v419, %v415
      %v524 = vpack.c.b16 %v420, %v416
      %v525 = vpack.c.b16 %v425, %v421
      %v526 = vpack.c.b16 %v426, %v422
      %v527 = vpack.c.b16 %v427, %v423
      %v528 = vpack.c.b16 %v428, %v424
      %v529 = vpack.c.b16 %v433, %v429
      %v530 = vpack.c.b16 %v434, %v430
      %v531 = vpack.c.b16 %v435, %v431
      %v532 = vpack.c.b16 %v436, %v432
      %v533 = vpack.c.b16 %v441, %v437
      %v534 = vpack.c.b16 %v442, %v438
      %v535 = vpack.c.b16 %v443, %v439
      %v536 = vpack.c.b16 %v444, %v440
      %v537 = vpack.c.b16 %v449, %v445
      %v538 = vpack.c.b16 %v450, %v446
      %v539 = vpack.c.b16 %v451, %v447
      %v540 = vpack.c.b16 %v452, %v448
      %v541 = vpack.c.b16 %v457, %v453
      %v542 = vpack.c.b16 %v458, %v454
      %v543 = vpack.c.b16 %v459, %v455
      %v544 = vpack.c.b16 %v460, %v456
      %v545 = vpack.c.b16 %v465, %v461
      %v546 = vpack.c.b16 %v466, %v462
      %v547 = vpack.c.b16 %v467, %v463
      %v548 = vpack.c.b16 %v468, %v464
      %v549 = vpack.c.b16 %v473, %v469
      %v550 = vpack.c.b16 %v474, %v470
      %v551 = vpack.c.b16 %v475, %v471
      %v552 = vpack.c.b16 %v476, %v472
      %v553 = vpack.c.b16 %v481, %v477
      %v554 = vpack.c.b16 %v482, %v478
      %v555 = vpack.c.b16 %v483, %v479
      %v556 = vpack.c.b16 %v484, %v480
      %v557 = vpack.c.b16 %v489, %v485
      %v558 = vpack.c.b16 %v490, %v486
      %v559 = vpack.c.b16 %v491, %v487
      %v560 = vpack.c.b16 %v492, %v488
      %v561 = vpack.c.b16 %v497, %v493
      %v562 = vpack.c.b16 %v498, %v494
      %v563 = vpack.c.b16 %v499, %v495
      %v564 = vpack.c.b16 %v500, %v496
      %v693 = vunpack.c.l.b16 %v241
      %v694 = vunpack.c.l.b16 %v242
      %v695 = vunpack.c.l.b16 %v243
      %v696 = vunpack.c.l.b16 %v244
      %v697 = vunpack.c.l.b16 %v245
      %v698 = vunpack.c.l.b16 %v246
      %v699 = vunpack.c.l.b16 %v247
      %v700 = vunpack.c.l.b16 %v248
      %v701 = vunpack.c.l.b16 %v249
      %v702 = vunpack.c.l.b16 %v250
      %v703 = vunpack.c.l.b16 %v251
      %v704 = vunpack.c.l.b16 %v252
      %v705 = vunpack.c.l.b16 %v253
      %v706 = vunpack.c.l.b16 %v254
      %v707 = vunpack.c.l.b16 %v255
      %v708 = vunpack.c.l.b16 %v256
      %v709 = vunpack.c.l.b16 %v257
      %v710 = vunpack.c.l.b16 %v258
      %v711 = vunpack.c.l.b16 %v259
      %v712 = vunpack.c.l.b16 %v260
      %v713 = vunpack.c.l.b16 %v261
      %v714 = vunpack.c.l.b16 %v262
      %v715 = vunpack.c.l.b16 %v263
      %v716 = vunpack.c.l.b16 %v264
      %v717 = vunpack.c.l.b16 %v265
      %v718 = vunpack.c.l.b16 %v266
      %v719 = vunpack.c.l.b16 %v267
      %v720 = vunpack.c.l.b16 %v268
      %v721 = vunpack.c.l.b16 %v269
      %v722 = vunpack.c.l.b16 %v270
      %v723 = vunpack.c.l.b16 %v271
      %v724 = vunpack.c.l.b16 %v272
      %v725 = vunpack.c.l.b16 %v273
      %v726 = vunpack.c.l.b16 %v274
      %v727 = vunpack.c.l.b16 %v275
      %v728 = vunpack.c.l.b16 %v276
      %v729 = vunpack.c.l.b16 %v277
      %v730 = vunpack.c.l.b16 %v278
      %v731 = vunpack.c.l.b16 %v279
      %v732 = vunpack.c.l.b16 %v280
      %v733 = vunpack.c.l.b16 %v281
      %v734 = vunpack.c.l.b16 %v282
      %v735 = vunpack.c.l.b16 %v283
      %v736 = vunpack.c.l.b16 %v284
      %v737 = vunpack.c.l.b16 %v285
      %v738 = vunpack.c.l.b16 %v286
      %v739 = vunpack.c.l.b16 %v287
      %v740 = vunpack.c.l.b16 %v288
      %v741 = vunpack.c.l.b16 %v289
      %v742 = vunpack.c.l.b16 %v290
      %v743 = vunpack.c.l.b16 %v291
      %v744 = vunpack.c.l.b16 %v292
      %v745 = vunpack.c.l.b16 %v293
      %v746 = vunpack.c.l.b16 %v294
      %v747 = vunpack.c.l.b16 %v295
      %v748 = vunpack.c.l.b16 %v296
      %v749 = vunpack.c.l.b16 %v297
      %v750 = vunpack.c.l.b16 %v298
      %v751 = vunpack.c.l.b16 %v299
      %v752 = vunpack.c.l.b16 %v300
      %v753 = vunpack.c.l.b16 %v301
      %v754 = vunpack.c.l.b16 %v302
      %v755 = vunpack.c.l.b16 %v303
      %v756 = vunpack.c.l.b16 %v304
      %v757 = vpack.c.b16 %v694, %v693
      %v758 = vpack.c.b16 %v696, %v695
      %v759 = vpack.c.b16 %v698, %v697
      %v760 = vpack.c.b16 %v700, %v699
      %v761 = vpack.c.b16 %v702, %v701
      %v762 = vpack.c.b16 %v704, %v703
      %v763 = vpack.c.b16 %v706, %v705
      %v764 = vpack.c.b16 %v708, %v707
      %v765 = vpack.c.b16 %v710, %v709
      %v766 = vpack.c.b16 %v712, %v711
      %v767 = vpack.c.b16 %v714, %v713
      %v768 = vpack.c.b16 %v716, %v715
      %v769 = vpack.c.b16 %v718, %v717
      %v770 = vpack.c.b16 %v720, %v719
      %v771 = vpack.c.b16 %v722, %v721
      %v772 = vpack.c.b16 %v724, %v723
      %v773 = vpack.c.b16 %v726, %v725
      %v774 = vpack.c.b16 %v728, %v727
      %v775 = vpack.c.b16 %v730, %v729
      %v776 = vpack.c.b16 %v732, %v731
      %v777 = vpack.c.b16 %v734, %v733
      %v778 = vpack.c.b16 %v736, %v735
      %v779 = vpack.c.b16 %v738, %v737
      %v780 = vpack.c.b16 %v740, %v739
      %v781 = vpack.c.b16 %v742, %v741
      %v782 = vpack.c.b16 %v744, %v743
      %v783 = vpack.c.b16 %v746, %v745
      %v784 = vpack.c.b16 %v748, %v747
      %v785 = vpack.c.b16 %v750, %v749
      %v786 = vpack.c.b16 %v752, %v751
      %v787 = vpack.c.b16 %v754, %v753
      %v788 = vpack.c.b16 %v756, %v755
      %821 = vmatpush.bf16.msra.mxu0 %v764
      %822 = vmatpush.bf16.msra.mxu0 %v763
      %823 = vmatpush.bf16.msra.mxu0 %v762
      %824 = vmatpush.bf16.msra.mxu0 %v761
      %825 = vmatpush.bf16.msra.mxu0 %v760
      %826 = vmatpush.bf16.msra.mxu0 %v759
      %827 = vmatpush.bf16.msra.mxu0 %v758
      %828 = vmatpush.bf16.msra.mxu0 %v757
      %829 = vmatmul.bf16.gmra.mxu0 %v501
      %v830 = vpop.f32.mrf.mxu0
      %v831 = vadd.f32 %v307, %v830
      %v832 = vpop.f32.mrf.mxu0
      %v833 = vadd.f32 %v307, %v832
      %834 = vmatmul.bf16.gmra.mxu0 %v505
      %v835 = vpop.f32.mrf.mxu0
      %v836 = vadd.f32 %v307, %v835
      %v837 = vpop.f32.mrf.mxu0
      %v838 = vadd.f32 %v307, %v837
      %839 = vmatmul.bf16.gmra.mxu0 %v509
      %v840 = vpop.f32.mrf.mxu0
      %v841 = vadd.f32 %v307, %v840
      %v842 = vpop.f32.mrf.mxu0
      %v843 = vadd.f32 %v307, %v842
      %844 = vmatmul.bf16.gmra.mxu0 %v513
      %v845 = vpop.f32.mrf.mxu0
      %v846 = vadd.f32 %v307, %v845
      %v847 = vpop.f32.mrf.mxu0
      %v848 = vadd.f32 %v307, %v847
      %849 = vmatmul.bf16.gmra.mxu0 %v517
      %v850 = vpop.f32.mrf.mxu0
      %v851 = vadd.f32 %v307, %v850
      %v852 = vpop.f32.mrf.mxu0
      %v853 = vadd.f32 %v307, %v852
      %854 = vmatmul.bf16.gmra.mxu0 %v521
      %v855 = vpop.f32.mrf.mxu0
      %v856 = vadd.f32 %v307, %v855
      %v857 = vpop.f32.mrf.mxu0
      %v858 = vadd.f32 %v307, %v857
      %859 = vmatmul.bf16.gmra.mxu0 %v525
      %v860 = vpop.f32.mrf.mxu0
      %v861 = vadd.f32 %v307, %v860
      %v862 = vpop.f32.mrf.mxu0
      %v863 = vadd.f32 %v307, %v862
      %864 = vmatmul.bf16.gmra.mxu0 %v529
      %v865 = vpop.f32.mrf.mxu0
      %v866 = vadd.f32 %v307, %v865
      %v867 = vpop.f32.mrf.mxu0
      %v868 = vadd.f32 %v307, %v867
      %869 = vmatmul.bf16.gmra.mxu0 %v533
      %v870 = vpop.f32.mrf.mxu0
      %v871 = vadd.f32 %v307, %v870
      %v872 = vpop.f32.mrf.mxu0
      %v873 = vadd.f32 %v307, %v872
      %874 = vmatmul.bf16.gmra.mxu0 %v537
      %v875 = vpop.f32.mrf.mxu0
      %v876 = vadd.f32 %v307, %v875
      %v877 = vpop.f32.mrf.mxu0
      %v878 = vadd.f32 %v307, %v877
      %879 = vmatmul.bf16.gmra.mxu0 %v541
      %v880 = vpop.f32.mrf.mxu0
      %v881 = vadd.f32 %v307, %v880
      %v882 = vpop.f32.mrf.mxu0
      %v883 = vadd.f32 %v307, %v882
      %884 = vmatmul.bf16.gmra.mxu0 %v545
      %v885 = vpop.f32.mrf.mxu0
      %v886 = vadd.f32 %v307, %v885
      %v887 = vpop.f32.mrf.mxu0
      %v888 = vadd.f32 %v307, %v887
      %889 = vmatmul.bf16.gmra.mxu0 %v549
      %v890 = vpop.f32.mrf.mxu0
      %v891 = vadd.f32 %v307, %v890
      %v892 = vpop.f32.mrf.mxu0
      %v893 = vadd.f32 %v307, %v892
      %894 = vmatmul.bf16.gmra.mxu0 %v553
      %v895 = vpop.f32.mrf.mxu0
      %v896 = vadd.f32 %v307, %v895
      %v897 = vpop.f32.mrf.mxu0
      %v898 = vadd.f32 %v307, %v897
      %899 = vmatmul.bf16.gmra.mxu0 %v557
      %v900 = vpop.f32.mrf.mxu0
      %v901 = vadd.f32 %v307, %v900
      %v902 = vpop.f32.mrf.mxu0
      %v903 = vadd.f32 %v307, %v902
      %904 = vmatmul.bf16.gmra.mxu0 %v561
      %v905 = vpop.f32.mrf.mxu0
      %v906 = vadd.f32 %v307, %v905
      %v907 = vpop.f32.mrf.mxu0
      %v908 = vadd.f32 %v307, %v907
      %909 = vdwg.mxu0
      %910 = vmatpush.bf16.msra.mxu0 %v772
      %911 = vmatpush.bf16.msra.mxu0 %v771
      %912 = vmatpush.bf16.msra.mxu0 %v770
      %913 = vmatpush.bf16.msra.mxu0 %v769
      %914 = vmatpush.bf16.msra.mxu0 %v768
      %915 = vmatpush.bf16.msra.mxu0 %v767
      %916 = vmatpush.bf16.msra.mxu0 %v766
      %917 = vmatpush.bf16.msra.mxu0 %v765
      %918 = vmatmul.bf16.gmra.mxu0 %v502
      %v919 = vpop.f32.mrf.mxu0
      %v920 = vadd.f32 %v831, %v919
      %v921 = vpop.f32.mrf.mxu0
      %v922 = vadd.f32 %v833, %v921
      %923 = vmatmul.bf16.gmra.mxu0 %v506
      %v924 = vpop.f32.mrf.mxu0
      %v925 = vadd.f32 %v836, %v924
      %v926 = vpop.f32.mrf.mxu0
      %v927 = vadd.f32 %v838, %v926
      %928 = vmatmul.bf16.gmra.mxu0 %v510
      %v929 = vpop.f32.mrf.mxu0
      %v930 = vadd.f32 %v841, %v929
      %v931 = vpop.f32.mrf.mxu0
      %v932 = vadd.f32 %v843, %v931
      %933 = vmatmul.bf16.gmra.mxu0 %v514
      %v934 = vpop.f32.mrf.mxu0
      %v935 = vadd.f32 %v846, %v934
      %v936 = vpop.f32.mrf.mxu0
      %v937 = vadd.f32 %v848, %v936
      %938 = vmatmul.bf16.gmra.mxu0 %v518
      %v939 = vpop.f32.mrf.mxu0
      %v940 = vadd.f32 %v851, %v939
      %v941 = vpop.f32.mrf.mxu0
      %v942 = vadd.f32 %v853, %v941
      %943 = vmatmul.bf16.gmra.mxu0 %v522
      %v944 = vpop.f32.mrf.mxu0
      %v945 = vadd.f32 %v856, %v944
      %v946 = vpop.f32.mrf.mxu0
      %v947 = vadd.f32 %v858, %v946
      %948 = vmatmul.bf16.gmra.mxu0 %v526
      %v949 = vpop.f32.mrf.mxu0
      %v950 = vadd.f32 %v861, %v949
      %v951 = vpop.f32.mrf.mxu0
      %v952 = vadd.f32 %v863, %v951
      %953 = vmatmul.bf16.gmra.mxu0 %v530
      %v954 = vpop.f32.mrf.mxu0
      %v955 = vadd.f32 %v866, %v954
      %v956 = vpop.f32.mrf.mxu0
      %v957 = vadd.f32 %v868, %v956
      %958 = vmatmul.bf16.gmra.mxu0 %v534
      %v959 = vpop.f32.mrf.mxu0
      %v960 = vadd.f32 %v871, %v959
      %v961 = vpop.f32.mrf.mxu0
      %v962 = vadd.f32 %v873, %v961
      %963 = vmatmul.bf16.gmra.mxu0 %v538
      %v964 = vpop.f32.mrf.mxu0
      %v965 = vadd.f32 %v876, %v964
      %v966 = vpop.f32.mrf.mxu0
      %v967 = vadd.f32 %v878, %v966
      %968 = vmatmul.bf16.gmra.mxu0 %v542
      %v969 = vpop.f32.mrf.mxu0
      %v970 = vadd.f32 %v881, %v969
      %v971 = vpop.f32.mrf.mxu0
      %v972 = vadd.f32 %v883, %v971
      %973 = vmatmul.bf16.gmra.mxu0 %v546
      %v974 = vpop.f32.mrf.mxu0
      %v975 = vadd.f32 %v886, %v974
      %v976 = vpop.f32.mrf.mxu0
      %v977 = vadd.f32 %v888, %v976
      %978 = vmatmul.bf16.gmra.mxu0 %v550
      %v979 = vpop.f32.mrf.mxu0
      %v980 = vadd.f32 %v891, %v979
      %v981 = vpop.f32.mrf.mxu0
      %v982 = vadd.f32 %v893, %v981
      %983 = vmatmul.bf16.gmra.mxu0 %v554
      %v984 = vpop.f32.mrf.mxu0
      %v985 = vadd.f32 %v896, %v984
      %v986 = vpop.f32.mrf.mxu0
      %v987 = vadd.f32 %v898, %v986
      %988 = vmatmul.bf16.gmra.mxu0 %v558
      %v989 = vpop.f32.mrf.mxu0
      %v990 = vadd.f32 %v901, %v989
      %v991 = vpop.f32.mrf.mxu0
      %v992 = vadd.f32 %v903, %v991
      %993 = vmatmul.bf16.gmra.mxu0 %v562
      %v994 = vpop.f32.mrf.mxu0
      %v995 = vadd.f32 %v906, %v994
      %v996 = vpop.f32.mrf.mxu0
      %v997 = vadd.f32 %v908, %v996
      %998 = vdwg.mxu0
      %999 = vmatpush.bf16.msra.mxu0 %v780
      %1000 = vmatpush.bf16.msra.mxu0 %v779
      %1001 = vmatpush.bf16.msra.mxu0 %v778
      %1002 = vmatpush.bf16.msra.mxu0 %v777
      %1003 = vmatpush.bf16.msra.mxu0 %v776
      %1004 = vmatpush.bf16.msra.mxu0 %v775
      %1005 = vmatpush.bf16.msra.mxu0 %v774
      %1006 = vmatpush.bf16.msra.mxu0 %v773
      %1007 = vmatmul.bf16.gmra.mxu0 %v503
      %v1008 = vpop.f32.mrf.mxu0
      %v1009 = vadd.f32 %v920, %v1008
      %v1010 = vpop.f32.mrf.mxu0
      %v1011 = vadd.f32 %v922, %v1010
      %1012 = vmatmul.bf16.gmra.mxu0 %v507
      %v1013 = vpop.f32.mrf.mxu0
      %v1014 = vadd.f32 %v925, %v1013
      %v1015 = vpop.f32.mrf.mxu0
      %v1016 = vadd.f32 %v927, %v1015
      %1017 = vmatmul.bf16.gmra.mxu0 %v511
      %v1018 = vpop.f32.mrf.mxu0
      %v1019 = vadd.f32 %v930, %v1018
      %v1020 = vpop.f32.mrf.mxu0
      %v1021 = vadd.f32 %v932, %v1020
      %1022 = vmatmul.bf16.gmra.mxu0 %v515
      %v1023 = vpop.f32.mrf.mxu0
      %v1024 = vadd.f32 %v935, %v1023
      %v1025 = vpop.f32.mrf.mxu0
      %v1026 = vadd.f32 %v937, %v1025
      %1027 = vmatmul.bf16.gmra.mxu0 %v519
      %v1028 = vpop.f32.mrf.mxu0
      %v1029 = vadd.f32 %v940, %v1028
      %v1030 = vpop.f32.mrf.mxu0
      %v1031 = vadd.f32 %v942, %v1030
      %1032 = vmatmul.bf16.gmra.mxu0 %v523
      %v1033 = vpop.f32.mrf.mxu0
      %v1034 = vadd.f32 %v945, %v1033
      %v1035 = vpop.f32.mrf.mxu0
      %v1036 = vadd.f32 %v947, %v1035
      %1037 = vmatmul.bf16.gmra.mxu0 %v527
      %v1038 = vpop.f32.mrf.mxu0
      %v1039 = vadd.f32 %v950, %v1038
      %v1040 = vpop.f32.mrf.mxu0
      %v1041 = vadd.f32 %v952, %v1040
      %1042 = vmatmul.bf16.gmra.mxu0 %v531
      %v1043 = vpop.f32.mrf.mxu0
      %v1044 = vadd.f32 %v955, %v1043
      %v1045 = vpop.f32.mrf.mxu0
      %v1046 = vadd.f32 %v957, %v1045
      %1047 = vmatmul.bf16.gmra.mxu0 %v535
      %v1048 = vpop.f32.mrf.mxu0
      %v1049 = vadd.f32 %v960, %v1048
      %v1050 = vpop.f32.mrf.mxu0
      %v1051 = vadd.f32 %v962, %v1050
      %1052 = vmatmul.bf16.gmra.mxu0 %v539
      %v1053 = vpop.f32.mrf.mxu0
      %v1054 = vadd.f32 %v965, %v1053
      %v1055 = vpop.f32.mrf.mxu0
      %v1056 = vadd.f32 %v967, %v1055
      %1057 = vmatmul.bf16.gmra.mxu0 %v543
      %v1058 = vpop.f32.mrf.mxu0
      %v1059 = vadd.f32 %v970, %v1058
      %v1060 = vpop.f32.mrf.mxu0
      %v1061 = vadd.f32 %v972, %v1060
      %1062 = vmatmul.bf16.gmra.mxu0 %v547
      %v1063 = vpop.f32.mrf.mxu0
      %v1064 = vadd.f32 %v975, %v1063
      %v1065 = vpop.f32.mrf.mxu0
      %v1066 = vadd.f32 %v977, %v1065
      %1067 = vmatmul.bf16.gmra.mxu0 %v551
      %v1068 = vpop.f32.mrf.mxu0
      %v1069 = vadd.f32 %v980, %v1068
      %v1070 = vpop.f32.mrf.mxu0
      %v1071 = vadd.f32 %v982, %v1070
      %1072 = vmatmul.bf16.gmra.mxu0 %v555
      %v1073 = vpop.f32.mrf.mxu0
      %v1074 = vadd.f32 %v985, %v1073
      %v1075 = vpop.f32.mrf.mxu0
      %v1076 = vadd.f32 %v987, %v1075
      %1077 = vmatmul.bf16.gmra.mxu0 %v559
      %v1078 = vpop.f32.mrf.mxu0
      %v1079 = vadd.f32 %v990, %v1078
      %v1080 = vpop.f32.mrf.mxu0
      %v1081 = vadd.f32 %v992, %v1080
      %1082 = vmatmul.bf16.gmra.mxu0 %v563
      %v1083 = vpop.f32.mrf.mxu0
      %v1084 = vadd.f32 %v995, %v1083
      %v1085 = vpop.f32.mrf.mxu0
      %v1086 = vadd.f32 %v997, %v1085
      %1087 = vdwg.mxu0
      %1088 = vmatpush.bf16.msra.mxu0 %v788
      %1089 = vmatpush.bf16.msra.mxu0 %v787
      %1090 = vmatpush.bf16.msra.mxu0 %v786
      %1091 = vmatpush.bf16.msra.mxu0 %v785
      %1092 = vmatpush.bf16.msra.mxu0 %v784
      %1093 = vmatpush.bf16.msra.mxu0 %v783
      %1094 = vmatpush.bf16.msra.mxu0 %v782
      %1095 = vmatpush.bf16.msra.mxu0 %v781
      %1096 = vmatmul.bf16.gmra.mxu0 %v504
      %v1097 = vpop.f32.mrf.mxu0
      %v1098 = vadd.f32 %v1009, %v1097
      %v1099 = vpop.f32.mrf.mxu0
      %v1100 = vadd.f32 %v1011, %v1099
      %1101 = vmatmul.bf16.gmra.mxu0 %v508
      %v1102 = vpop.f32.mrf.mxu0
      %v1103 = vadd.f32 %v1014, %v1102
      %v1104 = vpop.f32.mrf.mxu0
      %v1105 = vadd.f32 %v1016, %v1104
      %1106 = vmatmul.bf16.gmra.mxu0 %v512
      %v1107 = vpop.f32.mrf.mxu0
      %v1108 = vadd.f32 %v1019, %v1107
      %v1109 = vpop.f32.mrf.mxu0
      %v1110 = vadd.f32 %v1021, %v1109
      %1111 = vmatmul.bf16.gmra.mxu0 %v516
      %v1112 = vpop.f32.mrf.mxu0
      %v1113 = vadd.f32 %v1024, %v1112
      %v1114 = vpop.f32.mrf.mxu0
      %v1115 = vadd.f32 %v1026, %v1114
      %1116 = vmatmul.bf16.gmra.mxu0 %v520
      %v1117 = vpop.f32.mrf.mxu0
      %v1118 = vadd.f32 %v1029, %v1117
      %v1119 = vpop.f32.mrf.mxu0
      %v1120 = vadd.f32 %v1031, %v1119
      %1121 = vmatmul.bf16.gmra.mxu0 %v524
      %v1122 = vpop.f32.mrf.mxu0
      %v1123 = vadd.f32 %v1034, %v1122
      %v1124 = vpop.f32.mrf.mxu0
      %v1125 = vadd.f32 %v1036, %v1124
      %1126 = vmatmul.bf16.gmra.mxu0 %v528
      %v1127 = vpop.f32.mrf.mxu0
      %v1128 = vadd.f32 %v1039, %v1127
      %v1129 = vpop.f32.mrf.mxu0
      %v1130 = vadd.f32 %v1041, %v1129
      %1131 = vmatmul.bf16.gmra.mxu0 %v532
      %v1132 = vpop.f32.mrf.mxu0
      %v1133 = vadd.f32 %v1044, %v1132
      %v1134 = vpop.f32.mrf.mxu0
      %v1135 = vadd.f32 %v1046, %v1134
      %1136 = vmatmul.bf16.gmra.mxu0 %v536
      %v1137 = vpop.f32.mrf.mxu0
      %v1138 = vadd.f32 %v1049, %v1137
      %v1139 = vpop.f32.mrf.mxu0
      %v1140 = vadd.f32 %v1051, %v1139
      %1141 = vmatmul.bf16.gmra.mxu0 %v540
      %v1142 = vpop.f32.mrf.mxu0
      %v1143 = vadd.f32 %v1054, %v1142
      %v1144 = vpop.f32.mrf.mxu0
      %v1145 = vadd.f32 %v1056, %v1144
      %1146 = vmatmul.bf16.gmra.mxu0 %v544
      %v1147 = vpop.f32.mrf.mxu0
      %v1148 = vadd.f32 %v1059, %v1147
      %v1149 = vpop.f32.mrf.mxu0
      %v1150 = vadd.f32 %v1061, %v1149
      %1151 = vmatmul.bf16.gmra.mxu0 %v548
      %v1152 = vpop.f32.mrf.mxu0
      %v1153 = vadd.f32 %v1064, %v1152
      %v1154 = vpop.f32.mrf.mxu0
      %v1155 = vadd.f32 %v1066, %v1154
      %1156 = vmatmul.bf16.gmra.mxu0 %v552
      %v1157 = vpop.f32.mrf.mxu0
      %v1158 = vadd.f32 %v1069, %v1157
      %v1159 = vpop.f32.mrf.mxu0
      %v1160 = vadd.f32 %v1071, %v1159
      %1161 = vmatmul.bf16.gmra.mxu0 %v556
      %v1162 = vpop.f32.mrf.mxu0
      %v1163 = vadd.f32 %v1074, %v1162
      %v1164 = vpop.f32.mrf.mxu0
      %v1165 = vadd.f32 %v1076, %v1164
      %1166 = vmatmul.bf16.gmra.mxu0 %v560
      %v1167 = vpop.f32.mrf.mxu0
      %v1168 = vadd.f32 %v1079, %v1167
      %v1169 = vpop.f32.mrf.mxu0
      %v1170 = vadd.f32 %v1081, %v1169
      %1171 = vmatmul.bf16.gmra.mxu0 %v564
      %v1172 = vpop.f32.mrf.mxu0
      %v1173 = vadd.f32 %v1084, %v1172
      %v1174 = vpop.f32.mrf.mxu0
      %v1175 = vadd.f32 %v1086, %v1174
      %1176 = vdwg.mxu0
      %v1177 = vmax.f32 %v1098, 0.0
      %v1178 = vmax.f32 %v1100, 0.0
      %v1179 = vmax.f32 %v1103, 0.0
      %v1180 = vmax.f32 %v1105, 0.0
      %v1181 = vmax.f32 %v1108, 0.0
      %v1182 = vmax.f32 %v1110, 0.0
      %v1183 = vmax.f32 %v1113, 0.0
      %v1184 = vmax.f32 %v1115, 0.0
      %v1185 = vmax.f32 %v1118, 0.0
      %v1186 = vmax.f32 %v1120, 0.0
      %v1187 = vmax.f32 %v1123, 0.0
      %v1188 = vmax.f32 %v1125, 0.0
      %v1189 = vmax.f32 %v1128, 0.0
      %v1190 = vmax.f32 %v1130, 0.0
      %v1191 = vmax.f32 %v1133, 0.0
      %v1192 = vmax.f32 %v1135, 0.0
      %v1193 = vmax.f32 %v1138, 0.0
      %v1194 = vmax.f32 %v1140, 0.0
      %v1195 = vmax.f32 %v1143, 0.0
      %v1196 = vmax.f32 %v1145, 0.0
      %v1197 = vmax.f32 %v1148, 0.0
      %v1198 = vmax.f32 %v1150, 0.0
      %v1199 = vmax.f32 %v1153, 0.0
      %v1200 = vmax.f32 %v1155, 0.0
      %v1201 = vmax.f32 %v1158, 0.0
      %v1202 = vmax.f32 %v1160, 0.0
      %v1203 = vmax.f32 %v1163, 0.0
      %v1204 = vmax.f32 %v1165, 0.0
      %v1205 = vmax.f32 %v1168, 0.0
      %v1206 = vmax.f32 %v1170, 0.0
      %v1207 = vmax.f32 %v1173, 0.0
      %v1208 = vmax.f32 %v1175, 0.0
      %1209 = vst [vmem:[%s175] sm:$0xff] %v1177
      %1210 = vst [vmem:[%s175 + $0x8] sm:$0xff] %v1178
      %1211 = vst [vmem:[%s175 + $0x10] sm:$0xff] %v1179
      %1212 = vst [vmem:[%s175 + $0x18] sm:$0xff] %v1180
      %1213 = vst [vmem:[%s175 + $0x20] sm:$0xff] %v1181
      %1214 = vst [vmem:[%s175 + $0x28] sm:$0xff] %v1182
      %1215 = vst [vmem:[%s175 + $0x30] sm:$0xff] %v1183
      %1216 = vst [vmem:[%s175 + $0x38] sm:$0xff] %v1184
      %1217 = vst [vmem:[%s175 + $0x40] sm:$0xff] %v1185
      %1218 = vst [vmem:[%s175 + $0x48] sm:$0xff] %v1186
      %1219 = vst [vmem:[%s175 + $0x50] sm:$0xff] %v1187
      %1220 = vst [vmem:[%s175 + $0x58] sm:$0xff] %v1188
      %1221 = vst [vmem:[%s175 + $0x60] sm:$0xff] %v1189
      %1222 = vst [vmem:[%s175 + $0x68] sm:$0xff] %v1190
      %1223 = vst [vmem:[%s175 + $0x70] sm:$0xff] %v1191
      %1224 = vst [vmem:[%s175 + $0x78] sm:$0xff] %v1192
      %1225 = vst [vmem:[%s175 + $0x80] sm:$0xff] %v1193
      %1226 = vst [vmem:[%s175 + $0x88] sm:$0xff] %v1194
      %1227 = vst [vmem:[%s175 + $0x90] sm:$0xff] %v1195
      %1228 = vst [vmem:[%s175 + $0x98] sm:$0xff] %v1196
      %1229 = vst [vmem:[%s175 + $0xa0] sm:$0xff] %v1197
      %1230 = vst [vmem:[%s175 + $0xa8] sm:$0xff] %v1198
      %1231 = vst [vmem:[%s175 + $0xb0] sm:$0xff] %v1199
      %1232 = vst [vmem:[%s175 + $0xb8] sm:$0xff] %v1200
      %1233 = vst [vmem:[%s175 + $0xc0] sm:$0xff] %v1201
      %1234 = vst [vmem:[%s175 + $0xc8] sm:$0xff] %v1202
      %1235 = vst [vmem:[%s175 + $0xd0] sm:$0xff] %v1203
      %1236 = vst [vmem:[%s175 + $0xd8] sm:$0xff] %v1204
      %1237 = vst [vmem:[%s175 + $0xe0] sm:$0xff] %v1205
      %1238 = vst [vmem:[%s175 + $0xe8] sm:$0xff] %v1206
      %1239 = vst [vmem:[%s175 + $0xf0] sm:$0xff] %v1207
      %1240 = vst [vmem:[%s175 + $0xf8] sm:$0xff] %v1208
      %s1241 = smul.u32 32, %s14
      %p1242 = scmp.lt.s32.totalorder %s1241, 127
      %s1243 = scalar_select %p1242, %s1241, 127
      %s1244 = smul.addr %s1243, 8
      %s1245 = scalar_lea.vmem %s3, %s1244
      // Predicated region
      $region33: #{autoencoder_forward.10} parent=31 // pred_check
        %p1246 = pneg %p100
      $region34: #{autoencoder_forward.10} parent=31 // pred_check_branch
        %1248 = sbr.rel (%p1246) target = $region36
      $region35: #{autoencoder_forward.10} parent=31 // pred_region
        %s1249 = smul.u32 32, %s14
      $region36: #{autoencoder_forward.10} parent=31 // pred_fallthru
        _
    $region32: #{autoencoder_forward.10} parent=5 // pred_fallthru
      _
    %p1250 = scmp.le.s32.totalorder 2, %s9
    // Predicated region
    $region37: #{autoencoder_forward.10} parent=5 // pred_check
      %p1251 = pneg %p1250
    $region38: #{autoencoder_forward.10} parent=5 // pred_check_branch
      %1253 = sbr.rel (%p1251) target = $region40
    $region39: #{autoencoder_forward.10} parent=5 // pred_region
      %s1254 = ssub.s32 %s9, 2
      // Predicated region
      $region41: #{autoencoder_forward.10} parent=39 // pred_check
        %p1255 = pneg %p106
      $region42: #{autoencoder_forward.10} parent=39 // pred_check_branch
        %1257 = sbr.rel (%p1255) target = $region44
      $region43: #{autoencoder_forward.10} parent=39 // pred_region
        %s1258 = smul.u32 32, %s15
        %p1259 = scmp.lt.s32.totalorder %s1258, 127
        %s1260 = scalar_select %p1259, %s1258, 127
        %s1261 = smul.addr %s1260, 8
        %s1262 = scalar_lea.vmem %s3, %s1261
      $region44: #{autoencoder_forward.10} parent=39 // pred_fallthru
        _
    $region40: #{autoencoder_forward.10} parent=5 // pred_fallthru
      _
  $region6: #{autoencoder_forward.10} parent=0 // loop_footer
    %s13 = sadd.s32 1, %s9
  $region7: #{autoencoder_forward.10} parent=0 // loop_footer_branch
    %8 = sbr.rel target = $region3
  $region8: #{autoencoder_forward.10} parent=0 // loop_exit
    _

// kernel: autoencoder_forward.11
$region0: #{autoencoder_forward.11}
  #allocation0 [shape = 'u32[]', space=smem, size = 0x4, offset = 0x4, fixed_abs, tag = 'smem constant byte address 0x4 - core index']
  #allocation1 [shape = 'u32[72,128]{1,0:T(1,128)}', space=vmem, size = 0x9000, scoped, tag = 'internal scratch']
  %s0 = inlined_call_operand.vmem [shape: bf16[200,512], index: 0, kind: input, shape index: {}]
  %s1 = inlined_call_operand.vmem [shape: bf16[512,128], index: 1, kind: input, shape index: {}]
  %s2 = inlined_call_operand.vmem [shape: f32[1,128], index: 2, kind: input, shape index: {}]
  %s3 = inlined_call_operand.vmem [shape: f32[200,128], index: 3, kind: output, shape index: {}]
  %s4 = sld [smem:[#allocation0]]
  $region22: #{autoencoder_forward.11} parent=0
    _
  %s6 = ssub.s32 1, %s4
  %s7 = scalar_select 0, %s6, %s4
  // Predicated region
  $region2: #{autoencoder_forward.11} parent=0 // pred_check
    _
  $region3: #{autoencoder_forward.11} parent=0 // pred_check_branch
    %9 = sbr.rel (0) target = $region5
  $region4: #{autoencoder_forward.11} parent=0 // pred_region
    _
  $region5: #{autoencoder_forward.11} parent=0 // pred_fallthru
    _
  // Predicated region
  $region6: #{autoencoder_forward.11} parent=0 // pred_check
    _
  $region7: #{autoencoder_forward.11} parent=0 // pred_check_branch
    %11 = sbr.rel (0) target = $region9
  $region8: #{autoencoder_forward.11} parent=0 // pred_region
    _
  $region9: #{autoencoder_forward.11} parent=0 // pred_fallthru
    _
  // Predicated region
  $region10: #{autoencoder_forward.11} parent=0 // pred_check
    _
  $region11: #{autoencoder_forward.11} parent=0 // pred_check_branch
    %13 = sbr.rel (0) target = $region13
  $region12: #{autoencoder_forward.11} parent=0 // pred_region
    _
  $region13: #{autoencoder_forward.11} parent=0 // pred_fallthru
    _
  %v14 = vld [vmem:[%s0] sm:$0xff]
  %v15 = vld [vmem:[%s0 + $0x8] sm:$0xff]
  %v16 = vld [vmem:[%s0 + $0x10] sm:$0xff]
  %v17 = vld [vmem:[%s0 + $0x18] sm:$0xff]
  %v18 = vld [vmem:[%s0 + $0x20] sm:$0xff]
  %v19 = vld [vmem:[%s0 + $0x28] sm:$0xff]
  %v20 = vld [vmem:[%s0 + $0x30] sm:$0xff]
  %v21 = vld [vmem:[%s0 + $0x38] sm:$0xff]
  %v22 = vld [vmem:[%s0 + $0x40] sm:$0xff]
  %v23 = vld [vmem:[%s0 + $0x48] sm:$0xff]
  %v24 = vld [vmem:[%s0 + $0x50] sm:$0xff]
  %v25 = vld [vmem:[%s0 + $0x58] sm:$0xff]
  %v26 = vld [vmem:[%s0 + $0x60] sm:$0xff]
  %v27 = vld [vmem:[%s0 + $0x68] sm:$0xff]
  %v28 = vld [vmem:[%s0 + $0x70] sm:$0xff]
  %v29 = vld [vmem:[%s0 + $0x78] sm:$0xff]
  %v30 = vld [vmem:[%s0 + $0x80] sm:$0xff]
  %v31 = vld [vmem:[%s0 + $0x88] sm:$0xff]
  %v32 = vld [vmem:[%s0 + $0x90] sm:$0xff]
  %v33 = vld [vmem:[%s0 + $0x98] sm:$0xff]
  %v34 = vld [vmem:[%s0 + $0xa0] sm:$0xff]
  %v35 = vld [vmem:[%s0 + $0xa8] sm:$0xff]
  %v36 = vld [vmem:[%s0 + $0xb0] sm:$0xff]
  %v37 = vld [vmem:[%s0 + $0xb8] sm:$0xff]
  %v38 = vld [vmem:[%s0 + $0xc0] sm:$0xff]
  %v39 = vld [vmem:[%s0 + $0xc8] sm:$0xff]
  %v40 = vld [vmem:[%s0 + $0xd0] sm:$0xff]
  %v41 = vld [vmem:[%s0 + $0xd8] sm:$0xff]
  %v42 = vld [vmem:[%s0 + $0xe0] sm:$0xff]
  %v43 = vld [vmem:[%s0 + $0xe8] sm:$0xff]
  %v44 = vld [vmem:[%s0 + $0xf0] sm:$0xff]
  %v45 = vld [vmem:[%s0 + $0xf8] sm:$0xff]
  %v46 = vld [vmem:[%s0 + $0x100] sm:$0xff]
  %v47 = vld [vmem:[%s0 + $0x108] sm:$0xff]
  %v48 = vld [vmem:[%s0 + $0x110] sm:$0xff]
  %v49 = vld [vmem:[%s0 + $0x118] sm:$0xff]
  %v50 = vld [vmem:[%s0 + $0x120] sm:$0xff]
  %v51 = vld [vmem:[%s0 + $0x128] sm:$0xff]
  %v52 = vld [vmem:[%s0 + $0x130] sm:$0xff]
  %v53 = vld [vmem:[%s0 + $0x138] sm:$0xff]
  %v54 = vld [vmem:[%s0 + $0x140] sm:$0xff]
  %v55 = vld [vmem:[%s0 + $0x148] sm:$0xff]
  %v56 = vld [vmem:[%s0 + $0x150] sm:$0xff]
  %v57 = vld [vmem:[%s0 + $0x158] sm:$0xff]
  %v58 = vld [vmem:[%s0 + $0x160] sm:$0xff]
  %v59 = vld [vmem:[%s0 + $0x168] sm:$0xff]
  %v60 = vld [vmem:[%s0 + $0x170] sm:$0xff]
  %v61 = vld [vmem:[%s0 + $0x178] sm:$0xff]
  %v62 = vld [vmem:[%s0 + $0x180] sm:$0xff]
  %v63 = vld [vmem:[%s0 + $0x188] sm:$0xff]
  %v64 = vld [vmem:[%s1] sm:$0xf]
  %v65 = vld [vmem:[%s1 + $0x4] sm:$0xf]
  %v66 = vld [vmem:[%s1 + $0x8] sm:$0xf]
  %v67 = vld [vmem:[%s1 + $0xc] sm:$0xf]
  %v68 = vld [vmem:[%s1 + $0x10] sm:$0xf]
  %v69 = vld [vmem:[%s1 + $0x14] sm:$0xf]
  %v70 = vld [vmem:[%s1 + $0x18] sm:$0xf]
  %v71 = vld [vmem:[%s1 + $0x1c] sm:$0xf]
  %v72 = vld [vmem:[%s1 + $0x20] sm:$0xf]
  %v73 = vld [vmem:[%s1 + $0x24] sm:$0xf]
  %v74 = vld [vmem:[%s1 + $0x28] sm:$0xf]
  %v75 = vld [vmem:[%s1 + $0x2c] sm:$0xf]
  %v76 = vld [vmem:[%s1 + $0x30] sm:$0xf]
  %v77 = vld [vmem:[%s1 + $0x34] sm:$0xf]
  %v78 = vld [vmem:[%s1 + $0x38] sm:$0xf]
  %v79 = vld [vmem:[%s1 + $0x3c] sm:$0xf]
  %v80 = vld [vmem:[%s1 + $0x40] sm:$0xf]
  %v81 = vld [vmem:[%s1 + $0x44] sm:$0xf]
  %v82 = vld [vmem:[%s1 + $0x48] sm:$0xf]
  %v83 = vld [vmem:[%s1 + $0x4c] sm:$0xf]
  %v84 = vld [vmem:[%s1 + $0x50] sm:$0xf]
  %v85 = vld [vmem:[%s1 + $0x54] sm:$0xf]
  %v86 = vld [vmem:[%s1 + $0x58] sm:$0xf]
  %v87 = vld [vmem:[%s1 + $0x5c] sm:$0xf]
  %v88 = vld [vmem:[%s1 + $0x60] sm:$0xf]
  %v89 = vld [vmem:[%s1 + $0x64] sm:$0xf]
  %v90 = vld [vmem:[%s1 + $0x68] sm:$0xf]
  %v91 = vld [vmem:[%s1 + $0x6c] sm:$0xf]
  %v92 = vld [vmem:[%s1 + $0x70] sm:$0xf]
  %v93 = vld [vmem:[%s1 + $0x74] sm:$0xf]
  %v94 = vld [vmem:[%s1 + $0x78] sm:$0xf]
  %v95 = vld [vmem:[%s1 + $0x7c] sm:$0xf]
  %v96 = vld [vmem:[%s1 + $0x80] sm:$0xf]
  %v97 = vld [vmem:[%s1 + $0x84] sm:$0xf]
  %v98 = vld [vmem:[%s1 + $0x88] sm:$0xf]
  %v99 = vld [vmem:[%s1 + $0x8c] sm:$0xf]
  %v100 = vld [vmem:[%s1 + $0x90] sm:$0xf]
  %v101 = vld [vmem:[%s1 + $0x94] sm:$0xf]
  %v102 = vld [vmem:[%s1 + $0x98] sm:$0xf]
  %v103 = vld [vmem:[%s1 + $0x9c] sm:$0xf]
  %v104 = vld [vmem:[%s1 + $0xa0] sm:$0xf]
  %v105 = vld [vmem:[%s1 + $0xa4] sm:$0xf]
  %v106 = vld [vmem:[%s1 + $0xa8] sm:$0xf]
  %v107 = vld [vmem:[%s1 + $0xac] sm:$0xf]
  %v108 = vld [vmem:[%s1 + $0xb0] sm:$0xf]
  %v109 = vld [vmem:[%s1 + $0xb4] sm:$0xf]
  %v110 = vld [vmem:[%s1 + $0xb8] sm:$0xf]
  %v111 = vld [vmem:[%s1 + $0xbc] sm:$0xf]
  %v112 = vld [vmem:[%s1 + $0xc0] sm:$0xf]
  %v113 = vld [vmem:[%s1 + $0xc4] sm:$0xf]
  %v114 = vld [vmem:[%s1 + $0xc8] sm:$0xf]
  %v115 = vld [vmem:[%s1 + $0xcc] sm:$0xf]
  %v116 = vld [vmem:[%s1 + $0xd0] sm:$0xf]
  %v117 = vld [vmem:[%s1 + $0xd4] sm:$0xf]
  %v118 = vld [vmem:[%s1 + $0xd8] sm:$0xf]
  %v119 = vld [vmem:[%s1 + $0xdc] sm:$0xf]
  %v120 = vld [vmem:[%s1 + $0xe0] sm:$0xf]
  %v121 = vld [vmem:[%s1 + $0xe4] sm:$0xf]
  %v122 = vld [vmem:[%s1 + $0xe8] sm:$0xf]
  %v123 = vld [vmem:[%s1 + $0xec] sm:$0xf]
  %v124 = vld [vmem:[%s1 + $0xf0] sm:$0xf]
  %v125 = vld [vmem:[%s1 + $0xf4] sm:$0xf]
  %v126 = vld [vmem:[%s1 + $0xf8] sm:$0xf]
  %v127 = vld [vmem:[%s1 + $0xfc] sm:$0xf]
  %v128 = vld [vmem:[%s2] sm:$0x1]
  %v130 = vperm.slane %v128, 0
  %v182 = vunpack.c.l.b16 %v14
  %v183 = vunpack.c.h.b16 %v14
  %v184 = vunpack.c.l.b16 %v15
  %v185 = vunpack.c.h.b16 %v15
  %v186 = vunpack.c.l.b16 %v16
  %v187 = vunpack.c.h.b16 %v16
  %v188 = vunpack.c.l.b16 %v17
  %v189 = vunpack.c.h.b16 %v17
  %v190 = vunpack.c.l.b16 %v18
  %v191 = vunpack.c.h.b16 %v18
  %v192 = vunpack.c.l.b16 %v19
  %v193 = vunpack.c.h.b16 %v19
  %v194 = vunpack.c.l.b16 %v20
  %v195 = vunpack.c.h.b16 %v20
  %v196 = vunpack.c.l.b16 %v21
  %v197 = vunpack.c.h.b16 %v21
  %v198 = vunpack.c.l.b16 %v22
  %v199 = vunpack.c.h.b16 %v22
  %v200 = vunpack.c.l.b16 %v23
  %v201 = vunpack.c.h.b16 %v23
  %v202 = vunpack.c.l.b16 %v24
  %v203 = vunpack.c.h.b16 %v24
  %v204 = vunpack.c.l.b16 %v25
  %v205 = vunpack.c.h.b16 %v25
  %v206 = vunpack.c.l.b16 %v26
  %v207 = vunpack.c.h.b16 %v26
  %v208 = vunpack.c.l.b16 %v27
  %v209 = vunpack.c.h.b16 %v27
  %v210 = vunpack.c.l.b16 %v28
  %v211 = vunpack.c.h.b16 %v28
  %v212 = vunpack.c.l.b16 %v29
  %v213 = vunpack.c.h.b16 %v29
  %v214 = vunpack.c.l.b16 %v30
  %v215 = vunpack.c.h.b16 %v30
  %v216 = vunpack.c.l.b16 %v31
  %v217 = vunpack.c.h.b16 %v31
  %v218 = vunpack.c.l.b16 %v32
  %v219 = vunpack.c.h.b16 %v32
  %v220 = vunpack.c.l.b16 %v33
  %v221 = vunpack.c.h.b16 %v33
  %v222 = vunpack.c.l.b16 %v34
  %v223 = vunpack.c.h.b16 %v34
  %v224 = vunpack.c.l.b16 %v35
  %v225 = vunpack.c.h.b16 %v35
  %v226 = vunpack.c.l.b16 %v36
  %v227 = vunpack.c.h.b16 %v36
  %v228 = vunpack.c.l.b16 %v37
  %v229 = vunpack.c.h.b16 %v37
  %v230 = vunpack.c.l.b16 %v38
  %v231 = vunpack.c.h.b16 %v38
  %v232 = vunpack.c.l.b16 %v39
  %v233 = vunpack.c.h.b16 %v39
  %v234 = vunpack.c.l.b16 %v40
  %v235 = vunpack.c.h.b16 %v40
  %v236 = vunpack.c.l.b16 %v41
  %v237 = vunpack.c.h.b16 %v41
  %v238 = vunpack.c.l.b16 %v42
  %v239 = vunpack.c.h.b16 %v42
  %v240 = vunpack.c.l.b16 %v43
  %v241 = vunpack.c.h.b16 %v43
  %v242 = vunpack.c.l.b16 %v44
  %v243 = vunpack.c.h.b16 %v44
  %v244 = vunpack.c.l.b16 %v45
  %v245 = vunpack.c.h.b16 %v45
  %v246 = vunpack.c.l.b16 %v46
  %v247 = vunpack.c.h.b16 %v46
  %v248 = vunpack.c.l.b16 %v47
  %v249 = vunpack.c.h.b16 %v47
  %v250 = vunpack.c.l.b16 %v48
  %v251 = vunpack.c.h.b16 %v48
  %v252 = vunpack.c.l.b16 %v49
  %v253 = vunpack.c.h.b16 %v49
  %v254 = vunpack.c.l.b16 %v50
  %v255 = vunpack.c.h.b16 %v50
  %v256 = vunpack.c.l.b16 %v51
  %v257 = vunpack.c.h.b16 %v51
  %v258 = vunpack.c.l.b16 %v52
  %v259 = vunpack.c.h.b16 %v52
  %v260 = vunpack.c.l.b16 %v53
  %v261 = vunpack.c.h.b16 %v53
  %v262 = vunpack.c.l.b16 %v54
  %v263 = vunpack.c.h.b16 %v54
  %v264 = vunpack.c.l.b16 %v55
  %v265 = vunpack.c.h.b16 %v55
  %v266 = vunpack.c.l.b16 %v56
  %v267 = vunpack.c.h.b16 %v56
  %v268 = vunpack.c.l.b16 %v57
  %v269 = vunpack.c.h.b16 %v57
  %v270 = vunpack.c.l.b16 %v58
  %v271 = vunpack.c.h.b16 %v58
  %v272 = vunpack.c.l.b16 %v59
  %v273 = vunpack.c.h.b16 %v59
  %v274 = vunpack.c.l.b16 %v60
  %v275 = vunpack.c.h.b16 %v60
  %v276 = vunpack.c.l.b16 %v61
  %v277 = vunpack.c.h.b16 %v61
  %v278 = vunpack.c.l.b16 %v62
  %v279 = vunpack.c.h.b16 %v62
  %v280 = vunpack.c.l.b16 %v63
  %v281 = vunpack.c.h.b16 %v63
  %v282 = vpack.c.b16 %v186, %v182
  %v283 = vpack.c.b16 %v187, %v183
  %v284 = vpack.c.b16 %v188, %v184
  %v285 = vpack.c.b16 %v189, %v185
  %v286 = vpack.c.b16 %v194, %v190
  %v287 = vpack.c.b16 %v195, %v191
  %v288 = vpack.c.b16 %v196, %v192
  %v289 = vpack.c.b16 %v197, %v193
  %v290 = vpack.c.b16 %v202, %v198
  %v291 = vpack.c.b16 %v203, %v199
  %v292 = vpack.c.b16 %v204, %v200
  %v293 = vpack.c.b16 %v205, %v201
  %v294 = vpack.c.b16 %v210, %v206
  %v295 = vpack.c.b16 %v211, %v207
  %v296 = vpack.c.b16 %v212, %v208
  %v297 = vpack.c.b16 %v213, %v209
  %v298 = vpack.c.b16 %v218, %v214
  %v299 = vpack.c.b16 %v219, %v215
  %v300 = vpack.c.b16 %v220, %v216
  %v301 = vpack.c.b16 %v221, %v217
  %v302 = vpack.c.b16 %v226, %v222
  %v303 = vpack.c.b16 %v227, %v223
  %v304 = vpack.c.b16 %v228, %v224
  %v305 = vpack.c.b16 %v229, %v225
  %v306 = vpack.c.b16 %v234, %v230
  %v307 = vpack.c.b16 %v235, %v231
  %v308 = vpack.c.b16 %v236, %v232
  %v309 = vpack.c.b16 %v237, %v233
  %v310 = vpack.c.b16 %v242, %v238
  %v311 = vpack.c.b16 %v243, %v239
  %v312 = vpack.c.b16 %v244, %v240
  %v313 = vpack.c.b16 %v245, %v241
  %v314 = vpack.c.b16 %v250, %v246
  %v315 = vpack.c.b16 %v251, %v247
  %v316 = vpack.c.b16 %v252, %v248
  %v317 = vpack.c.b16 %v253, %v249
  %v318 = vpack.c.b16 %v258, %v254
  %v319 = vpack.c.b16 %v259, %v255
  %v320 = vpack.c.b16 %v260, %v256
  %v321 = vpack.c.b16 %v261, %v257
  %v322 = vpack.c.b16 %v266, %v262
  %v323 = vpack.c.b16 %v267, %v263
  %v324 = vpack.c.b16 %v268, %v264
  %v325 = vpack.c.b16 %v269, %v265
  %v326 = vpack.c.b16 %v274, %v270
  %v327 = vpack.c.b16 %v275, %v271
  %v328 = vpack.c.b16 %v276, %v272
  %v329 = vpack.c.b16 %v277, %v273
  %v330 = vpack.c.b16 %v278, %v278
  %v331 = vpack.c.b16 %v279, %v279
  %v332 = vpack.c.b16 %v280, %v280
  %v333 = vpack.c.b16 %v281, %v281
  %v450 = vunpack.c.l.b16 %v64
  %v451 = vunpack.c.l.b16 %v65
  %v452 = vunpack.c.l.b16 %v66
  %v453 = vunpack.c.l.b16 %v67
  %v454 = vunpack.c.l.b16 %v68
  %v455 = vunpack.c.l.b16 %v69
  %v456 = vunpack.c.l.b16 %v70
  %v457 = vunpack.c.l.b16 %v71
  %v458 = vunpack.c.l.b16 %v72
  %v459 = vunpack.c.l.b16 %v73
  %v460 = vunpack.c.l.b16 %v74
  %v461 = vunpack.c.l.b16 %v75
  %v462 = vunpack.c.l.b16 %v76
  %v463 = vunpack.c.l.b16 %v77
  %v464 = vunpack.c.l.b16 %v78
  %v465 = vunpack.c.l.b16 %v79
  %v466 = vunpack.c.l.b16 %v80
  %v467 = vunpack.c.l.b16 %v81
  %v468 = vunpack.c.l.b16 %v82
  %v469 = vunpack.c.l.b16 %v83
  %v470 = vunpack.c.l.b16 %v84
  %v471 = vunpack.c.l.b16 %v85
  %v472 = vunpack.c.l.b16 %v86
  %v473 = vunpack.c.l.b16 %v87
  %v474 = vunpack.c.l.b16 %v88
  %v475 = vunpack.c.l.b16 %v89
  %v476 = vunpack.c.l.b16 %v90
  %v477 = vunpack.c.l.b16 %v91
  %v478 = vunpack.c.l.b16 %v92
  %v479 = vunpack.c.l.b16 %v93
  %v480 = vunpack.c.l.b16 %v94
  %v481 = vunpack.c.l.b16 %v95
  %v482 = vunpack.c.l.b16 %v96
  %v483 = vunpack.c.l.b16 %v97
  %v484 = vunpack.c.l.b16 %v98
  %v485 = vunpack.c.l.b16 %v99
  %v486 = vunpack.c.l.b16 %v100
  %v487 = vunpack.c.l.b16 %v101
  %v488 = vunpack.c.l.b16 %v102
  %v489 = vunpack.c.l.b16 %v103
  %v490 = vunpack.c.l.b16 %v104
  %v491 = vunpack.c.l.b16 %v105
  %v492 = vunpack.c.l.b16 %v106
  %v493 = vunpack.c.l.b16 %v107
  %v494 = vunpack.c.l.b16 %v108
  %v495 = vunpack.c.l.b16 %v109
  %v496 = vunpack.c.l.b16 %v110
  %v497 = vunpack.c.l.b16 %v111
  %v498 = vunpack.c.l.b16 %v112
  %v499 = vunpack.c.l.b16 %v113
  %v500 = vunpack.c.l.b16 %v114
  %v501 = vunpack.c.l.b16 %v115
  %v502 = vunpack.c.l.b16 %v116
  %v503 = vunpack.c.l.b16 %v117
  %v504 = vunpack.c.l.b16 %v118
  %v505 = vunpack.c.l.b16 %v119
  %v506 = vunpack.c.l.b16 %v120
  %v507 = vunpack.c.l.b16 %v121
  %v508 = vunpack.c.l.b16 %v122
  %v509 = vunpack.c.l.b16 %v123
  %v510 = vunpack.c.l.b16 %v124
  %v511 = vunpack.c.l.b16 %v125
  %v512 = vunpack.c.l.b16 %v126
  %v513 = vunpack.c.l.b16 %v127
  %v514 = vpack.c.b16 %v451, %v450
  %v515 = vpack.c.b16 %v453, %v452
  %v516 = vpack.c.b16 %v455, %v454
  %v517 = vpack.c.b16 %v457, %v456
  %v518 = vpack.c.b16 %v459, %v458
  %v519 = vpack.c.b16 %v461, %v460
  %v520 = vpack.c.b16 %v463, %v462
  %v521 = vpack.c.b16 %v465, %v464
  %v522 = vpack.c.b16 %v467, %v466
  %v523 = vpack.c.b16 %v469, %v468
  %v524 = vpack.c.b16 %v471, %v470
  %v525 = vpack.c.b16 %v473, %v472
  %v526 = vpack.c.b16 %v475, %v474
  %v527 = vpack.c.b16 %v477, %v476
  %v528 = vpack.c.b16 %v479, %v478
  %v529 = vpack.c.b16 %v481, %v480
  %v530 = vpack.c.b16 %v483, %v482
  %v531 = vpack.c.b16 %v485, %v484
  %v532 = vpack.c.b16 %v487, %v486
  %v533 = vpack.c.b16 %v489, %v488
  %v534 = vpack.c.b16 %v491, %v490
  %v535 = vpack.c.b16 %v493, %v492
  %v536 = vpack.c.b16 %v495, %v494
  %v537 = vpack.c.b16 %v497, %v496
  %v538 = vpack.c.b16 %v499, %v498
  %v539 = vpack.c.b16 %v501, %v500
  %v540 = vpack.c.b16 %v503, %v502
  %v541 = vpack.c.b16 %v505, %v504
  %v542 = vpack.c.b16 %v507, %v506
  %v543 = vpack.c.b16 %v509, %v508
  %v544 = vpack.c.b16 %v511, %v510
  %v545 = vpack.c.b16 %v513, %v512
  %578 = vmatpush.bf16.msra.mxu0 %v521
  %579 = vmatpush.bf16.msra.mxu0 %v520
  %580 = vmatpush.bf16.msra.mxu0 %v519
  %581 = vmatpush.bf16.msra.mxu0 %v518
  %582 = vmatpush.bf16.msra.mxu0 %v517
  %583 = vmatpush.bf16.msra.mxu0 %v516
  %584 = vmatpush.bf16.msra.mxu0 %v515
  %585 = vmatpush.bf16.msra.mxu0 %v514
  %586 = vmatmul.bf16.gmra.mxu0 %v282
  %v587 = vpop.f32.mrf.mxu0
  %v588 = vadd.f32 %v130, %v587
  %v589 = vpop.f32.mrf.mxu0
  %v590 = vadd.f32 %v130, %v589
  %591 = vmatmul.bf16.gmra.mxu0 %v286
  %v592 = vpop.f32.mrf.mxu0
  %v593 = vadd.f32 %v130, %v592
  %v594 = vpop.f32.mrf.mxu0
  %v595 = vadd.f32 %v130, %v594
  %596 = vmatmul.bf16.gmra.mxu0 %v290
  %v597 = vpop.f32.mrf.mxu0
  %v598 = vadd.f32 %v130, %v597
  %v599 = vpop.f32.mrf.mxu0
  %v600 = vadd.f32 %v130, %v599
  %601 = vmatmul.bf16.gmra.mxu0 %v294
  %v602 = vpop.f32.mrf.mxu0
  %v603 = vadd.f32 %v130, %v602
  %v604 = vpop.f32.mrf.mxu0
  %v605 = vadd.f32 %v130, %v604
  %606 = vmatmul.bf16.gmra.mxu0 %v298
  %v607 = vpop.f32.mrf.mxu0
  %v608 = vadd.f32 %v130, %v607
  %v609 = vpop.f32.mrf.mxu0
  %v610 = vadd.f32 %v130, %v609
  %611 = vmatmul.bf16.gmra.mxu0 %v302
  %v612 = vpop.f32.mrf.mxu0
  %v613 = vadd.f32 %v130, %v612
  %v614 = vpop.f32.mrf.mxu0
  %v615 = vadd.f32 %v130, %v614
  %616 = vmatmul.bf16.gmra.mxu0 %v306
  %v617 = vpop.f32.mrf.mxu0
  %v618 = vadd.f32 %v130, %v617
  %v619 = vpop.f32.mrf.mxu0
  %v620 = vadd.f32 %v130, %v619
  %621 = vmatmul.bf16.gmra.mxu0 %v310
  %v622 = vpop.f32.mrf.mxu0
  %v623 = vadd.f32 %v130, %v622
  %v624 = vpop.f32.mrf.mxu0
  %v625 = vadd.f32 %v130, %v624
  %626 = vmatmul.bf16.gmra.mxu0 %v314
  %v627 = vpop.f32.mrf.mxu0
  %v628 = vadd.f32 %v130, %v627
  %v629 = vpop.f32.mrf.mxu0
  %v630 = vadd.f32 %v130, %v629
  %631 = vmatmul.bf16.gmra.mxu0 %v318
  %v632 = vpop.f32.mrf.mxu0
  %v633 = vadd.f32 %v130, %v632
  %v634 = vpop.f32.mrf.mxu0
  %v635 = vadd.f32 %v130, %v634
  %636 = vmatmul.bf16.gmra.mxu0 %v322
  %v637 = vpop.f32.mrf.mxu0
  %v638 = vadd.f32 %v130, %v637
  %v639 = vpop.f32.mrf.mxu0
  %v640 = vadd.f32 %v130, %v639
  %641 = vmatmul.bf16.gmra.mxu0 %v326
  %v642 = vpop.f32.mrf.mxu0
  %v643 = vadd.f32 %v130, %v642
  %v644 = vpop.f32.mrf.mxu0
  %v645 = vadd.f32 %v130, %v644
  %646 = vmatmul.bf16.gmra.mxu0 %v330
  %v647 = vpop.f32.mrf.mxu0
  %v648 = vadd.f32 %v130, %v647
  %v649 = vpop.f32.mrf.mxu0
  %650 = vdwg.mxu0
  %651 = vmatpush.bf16.msra.mxu0 %v529
  %652 = vmatpush.bf16.msra.mxu0 %v528
  %653 = vmatpush.bf16.msra.mxu0 %v527
  %654 = vmatpush.bf16.msra.mxu0 %v526
  %655 = vmatpush.bf16.msra.mxu0 %v525
  %656 = vmatpush.bf16.msra.mxu0 %v524
  %657 = vmatpush.bf16.msra.mxu0 %v523
  %658 = vmatpush.bf16.msra.mxu0 %v522
  %659 = vmatmul.bf16.gmra.mxu0 %v283
  %v660 = vpop.f32.mrf.mxu0
  %v661 = vadd.f32 %v588, %v660
  %v662 = vpop.f32.mrf.mxu0
  %v663 = vadd.f32 %v590, %v662
  %664 = vmatmul.bf16.gmra.mxu0 %v287
  %v665 = vpop.f32.mrf.mxu0
  %v666 = vadd.f32 %v593, %v665
  %v667 = vpop.f32.mrf.mxu0
  %v668 = vadd.f32 %v595, %v667
  %669 = vmatmul.bf16.gmra.mxu0 %v291
  %v670 = vpop.f32.mrf.mxu0
  %v671 = vadd.f32 %v598, %v670
  %v672 = vpop.f32.mrf.mxu0
  %v673 = vadd.f32 %v600, %v672
  %674 = vmatmul.bf16.gmra.mxu0 %v295
  %v675 = vpop.f32.mrf.mxu0
  %v676 = vadd.f32 %v603, %v675
  %v677 = vpop.f32.mrf.mxu0
  %v678 = vadd.f32 %v605, %v677
  %679 = vmatmul.bf16.gmra.mxu0 %v299
  %v680 = vpop.f32.mrf.mxu0
  %v681 = vadd.f32 %v608, %v680
  %v682 = vpop.f32.mrf.mxu0
  %v683 = vadd.f32 %v610, %v682
  %684 = vmatmul.bf16.gmra.mxu0 %v303
  %v685 = vpop.f32.mrf.mxu0
  %v686 = vadd.f32 %v613, %v685
  %v687 = vpop.f32.mrf.mxu0
  %v688 = vadd.f32 %v615, %v687
  %689 = vmatmul.bf16.gmra.mxu0 %v307
  %v690 = vpop.f32.mrf.mxu0
  %v691 = vadd.f32 %v618, %v690
  %v692 = vpop.f32.mrf.mxu0
  %v693 = vadd.f32 %v620, %v692
  %694 = vmatmul.bf16.gmra.mxu0 %v311
  %v695 = vpop.f32.mrf.mxu0
  %v696 = vadd.f32 %v623, %v695
  %v697 = vpop.f32.mrf.mxu0
  %v698 = vadd.f32 %v625, %v697
  %699 = vmatmul.bf16.gmra.mxu0 %v315
  %v700 = vpop.f32.mrf.mxu0
  %v701 = vadd.f32 %v628, %v700
  %v702 = vpop.f32.mrf.mxu0
  %v703 = vadd.f32 %v630, %v702
  %704 = vmatmul.bf16.gmra.mxu0 %v319
  %v705 = vpop.f32.mrf.mxu0
  %v706 = vadd.f32 %v633, %v705
  %v707 = vpop.f32.mrf.mxu0
  %v708 = vadd.f32 %v635, %v707
  %709 = vmatmul.bf16.gmra.mxu0 %v323
  %v710 = vpop.f32.mrf.mxu0
  %v711 = vadd.f32 %v638, %v710
  %v712 = vpop.f32.mrf.mxu0
  %v713 = vadd.f32 %v640, %v712
  %714 = vmatmul.bf16.gmra.mxu0 %v327
  %v715 = vpop.f32.mrf.mxu0
  %v716 = vadd.f32 %v643, %v715
  %v717 = vpop.f32.mrf.mxu0
  %v718 = vadd.f32 %v645, %v717
  %719 = vmatmul.bf16.gmra.mxu0 %v331
  %v720 = vpop.f32.mrf.mxu0
  %v721 = vadd.f32 %v648, %v720
  %v722 = vpop.f32.mrf.mxu0
  %723 = vdwg.mxu0
  %724 = vmatpush.bf16.msra.mxu0 %v537
  %725 = vmatpush.bf16.msra.mxu0 %v536
  %726 = vmatpush.bf16.msra.mxu0 %v535
  %727 = vmatpush.bf16.msra.mxu0 %v534
  %728 = vmatpush.bf16.msra.mxu0 %v533
  %729 = vmatpush.bf16.msra.mxu0 %v532
  %730 = vmatpush.bf16.msra.mxu0 %v531
  %731 = vmatpush.bf16.msra.mxu0 %v530
  %732 = vmatmul.bf16.gmra.mxu0 %v284
  %v733 = vpop.f32.mrf.mxu0
  %v734 = vadd.f32 %v661, %v733
  %v735 = vpop.f32.mrf.mxu0
  %v736 = vadd.f32 %v663, %v735
  %737 = vmatmul.bf16.gmra.mxu0 %v288
  %v738 = vpop.f32.mrf.mxu0
  %v739 = vadd.f32 %v666, %v738
  %v740 = vpop.f32.mrf.mxu0
  %v741 = vadd.f32 %v668, %v740
  %742 = vmatmul.bf16.gmra.mxu0 %v292
  %v743 = vpop.f32.mrf.mxu0
  %v744 = vadd.f32 %v671, %v743
  %v745 = vpop.f32.mrf.mxu0
  %v746 = vadd.f32 %v673, %v745
  %747 = vmatmul.bf16.gmra.mxu0 %v296
  %v748 = vpop.f32.mrf.mxu0
  %v749 = vadd.f32 %v676, %v748
  %v750 = vpop.f32.mrf.mxu0
  %v751 = vadd.f32 %v678, %v750
  %752 = vmatmul.bf16.gmra.mxu0 %v300
  %v753 = vpop.f32.mrf.mxu0
  %v754 = vadd.f32 %v681, %v753
  %v755 = vpop.f32.mrf.mxu0
  %v756 = vadd.f32 %v683, %v755
  %757 = vmatmul.bf16.gmra.mxu0 %v304
  %v758 = vpop.f32.mrf.mxu0
  %v759 = vadd.f32 %v686, %v758
  %v760 = vpop.f32.mrf.mxu0
  %v761 = vadd.f32 %v688, %v760
  %762 = vmatmul.bf16.gmra.mxu0 %v308
  %v763 = vpop.f32.mrf.mxu0
  %v764 = vadd.f32 %v691, %v763
  %v765 = vpop.f32.mrf.mxu0
  %v766 = vadd.f32 %v693, %v765
  %767 = vmatmul.bf16.gmra.mxu0 %v312
  %v768 = vpop.f32.mrf.mxu0
  %v769 = vadd.f32 %v696, %v768
  %v770 = vpop.f32.mrf.mxu0
  %v771 = vadd.f32 %v698, %v770
  %772 = vmatmul.bf16.gmra.mxu0 %v316
  %v773 = vpop.f32.mrf.mxu0
  %v774 = vadd.f32 %v701, %v773
  %v775 = vpop.f32.mrf.mxu0
  %v776 = vadd.f32 %v703, %v775
  %777 = vmatmul.bf16.gmra.mxu0 %v320
  %v778 = vpop.f32.mrf.mxu0
  %v779 = vadd.f32 %v706, %v778
  %v780 = vpop.f32.mrf.mxu0
  %v781 = vadd.f32 %v708, %v780
  %782 = vmatmul.bf16.gmra.mxu0 %v324
  %v783 = vpop.f32.mrf.mxu0
  %v784 = vadd.f32 %v711, %v783
  %v785 = vpop.f32.mrf.mxu0
  %v786 = vadd.f32 %v713, %v785
  %787 = vmatmul.bf16.gmra.mxu0 %v328
  %v788 = vpop.f32.mrf.mxu0
  %v789 = vadd.f32 %v716, %v788
  %v790 = vpop.f32.mrf.mxu0
  %v791 = vadd.f32 %v718, %v790
  %792 = vmatmul.bf16.gmra.mxu0 %v332
  %v793 = vpop.f32.mrf.mxu0
  %v794 = vadd.f32 %v721, %v793
  %v795 = vpop.f32.mrf.mxu0
  %796 = vdwg.mxu0
  %797 = vmatpush.bf16.msra.mxu0 %v545
  %798 = vmatpush.bf16.msra.mxu0 %v544
  %799 = vmatpush.bf16.msra.mxu0 %v543
  %800 = vmatpush.bf16.msra.mxu0 %v542
  %801 = vmatpush.bf16.msra.mxu0 %v541
  %802 = vmatpush.bf16.msra.mxu0 %v540
  %803 = vmatpush.bf16.msra.mxu0 %v539
  %804 = vmatpush.bf16.msra.mxu0 %v538
  %805 = vmatmul.bf16.gmra.mxu0 %v285
  %v806 = vpop.f32.mrf.mxu0
  %v807 = vadd.f32 %v734, %v806
  %v808 = vpop.f32.mrf.mxu0
  %v809 = vadd.f32 %v736, %v808
  %810 = vmatmul.bf16.gmra.mxu0 %v289
  %v811 = vpop.f32.mrf.mxu0
  %v812 = vadd.f32 %v739, %v811
  %v813 = vpop.f32.mrf.mxu0
  %v814 = vadd.f32 %v741, %v813
  %815 = vmatmul.bf16.gmra.mxu0 %v293
  %v816 = vpop.f32.mrf.mxu0
  %v817 = vadd.f32 %v744, %v816
  %v818 = vpop.f32.mrf.mxu0
  %v819 = vadd.f32 %v746, %v818
  %820 = vmatmul.bf16.gmra.mxu0 %v297
  %v821 = vpop.f32.mrf.mxu0
  %v822 = vadd.f32 %v749, %v821
  %v823 = vpop.f32.mrf.mxu0
  %v824 = vadd.f32 %v751, %v823
  %825 = vmatmul.bf16.gmra.mxu0 %v301
  %v826 = vpop.f32.mrf.mxu0
  %v827 = vadd.f32 %v754, %v826
  %v828 = vpop.f32.mrf.mxu0
  %v829 = vadd.f32 %v756, %v828
  %830 = vmatmul.bf16.gmra.mxu0 %v305
  %v831 = vpop.f32.mrf.mxu0
  %v832 = vadd.f32 %v759, %v831
  %v833 = vpop.f32.mrf.mxu0
  %v834 = vadd.f32 %v761, %v833
  %835 = vmatmul.bf16.gmra.mxu0 %v309
  %v836 = vpop.f32.mrf.mxu0
  %v837 = vadd.f32 %v764, %v836
  %v838 = vpop.f32.mrf.mxu0
  %v839 = vadd.f32 %v766, %v838
  %840 = vmatmul.bf16.gmra.mxu0 %v313
  %v841 = vpop.f32.mrf.mxu0
  %v842 = vadd.f32 %v769, %v841
  %v843 = vpop.f32.mrf.mxu0
  %v844 = vadd.f32 %v771, %v843
  %845 = vmatmul.bf16.gmra.mxu0 %v317
  %v846 = vpop.f32.mrf.mxu0
  %v847 = vadd.f32 %v774, %v846
  %v848 = vpop.f32.mrf.mxu0
  %v849 = vadd.f32 %v776, %v848
  %850 = vmatmul.bf16.gmra.mxu0 %v321
  %v851 = vpop.f32.mrf.mxu0
  %v852 = vadd.f32 %v779, %v851
  %v853 = vpop.f32.mrf.mxu0
  %v854 = vadd.f32 %v781, %v853
  %855 = vmatmul.bf16.gmra.mxu0 %v325
  %v856 = vpop.f32.mrf.mxu0
  %v857 = vadd.f32 %v784, %v856
  %v858 = vpop.f32.mrf.mxu0
  %v859 = vadd.f32 %v786, %v858
  %860 = vmatmul.bf16.gmra.mxu0 %v329
  %v861 = vpop.f32.mrf.mxu0
  %v862 = vadd.f32 %v789, %v861
  %v863 = vpop.f32.mrf.mxu0
  %v864 = vadd.f32 %v791, %v863
  %865 = vmatmul.bf16.gmra.mxu0 %v333
  %v866 = vpop.f32.mrf.mxu0
  %v867 = vadd.f32 %v794, %v866
  %v868 = vpop.f32.mrf.mxu0
  %869 = vdwg.mxu0
  %v870 = vmax.f32 %v807, 0.0
  %v871 = vmax.f32 %v809, 0.0
  %v872 = vmax.f32 %v812, 0.0
  %v873 = vmax.f32 %v814, 0.0
  %v874 = vmax.f32 %v817, 0.0
  %v875 = vmax.f32 %v819, 0.0
  %v876 = vmax.f32 %v822, 0.0
  %v877 = vmax.f32 %v824, 0.0
  %v878 = vmax.f32 %v827, 0.0
  %v879 = vmax.f32 %v829, 0.0
  %v880 = vmax.f32 %v832, 0.0
  %v881 = vmax.f32 %v834, 0.0
  %v882 = vmax.f32 %v837, 0.0
  %v883 = vmax.f32 %v839, 0.0
  %v884 = vmax.f32 %v842, 0.0
  %v885 = vmax.f32 %v844, 0.0
  %v886 = vmax.f32 %v847, 0.0
  %v887 = vmax.f32 %v849, 0.0
  %v888 = vmax.f32 %v852, 0.0
  %v889 = vmax.f32 %v854, 0.0
  %v890 = vmax.f32 %v857, 0.0
  %v891 = vmax.f32 %v859, 0.0
  %v892 = vmax.f32 %v862, 0.0
  %v893 = vmax.f32 %v864, 0.0
  %v894 = vmax.f32 %v867, 0.0
  %895 = vst [vmem:[%s3] sm:$0xff] %v870
  %896 = vst [vmem:[%s3 + $0x8] sm:$0xff] %v871
  %897 = vst [vmem:[%s3 + $0x10] sm:$0xff] %v872
  %898 = vst [vmem:[%s3 + $0x18] sm:$0xff] %v873
  %899 = vst [vmem:[%s3 + $0x20] sm:$0xff] %v874
  %900 = vst [vmem:[%s3 + $0x28] sm:$0xff] %v875
  %901 = vst [vmem:[%s3 + $0x30] sm:$0xff] %v876
  %902 = vst [vmem:[%s3 + $0x38] sm:$0xff] %v877
  %903 = vst [vmem:[%s3 + $0x40] sm:$0xff] %v878
  %904 = vst [vmem:[%s3 + $0x48] sm:$0xff] %v879
  %905 = vst [vmem:[%s3 + $0x50] sm:$0xff] %v880
  %906 = vst [vmem:[%s3 + $0x58] sm:$0xff] %v881
  %907 = vst [vmem:[%s3 + $0x60] sm:$0xff] %v882
  %908 = vst [vmem:[%s3 + $0x68] sm:$0xff] %v883
  %909 = vst [vmem:[%s3 + $0x70] sm:$0xff] %v884
  %910 = vst [vmem:[%s3 + $0x78] sm:$0xff] %v885
  %911 = vst [vmem:[%s3 + $0x80] sm:$0xff] %v886
  %912 = vst [vmem:[%s3 + $0x88] sm:$0xff] %v887
  %913 = vst [vmem:[%s3 + $0x90] sm:$0xff] %v888
  %914 = vst [vmem:[%s3 + $0x98] sm:$0xff] %v889
  %915 = vst [vmem:[%s3 + $0xa0] sm:$0xff] %v890
  %916 = vst [vmem:[%s3 + $0xa8] sm:$0xff] %v891
  %917 = vst [vmem:[%s3 + $0xb0] sm:$0xff] %v892
  %918 = vst [vmem:[%s3 + $0xb8] sm:$0xff] %v893
  %919 = vst [vmem:[%s3 + $0xc0] sm:$0xff] %v894
  // Predicated region
  $region14: #{autoencoder_forward.11} parent=0 // pred_check
    _
  $region15: #{autoencoder_forward.11} parent=0 // pred_check_branch
    %921 = sbr.rel (0) target = $region17
  $region16: #{autoencoder_forward.11} parent=0 // pred_region
    _
  $region17: #{autoencoder_forward.11} parent=0 // pred_fallthru
    _
  // Predicated region
  $region18: #{autoencoder_forward.11} parent=0 // pred_check
    _
  $region19: #{autoencoder_forward.11} parent=0 // pred_check_branch
    %923 = sbr.rel (0) target = $region21
  $region20: #{autoencoder_forward.11} parent=0 // pred_region
    _
  $region21: #{autoencoder_forward.11} parent=0 // pred_fallthru
    _

// kernel: autoencoder_forward.12
$region0: #{autoencoder_forward.12}
  #allocation0 [shape = 'u32[]', space=smem, size = 0x4, offset = 0x4, fixed_abs, tag = 'smem constant byte address 0x4 - core index']
  #allocation1 [shape = 'u32[72,128]{1,0:T(1,128)}', space=vmem, size = 0x9000, scoped, tag = 'internal scratch']
  %s0 = inlined_call_operand.vmem [shape: bf16[32,512], index: 0, kind: input, shape index: {}]
  %s1 = inlined_call_operand.vmem [shape: bf16[512,128], index: 1, kind: input, shape index: {}]
  %s2 = inlined_call_operand.vmem [shape: f32[1,128], index: 2, kind: input, shape index: {}]
  %s3 = inlined_call_operand.vmem [shape: f32[32,128], index: 3, kind: output, shape index: {}]
  %s4 = sld [smem:[#allocation0]]
  $region22: #{autoencoder_forward.12} parent=0
    _
  %s6 = ssub.s32 1, %s4
  %s7 = scalar_select 0, %s6, %s4
  // Predicated region
  $region2: #{autoencoder_forward.12} parent=0 // pred_check
    _
  $region3: #{autoencoder_forward.12} parent=0 // pred_check_branch
    %9 = sbr.rel (0) target = $region5
  $region4: #{autoencoder_forward.12} parent=0 // pred_region
    _
  $region5: #{autoencoder_forward.12} parent=0 // pred_fallthru
    _
  // Predicated region
  $region6: #{autoencoder_forward.12} parent=0 // pred_check
    _
  $region7: #{autoencoder_forward.12} parent=0 // pred_check_branch
    %11 = sbr.rel (0) target = $region9
  $region8: #{autoencoder_forward.12} parent=0 // pred_region
    _
  $region9: #{autoencoder_forward.12} parent=0 // pred_fallthru
    _
  // Predicated region
  $region10: #{autoencoder_forward.12} parent=0 // pred_check
    _
  $region11: #{autoencoder_forward.12} parent=0 // pred_check_branch
    %13 = sbr.rel (0) target = $region13
  $region12: #{autoencoder_forward.12} parent=0 // pred_region
    _
  $region13: #{autoencoder_forward.12} parent=0 // pred_fallthru
    _
  %v14 = vld [vmem:[%s0] sm:$0xff]
  %v15 = vld [vmem:[%s0 + $0x8] sm:$0xff]
  %v16 = vld [vmem:[%s0 + $0x10] sm:$0xff]
  %v17 = vld [vmem:[%s0 + $0x18] sm:$0xff]
  %v18 = vld [vmem:[%s0 + $0x20] sm:$0xff]
  %v19 = vld [vmem:[%s0 + $0x28] sm:$0xff]
  %v20 = vld [vmem:[%s0 + $0x30] sm:$0xff]
  %v21 = vld [vmem:[%s0 + $0x38] sm:$0xff]
  %v22 = vld [vmem:[%s1] sm:$0xf]
  %v23 = vld [vmem:[%s1 + $0x4] sm:$0xf]
  %v24 = vld [vmem:[%s1 + $0x8] sm:$0xf]
  %v25 = vld [vmem:[%s1 + $0xc] sm:$0xf]
  %v26 = vld [vmem:[%s1 + $0x10] sm:$0xf]
  %v27 = vld [vmem:[%s1 + $0x14] sm:$0xf]
  %v28 = vld [vmem:[%s1 + $0x18] sm:$0xf]
  %v29 = vld [vmem:[%s1 + $0x1c] sm:$0xf]
  %v30 = vld [vmem:[%s1 + $0x20] sm:$0xf]
  %v31 = vld [vmem:[%s1 + $0x24] sm:$0xf]
  %v32 = vld [vmem:[%s1 + $0x28] sm:$0xf]
  %v33 = vld [vmem:[%s1 + $0x2c] sm:$0xf]
  %v34 = vld [vmem:[%s1 + $0x30] sm:$0xf]
  %v35 = vld [vmem:[%s1 + $0x34] sm:$0xf]
  %v36 = vld [vmem:[%s1 + $0x38] sm:$0xf]
  %v37 = vld [vmem:[%s1 + $0x3c] sm:$0xf]
  %v38 = vld [vmem:[%s1 + $0x40] sm:$0xf]
  %v39 = vld [vmem:[%s1 + $0x44] sm:$0xf]
  %v40 = vld [vmem:[%s1 + $0x48] sm:$0xf]
  %v41 = vld [vmem:[%s1 + $0x4c] sm:$0xf]
  %v42 = vld [vmem:[%s1 + $0x50] sm:$0xf]
  %v43 = vld [vmem:[%s1 + $0x54] sm:$0xf]
  %v44 = vld [vmem:[%s1 + $0x58] sm:$0xf]
  %v45 = vld [vmem:[%s1 + $0x5c] sm:$0xf]
  %v46 = vld [vmem:[%s1 + $0x60] sm:$0xf]
  %v47 = vld [vmem:[%s1 + $0x64] sm:$0xf]
  %v48 = vld [vmem:[%s1 + $0x68] sm:$0xf]
  %v49 = vld [vmem:[%s1 + $0x6c] sm:$0xf]
  %v50 = vld [vmem:[%s1 + $0x70] sm:$0xf]
  %v51 = vld [vmem:[%s1 + $0x74] sm:$0xf]
  %v52 = vld [vmem:[%s1 + $0x78] sm:$0xf]
  %v53 = vld [vmem:[%s1 + $0x7c] sm:$0xf]
  %v54 = vld [vmem:[%s1 + $0x80] sm:$0xf]
  %v55 = vld [vmem:[%s1 + $0x84] sm:$0xf]
  %v56 = vld [vmem:[%s1 + $0x88] sm:$0xf]
  %v57 = vld [vmem:[%s1 + $0x8c] sm:$0xf]
  %v58 = vld [vmem:[%s1 + $0x90] sm:$0xf]
  %v59 = vld [vmem:[%s1 + $0x94] sm:$0xf]
  %v60 = vld [vmem:[%s1 + $0x98] sm:$0xf]
  %v61 = vld [vmem:[%s1 + $0x9c] sm:$0xf]
  %v62 = vld [vmem:[%s1 + $0xa0] sm:$0xf]
  %v63 = vld [vmem:[%s1 + $0xa4] sm:$0xf]
  %v64 = vld [vmem:[%s1 + $0xa8] sm:$0xf]
  %v65 = vld [vmem:[%s1 + $0xac] sm:$0xf]
  %v66 = vld [vmem:[%s1 + $0xb0] sm:$0xf]
  %v67 = vld [vmem:[%s1 + $0xb4] sm:$0xf]
  %v68 = vld [vmem:[%s1 + $0xb8] sm:$0xf]
  %v69 = vld [vmem:[%s1 + $0xbc] sm:$0xf]
  %v70 = vld [vmem:[%s1 + $0xc0] sm:$0xf]
  %v71 = vld [vmem:[%s1 + $0xc4] sm:$0xf]
  %v72 = vld [vmem:[%s1 + $0xc8] sm:$0xf]
  %v73 = vld [vmem:[%s1 + $0xcc] sm:$0xf]
  %v74 = vld [vmem:[%s1 + $0xd0] sm:$0xf]
  %v75 = vld [vmem:[%s1 + $0xd4] sm:$0xf]
  %v76 = vld [vmem:[%s1 + $0xd8] sm:$0xf]
  %v77 = vld [vmem:[%s1 + $0xdc] sm:$0xf]
  %v78 = vld [vmem:[%s1 + $0xe0] sm:$0xf]
  %v79 = vld [vmem:[%s1 + $0xe4] sm:$0xf]
  %v80 = vld [vmem:[%s1 + $0xe8] sm:$0xf]
  %v81 = vld [vmem:[%s1 + $0xec] sm:$0xf]
  %v82 = vld [vmem:[%s1 + $0xf0] sm:$0xf]
  %v83 = vld [vmem:[%s1 + $0xf4] sm:$0xf]
  %v84 = vld [vmem:[%s1 + $0xf8] sm:$0xf]
  %v85 = vld [vmem:[%s1 + $0xfc] sm:$0xf]
  %v86 = vld [vmem:[%s2] sm:$0x1]
  %v88 = vperm.slane %v86, 0
  %v98 = vunpack.c.l.b16 %v14
  %v99 = vunpack.c.h.b16 %v14
  %v100 = vunpack.c.l.b16 %v15
  %v101 = vunpack.c.h.b16 %v15
  %v102 = vunpack.c.l.b16 %v16
  %v103 = vunpack.c.h.b16 %v16
  %v104 = vunpack.c.l.b16 %v17
  %v105 = vunpack.c.h.b16 %v17
  %v106 = vunpack.c.l.b16 %v18
  %v107 = vunpack.c.h.b16 %v18
  %v108 = vunpack.c.l.b16 %v19
  %v109 = vunpack.c.h.b16 %v19
  %v110 = vunpack.c.l.b16 %v20
  %v111 = vunpack.c.h.b16 %v20
  %v112 = vunpack.c.l.b16 %v21
  %v113 = vunpack.c.h.b16 %v21
  %v114 = vpack.c.b16 %v102, %v98
  %v115 = vpack.c.b16 %v103, %v99
  %v116 = vpack.c.b16 %v104, %v100
  %v117 = vpack.c.b16 %v105, %v101
  %v118 = vpack.c.b16 %v110, %v106
  %v119 = vpack.c.b16 %v111, %v107
  %v120 = vpack.c.b16 %v112, %v108
  %v121 = vpack.c.b16 %v113, %v109
  %v194 = vunpack.c.l.b16 %v22
  %v195 = vunpack.c.l.b16 %v23
  %v196 = vunpack.c.l.b16 %v24
  %v197 = vunpack.c.l.b16 %v25
  %v198 = vunpack.c.l.b16 %v26
  %v199 = vunpack.c.l.b16 %v27
  %v200 = vunpack.c.l.b16 %v28
  %v201 = vunpack.c.l.b16 %v29
  %v202 = vunpack.c.l.b16 %v30
  %v203 = vunpack.c.l.b16 %v31
  %v204 = vunpack.c.l.b16 %v32
  %v205 = vunpack.c.l.b16 %v33
  %v206 = vunpack.c.l.b16 %v34
  %v207 = vunpack.c.l.b16 %v35
  %v208 = vunpack.c.l.b16 %v36
  %v209 = vunpack.c.l.b16 %v37
  %v210 = vunpack.c.l.b16 %v38
  %v211 = vunpack.c.l.b16 %v39
  %v212 = vunpack.c.l.b16 %v40
  %v213 = vunpack.c.l.b16 %v41
  %v214 = vunpack.c.l.b16 %v42
  %v215 = vunpack.c.l.b16 %v43
  %v216 = vunpack.c.l.b16 %v44
  %v217 = vunpack.c.l.b16 %v45
  %v218 = vunpack.c.l.b16 %v46
  %v219 = vunpack.c.l.b16 %v47
  %v220 = vunpack.c.l.b16 %v48
  %v221 = vunpack.c.l.b16 %v49
  %v222 = vunpack.c.l.b16 %v50
  %v223 = vunpack.c.l.b16 %v51
  %v224 = vunpack.c.l.b16 %v52
  %v225 = vunpack.c.l.b16 %v53
  %v226 = vunpack.c.l.b16 %v54
  %v227 = vunpack.c.l.b16 %v55
  %v228 = vunpack.c.l.b16 %v56
  %v229 = vunpack.c.l.b16 %v57
  %v230 = vunpack.c.l.b16 %v58
  %v231 = vunpack.c.l.b16 %v59
  %v232 = vunpack.c.l.b16 %v60
  %v233 = vunpack.c.l.b16 %v61
  %v234 = vunpack.c.l.b16 %v62
  %v235 = vunpack.c.l.b16 %v63
  %v236 = vunpack.c.l.b16 %v64
  %v237 = vunpack.c.l.b16 %v65
  %v238 = vunpack.c.l.b16 %v66
  %v239 = vunpack.c.l.b16 %v67
  %v240 = vunpack.c.l.b16 %v68
  %v241 = vunpack.c.l.b16 %v69
  %v242 = vunpack.c.l.b16 %v70
  %v243 = vunpack.c.l.b16 %v71
  %v244 = vunpack.c.l.b16 %v72
  %v245 = vunpack.c.l.b16 %v73
  %v246 = vunpack.c.l.b16 %v74
  %v247 = vunpack.c.l.b16 %v75
  %v248 = vunpack.c.l.b16 %v76
  %v249 = vunpack.c.l.b16 %v77
  %v250 = vunpack.c.l.b16 %v78
  %v251 = vunpack.c.l.b16 %v79
  %v252 = vunpack.c.l.b16 %v80
  %v253 = vunpack.c.l.b16 %v81
  %v254 = vunpack.c.l.b16 %v82
  %v255 = vunpack.c.l.b16 %v83
  %v256 = vunpack.c.l.b16 %v84
  %v257 = vunpack.c.l.b16 %v85
  %v258 = vpack.c.b16 %v195, %v194
  %v259 = vpack.c.b16 %v197, %v196
  %v260 = vpack.c.b16 %v199, %v198
  %v261 = vpack.c.b16 %v201, %v200
  %v262 = vpack.c.b16 %v203, %v202
  %v263 = vpack.c.b16 %v205, %v204
  %v264 = vpack.c.b16 %v207, %v206
  %v265 = vpack.c.b16 %v209, %v208
  %v266 = vpack.c.b16 %v211, %v210
  %v267 = vpack.c.b16 %v213, %v212
  %v268 = vpack.c.b16 %v215, %v214
  %v269 = vpack.c.b16 %v217, %v216
  %v270 = vpack.c.b16 %v219, %v218
  %v271 = vpack.c.b16 %v221, %v220
  %v272 = vpack.c.b16 %v223, %v222
  %v273 = vpack.c.b16 %v225, %v224
  %v274 = vpack.c.b16 %v227, %v226
  %v275 = vpack.c.b16 %v229, %v228
  %v276 = vpack.c.b16 %v231, %v230
  %v277 = vpack.c.b16 %v233, %v232
  %v278 = vpack.c.b16 %v235, %v234
  %v279 = vpack.c.b16 %v237, %v236
  %v280 = vpack.c.b16 %v239, %v238
  %v281 = vpack.c.b16 %v241, %v240
  %v282 = vpack.c.b16 %v243, %v242
  %v283 = vpack.c.b16 %v245, %v244
  %v284 = vpack.c.b16 %v247, %v246
  %v285 = vpack.c.b16 %v249, %v248
  %v286 = vpack.c.b16 %v251, %v250
  %v287 = vpack.c.b16 %v253, %v252
  %v288 = vpack.c.b16 %v255, %v254
  %v289 = vpack.c.b16 %v257, %v256
  %322 = vmatpush.bf16.msra.mxu0 %v265
  %323 = vmatpush.bf16.msra.mxu0 %v264
  %324 = vmatpush.bf16.msra.mxu0 %v263
  %325 = vmatpush.bf16.msra.mxu0 %v262
  %326 = vmatpush.bf16.msra.mxu0 %v261
  %327 = vmatpush.bf16.msra.mxu0 %v260
  %328 = vmatpush.bf16.msra.mxu0 %v259
  %329 = vmatpush.bf16.msra.mxu0 %v258
  %330 = vmatmul.bf16.gmra.mxu0 %v114
  %v331 = vpop.f32.mrf.mxu0
  %v332 = vadd.f32 %v88, %v331
  %v333 = vpop.f32.mrf.mxu0
  %v334 = vadd.f32 %v88, %v333
  %335 = vmatmul.bf16.gmra.mxu0 %v118
  %v336 = vpop.f32.mrf.mxu0
  %v337 = vadd.f32 %v88, %v336
  %v338 = vpop.f32.mrf.mxu0
  %v339 = vadd.f32 %v88, %v338
  %340 = vdwg.mxu0
  %341 = vmatpush.bf16.msra.mxu0 %v273
  %342 = vmatpush.bf16.msra.mxu0 %v272
  %343 = vmatpush.bf16.msra.mxu0 %v271
  %344 = vmatpush.bf16.msra.mxu0 %v270
  %345 = vmatpush.bf16.msra.mxu0 %v269
  %346 = vmatpush.bf16.msra.mxu0 %v268
  %347 = vmatpush.bf16.msra.mxu0 %v267
  %348 = vmatpush.bf16.msra.mxu0 %v266
  %349 = vmatmul.bf16.gmra.mxu0 %v115
  %v350 = vpop.f32.mrf.mxu0
  %v351 = vadd.f32 %v332, %v350
  %v352 = vpop.f32.mrf.mxu0
  %v353 = vadd.f32 %v334, %v352
  %354 = vmatmul.bf16.gmra.mxu0 %v119
  %v355 = vpop.f32.mrf.mxu0
  %v356 = vadd.f32 %v337, %v355
  %v357 = vpop.f32.mrf.mxu0
  %v358 = vadd.f32 %v339, %v357
  %359 = vdwg.mxu0
  %360 = vmatpush.bf16.msra.mxu0 %v281
  %361 = vmatpush.bf16.msra.mxu0 %v280
  %362 = vmatpush.bf16.msra.mxu0 %v279
  %363 = vmatpush.bf16.msra.mxu0 %v278
  %364 = vmatpush.bf16.msra.mxu0 %v277
  %365 = vmatpush.bf16.msra.mxu0 %v276
  %366 = vmatpush.bf16.msra.mxu0 %v275
  %367 = vmatpush.bf16.msra.mxu0 %v274
  %368 = vmatmul.bf16.gmra.mxu0 %v116
  %v369 = vpop.f32.mrf.mxu0
  %v370 = vadd.f32 %v351, %v369
  %v371 = vpop.f32.mrf.mxu0
  %v372 = vadd.f32 %v353, %v371
  %373 = vmatmul.bf16.gmra.mxu0 %v120
  %v374 = vpop.f32.mrf.mxu0
  %v375 = vadd.f32 %v356, %v374
  %v376 = vpop.f32.mrf.mxu0
  %v377 = vadd.f32 %v358, %v376
  %378 = vdwg.mxu0
  %379 = vmatpush.bf16.msra.mxu0 %v289
  %380 = vmatpush.bf16.msra.mxu0 %v288
  %381 = vmatpush.bf16.msra.mxu0 %v287
  %382 = vmatpush.bf16.msra.mxu0 %v286
  %383 = vmatpush.bf16.msra.mxu0 %v285
  %384 = vmatpush.bf16.msra.mxu0 %v284
  %385 = vmatpush.bf16.msra.mxu0 %v283
  %386 = vmatpush.bf16.msra.mxu0 %v282
  %387 = vmatmul.bf16.gmra.mxu0 %v117
  %v388 = vpop.f32.mrf.mxu0
  %v389 = vadd.f32 %v370, %v388
  %v390 = vpop.f32.mrf.mxu0
  %v391 = vadd.f32 %v372, %v390
  %392 = vmatmul.bf16.gmra.mxu0 %v121
  %v393 = vpop.f32.mrf.mxu0
  %v394 = vadd.f32 %v375, %v393
  %v395 = vpop.f32.mrf.mxu0
  %v396 = vadd.f32 %v377, %v395
  %397 = vdwg.mxu0
  %v398 = vmax.f32 %v389, 0.0
  %v399 = vmax.f32 %v391, 0.0
  %v400 = vmax.f32 %v394, 0.0
  %v401 = vmax.f32 %v396, 0.0
  %402 = vst [vmem:[%s3] sm:$0xff] %v398
  %403 = vst [vmem:[%s3 + $0x8] sm:$0xff] %v399
  %404 = vst [vmem:[%s3 + $0x10] sm:$0xff] %v400
  %405 = vst [vmem:[%s3 + $0x18] sm:$0xff] %v401
  // Predicated region
  $region14: #{autoencoder_forward.12} parent=0 // pred_check
    _
  $region15: #{autoencoder_forward.12} parent=0 // pred_check_branch
    %407 = sbr.rel (0) target = $region17
  $region16: #{autoencoder_forward.12} parent=0 // pred_region
    _
  $region17: #{autoencoder_forward.12} parent=0 // pred_fallthru
    _
  // Predicated region
  $region18: #{autoencoder_forward.12} parent=0 // pred_check
    _
  $region19: #{autoencoder_forward.12} parent=0 // pred_check_branch
    %409 = sbr.rel (0) target = $region21
  $region20: #{autoencoder_forward.12} parent=0 // pred_region
    _
  $region21: #{autoencoder_forward.12} parent=0 // pred_fallthru
    _

// kernel: autoencoder_forward.13
$region0: #{autoencoder_forward.13}
  #allocation0 [shape = 'u32[]', space=smem, size = 0x4, offset = 0x4, fixed_abs, tag = 'smem constant byte address 0x4 - core index']
  #allocation1 [shape = 'u32[72,128]{1,0:T(1,128)}', space=vmem, size = 0x9000, scoped, tag = 'internal scratch']
  %s0 = inlined_call_operand.vmem [shape: bf16[8,512], index: 0, kind: input, shape index: {}]
  %s1 = inlined_call_operand.vmem [shape: bf16[512,128], index: 1, kind: input, shape index: {}]
  %s2 = inlined_call_operand.vmem [shape: f32[1,128], index: 2, kind: input, shape index: {}]
  %s3 = inlined_call_operand.vmem [shape: bf16[128,512], index: 3, kind: input, shape index: {}]
  %s4 = inlined_call_operand.vmem [shape: f32[1,512], index: 4, kind: input, shape index: {}]
  %s5 = inlined_call_operand.vmem [shape: f32[8,128], index: 5, kind: output, shape index: {0}]
  %s6 = inlined_call_operand.vmem [shape: f32[8,512], index: 6, kind: output, shape index: {1}]
  %7 = xla_tuple %s5, %s6
  %s8 = sld [smem:[#allocation0]]
  $region38: #{autoencoder_forward.13} parent=0
    _
  %s10 = ssub.s32 1, %s8
  %s11 = scalar_select 0, %s10, %s8
  // Predicated region
  $region2: #{autoencoder_forward.13} parent=0 // pred_check
    _
  $region3: #{autoencoder_forward.13} parent=0 // pred_check_branch
    %13 = sbr.rel (0) target = $region5
  $region4: #{autoencoder_forward.13} parent=0 // pred_region
    _
  $region5: #{autoencoder_forward.13} parent=0 // pred_fallthru
    _
  // Predicated region
  $region6: #{autoencoder_forward.13} parent=0 // pred_check
    _
  $region7: #{autoencoder_forward.13} parent=0 // pred_check_branch
    %15 = sbr.rel (0) target = $region9
  $region8: #{autoencoder_forward.13} parent=0 // pred_region
    _
  $region9: #{autoencoder_forward.13} parent=0 // pred_fallthru
    _
  // Predicated region
  $region10: #{autoencoder_forward.13} parent=0 // pred_check
    _
  $region11: #{autoencoder_forward.13} parent=0 // pred_check_branch
    %17 = sbr.rel (0) target = $region13
  $region12: #{autoencoder_forward.13} parent=0 // pred_region
    _
  $region13: #{autoencoder_forward.13} parent=0 // pred_fallthru
    _
  // Predicated region
  $region14: #{autoencoder_forward.13} parent=0 // pred_check
    _
  $region15: #{autoencoder_forward.13} parent=0 // pred_check_branch
    %19 = sbr.rel (0) target = $region17
  $region16: #{autoencoder_forward.13} parent=0 // pred_region
    _
  $region17: #{autoencoder_forward.13} parent=0 // pred_fallthru
    _
  // Predicated region
  $region18: #{autoencoder_forward.13} parent=0 // pred_check
    _
  $region19: #{autoencoder_forward.13} parent=0 // pred_check_branch
    %21 = sbr.rel (0) target = $region21
  $region20: #{autoencoder_forward.13} parent=0 // pred_region
    _
  $region21: #{autoencoder_forward.13} parent=0 // pred_fallthru
    _
  %v22 = vld [vmem:[%s0] sm:$0xff]
  %v23 = vld [vmem:[%s0 + $0x8] sm:$0xff]
  %v24 = vld [vmem:[%s1] sm:$0xf]
  %v25 = vld [vmem:[%s1 + $0x4] sm:$0xf]
  %v26 = vld [vmem:[%s1 + $0x8] sm:$0xf]
  %v27 = vld [vmem:[%s1 + $0xc] sm:$0xf]
  %v28 = vld [vmem:[%s1 + $0x10] sm:$0xf]
  %v29 = vld [vmem:[%s1 + $0x14] sm:$0xf]
  %v30 = vld [vmem:[%s1 + $0x18] sm:$0xf]
  %v31 = vld [vmem:[%s1 + $0x1c] sm:$0xf]
  %v32 = vld [vmem:[%s1 + $0x20] sm:$0xf]
  %v33 = vld [vmem:[%s1 + $0x24] sm:$0xf]
  %v34 = vld [vmem:[%s1 + $0x28] sm:$0xf]
  %v35 = vld [vmem:[%s1 + $0x2c] sm:$0xf]
  %v36 = vld [vmem:[%s1 + $0x30] sm:$0xf]
  %v37 = vld [vmem:[%s1 + $0x34] sm:$0xf]
  %v38 = vld [vmem:[%s1 + $0x38] sm:$0xf]
  %v39 = vld [vmem:[%s1 + $0x3c] sm:$0xf]
  %v40 = vld [vmem:[%s1 + $0x40] sm:$0xf]
  %v41 = vld [vmem:[%s1 + $0x44] sm:$0xf]
  %v42 = vld [vmem:[%s1 + $0x48] sm:$0xf]
  %v43 = vld [vmem:[%s1 + $0x4c] sm:$0xf]
  %v44 = vld [vmem:[%s1 + $0x50] sm:$0xf]
  %v45 = vld [vmem:[%s1 + $0x54] sm:$0xf]
  %v46 = vld [vmem:[%s1 + $0x58] sm:$0xf]
  %v47 = vld [vmem:[%s1 + $0x5c] sm:$0xf]
  %v48 = vld [vmem:[%s1 + $0x60] sm:$0xf]
  %v49 = vld [vmem:[%s1 + $0x64] sm:$0xf]
  %v50 = vld [vmem:[%s1 + $0x68] sm:$0xf]
  %v51 = vld [vmem:[%s1 + $0x6c] sm:$0xf]
  %v52 = vld [vmem:[%s1 + $0x70] sm:$0xf]
  %v53 = vld [vmem:[%s1 + $0x74] sm:$0xf]
  %v54 = vld [vmem:[%s1 + $0x78] sm:$0xf]
  %v55 = vld [vmem:[%s1 + $0x7c] sm:$0xf]
  %v56 = vld [vmem:[%s1 + $0x80] sm:$0xf]
  %v57 = vld [vmem:[%s1 + $0x84] sm:$0xf]
  %v58 = vld [vmem:[%s1 + $0x88] sm:$0xf]
  %v59 = vld [vmem:[%s1 + $0x8c] sm:$0xf]
  %v60 = vld [vmem:[%s1 + $0x90] sm:$0xf]
  %v61 = vld [vmem:[%s1 + $0x94] sm:$0xf]
  %v62 = vld [vmem:[%s1 + $0x98] sm:$0xf]
  %v63 = vld [vmem:[%s1 + $0x9c] sm:$0xf]
  %v64 = vld [vmem:[%s1 + $0xa0] sm:$0xf]
  %v65 = vld [vmem:[%s1 + $0xa4] sm:$0xf]
  %v66 = vld [vmem:[%s1 + $0xa8] sm:$0xf]
  %v67 = vld [vmem:[%s1 + $0xac] sm:$0xf]
  %v68 = vld [vmem:[%s1 + $0xb0] sm:$0xf]
  %v69 = vld [vmem:[%s1 + $0xb4] sm:$0xf]
  %v70 = vld [vmem:[%s1 + $0xb8] sm:$0xf]
  %v71 = vld [vmem:[%s1 + $0xbc] sm:$0xf]
  %v72 = vld [vmem:[%s1 + $0xc0] sm:$0xf]
  %v73 = vld [vmem:[%s1 + $0xc4] sm:$0xf]
  %v74 = vld [vmem:[%s1 + $0xc8] sm:$0xf]
  %v75 = vld [vmem:[%s1 + $0xcc] sm:$0xf]
  %v76 = vld [vmem:[%s1 + $0xd0] sm:$0xf]
  %v77 = vld [vmem:[%s1 + $0xd4] sm:$0xf]
  %v78 = vld [vmem:[%s1 + $0xd8] sm:$0xf]
  %v79 = vld [vmem:[%s1 + $0xdc] sm:$0xf]
  %v80 = vld [vmem:[%s1 + $0xe0] sm:$0xf]
  %v81 = vld [vmem:[%s1 + $0xe4] sm:$0xf]
  %v82 = vld [vmem:[%s1 + $0xe8] sm:$0xf]
  %v83 = vld [vmem:[%s1 + $0xec] sm:$0xf]
  %v84 = vld [vmem:[%s1 + $0xf0] sm:$0xf]
  %v85 = vld [vmem:[%s1 + $0xf4] sm:$0xf]
  %v86 = vld [vmem:[%s1 + $0xf8] sm:$0xf]
  %v87 = vld [vmem:[%s1 + $0xfc] sm:$0xf]
  %v88 = vld [vmem:[%s2] sm:$0x1]
  %v90 = vperm.slane %v88, 0
  %v94 = vunpack.c.l.b16 %v22
  %v95 = vunpack.c.h.b16 %v22
  %v96 = vunpack.c.l.b16 %v23
  %v97 = vunpack.c.h.b16 %v23
  %v98 = vpack.c.b16 %v94, %v94
  %v99 = vpack.c.b16 %v95, %v95
  %v100 = vpack.c.b16 %v96, %v96
  %v101 = vpack.c.b16 %v97, %v97
  %v170 = vunpack.c.l.b16 %v24
  %v171 = vunpack.c.l.b16 %v25
  %v172 = vunpack.c.l.b16 %v26
  %v173 = vunpack.c.l.b16 %v27
  %v174 = vunpack.c.l.b16 %v28
  %v175 = vunpack.c.l.b16 %v29
  %v176 = vunpack.c.l.b16 %v30
  %v177 = vunpack.c.l.b16 %v31
  %v178 = vunpack.c.l.b16 %v32
  %v179 = vunpack.c.l.b16 %v33
  %v180 = vunpack.c.l.b16 %v34
  %v181 = vunpack.c.l.b16 %v35
  %v182 = vunpack.c.l.b16 %v36
  %v183 = vunpack.c.l.b16 %v37
  %v184 = vunpack.c.l.b16 %v38
  %v185 = vunpack.c.l.b16 %v39
  %v186 = vunpack.c.l.b16 %v40
  %v187 = vunpack.c.l.b16 %v41
  %v188 = vunpack.c.l.b16 %v42
  %v189 = vunpack.c.l.b16 %v43
  %v190 = vunpack.c.l.b16 %v44
  %v191 = vunpack.c.l.b16 %v45
  %v192 = vunpack.c.l.b16 %v46
  %v193 = vunpack.c.l.b16 %v47
  %v194 = vunpack.c.l.b16 %v48
  %v195 = vunpack.c.l.b16 %v49
  %v196 = vunpack.c.l.b16 %v50
  %v197 = vunpack.c.l.b16 %v51
  %v198 = vunpack.c.l.b16 %v52
  %v199 = vunpack.c.l.b16 %v53
  %v200 = vunpack.c.l.b16 %v54
  %v201 = vunpack.c.l.b16 %v55
  %v202 = vunpack.c.l.b16 %v56
  %v203 = vunpack.c.l.b16 %v57
  %v204 = vunpack.c.l.b16 %v58
  %v205 = vunpack.c.l.b16 %v59
  %v206 = vunpack.c.l.b16 %v60
  %v207 = vunpack.c.l.b16 %v61
  %v208 = vunpack.c.l.b16 %v62
  %v209 = vunpack.c.l.b16 %v63
  %v210 = vunpack.c.l.b16 %v64
  %v211 = vunpack.c.l.b16 %v65
  %v212 = vunpack.c.l.b16 %v66
  %v213 = vunpack.c.l.b16 %v67
  %v214 = vunpack.c.l.b16 %v68
  %v215 = vunpack.c.l.b16 %v69
  %v216 = vunpack.c.l.b16 %v70
  %v217 = vunpack.c.l.b16 %v71
  %v218 = vunpack.c.l.b16 %v72
  %v219 = vunpack.c.l.b16 %v73
  %v220 = vunpack.c.l.b16 %v74
  %v221 = vunpack.c.l.b16 %v75
  %v222 = vunpack.c.l.b16 %v76
  %v223 = vunpack.c.l.b16 %v77
  %v224 = vunpack.c.l.b16 %v78
  %v225 = vunpack.c.l.b16 %v79
  %v226 = vunpack.c.l.b16 %v80
  %v227 = vunpack.c.l.b16 %v81
  %v228 = vunpack.c.l.b16 %v82
  %v229 = vunpack.c.l.b16 %v83
  %v230 = vunpack.c.l.b16 %v84
  %v231 = vunpack.c.l.b16 %v85
  %v232 = vunpack.c.l.b16 %v86
  %v233 = vunpack.c.l.b16 %v87
  %v234 = vpack.c.b16 %v171, %v170
  %v235 = vpack.c.b16 %v173, %v172
  %v236 = vpack.c.b16 %v175, %v174
  %v237 = vpack.c.b16 %v177, %v176
  %v238 = vpack.c.b16 %v179, %v178
  %v239 = vpack.c.b16 %v181, %v180
  %v240 = vpack.c.b16 %v183, %v182
  %v241 = vpack.c.b16 %v185, %v184
  %v242 = vpack.c.b16 %v187, %v186
  %v243 = vpack.c.b16 %v189, %v188
  %v244 = vpack.c.b16 %v191, %v190
  %v245 = vpack.c.b16 %v193, %v192
  %v246 = vpack.c.b16 %v195, %v194
  %v247 = vpack.c.b16 %v197, %v196
  %v248 = vpack.c.b16 %v199, %v198
  %v249 = vpack.c.b16 %v201, %v200
  %v250 = vpack.c.b16 %v203, %v202
  %v251 = vpack.c.b16 %v205, %v204
  %v252 = vpack.c.b16 %v207, %v206
  %v253 = vpack.c.b16 %v209, %v208
  %v254 = vpack.c.b16 %v211, %v210
  %v255 = vpack.c.b16 %v213, %v212
  %v256 = vpack.c.b16 %v215, %v214
  %v257 = vpack.c.b16 %v217, %v216
  %v258 = vpack.c.b16 %v219, %v218
  %v259 = vpack.c.b16 %v221, %v220
  %v260 = vpack.c.b16 %v223, %v222
  %v261 = vpack.c.b16 %v225, %v224
  %v262 = vpack.c.b16 %v227, %v226
  %v263 = vpack.c.b16 %v229, %v228
  %v264 = vpack.c.b16 %v231, %v230
  %v265 = vpack.c.b16 %v233, %v232
  %298 = vmatpush.bf16.msra.mxu0 %v241
  %299 = vmatpush.bf16.msra.mxu0 %v240
  %300 = vmatpush.bf16.msra.mxu0 %v239
  %301 = vmatpush.bf16.msra.mxu0 %v238
  %302 = vmatpush.bf16.msra.mxu0 %v237
  %303 = vmatpush.bf16.msra.mxu0 %v236
  %304 = vmatpush.bf16.msra.mxu0 %v235
  %305 = vmatpush.bf16.msra.mxu0 %v234
  %306 = vmatmul.bf16.gmra.mxu0 %v98
  %v307 = vpop.f32.mrf.mxu0
  %v308 = vadd.f32 %v90, %v307
  %v309 = vpop.f32.mrf.mxu0
  %310 = vdwg.mxu0
  %311 = vmatpush.bf16.msra.mxu0 %v249
  %312 = vmatpush.bf16.msra.mxu0 %v248
  %313 = vmatpush.bf16.msra.mxu0 %v247
  %314 = vmatpush.bf16.msra.mxu0 %v246
  %315 = vmatpush.bf16.msra.mxu0 %v245
  %316 = vmatpush.bf16.msra.mxu0 %v244
  %317 = vmatpush.bf16.msra.mxu0 %v243
  %318 = vmatpush.bf16.msra.mxu0 %v242
  %319 = vmatmul.bf16.gmra.mxu0 %v99
  %v320 = vpop.f32.mrf.mxu0
  %v321 = vadd.f32 %v308, %v320
  %v322 = vpop.f32.mrf.mxu0
  %323 = vdwg.mxu0
  %324 = vmatpush.bf16.msra.mxu0 %v257
  %325 = vmatpush.bf16.msra.mxu0 %v256
  %326 = vmatpush.bf16.msra.mxu0 %v255
  %327 = vmatpush.bf16.msra.mxu0 %v254
  %328 = vmatpush.bf16.msra.mxu0 %v253
  %329 = vmatpush.bf16.msra.mxu0 %v252
  %330 = vmatpush.bf16.msra.mxu0 %v251
  %331 = vmatpush.bf16.msra.mxu0 %v250
  %332 = vmatmul.bf16.gmra.mxu0 %v100
  %v333 = vpop.f32.mrf.mxu0
  %v334 = vadd.f32 %v321, %v333
  %v335 = vpop.f32.mrf.mxu0
  %336 = vdwg.mxu0
  %337 = vmatpush.bf16.msra.mxu0 %v265
  %338 = vmatpush.bf16.msra.mxu0 %v264
  %339 = vmatpush.bf16.msra.mxu0 %v263
  %340 = vmatpush.bf16.msra.mxu0 %v262
  %341 = vmatpush.bf16.msra.mxu0 %v261
  %342 = vmatpush.bf16.msra.mxu0 %v260
  %343 = vmatpush.bf16.msra.mxu0 %v259
  %344 = vmatpush.bf16.msra.mxu0 %v258
  %345 = vmatmul.bf16.gmra.mxu0 %v101
  %v346 = vpop.f32.mrf.mxu0
  %v347 = vadd.f32 %v334, %v346
  %v348 = vpop.f32.mrf.mxu0
  %349 = vdwg.mxu0
  %350 = vst [vmem:[%s5] sm:$0xff] %v347
  %v351 = vpack.c.bf16 %v347, %v347
  %v352 = vld [vmem:[%s3] sm:$0xff]
  %v353 = vld [vmem:[%s3 + $0x8] sm:$0xff]
  %v354 = vld [vmem:[%s3 + $0x10] sm:$0xff]
  %v355 = vld [vmem:[%s3 + $0x18] sm:$0xff]
  %v356 = vld [vmem:[%s3 + $0x20] sm:$0xff]
  %v357 = vld [vmem:[%s3 + $0x28] sm:$0xff]
  %v358 = vld [vmem:[%s3 + $0x30] sm:$0xff]
  %v359 = vld [vmem:[%s3 + $0x38] sm:$0xff]
  %v360 = vld [vmem:[%s3 + $0x40] sm:$0xff]
  %v361 = vld [vmem:[%s3 + $0x48] sm:$0xff]
  %v362 = vld [vmem:[%s3 + $0x50] sm:$0xff]
  %v363 = vld [vmem:[%s3 + $0x58] sm:$0xff]
  %v364 = vld [vmem:[%s3 + $0x60] sm:$0xff]
  %v365 = vld [vmem:[%s3 + $0x68] sm:$0xff]
  %v366 = vld [vmem:[%s3 + $0x70] sm:$0xff]
  %v367 = vld [vmem:[%s3 + $0x78] sm:$0xff]
  %v368 = vld [vmem:[%s3 + $0x80] sm:$0xff]
  %v369 = vld [vmem:[%s3 + $0x88] sm:$0xff]
  %v370 = vld [vmem:[%s3 + $0x90] sm:$0xff]
  %v371 = vld [vmem:[%s3 + $0x98] sm:$0xff]
  %v372 = vld [vmem:[%s3 + $0xa0] sm:$0xff]
  %v373 = vld [vmem:[%s3 + $0xa8] sm:$0xff]
  %v374 = vld [vmem:[%s3 + $0xb0] sm:$0xff]
  %v375 = vld [vmem:[%s3 + $0xb8] sm:$0xff]
  %v376 = vld [vmem:[%s3 + $0xc0] sm:$0xff]
  %v377 = vld [vmem:[%s3 + $0xc8] sm:$0xff]
  %v378 = vld [vmem:[%s3 + $0xd0] sm:$0xff]
  %v379 = vld [vmem:[%s3 + $0xd8] sm:$0xff]
  %v380 = vld [vmem:[%s3 + $0xe0] sm:$0xff]
  %v381 = vld [vmem:[%s3 + $0xe8] sm:$0xff]
  %v382 = vld [vmem:[%s3 + $0xf0] sm:$0xff]
  %v383 = vld [vmem:[%s3 + $0xf8] sm:$0xff]
  %v384 = vld [vmem:[%s4] sm:$0xf]
  %v386 = vperm.slane %v384, 0
  %v387 = vperm.slane %v384, 1
  %v388 = vperm.slane %v384, 2
  %v389 = vperm.slane %v384, 3
  %v426 = vunpack.c.l.b16 %v352
  %v427 = vunpack.c.h.b16 %v352
  %v428 = vunpack.c.l.b16 %v353
  %v429 = vunpack.c.h.b16 %v353
  %v430 = vunpack.c.l.b16 %v354
  %v431 = vunpack.c.h.b16 %v354
  %v432 = vunpack.c.l.b16 %v355
  %v433 = vunpack.c.h.b16 %v355
  %v434 = vunpack.c.l.b16 %v356
  %v435 = vunpack.c.h.b16 %v356
  %v436 = vunpack.c.l.b16 %v357
  %v437 = vunpack.c.h.b16 %v357
  %v438 = vunpack.c.l.b16 %v358
  %v439 = vunpack.c.h.b16 %v358
  %v440 = vunpack.c.l.b16 %v359
  %v441 = vunpack.c.h.b16 %v359
  %v442 = vunpack.c.l.b16 %v360
  %v443 = vunpack.c.h.b16 %v360
  %v444 = vunpack.c.l.b16 %v361
  %v445 = vunpack.c.h.b16 %v361
  %v446 = vunpack.c.l.b16 %v362
  %v447 = vunpack.c.h.b16 %v362
  %v448 = vunpack.c.l.b16 %v363
  %v449 = vunpack.c.h.b16 %v363
  %v450 = vunpack.c.l.b16 %v364
  %v451 = vunpack.c.h.b16 %v364
  %v452 = vunpack.c.l.b16 %v365
  %v453 = vunpack.c.h.b16 %v365
  %v454 = vunpack.c.l.b16 %v366
  %v455 = vunpack.c.h.b16 %v366
  %v456 = vunpack.c.l.b16 %v367
  %v457 = vunpack.c.h.b16 %v367
  %v458 = vunpack.c.l.b16 %v368
  %v459 = vunpack.c.h.b16 %v368
  %v460 = vunpack.c.l.b16 %v369
  %v461 = vunpack.c.h.b16 %v369
  %v462 = vunpack.c.l.b16 %v370
  %v463 = vunpack.c.h.b16 %v370
  %v464 = vunpack.c.l.b16 %v371
  %v465 = vunpack.c.h.b16 %v371
  %v466 = vunpack.c.l.b16 %v372
  %v467 = vunpack.c.h.b16 %v372
  %v468 = vunpack.c.l.b16 %v373
  %v469 = vunpack.c.h.b16 %v373
  %v470 = vunpack.c.l.b16 %v374
  %v471 = vunpack.c.h.b16 %v374
  %v472 = vunpack.c.l.b16 %v375
  %v473 = vunpack.c.h.b16 %v375
  %v474 = vunpack.c.l.b16 %v376
  %v475 = vunpack.c.h.b16 %v376
  %v476 = vunpack.c.l.b16 %v377
  %v477 = vunpack.c.h.b16 %v377
  %v478 = vunpack.c.l.b16 %v378
  %v479 = vunpack.c.h.b16 %v378
  %v480 = vunpack.c.l.b16 %v379
  %v481 = vunpack.c.h.b16 %v379
  %v482 = vunpack.c.l.b16 %v380
  %v483 = vunpack.c.h.b16 %v380
  %v484 = vunpack.c.l.b16 %v381
  %v485 = vunpack.c.h.b16 %v381
  %v486 = vunpack.c.l.b16 %v382
  %v487 = vunpack.c.h.b16 %v382
  %v488 = vunpack.c.l.b16 %v383
  %v489 = vunpack.c.h.b16 %v383
  %v490 = vpack.c.b16 %v430, %v426
  %v491 = vpack.c.b16 %v431, %v427
  %v492 = vpack.c.b16 %v432, %v428
  %v493 = vpack.c.b16 %v433, %v429
  %v494 = vpack.c.b16 %v438, %v434
  %v495 = vpack.c.b16 %v439, %v435
  %v496 = vpack.c.b16 %v440, %v436
  %v497 = vpack.c.b16 %v441, %v437
  %v498 = vpack.c.b16 %v446, %v442
  %v499 = vpack.c.b16 %v447, %v443
  %v500 = vpack.c.b16 %v448, %v444
  %v501 = vpack.c.b16 %v449, %v445
  %v502 = vpack.c.b16 %v454, %v450
  %v503 = vpack.c.b16 %v455, %v451
  %v504 = vpack.c.b16 %v456, %v452
  %v505 = vpack.c.b16 %v457, %v453
  %v506 = vpack.c.b16 %v462, %v458
  %v507 = vpack.c.b16 %v463, %v459
  %v508 = vpack.c.b16 %v464, %v460
  %v509 = vpack.c.b16 %v465, %v461
  %v510 = vpack.c.b16 %v470, %v466
  %v511 = vpack.c.b16 %v471, %v467
  %v512 = vpack.c.b16 %v472, %v468
  %v513 = vpack.c.b16 %v473, %v469
  %v514 = vpack.c.b16 %v478, %v474
  %v515 = vpack.c.b16 %v479, %v475
  %v516 = vpack.c.b16 %v480, %v476
  %v517 = vpack.c.b16 %v481, %v477
  %v518 = vpack.c.b16 %v486, %v482
  %v519 = vpack.c.b16 %v487, %v483
  %v520 = vpack.c.b16 %v488, %v484
  %v521 = vpack.c.b16 %v489, %v485
  %554 = vmatpush.bf16.msra.mxu0 %v518
  %555 = vmatpush.bf16.msra.mxu0 %v514
  %556 = vmatpush.bf16.msra.mxu0 %v510
  %557 = vmatpush.bf16.msra.mxu0 %v506
  %558 = vmatpush.bf16.msra.mxu0 %v502
  %559 = vmatpush.bf16.msra.mxu0 %v498
  %560 = vmatpush.bf16.msra.mxu0 %v494
  %561 = vmatpush.bf16.msra.mxu0 %v490
  %562 = vmatmul.bf16.gmra.mxu0 %v351
  %v563 = vpop.f32.mrf.mxu0
  %v564 = vadd.f32 %v386, %v563
  %v565 = vpop.f32.mrf.mxu0
  %566 = vdwg.mxu0
  %567 = vmatpush.bf16.msra.mxu0 %v519
  %568 = vmatpush.bf16.msra.mxu0 %v515
  %569 = vmatpush.bf16.msra.mxu0 %v511
  %570 = vmatpush.bf16.msra.mxu0 %v507
  %571 = vmatpush.bf16.msra.mxu0 %v503
  %572 = vmatpush.bf16.msra.mxu0 %v499
  %573 = vmatpush.bf16.msra.mxu0 %v495
  %574 = vmatpush.bf16.msra.mxu0 %v491
  %575 = vmatmul.bf16.gmra.mxu0 %v351
  %v576 = vpop.f32.mrf.mxu0
  %v577 = vadd.f32 %v387, %v576
  %v578 = vpop.f32.mrf.mxu0
  %579 = vdwg.mxu0
  %580 = vmatpush.bf16.msra.mxu0 %v520
  %581 = vmatpush.bf16.msra.mxu0 %v516
  %582 = vmatpush.bf16.msra.mxu0 %v512
  %583 = vmatpush.bf16.msra.mxu0 %v508
  %584 = vmatpush.bf16.msra.mxu0 %v504
  %585 = vmatpush.bf16.msra.mxu0 %v500
  %586 = vmatpush.bf16.msra.mxu0 %v496
  %587 = vmatpush.bf16.msra.mxu0 %v492
  %588 = vmatmul.bf16.gmra.mxu0 %v351
  %v589 = vpop.f32.mrf.mxu0
  %v590 = vadd.f32 %v388, %v589
  %v591 = vpop.f32.mrf.mxu0
  %592 = vdwg.mxu0
  %593 = vmatpush.bf16.msra.mxu0 %v521
  %594 = vmatpush.bf16.msra.mxu0 %v517
  %595 = vmatpush.bf16.msra.mxu0 %v513
  %596 = vmatpush.bf16.msra.mxu0 %v509
  %597 = vmatpush.bf16.msra.mxu0 %v505
  %598 = vmatpush.bf16.msra.mxu0 %v501
  %599 = vmatpush.bf16.msra.mxu0 %v497
  %600 = vmatpush.bf16.msra.mxu0 %v493
  %601 = vmatmul.bf16.gmra.mxu0 %v351
  %v602 = vpop.f32.mrf.mxu0
  %v603 = vadd.f32 %v389, %v602
  %v604 = vpop.f32.mrf.mxu0
  %605 = vdwg.mxu0
  %606 = vst [vmem:[%s6] sm:$0xff] %v564
  %607 = vst [vmem:[%s6 + $0x8] sm:$0xff] %v577
  %608 = vst [vmem:[%s6 + $0x10] sm:$0xff] %v590
  %609 = vst [vmem:[%s6 + $0x18] sm:$0xff] %v603
  // Predicated region
  $region22: #{autoencoder_forward.13} parent=0 // pred_check
    _
  $region23: #{autoencoder_forward.13} parent=0 // pred_check_branch
    %611 = sbr.rel (0) target = $region25
  $region24: #{autoencoder_forward.13} parent=0 // pred_region
    _
  $region25: #{autoencoder_forward.13} parent=0 // pred_fallthru
    _
  // Predicated region
  $region26: #{autoencoder_forward.13} parent=0 // pred_check
    _
  $region27: #{autoencoder_forward.13} parent=0 // pred_check_branch
    %613 = sbr.rel (0) target = $region29
  $region28: #{autoencoder_forward.13} parent=0 // pred_region
    _
  $region29: #{autoencoder_forward.13} parent=0 // pred_fallthru
    _
  // Predicated region
  $region30: #{autoencoder_forward.13} parent=0 // pred_check
    _
  $region31: #{autoencoder_forward.13} parent=0 // pred_check_branch
    %615 = sbr.rel (0) target = $region33
  $region32: #{autoencoder_forward.13} parent=0 // pred_region
    _
  $region33: #{autoencoder_forward.13} parent=0 // pred_fallthru
    _
  // Predicated region
  $region34: #{autoencoder_forward.13} parent=0 // pred_check
    _
  $region35: #{autoencoder_forward.13} parent=0 // pred_check_branch
    %617 = sbr.rel (0) target = $region37
  $region36: #{autoencoder_forward.13} parent=0 // pred_region
    _
  $region37: #{autoencoder_forward.13} parent=0 // pred_fallthru
    _

// kernel: tile.13
$region0: #{tile.13}
  #allocation0 [shape = 's32[1]{0}', space=sflag, size = 0x4, scoped, tag = 'scoped memory for tile.13']
  %s0 = inlined_call_operand.vmem [shape: f32[32], index: 0, kind: input, shape index: {}]
  %s1 = inlined_call_operand.vmem [shape: f32[4,32], index: 1, kind: output, shape index: {}]
  // Predicated region
  $region2: #{tile.13} parent=0 // pred_check
    _
  $region3: #{tile.13} parent=0 // pred_check_branch
    %3 = sbr.rel (0) target = $region5
  $region4: #{tile.13} parent=0 // pred_region
    _
  $region5: #{tile.13} parent=0 // pred_fallthru
    _
  %v4 = vld [vmem:[%s0] ss:$0 sm:$0xff]
  %5 = vst [vmem:[%s1] sm:$0xf] %v4

// kernel: autoencoder_forward.14
$region0: #{autoencoder_forward.14}
  #allocation0 [shape = 'u32[]', space=smem, size = 0x4, offset = 0x4, fixed_abs, tag = 'smem constant byte address 0x4 - core index']
  #allocation1 [shape = 'u32[72,128]{1,0:T(1,128)}', space=vmem, size = 0x9000, scoped, tag = 'internal scratch']
  %s0 = inlined_call_operand.vmem [shape: bf16[56,128], index: 0, kind: input, shape index: {}]
  %s1 = inlined_call_operand.vmem [shape: bf16[128,128], index: 1, kind: input, shape index: {}]
  %s2 = inlined_call_operand.vmem [shape: f32[1,128], index: 2, kind: input, shape index: {}]
  %s3 = inlined_call_operand.vmem [shape: f32[56,128], index: 3, kind: output, shape index: {}]
  %s4 = sld [smem:[#allocation0]]
  $region22: #{autoencoder_forward.14} parent=0
    _
  %s6 = ssub.s32 1, %s4
  %s7 = scalar_select 0, %s6, %s4
  // Predicated region
  $region2: #{autoencoder_forward.14} parent=0 // pred_check
    _
  $region3: #{autoencoder_forward.14} parent=0 // pred_check_branch
    %9 = sbr.rel (0) target = $region5
  $region4: #{autoencoder_forward.14} parent=0 // pred_region
    _
  $region5: #{autoencoder_forward.14} parent=0 // pred_fallthru
    _
  // Predicated region
  $region6: #{autoencoder_forward.14} parent=0 // pred_check
    _
  $region7: #{autoencoder_forward.14} parent=0 // pred_check_branch
    %11 = sbr.rel (0) target = $region9
  $region8: #{autoencoder_forward.14} parent=0 // pred_region
    _
  $region9: #{autoencoder_forward.14} parent=0 // pred_fallthru
    _
  // Predicated region
  $region10: #{autoencoder_forward.14} parent=0 // pred_check
    _
  $region11: #{autoencoder_forward.14} parent=0 // pred_check_branch
    %13 = sbr.rel (0) target = $region13
  $region12: #{autoencoder_forward.14} parent=0 // pred_region
    _
  $region13: #{autoencoder_forward.14} parent=0 // pred_fallthru
    _
  %v14 = vld [vmem:[%s0] sm:$0xf]
  %v15 = vld [vmem:[%s0 + $0x4] sm:$0xf]
  %v16 = vld [vmem:[%s0 + $0x8] sm:$0xf]
  %v17 = vld [vmem:[%s0 + $0xc] sm:$0xf]
  %v18 = vld [vmem:[%s0 + $0x10] sm:$0xf]
  %v19 = vld [vmem:[%s0 + $0x14] sm:$0xf]
  %v20 = vld [vmem:[%s0 + $0x18] sm:$0xf]
  %v21 = vld [vmem:[%s1] sm:$0xf]
  %v22 = vld [vmem:[%s1 + $0x4] sm:$0xf]
  %v23 = vld [vmem:[%s1 + $0x8] sm:$0xf]
  %v24 = vld [vmem:[%s1 + $0xc] sm:$0xf]
  %v25 = vld [vmem:[%s1 + $0x10] sm:$0xf]
  %v26 = vld [vmem:[%s1 + $0x14] sm:$0xf]
  %v27 = vld [vmem:[%s1 + $0x18] sm:$0xf]
  %v28 = vld [vmem:[%s1 + $0x1c] sm:$0xf]
  %v29 = vld [vmem:[%s1 + $0x20] sm:$0xf]
  %v30 = vld [vmem:[%s1 + $0x24] sm:$0xf]
  %v31 = vld [vmem:[%s1 + $0x28] sm:$0xf]
  %v32 = vld [vmem:[%s1 + $0x2c] sm:$0xf]
  %v33 = vld [vmem:[%s1 + $0x30] sm:$0xf]
  %v34 = vld [vmem:[%s1 + $0x34] sm:$0xf]
  %v35 = vld [vmem:[%s1 + $0x38] sm:$0xf]
  %v36 = vld [vmem:[%s1 + $0x3c] sm:$0xf]
  %v37 = vld [vmem:[%s2] sm:$0x1]
  %v39 = vperm.slane %v37, 0
  %v48 = vunpack.c.l.b16 %v14
  %v49 = vunpack.c.l.b16 %v15
  %v50 = vunpack.c.l.b16 %v16
  %v51 = vunpack.c.l.b16 %v17
  %v52 = vunpack.c.l.b16 %v18
  %v53 = vunpack.c.l.b16 %v19
  %v54 = vunpack.c.l.b16 %v20
  %v55 = vpack.c.b16 %v49, %v48
  %v56 = vpack.c.b16 %v51, %v50
  %v57 = vpack.c.b16 %v53, %v52
  %v58 = vpack.c.b16 %v54, %v54
  %v79 = vunpack.c.l.b16 %v21
  %v80 = vunpack.c.l.b16 %v22
  %v81 = vunpack.c.l.b16 %v23
  %v82 = vunpack.c.l.b16 %v24
  %v83 = vunpack.c.l.b16 %v25
  %v84 = vunpack.c.l.b16 %v26
  %v85 = vunpack.c.l.b16 %v27
  %v86 = vunpack.c.l.b16 %v28
  %v87 = vunpack.c.l.b16 %v29
  %v88 = vunpack.c.l.b16 %v30
  %v89 = vunpack.c.l.b16 %v31
  %v90 = vunpack.c.l.b16 %v32
  %v91 = vunpack.c.l.b16 %v33
  %v92 = vunpack.c.l.b16 %v34
  %v93 = vunpack.c.l.b16 %v35
  %v94 = vunpack.c.l.b16 %v36
  %v95 = vpack.c.b16 %v80, %v79
  %v96 = vpack.c.b16 %v82, %v81
  %v97 = vpack.c.b16 %v84, %v83
  %v98 = vpack.c.b16 %v86, %v85
  %v99 = vpack.c.b16 %v88, %v87
  %v100 = vpack.c.b16 %v90, %v89
  %v101 = vpack.c.b16 %v92, %v91
  %v102 = vpack.c.b16 %v94, %v93
  %111 = vmatpush.bf16.msra.mxu0 %v102
  %112 = vmatpush.bf16.msra.mxu0 %v101
  %113 = vmatpush.bf16.msra.mxu0 %v100
  %114 = vmatpush.bf16.msra.mxu0 %v99
  %115 = vmatpush.bf16.msra.mxu0 %v98
  %116 = vmatpush.bf16.msra.mxu0 %v97
  %117 = vmatpush.bf16.msra.mxu0 %v96
  %118 = vmatpush.bf16.msra.mxu0 %v95
  %119 = vmatmul.bf16.gmra.mxu0 %v55
  %v120 = vpop.f32.mrf.mxu0
  %v121 = vadd.f32 %v39, %v120
  %v122 = vpop.f32.mrf.mxu0
  %v123 = vadd.f32 %v39, %v122
  %124 = vmatmul.bf16.gmra.mxu0 %v56
  %v125 = vpop.f32.mrf.mxu0
  %v126 = vadd.f32 %v39, %v125
  %v127 = vpop.f32.mrf.mxu0
  %v128 = vadd.f32 %v39, %v127
  %129 = vmatmul.bf16.gmra.mxu0 %v57
  %v130 = vpop.f32.mrf.mxu0
  %v131 = vadd.f32 %v39, %v130
  %v132 = vpop.f32.mrf.mxu0
  %v133 = vadd.f32 %v39, %v132
  %134 = vmatmul.bf16.gmra.mxu0 %v58
  %v135 = vpop.f32.mrf.mxu0
  %v136 = vadd.f32 %v39, %v135
  %v137 = vpop.f32.mrf.mxu0
  %138 = vdwg.mxu0
  %v139 = vmax.f32 %v121, 0.0
  %v140 = vmax.f32 %v123, 0.0
  %v141 = vmax.f32 %v126, 0.0
  %v142 = vmax.f32 %v128, 0.0
  %v143 = vmax.f32 %v131, 0.0
  %v144 = vmax.f32 %v133, 0.0
  %v145 = vmax.f32 %v136, 0.0
  %146 = vst [vmem:[%s3] sm:$0xff] %v139
  %147 = vst [vmem:[%s3 + $0x8] sm:$0xff] %v140
  %148 = vst [vmem:[%s3 + $0x10] sm:$0xff] %v141
  %149 = vst [vmem:[%s3 + $0x18] sm:$0xff] %v142
  %150 = vst [vmem:[%s3 + $0x20] sm:$0xff] %v143
  %151 = vst [vmem:[%s3 + $0x28] sm:$0xff] %v144
  %152 = vst [vmem:[%s3 + $0x30] sm:$0xff] %v145
  // Predicated region
  $region14: #{autoencoder_forward.14} parent=0 // pred_check
    _
  $region15: #{autoencoder_forward.14} parent=0 // pred_check_branch
    %154 = sbr.rel (0) target = $region17
  $region16: #{autoencoder_forward.14} parent=0 // pred_region
    _
  $region17: #{autoencoder_forward.14} parent=0 // pred_fallthru
    _
  // Predicated region
  $region18: #{autoencoder_forward.14} parent=0 // pred_check
    _
  $region19: #{autoencoder_forward.14} parent=0 // pred_check_branch
    %156 = sbr.rel (0) target = $region21
  $region20: #{autoencoder_forward.14} parent=0 // pred_region
    _
  $region21: #{autoencoder_forward.14} parent=0 // pred_fallthru
    _

// kernel: autoencoder_forward.15
$region0: #{autoencoder_forward.15}
  #allocation0 [shape = 'u32[]', space=smem, size = 0x4, offset = 0x4, fixed_abs, tag = 'smem constant byte address 0x4 - core index']
  #allocation1 [shape = 'u32[72,128]{1,0:T(1,128)}', space=vmem, size = 0x9000, scoped, tag = 'internal scratch']
  %s0 = inlined_call_operand.vmem [shape: bf16[248,128], index: 0, kind: input, shape index: {}]
  %s1 = inlined_call_operand.vmem [shape: bf16[128,128], index: 1, kind: input, shape index: {}]
  %s2 = inlined_call_operand.vmem [shape: f32[1,128], index: 2, kind: input, shape index: {}]
  %s3 = inlined_call_operand.vmem [shape: f32[248,128], index: 3, kind: output, shape index: {}]
  %s4 = sld [smem:[#allocation0]]
  $region22: #{autoencoder_forward.15} parent=0
    _
  %s6 = ssub.s32 1, %s4
  %s7 = scalar_select 0, %s6, %s4
  // Predicated region
  $region2: #{autoencoder_forward.15} parent=0 // pred_check
    _
  $region3: #{autoencoder_forward.15} parent=0 // pred_check_branch
    %9 = sbr.rel (0) target = $region5
  $region4: #{autoencoder_forward.15} parent=0 // pred_region
    _
  $region5: #{autoencoder_forward.15} parent=0 // pred_fallthru
    _
  // Predicated region
  $region6: #{autoencoder_forward.15} parent=0 // pred_check
    _
  $region7: #{autoencoder_forward.15} parent=0 // pred_check_branch
    %11 = sbr.rel (0) target = $region9
  $region8: #{autoencoder_forward.15} parent=0 // pred_region
    _
  $region9: #{autoencoder_forward.15} parent=0 // pred_fallthru
    _
  // Predicated region
  $region10: #{autoencoder_forward.15} parent=0 // pred_check
    _
  $region11: #{autoencoder_forward.15} parent=0 // pred_check_branch
    %13 = sbr.rel (0) target = $region13
  $region12: #{autoencoder_forward.15} parent=0 // pred_region
    _
  $region13: #{autoencoder_forward.15} parent=0 // pred_fallthru
    _
  %v14 = vld [vmem:[%s0] sm:$0xf]
  %v15 = vld [vmem:[%s0 + $0x4] sm:$0xf]
  %v16 = vld [vmem:[%s0 + $0x8] sm:$0xf]
  %v17 = vld [vmem:[%s0 + $0xc] sm:$0xf]
  %v18 = vld [vmem:[%s0 + $0x10] sm:$0xf]
  %v19 = vld [vmem:[%s0 + $0x14] sm:$0xf]
  %v20 = vld [vmem:[%s0 + $0x18] sm:$0xf]
  %v21 = vld [vmem:[%s0 + $0x1c] sm:$0xf]
  %v22 = vld [vmem:[%s0 + $0x20] sm:$0xf]
  %v23 = vld [vmem:[%s0 + $0x24] sm:$0xf]
  %v24 = vld [vmem:[%s0 + $0x28] sm:$0xf]
  %v25 = vld [vmem:[%s0 + $0x2c] sm:$0xf]
  %v26 = vld [vmem:[%s0 + $0x30] sm:$0xf]
  %v27 = vld [vmem:[%s0 + $0x34] sm:$0xf]
  %v28 = vld [vmem:[%s0 + $0x38] sm:$0xf]
  %v29 = vld [vmem:[%s0 + $0x3c] sm:$0xf]
  %v30 = vld [vmem:[%s0 + $0x40] sm:$0xf]
  %v31 = vld [vmem:[%s0 + $0x44] sm:$0xf]
  %v32 = vld [vmem:[%s0 + $0x48] sm:$0xf]
  %v33 = vld [vmem:[%s0 + $0x4c] sm:$0xf]
  %v34 = vld [vmem:[%s0 + $0x50] sm:$0xf]
  %v35 = vld [vmem:[%s0 + $0x54] sm:$0xf]
  %v36 = vld [vmem:[%s0 + $0x58] sm:$0xf]
  %v37 = vld [vmem:[%s0 + $0x5c] sm:$0xf]
  %v38 = vld [vmem:[%s0 + $0x60] sm:$0xf]
  %v39 = vld [vmem:[%s0 + $0x64] sm:$0xf]
  %v40 = vld [vmem:[%s0 + $0x68] sm:$0xf]
  %v41 = vld [vmem:[%s0 + $0x6c] sm:$0xf]
  %v42 = vld [vmem:[%s0 + $0x70] sm:$0xf]
  %v43 = vld [vmem:[%s0 + $0x74] sm:$0xf]
  %v44 = vld [vmem:[%s0 + $0x78] sm:$0xf]
  %v45 = vld [vmem:[%s1] sm:$0xf]
  %v46 = vld [vmem:[%s1 + $0x4] sm:$0xf]
  %v47 = vld [vmem:[%s1 + $0x8] sm:$0xf]
  %v48 = vld [vmem:[%s1 + $0xc] sm:$0xf]
  %v49 = vld [vmem:[%s1 + $0x10] sm:$0xf]
  %v50 = vld [vmem:[%s1 + $0x14] sm:$0xf]
  %v51 = vld [vmem:[%s1 + $0x18] sm:$0xf]
  %v52 = vld [vmem:[%s1 + $0x1c] sm:$0xf]
  %v53 = vld [vmem:[%s1 + $0x20] sm:$0xf]
  %v54 = vld [vmem:[%s1 + $0x24] sm:$0xf]
  %v55 = vld [vmem:[%s1 + $0x28] sm:$0xf]
  %v56 = vld [vmem:[%s1 + $0x2c] sm:$0xf]
  %v57 = vld [vmem:[%s1 + $0x30] sm:$0xf]
  %v58 = vld [vmem:[%s1 + $0x34] sm:$0xf]
  %v59 = vld [vmem:[%s1 + $0x38] sm:$0xf]
  %v60 = vld [vmem:[%s1 + $0x3c] sm:$0xf]
  %v61 = vld [vmem:[%s2] sm:$0x1]
  %v63 = vperm.slane %v61, 0
  %v96 = vunpack.c.l.b16 %v14
  %v97 = vunpack.c.l.b16 %v15
  %v98 = vunpack.c.l.b16 %v16
  %v99 = vunpack.c.l.b16 %v17
  %v100 = vunpack.c.l.b16 %v18
  %v101 = vunpack.c.l.b16 %v19
  %v102 = vunpack.c.l.b16 %v20
  %v103 = vunpack.c.l.b16 %v21
  %v104 = vunpack.c.l.b16 %v22
  %v105 = vunpack.c.l.b16 %v23
  %v106 = vunpack.c.l.b16 %v24
  %v107 = vunpack.c.l.b16 %v25
  %v108 = vunpack.c.l.b16 %v26
  %v109 = vunpack.c.l.b16 %v27
  %v110 = vunpack.c.l.b16 %v28
  %v111 = vunpack.c.l.b16 %v29
  %v112 = vunpack.c.l.b16 %v30
  %v113 = vunpack.c.l.b16 %v31
  %v114 = vunpack.c.l.b16 %v32
  %v115 = vunpack.c.l.b16 %v33
  %v116 = vunpack.c.l.b16 %v34
  %v117 = vunpack.c.l.b16 %v35
  %v118 = vunpack.c.l.b16 %v36
  %v119 = vunpack.c.l.b16 %v37
  %v120 = vunpack.c.l.b16 %v38
  %v121 = vunpack.c.l.b16 %v39
  %v122 = vunpack.c.l.b16 %v40
  %v123 = vunpack.c.l.b16 %v41
  %v124 = vunpack.c.l.b16 %v42
  %v125 = vunpack.c.l.b16 %v43
  %v126 = vunpack.c.l.b16 %v44
  %v127 = vpack.c.b16 %v97, %v96
  %v128 = vpack.c.b16 %v99, %v98
  %v129 = vpack.c.b16 %v101, %v100
  %v130 = vpack.c.b16 %v103, %v102
  %v131 = vpack.c.b16 %v105, %v104
  %v132 = vpack.c.b16 %v107, %v106
  %v133 = vpack.c.b16 %v109, %v108
  %v134 = vpack.c.b16 %v111, %v110
  %v135 = vpack.c.b16 %v113, %v112
  %v136 = vpack.c.b16 %v115, %v114
  %v137 = vpack.c.b16 %v117, %v116
  %v138 = vpack.c.b16 %v119, %v118
  %v139 = vpack.c.b16 %v121, %v120
  %v140 = vpack.c.b16 %v123, %v122
  %v141 = vpack.c.b16 %v125, %v124
  %v142 = vpack.c.b16 %v126, %v126
  %v175 = vunpack.c.l.b16 %v45
  %v176 = vunpack.c.l.b16 %v46
  %v177 = vunpack.c.l.b16 %v47
  %v178 = vunpack.c.l.b16 %v48
  %v179 = vunpack.c.l.b16 %v49
  %v180 = vunpack.c.l.b16 %v50
  %v181 = vunpack.c.l.b16 %v51
  %v182 = vunpack.c.l.b16 %v52
  %v183 = vunpack.c.l.b16 %v53
  %v184 = vunpack.c.l.b16 %v54
  %v185 = vunpack.c.l.b16 %v55
  %v186 = vunpack.c.l.b16 %v56
  %v187 = vunpack.c.l.b16 %v57
  %v188 = vunpack.c.l.b16 %v58
  %v189 = vunpack.c.l.b16 %v59
  %v190 = vunpack.c.l.b16 %v60
  %v191 = vpack.c.b16 %v176, %v175
  %v192 = vpack.c.b16 %v178, %v177
  %v193 = vpack.c.b16 %v180, %v179
  %v194 = vpack.c.b16 %v182, %v181
  %v195 = vpack.c.b16 %v184, %v183
  %v196 = vpack.c.b16 %v186, %v185
  %v197 = vpack.c.b16 %v188, %v187
  %v198 = vpack.c.b16 %v190, %v189
  %207 = vmatpush.bf16.msra.mxu0 %v198
  %208 = vmatpush.bf16.msra.mxu0 %v197
  %209 = vmatpush.bf16.msra.mxu0 %v196
  %210 = vmatpush.bf16.msra.mxu0 %v195
  %211 = vmatpush.bf16.msra.mxu0 %v194
  %212 = vmatpush.bf16.msra.mxu0 %v193
  %213 = vmatpush.bf16.msra.mxu0 %v192
  %214 = vmatpush.bf16.msra.mxu0 %v191
  %215 = vmatmul.bf16.gmra.mxu0 %v127
  %v216 = vpop.f32.mrf.mxu0
  %v217 = vadd.f32 %v63, %v216
  %v218 = vpop.f32.mrf.mxu0
  %v219 = vadd.f32 %v63, %v218
  %220 = vmatmul.bf16.gmra.mxu0 %v128
  %v221 = vpop.f32.mrf.mxu0
  %v222 = vadd.f32 %v63, %v221
  %v223 = vpop.f32.mrf.mxu0
  %v224 = vadd.f32 %v63, %v223
  %225 = vmatmul.bf16.gmra.mxu0 %v129
  %v226 = vpop.f32.mrf.mxu0
  %v227 = vadd.f32 %v63, %v226
  %v228 = vpop.f32.mrf.mxu0
  %v229 = vadd.f32 %v63, %v228
  %230 = vmatmul.bf16.gmra.mxu0 %v130
  %v231 = vpop.f32.mrf.mxu0
  %v232 = vadd.f32 %v63, %v231
  %v233 = vpop.f32.mrf.mxu0
  %v234 = vadd.f32 %v63, %v233
  %235 = vmatmul.bf16.gmra.mxu0 %v131
  %v236 = vpop.f32.mrf.mxu0
  %v237 = vadd.f32 %v63, %v236
  %v238 = vpop.f32.mrf.mxu0
  %v239 = vadd.f32 %v63, %v238
  %240 = vmatmul.bf16.gmra.mxu0 %v132
  %v241 = vpop.f32.mrf.mxu0
  %v242 = vadd.f32 %v63, %v241
  %v243 = vpop.f32.mrf.mxu0
  %v244 = vadd.f32 %v63, %v243
  %245 = vmatmul.bf16.gmra.mxu0 %v133
  %v246 = vpop.f32.mrf.mxu0
  %v247 = vadd.f32 %v63, %v246
  %v248 = vpop.f32.mrf.mxu0
  %v249 = vadd.f32 %v63, %v248
  %250 = vmatmul.bf16.gmra.mxu0 %v134
  %v251 = vpop.f32.mrf.mxu0
  %v252 = vadd.f32 %v63, %v251
  %v253 = vpop.f32.mrf.mxu0
  %v254 = vadd.f32 %v63, %v253
  %255 = vmatmul.bf16.gmra.mxu0 %v135
  %v256 = vpop.f32.mrf.mxu0
  %v257 = vadd.f32 %v63, %v256
  %v258 = vpop.f32.mrf.mxu0
  %v259 = vadd.f32 %v63, %v258
  %260 = vmatmul.bf16.gmra.mxu0 %v136
  %v261 = vpop.f32.mrf.mxu0
  %v262 = vadd.f32 %v63, %v261
  %v263 = vpop.f32.mrf.mxu0
  %v264 = vadd.f32 %v63, %v263
  %265 = vmatmul.bf16.gmra.mxu0 %v137
  %v266 = vpop.f32.mrf.mxu0
  %v267 = vadd.f32 %v63, %v266
  %v268 = vpop.f32.mrf.mxu0
  %v269 = vadd.f32 %v63, %v268
  %270 = vmatmul.bf16.gmra.mxu0 %v138
  %v271 = vpop.f32.mrf.mxu0
  %v272 = vadd.f32 %v63, %v271
  %v273 = vpop.f32.mrf.mxu0
  %v274 = vadd.f32 %v63, %v273
  %275 = vmatmul.bf16.gmra.mxu0 %v139
  %v276 = vpop.f32.mrf.mxu0
  %v277 = vadd.f32 %v63, %v276
  %v278 = vpop.f32.mrf.mxu0
  %v279 = vadd.f32 %v63, %v278
  %280 = vmatmul.bf16.gmra.mxu0 %v140
  %v281 = vpop.f32.mrf.mxu0
  %v282 = vadd.f32 %v63, %v281
  %v283 = vpop.f32.mrf.mxu0
  %v284 = vadd.f32 %v63, %v283
  %285 = vmatmul.bf16.gmra.mxu0 %v141
  %v286 = vpop.f32.mrf.mxu0
  %v287 = vadd.f32 %v63, %v286
  %v288 = vpop.f32.mrf.mxu0
  %v289 = vadd.f32 %v63, %v288
  %290 = vmatmul.bf16.gmra.mxu0 %v142
  %v291 = vpop.f32.mrf.mxu0
  %v292 = vadd.f32 %v63, %v291
  %v293 = vpop.f32.mrf.mxu0
  %294 = vdwg.mxu0
  %v295 = vmax.f32 %v217, 0.0
  %v296 = vmax.f32 %v219, 0.0
  %v297 = vmax.f32 %v222, 0.0
  %v298 = vmax.f32 %v224, 0.0
  %v299 = vmax.f32 %v227, 0.0
  %v300 = vmax.f32 %v229, 0.0
  %v301 = vmax.f32 %v232, 0.0
  %v302 = vmax.f32 %v234, 0.0
  %v303 = vmax.f32 %v237, 0.0
  %v304 = vmax.f32 %v239, 0.0
  %v305 = vmax.f32 %v242, 0.0
  %v306 = vmax.f32 %v244, 0.0
  %v307 = vmax.f32 %v247, 0.0
  %v308 = vmax.f32 %v249, 0.0
  %v309 = vmax.f32 %v252, 0.0
  %v310 = vmax.f32 %v254, 0.0
  %v311 = vmax.f32 %v257, 0.0
  %v312 = vmax.f32 %v259, 0.0
  %v313 = vmax.f32 %v262, 0.0
  %v314 = vmax.f32 %v264, 0.0
  %v315 = vmax.f32 %v267, 0.0
  %v316 = vmax.f32 %v269, 0.0
  %v317 = vmax.f32 %v272, 0.0
  %v318 = vmax.f32 %v274, 0.0
  %v319 = vmax.f32 %v277, 0.0
  %v320 = vmax.f32 %v279, 0.0
  %v321 = vmax.f32 %v282, 0.0
  %v322 = vmax.f32 %v284, 0.0
  %v323 = vmax.f32 %v287, 0.0
  %v324 = vmax.f32 %v289, 0.0
  %v325 = vmax.f32 %v292, 0.0
  %326 = vst [vmem:[%s3] sm:$0xff] %v295
  %327 = vst [vmem:[%s3 + $0x8] sm:$0xff] %v296
  %328 = vst [vmem:[%s3 + $0x10] sm:$0xff] %v297
  %329 = vst [vmem:[%s3 + $0x18] sm:$0xff] %v298
  %330 = vst [vmem:[%s3 + $0x20] sm:$0xff] %v299
  %331 = vst [vmem:[%s3 + $0x28] sm:$0xff] %v300
  %332 = vst [vmem:[%s3 + $0x30] sm:$0xff] %v301
  %333 = vst [vmem:[%s3 + $0x38] sm:$0xff] %v302
  %334 = vst [vmem:[%s3 + $0x40] sm:$0xff] %v303
  %335 = vst [vmem:[%s3 + $0x48] sm:$0xff] %v304
  %336 = vst [vmem:[%s3 + $0x50] sm:$0xff] %v305
  %337 = vst [vmem:[%s3 + $0x58] sm:$0xff] %v306
  %338 = vst [vmem:[%s3 + $0x60] sm:$0xff] %v307
  %339 = vst [vmem:[%s3 + $0x68] sm:$0xff] %v308
  %340 = vst [vmem:[%s3 + $0x70] sm:$0xff] %v309
  %341 = vst [vmem:[%s3 + $0x78] sm:$0xff] %v310
  %342 = vst [vmem:[%s3 + $0x80] sm:$0xff] %v311
  %343 = vst [vmem:[%s3 + $0x88] sm:$0xff] %v312
  %344 = vst [vmem:[%s3 + $0x90] sm:$0xff] %v313
  %345 = vst [vmem:[%s3 + $0x98] sm:$0xff] %v314
  %346 = vst [vmem:[%s3 + $0xa0] sm:$0xff] %v315
  %347 = vst [vmem:[%s3 + $0xa8] sm:$0xff] %v316
  %348 = vst [vmem:[%s3 + $0xb0] sm:$0xff] %v317
  %349 = vst [vmem:[%s3 + $0xb8] sm:$0xff] %v318
  %350 = vst [vmem:[%s3 + $0xc0] sm:$0xff] %v319
  %351 = vst [vmem:[%s3 + $0xc8] sm:$0xff] %v320
  %352 = vst [vmem:[%s3 + $0xd0] sm:$0xff] %v321
  %353 = vst [vmem:[%s3 + $0xd8] sm:$0xff] %v322
  %354 = vst [vmem:[%s3 + $0xe0] sm:$0xff] %v323
  %355 = vst [vmem:[%s3 + $0xe8] sm:$0xff] %v324
  %356 = vst [vmem:[%s3 + $0xf0] sm:$0xff] %v325
  // Predicated region
  $region14: #{autoencoder_forward.15} parent=0 // pred_check
    _
  $region15: #{autoencoder_forward.15} parent=0 // pred_check_branch
    %358 = sbr.rel (0) target = $region17
  $region16: #{autoencoder_forward.15} parent=0 // pred_region
    _
  $region17: #{autoencoder_forward.15} parent=0 // pred_fallthru
    _
  // Predicated region
  $region18: #{autoencoder_forward.15} parent=0 // pred_check
    _
  $region19: #{autoencoder_forward.15} parent=0 // pred_check_branch
    %360 = sbr.rel (0) target = $region21
  $region20: #{autoencoder_forward.15} parent=0 // pred_region
    _
  $region21: #{autoencoder_forward.15} parent=0 // pred_fallthru
    _

// kernel: autoencoder_forward.16
$region0: #{autoencoder_forward.16}
  #allocation0 [shape = 'u32[]', space=smem, size = 0x4, offset = 0x4, fixed_abs, tag = 'smem constant byte address 0x4 - core index']
  #allocation1 [shape = 'u32[72,128]{1,0:T(1,128)}', space=vmem, size = 0x9000, scoped, tag = 'internal scratch']
  %s0 = inlined_call_operand.vmem [shape: bf16[1280,512], index: 0, kind: input, shape index: {}]
  %s1 = inlined_call_operand.vmem [shape: bf16[512,128], index: 1, kind: input, shape index: {}]
  %s2 = inlined_call_operand.vmem [shape: f32[1,128], index: 2, kind: input, shape index: {}]
  %s3 = inlined_call_operand.vmem [shape: f32[1280,128], index: 3, kind: output, shape index: {}]
  %s4 = sld [smem:[#allocation0]]
  $region45: #{autoencoder_forward.16} parent=0
    _
  %s6 = ssub.s32 1, %s4
  %s7 = scalar_select 0, %s6, %s4
  loop: start=0, step=1, limit=7
  $region2: #{autoencoder_forward.16} parent=0 // loop_pre_header
    _
  $region3: #{autoencoder_forward.16} parent=0 // loop_header
    %s9 = sphi 0, %s13
    %p10 = scmp.ge.s32.totalorder %s9, 7
    %s19 = sphi 0, %s21
    %s22 = sphi 0, %s19
    %s23 = sphi 0, %s22
    %s39 = sphi 0, %s23
    %s43 = sphi 0, %s43
    %s45 = sphi 0, %s43
    %s46 = sphi 0, %s45
    %s60 = sphi 0, %s46
    %s64 = sphi 0, %s64
    %s66 = sphi 0, %s64
    %s67 = sphi 0, %s66
    %s81 = sphi 0, %s67
    %s87 = sphi 0, %s89
    %s90 = sphi 0, %s87
    %s91 = sphi 0, %s90
    %s107 = sphi 0, %s91
  $region4: #{autoencoder_forward.16} parent=0 // loop_header_branch
    %12 = sbr.rel (%p10) target = $region8
  $region5: #{autoencoder_forward.16} parent=0 // loop_body
    %s14 = ssub.s32 %s9, 1
    %s15 = ssub.s32 %s9, 2
    %s16 = sadd.s32 %s9, 1
    %s17 = ssub.s32 %s9, %s16
    %p18 = scmp.eq.s32.totalorder %s17, 0
    %s20 = sadd.s32 %s19, 1
    %s21 = scalar_select %p18, %s19, %s20
    %p24 = pneg %p18
    %p25 = scmp.eq.s32.totalorder %s9, 4
    %p26 = por %p24, %p25
    %p27 = scmp.ne.s32.totalorder %s19, %s22
    %p28 = scmp.eq.s32.totalorder %s9, 0
    %p29 = por %p27, %p28
    %p30 = scmp.ne.s32.totalorder %s19, %s22
    %p31 = scmp.eq.s32.totalorder %s14, 4
    %p32 = por %p30, %p31
    %p33 = scmp.ne.s32.totalorder %s22, %s23
    %p34 = scmp.eq.s32.totalorder %s14, 0
    %p35 = por %p33, %p34
    %p36 = scmp.ne.s32.totalorder %s22, %s23
    %p37 = scmp.eq.s32.totalorder %s15, 4
    %p38 = por %p36, %p37
    %p40 = scmp.ne.s32.totalorder %s23, %s39
    %p41 = scmp.eq.s32.totalorder %s15, 0
    %p42 = por %p40, %p41
    %s44 = sadd.s32 %s43, 1
    %p47 = scmp.eq.s32.totalorder %s9, 4
    %p48 = scmp.ne.s32.totalorder %s43, %s45
    %p49 = scmp.eq.s32.totalorder %s9, 0
    %p50 = por %p48, %p49
    %p51 = scmp.ne.s32.totalorder %s43, %s45
    %p52 = scmp.eq.s32.totalorder %s14, 4
    %p53 = por %p51, %p52
    %p54 = scmp.ne.s32.totalorder %s45, %s46
    %p55 = scmp.eq.s32.totalorder %s14, 0
    %p56 = por %p54, %p55
    %p57 = scmp.ne.s32.totalorder %s45, %s46
    %p58 = scmp.eq.s32.totalorder %s15, 4
    %p59 = por %p57, %p58
    %p61 = scmp.ne.s32.totalorder %s46, %s60
    %p62 = scmp.eq.s32.totalorder %s15, 0
    %p63 = por %p61, %p62
    %s65 = sadd.s32 %s64, 1
    %p68 = scmp.eq.s32.totalorder %s9, 4
    %p69 = scmp.ne.s32.totalorder %s64, %s66
    %p70 = scmp.eq.s32.totalorder %s9, 0
    %p71 = por %p69, %p70
    %p72 = scmp.ne.s32.totalorder %s64, %s66
    %p73 = scmp.eq.s32.totalorder %s14, 4
    %p74 = por %p72, %p73
    %p75 = scmp.ne.s32.totalorder %s66, %s67
    %p76 = scmp.eq.s32.totalorder %s14, 0
    %p77 = por %p75, %p76
    %p78 = scmp.ne.s32.totalorder %s66, %s67
    %p79 = scmp.eq.s32.totalorder %s15, 4
    %p80 = por %p78, %p79
    %p82 = scmp.ne.s32.totalorder %s67, %s81
    %p83 = scmp.eq.s32.totalorder %s15, 0
    %p84 = por %p82, %p83
    %s85 = ssub.s32 %s9, %s16
    %p86 = scmp.eq.s32.totalorder %s85, 0
    %s88 = sadd.s32 %s87, 1
    %s89 = scalar_select %p86, %s87, %s88
    %p92 = pneg %p86
    %p93 = scmp.eq.s32.totalorder %s9, 4
    %p94 = por %p92, %p93
    %p95 = scmp.ne.s32.totalorder %s87, %s90
    %p96 = scmp.eq.s32.totalorder %s9, 0
    %p97 = por %p95, %p96
    %p98 = scmp.ne.s32.totalorder %s87, %s90
    %p99 = scmp.eq.s32.totalorder %s14, 4
    %p100 = por %p98, %p99
    %p101 = scmp.ne.s32.totalorder %s90, %s91
    %p102 = scmp.eq.s32.totalorder %s14, 0
    %p103 = por %p101, %p102
    %p104 = scmp.ne.s32.totalorder %s90, %s91
    %p105 = scmp.eq.s32.totalorder %s15, 4
    %p106 = por %p104, %p105
    %p108 = scmp.ne.s32.totalorder %s91, %s107
    %p109 = scmp.eq.s32.totalorder %s15, 0
    %p110 = por %p108, %p109
    %p111 = scmp.le.s32.totalorder 1, %s9
    %p112 = scmp.lt.s32.totalorder %s9, 6
    %p113 = pnand %p111, %p112
    %p114 = pneg %p113
    // Predicated region
    $region9: #{autoencoder_forward.16} parent=5 // pred_check
      _
    $region10: #{autoencoder_forward.16} parent=5 // pred_check_branch
      %116 = sbr.rel (%p113) target = $region12
    $region11: #{autoencoder_forward.16} parent=5 // pred_region
      %s117 = ssub.s32 %s9, 1
      // Predicated region
      $region13: #{autoencoder_forward.16} parent=11 // pred_check
        %p118 = pneg %p56
      $region14: #{autoencoder_forward.16} parent=11 // pred_check_branch
        %120 = sbr.rel (%p118) target = $region16
      $region15: #{autoencoder_forward.16} parent=11 // pred_region
        _
      $region16: #{autoencoder_forward.16} parent=11 // pred_fallthru
        _
      // Predicated region
      $region17: #{autoencoder_forward.16} parent=11 // pred_check
        %p121 = pneg %p77
      $region18: #{autoencoder_forward.16} parent=11 // pred_check_branch
        %123 = sbr.rel (%p121) target = $region20
      $region19: #{autoencoder_forward.16} parent=11 // pred_region
        _
      $region20: #{autoencoder_forward.16} parent=11 // pred_fallthru
        _
    $region12: #{autoencoder_forward.16} parent=5 // pred_fallthru
      _
    %p124 = scmp.lt.s32.totalorder %s9, 5
    // Predicated region
    $region21: #{autoencoder_forward.16} parent=5 // pred_check
      %p125 = pneg %p124
    $region22: #{autoencoder_forward.16} parent=5 // pred_check_branch
      %127 = sbr.rel (%p125) target = $region24
    $region23: #{autoencoder_forward.16} parent=5 // pred_region
      // Predicated region
      $region25: #{autoencoder_forward.16} parent=23 // pred_check
        %p128 = pneg %p29
      $region26: #{autoencoder_forward.16} parent=23 // pred_check_branch
        %130 = sbr.rel (%p128) target = $region28
      $region27: #{autoencoder_forward.16} parent=23 // pred_region
        %s131 = smul.u32 32, %s9
        %p132 = scmp.lt.s32.totalorder %s131, 159
        %s133 = scalar_select %p132, %s131, 159
        %s134 = smul.addr %s133, 4
        %s135 = smul.addr %s134, 4
        %s136 = scalar_lea.vmem %s0, %s135
        %s137 = smul.u32 32, %s9
      $region28: #{autoencoder_forward.16} parent=23 // pred_fallthru
        _
    $region24: #{autoencoder_forward.16} parent=5 // pred_fallthru
      _
    %p138 = scmp.le.s32.totalorder 1, %s9
    %p139 = scmp.lt.s32.totalorder %s9, 6
    %p140 = pnand %p138, %p139
    %p141 = pneg %p140
    // Predicated region
    $region29: #{autoencoder_forward.16} parent=5 // pred_check
      _
    $region30: #{autoencoder_forward.16} parent=5 // pred_check_branch
      %143 = sbr.rel (%p140) target = $region32
    $region31: #{autoencoder_forward.16} parent=5 // pred_region
      %s144 = ssub.s32 %s9, 1
      %s145 = smul.u32 32, %s14
      %p146 = scmp.lt.s32.totalorder %s145, 159
      %s147 = scalar_select %p146, %s145, 159
      %s148 = smul.addr %s147, 4
      %s149 = smul.addr %s148, 4
      %s150 = scalar_lea.vmem %s0, %s149
      %p151 = pneg %p35
      %p152 = pneg %p32
      %p153 = pneg %p56
      %p154 = pneg %p53
      %p155 = pneg %p77
      %p156 = pneg %p74
      %p157 = pneg %p103
      %p158 = pneg %p100
      %s159 = smul.u32 32, %s14
      %p160 = scmp.lt.s32.totalorder %s159, 159
      %s161 = scalar_select %p160, %s159, 159
      %s162 = smul.addr %s161, 8
      %s163 = scalar_lea.vmem %s3, %s162
      %s164 = smul.u32 32, %s14
      %p165 = scmp.lt.s32.totalorder %s164, 159
      %s166 = scalar_select %p165, %s164, 159
      %s167 = smul.addr %s166, 4
      %s168 = smul.addr %s167, 4
      %s169 = scalar_lea.vmem %s0, %s168
      %s170 = smul.u32 32, %s14
      %s171 = smul.u32 32, %s14
      %p172 = scmp.lt.s32.totalorder %s171, 159
      %s173 = scalar_select %p172, %s171, 159
      %s174 = smul.addr %s173, 8
      %s175 = scalar_lea.vmem %s3, %s174
      %s176 = smul.u32 32, %s14
      %v177 = vld [vmem:[%s169] sm:$0xff]
      %v178 = vld [vmem:[%s169 + $0x8] sm:$0xff]
      %v179 = vld [vmem:[%s169 + $0x10] sm:$0xff]
      %v180 = vld [vmem:[%s169 + $0x18] sm:$0xff]
      %v181 = vld [vmem:[%s169 + $0x20] sm:$0xff]
      %v182 = vld [vmem:[%s169 + $0x28] sm:$0xff]
      %v183 = vld [vmem:[%s169 + $0x30] sm:$0xff]
      %v184 = vld [vmem:[%s169 + $0x38] sm:$0xff]
      %v185 = vld [vmem:[%s169 + $0x40] sm:$0xff]
      %v186 = vld [vmem:[%s169 + $0x48] sm:$0xff]
      %v187 = vld [vmem:[%s169 + $0x50] sm:$0xff]
      %v188 = vld [vmem:[%s169 + $0x58] sm:$0xff]
      %v189 = vld [vmem:[%s169 + $0x60] sm:$0xff]
      %v190 = vld [vmem:[%s169 + $0x68] sm:$0xff]
      %v191 = vld [vmem:[%s169 + $0x70] sm:$0xff]
      %v192 = vld [vmem:[%s169 + $0x78] sm:$0xff]
      %v193 = vld [vmem:[%s169 + $0x80] sm:$0xff]
      %v194 = vld [vmem:[%s169 + $0x88] sm:$0xff]
      %v195 = vld [vmem:[%s169 + $0x90] sm:$0xff]
      %v196 = vld [vmem:[%s169 + $0x98] sm:$0xff]
      %v197 = vld [vmem:[%s169 + $0xa0] sm:$0xff]
      %v198 = vld [vmem:[%s169 + $0xa8] sm:$0xff]
      %v199 = vld [vmem:[%s169 + $0xb0] sm:$0xff]
      %v200 = vld [vmem:[%s169 + $0xb8] sm:$0xff]
      %v201 = vld [vmem:[%s169 + $0xc0] sm:$0xff]
      %v202 = vld [vmem:[%s169 + $0xc8] sm:$0xff]
      %v203 = vld [vmem:[%s169 + $0xd0] sm:$0xff]
      %v204 = vld [vmem:[%s169 + $0xd8] sm:$0xff]
      %v205 = vld [vmem:[%s169 + $0xe0] sm:$0xff]
      %v206 = vld [vmem:[%s169 + $0xe8] sm:$0xff]
      %v207 = vld [vmem:[%s169 + $0xf0] sm:$0xff]
      %v208 = vld [vmem:[%s169 + $0xf8] sm:$0xff]
      %v209 = vld [vmem:[%s169 + $0x100] sm:$0xff]
      %v210 = vld [vmem:[%s169 + $0x108] sm:$0xff]
      %v211 = vld [vmem:[%s169 + $0x110] sm:$0xff]
      %v212 = vld [vmem:[%s169 + $0x118] sm:$0xff]
      %v213 = vld [vmem:[%s169 + $0x120] sm:$0xff]
      %v214 = vld [vmem:[%s169 + $0x128] sm:$0xff]
      %v215 = vld [vmem:[%s169 + $0x130] sm:$0xff]
      %v216 = vld [vmem:[%s169 + $0x138] sm:$0xff]
      %v217 = vld [vmem:[%s169 + $0x140] sm:$0xff]
      %v218 = vld [vmem:[%s169 + $0x148] sm:$0xff]
      %v219 = vld [vmem:[%s169 + $0x150] sm:$0xff]
      %v220 = vld [vmem:[%s169 + $0x158] sm:$0xff]
      %v221 = vld [vmem:[%s169 + $0x160] sm:$0xff]
      %v222 = vld [vmem:[%s169 + $0x168] sm:$0xff]
      %v223 = vld [vmem:[%s169 + $0x170] sm:$0xff]
      %v224 = vld [vmem:[%s169 + $0x178] sm:$0xff]
      %v225 = vld [vmem:[%s169 + $0x180] sm:$0xff]
      %v226 = vld [vmem:[%s169 + $0x188] sm:$0xff]
      %v227 = vld [vmem:[%s169 + $0x190] sm:$0xff]
      %v228 = vld [vmem:[%s169 + $0x198] sm:$0xff]
      %v229 = vld [vmem:[%s169 + $0x1a0] sm:$0xff]
      %v230 = vld [vmem:[%s169 + $0x1a8] sm:$0xff]
      %v231 = vld [vmem:[%s169 + $0x1b0] sm:$0xff]
      %v232 = vld [vmem:[%s169 + $0x1b8] sm:$0xff]
      %v233 = vld [vmem:[%s169 + $0x1c0] sm:$0xff]
      %v234 = vld [vmem:[%s169 + $0x1c8] sm:$0xff]
      %v235 = vld [vmem:[%s169 + $0x1d0] sm:$0xff]
      %v236 = vld [vmem:[%s169 + $0x1d8] sm:$0xff]
      %v237 = vld [vmem:[%s169 + $0x1e0] sm:$0xff]
      %v238 = vld [vmem:[%s169 + $0x1e8] sm:$0xff]
      %v239 = vld [vmem:[%s169 + $0x1f0] sm:$0xff]
      %v240 = vld [vmem:[%s169 + $0x1f8] sm:$0xff]
      %v241 = vld [vmem:[%s1] sm:$0xf]
      %v242 = vld [vmem:[%s1 + $0x4] sm:$0xf]
      %v243 = vld [vmem:[%s1 + $0x8] sm:$0xf]
      %v244 = vld [vmem:[%s1 + $0xc] sm:$0xf]
      %v245 = vld [vmem:[%s1 + $0x10] sm:$0xf]
      %v246 = vld [vmem:[%s1 + $0x14] sm:$0xf]
      %v247 = vld [vmem:[%s1 + $0x18] sm:$0xf]
      %v248 = vld [vmem:[%s1 + $0x1c] sm:$0xf]
      %v249 = vld [vmem:[%s1 + $0x20] sm:$0xf]
      %v250 = vld [vmem:[%s1 + $0x24] sm:$0xf]
      %v251 = vld [vmem:[%s1 + $0x28] sm:$0xf]
      %v252 = vld [vmem:[%s1 + $0x2c] sm:$0xf]
      %v253 = vld [vmem:[%s1 + $0x30] sm:$0xf]
      %v254 = vld [vmem:[%s1 + $0x34] sm:$0xf]
      %v255 = vld [vmem:[%s1 + $0x38] sm:$0xf]
      %v256 = vld [vmem:[%s1 + $0x3c] sm:$0xf]
      %v257 = vld [vmem:[%s1 + $0x40] sm:$0xf]
      %v258 = vld [vmem:[%s1 + $0x44] sm:$0xf]
      %v259 = vld [vmem:[%s1 + $0x48] sm:$0xf]
      %v260 = vld [vmem:[%s1 + $0x4c] sm:$0xf]
      %v261 = vld [vmem:[%s1 + $0x50] sm:$0xf]
      %v262 = vld [vmem:[%s1 + $0x54] sm:$0xf]
      %v263 = vld [vmem:[%s1 + $0x58] sm:$0xf]
      %v264 = vld [vmem:[%s1 + $0x5c] sm:$0xf]
      %v265 = vld [vmem:[%s1 + $0x60] sm:$0xf]
      %v266 = vld [vmem:[%s1 + $0x64] sm:$0xf]
      %v267 = vld [vmem:[%s1 + $0x68] sm:$0xf]
      %v268 = vld [vmem:[%s1 + $0x6c] sm:$0xf]
      %v269 = vld [vmem:[%s1 + $0x70] sm:$0xf]
      %v270 = vld [vmem:[%s1 + $0x74] sm:$0xf]
      %v271 = vld [vmem:[%s1 + $0x78] sm:$0xf]
      %v272 = vld [vmem:[%s1 + $0x7c] sm:$0xf]
      %v273 = vld [vmem:[%s1 + $0x80] sm:$0xf]
      %v274 = vld [vmem:[%s1 + $0x84] sm:$0xf]
      %v275 = vld [vmem:[%s1 + $0x88] sm:$0xf]
      %v276 = vld [vmem:[%s1 + $0x8c] sm:$0xf]
      %v277 = vld [vmem:[%s1 + $0x90] sm:$0xf]
      %v278 = vld [vmem:[%s1 + $0x94] sm:$0xf]
      %v279 = vld [vmem:[%s1 + $0x98] sm:$0xf]
      %v280 = vld [vmem:[%s1 + $0x9c] sm:$0xf]
      %v281 = vld [vmem:[%s1 + $0xa0] sm:$0xf]
      %v282 = vld [vmem:[%s1 + $0xa4] sm:$0xf]
      %v283 = vld [vmem:[%s1 + $0xa8] sm:$0xf]
      %v284 = vld [vmem:[%s1 + $0xac] sm:$0xf]
      %v285 = vld [vmem:[%s1 + $0xb0] sm:$0xf]
      %v286 = vld [vmem:[%s1 + $0xb4] sm:$0xf]
      %v287 = vld [vmem:[%s1 + $0xb8] sm:$0xf]
      %v288 = vld [vmem:[%s1 + $0xbc] sm:$0xf]
      %v289 = vld [vmem:[%s1 + $0xc0] sm:$0xf]
      %v290 = vld [vmem:[%s1 + $0xc4] sm:$0xf]
      %v291 = vld [vmem:[%s1 + $0xc8] sm:$0xf]
      %v292 = vld [vmem:[%s1 + $0xcc] sm:$0xf]
      %v293 = vld [vmem:[%s1 + $0xd0] sm:$0xf]
      %v294 = vld [vmem:[%s1 + $0xd4] sm:$0xf]
      %v295 = vld [vmem:[%s1 + $0xd8] sm:$0xf]
      %v296 = vld [vmem:[%s1 + $0xdc] sm:$0xf]
      %v297 = vld [vmem:[%s1 + $0xe0] sm:$0xf]
      %v298 = vld [vmem:[%s1 + $0xe4] sm:$0xf]
      %v299 = vld [vmem:[%s1 + $0xe8] sm:$0xf]
      %v300 = vld [vmem:[%s1 + $0xec] sm:$0xf]
      %v301 = vld [vmem:[%s1 + $0xf0] sm:$0xf]
      %v302 = vld [vmem:[%s1 + $0xf4] sm:$0xf]
      %v303 = vld [vmem:[%s1 + $0xf8] sm:$0xf]
      %v304 = vld [vmem:[%s1 + $0xfc] sm:$0xf]
      %v305 = vld [vmem:[%s2] sm:$0x1]
      %v307 = vperm.slane %v305, 0
      %v373 = vunpack.c.l.b16 %v177
      %v374 = vunpack.c.h.b16 %v177
      %v375 = vunpack.c.l.b16 %v178
      %v376 = vunpack.c.h.b16 %v178
      %v377 = vunpack.c.l.b16 %v179
      %v378 = vunpack.c.h.b16 %v179
      %v379 = vunpack.c.l.b16 %v180
      %v380 = vunpack.c.h.b16 %v180
      %v381 = vunpack.c.l.b16 %v181
      %v382 = vunpack.c.h.b16 %v181
      %v383 = vunpack.c.l.b16 %v182
      %v384 = vunpack.c.h.b16 %v182
      %v385 = vunpack.c.l.b16 %v183
      %v386 = vunpack.c.h.b16 %v183
      %v387 = vunpack.c.l.b16 %v184
      %v388 = vunpack.c.h.b16 %v184
      %v389 = vunpack.c.l.b16 %v185
      %v390 = vunpack.c.h.b16 %v185
      %v391 = vunpack.c.l.b16 %v186
      %v392 = vunpack.c.h.b16 %v186
      %v393 = vunpack.c.l.b16 %v187
      %v394 = vunpack.c.h.b16 %v187
      %v395 = vunpack.c.l.b16 %v188
      %v396 = vunpack.c.h.b16 %v188
      %v397 = vunpack.c.l.b16 %v189
      %v398 = vunpack.c.h.b16 %v189
      %v399 = vunpack.c.l.b16 %v190
      %v400 = vunpack.c.h.b16 %v190
      %v401 = vunpack.c.l.b16 %v191
      %v402 = vunpack.c.h.b16 %v191
      %v403 = vunpack.c.l.b16 %v192
      %v404 = vunpack.c.h.b16 %v192
      %v405 = vunpack.c.l.b16 %v193
      %v406 = vunpack.c.h.b16 %v193
      %v407 = vunpack.c.l.b16 %v194
      %v408 = vunpack.c.h.b16 %v194
      %v409 = vunpack.c.l.b16 %v195
      %v410 = vunpack.c.h.b16 %v195
      %v411 = vunpack.c.l.b16 %v196
      %v412 = vunpack.c.h.b16 %v196
      %v413 = vunpack.c.l.b16 %v197
      %v414 = vunpack.c.h.b16 %v197
      %v415 = vunpack.c.l.b16 %v198
      %v416 = vunpack.c.h.b16 %v198
      %v417 = vunpack.c.l.b16 %v199
      %v418 = vunpack.c.h.b16 %v199
      %v419 = vunpack.c.l.b16 %v200
      %v420 = vunpack.c.h.b16 %v200
      %v421 = vunpack.c.l.b16 %v201
      %v422 = vunpack.c.h.b16 %v201
      %v423 = vunpack.c.l.b16 %v202
      %v424 = vunpack.c.h.b16 %v202
      %v425 = vunpack.c.l.b16 %v203
      %v426 = vunpack.c.h.b16 %v203
      %v427 = vunpack.c.l.b16 %v204
      %v428 = vunpack.c.h.b16 %v204
      %v429 = vunpack.c.l.b16 %v205
      %v430 = vunpack.c.h.b16 %v205
      %v431 = vunpack.c.l.b16 %v206
      %v432 = vunpack.c.h.b16 %v206
      %v433 = vunpack.c.l.b16 %v207
      %v434 = vunpack.c.h.b16 %v207
      %v435 = vunpack.c.l.b16 %v208
      %v436 = vunpack.c.h.b16 %v208
      %v437 = vunpack.c.l.b16 %v209
      %v438 = vunpack.c.h.b16 %v209
      %v439 = vunpack.c.l.b16 %v210
      %v440 = vunpack.c.h.b16 %v210
      %v441 = vunpack.c.l.b16 %v211
      %v442 = vunpack.c.h.b16 %v211
      %v443 = vunpack.c.l.b16 %v212
      %v444 = vunpack.c.h.b16 %v212
      %v445 = vunpack.c.l.b16 %v213
      %v446 = vunpack.c.h.b16 %v213
      %v447 = vunpack.c.l.b16 %v214
      %v448 = vunpack.c.h.b16 %v214
      %v449 = vunpack.c.l.b16 %v215
      %v450 = vunpack.c.h.b16 %v215
      %v451 = vunpack.c.l.b16 %v216
      %v452 = vunpack.c.h.b16 %v216
      %v453 = vunpack.c.l.b16 %v217
      %v454 = vunpack.c.h.b16 %v217
      %v455 = vunpack.c.l.b16 %v218
      %v456 = vunpack.c.h.b16 %v218
      %v457 = vunpack.c.l.b16 %v219
      %v458 = vunpack.c.h.b16 %v219
      %v459 = vunpack.c.l.b16 %v220
      %v460 = vunpack.c.h.b16 %v220
      %v461 = vunpack.c.l.b16 %v221
      %v462 = vunpack.c.h.b16 %v221
      %v463 = vunpack.c.l.b16 %v222
      %v464 = vunpack.c.h.b16 %v222
      %v465 = vunpack.c.l.b16 %v223
      %v466 = vunpack.c.h.b16 %v223
      %v467 = vunpack.c.l.b16 %v224
      %v468 = vunpack.c.h.b16 %v224
      %v469 = vunpack.c.l.b16 %v225
      %v470 = vunpack.c.h.b16 %v225
      %v471 = vunpack.c.l.b16 %v226
      %v472 = vunpack.c.h.b16 %v226
      %v473 = vunpack.c.l.b16 %v227
      %v474 = vunpack.c.h.b16 %v227
      %v475 = vunpack.c.l.b16 %v228
      %v476 = vunpack.c.h.b16 %v228
      %v477 = vunpack.c.l.b16 %v229
      %v478 = vunpack.c.h.b16 %v229
      %v479 = vunpack.c.l.b16 %v230
      %v480 = vunpack.c.h.b16 %v230
      %v481 = vunpack.c.l.b16 %v231
      %v482 = vunpack.c.h.b16 %v231
      %v483 = vunpack.c.l.b16 %v232
      %v484 = vunpack.c.h.b16 %v232
      %v485 = vunpack.c.l.b16 %v233
      %v486 = vunpack.c.h.b16 %v233
      %v487 = vunpack.c.l.b16 %v234
      %v488 = vunpack.c.h.b16 %v234
      %v489 = vunpack.c.l.b16 %v235
      %v490 = vunpack.c.h.b16 %v235
      %v491 = vunpack.c.l.b16 %v236
      %v492 = vunpack.c.h.b16 %v236
      %v493 = vunpack.c.l.b16 %v237
      %v494 = vunpack.c.h.b16 %v237
      %v495 = vunpack.c.l.b16 %v238
      %v496 = vunpack.c.h.b16 %v238
      %v497 = vunpack.c.l.b16 %v239
      %v498 = vunpack.c.h.b16 %v239
      %v499 = vunpack.c.l.b16 %v240
      %v500 = vunpack.c.h.b16 %v240
      %v501 = vpack.c.b16 %v377, %v373
      %v502 = vpack.c.b16 %v378, %v374
      %v503 = vpack.c.b16 %v379, %v375
      %v504 = vpack.c.b16 %v380, %v376
      %v505 = vpack.c.b16 %v385, %v381
      %v506 = vpack.c.b16 %v386, %v382
      %v507 = vpack.c.b16 %v387, %v383
      %v508 = vpack.c.b16 %v388, %v384
      %v509 = vpack.c.b16 %v393, %v389
      %v510 = vpack.c.b16 %v394, %v390
      %v511 = vpack.c.b16 %v395, %v391
      %v512 = vpack.c.b16 %v396, %v392
      %v513 = vpack.c.b16 %v401, %v397
      %v514 = vpack.c.b16 %v402, %v398
      %v515 = vpack.c.b16 %v403, %v399
      %v516 = vpack.c.b16 %v404, %v400
      %v517 = vpack.c.b16 %v409, %v405
      %v518 = vpack.c.b16 %v410, %v406
      %v519 = vpack.c.b16 %v411, %v407
      %v520 = vpack.c.b16 %v412, %v408
      %v521 = vpack.c.b16 %v417, %v413
      %v522 = vpack.c.b16 %v418, %v414
      %v523 = vpack.c.b16 %v419, %v415
      %v524 = vpack.c.b16 %v420, %v416
      %v525 = vpack.c.b16 %v425, %v421
      %v526 = vpack.c.b16 %v426, %v422
      %v527 = vpack.c.b16 %v427, %v423
      %v528 = vpack.c.b16 %v428, %v424
      %v529 = vpack.c.b16 %v433, %v429
      %v530 = vpack.c.b16 %v434, %v430
      %v531 = vpack.c.b16 %v435, %v431
      %v532 = vpack.c.b16 %v436, %v432
      %v533 = vpack.c.b16 %v441, %v437
      %v534 = vpack.c.b16 %v442, %v438
      %v535 = vpack.c.b16 %v443, %v439
      %v536 = vpack.c.b16 %v444, %v440
      %v537 = vpack.c.b16 %v449, %v445
      %v538 = vpack.c.b16 %v450, %v446
      %v539 = vpack.c.b16 %v451, %v447
      %v540 = vpack.c.b16 %v452, %v448
      %v541 = vpack.c.b16 %v457, %v453
      %v542 = vpack.c.b16 %v458, %v454
      %v543 = vpack.c.b16 %v459, %v455
      %v544 = vpack.c.b16 %v460, %v456
      %v545 = vpack.c.b16 %v465, %v461
      %v546 = vpack.c.b16 %v466, %v462
      %v547 = vpack.c.b16 %v467, %v463
      %v548 = vpack.c.b16 %v468, %v464
      %v549 = vpack.c.b16 %v473, %v469
      %v550 = vpack.c.b16 %v474, %v470
      %v551 = vpack.c.b16 %v475, %v471
      %v552 = vpack.c.b16 %v476, %v472
      %v553 = vpack.c.b16 %v481, %v477
      %v554 = vpack.c.b16 %v482, %v478
      %v555 = vpack.c.b16 %v483, %v479
      %v556 = vpack.c.b16 %v484, %v480
      %v557 = vpack.c.b16 %v489, %v485
      %v558 = vpack.c.b16 %v490, %v486
      %v559 = vpack.c.b16 %v491, %v487
      %v560 = vpack.c.b16 %v492, %v488
      %v561 = vpack.c.b16 %v497, %v493
      %v562 = vpack.c.b16 %v498, %v494
      %v563 = vpack.c.b16 %v499, %v495
      %v564 = vpack.c.b16 %v500, %v496
      %v693 = vunpack.c.l.b16 %v241
      %v694 = vunpack.c.l.b16 %v242
      %v695 = vunpack.c.l.b16 %v243
      %v696 = vunpack.c.l.b16 %v244
      %v697 = vunpack.c.l.b16 %v245
      %v698 = vunpack.c.l.b16 %v246
      %v699 = vunpack.c.l.b16 %v247
      %v700 = vunpack.c.l.b16 %v248
      %v701 = vunpack.c.l.b16 %v249
      %v702 = vunpack.c.l.b16 %v250
      %v703 = vunpack.c.l.b16 %v251
      %v704 = vunpack.c.l.b16 %v252
      %v705 = vunpack.c.l.b16 %v253
      %v706 = vunpack.c.l.b16 %v254
      %v707 = vunpack.c.l.b16 %v255
      %v708 = vunpack.c.l.b16 %v256
      %v709 = vunpack.c.l.b16 %v257
      %v710 = vunpack.c.l.b16 %v258
      %v711 = vunpack.c.l.b16 %v259
      %v712 = vunpack.c.l.b16 %v260
      %v713 = vunpack.c.l.b16 %v261
      %v714 = vunpack.c.l.b16 %v262
      %v715 = vunpack.c.l.b16 %v263
      %v716 = vunpack.c.l.b16 %v264
      %v717 = vunpack.c.l.b16 %v265
      %v718 = vunpack.c.l.b16 %v266
      %v719 = vunpack.c.l.b16 %v267
      %v720 = vunpack.c.l.b16 %v268
      %v721 = vunpack.c.l.b16 %v269
      %v722 = vunpack.c.l.b16 %v270
      %v723 = vunpack.c.l.b16 %v271
      %v724 = vunpack.c.l.b16 %v272
      %v725 = vunpack.c.l.b16 %v273
      %v726 = vunpack.c.l.b16 %v274
      %v727 = vunpack.c.l.b16 %v275
      %v728 = vunpack.c.l.b16 %v276
      %v729 = vunpack.c.l.b16 %v277
      %v730 = vunpack.c.l.b16 %v278
      %v731 = vunpack.c.l.b16 %v279
      %v732 = vunpack.c.l.b16 %v280
      %v733 = vunpack.c.l.b16 %v281
      %v734 = vunpack.c.l.b16 %v282
      %v735 = vunpack.c.l.b16 %v283
      %v736 = vunpack.c.l.b16 %v284
      %v737 = vunpack.c.l.b16 %v285
      %v738 = vunpack.c.l.b16 %v286
      %v739 = vunpack.c.l.b16 %v287
      %v740 = vunpack.c.l.b16 %v288
      %v741 = vunpack.c.l.b16 %v289
      %v742 = vunpack.c.l.b16 %v290
      %v743 = vunpack.c.l.b16 %v291
      %v744 = vunpack.c.l.b16 %v292
      %v745 = vunpack.c.l.b16 %v293
      %v746 = vunpack.c.l.b16 %v294
      %v747 = vunpack.c.l.b16 %v295
      %v748 = vunpack.c.l.b16 %v296
      %v749 = vunpack.c.l.b16 %v297
      %v750 = vunpack.c.l.b16 %v298
      %v751 = vunpack.c.l.b16 %v299
      %v752 = vunpack.c.l.b16 %v300
      %v753 = vunpack.c.l.b16 %v301
      %v754 = vunpack.c.l.b16 %v302
      %v755 = vunpack.c.l.b16 %v303
      %v756 = vunpack.c.l.b16 %v304
      %v757 = vpack.c.b16 %v694, %v693
      %v758 = vpack.c.b16 %v696, %v695
      %v759 = vpack.c.b16 %v698, %v697
      %v760 = vpack.c.b16 %v700, %v699
      %v761 = vpack.c.b16 %v702, %v701
      %v762 = vpack.c.b16 %v704, %v703
      %v763 = vpack.c.b16 %v706, %v705
      %v764 = vpack.c.b16 %v708, %v707
      %v765 = vpack.c.b16 %v710, %v709
      %v766 = vpack.c.b16 %v712, %v711
      %v767 = vpack.c.b16 %v714, %v713
      %v768 = vpack.c.b16 %v716, %v715
      %v769 = vpack.c.b16 %v718, %v717
      %v770 = vpack.c.b16 %v720, %v719
      %v771 = vpack.c.b16 %v722, %v721
      %v772 = vpack.c.b16 %v724, %v723
      %v773 = vpack.c.b16 %v726, %v725
      %v774 = vpack.c.b16 %v728, %v727
      %v775 = vpack.c.b16 %v730, %v729
      %v776 = vpack.c.b16 %v732, %v731
      %v777 = vpack.c.b16 %v734, %v733
      %v778 = vpack.c.b16 %v736, %v735
      %v779 = vpack.c.b16 %v738, %v737
      %v780 = vpack.c.b16 %v740, %v739
      %v781 = vpack.c.b16 %v742, %v741
      %v782 = vpack.c.b16 %v744, %v743
      %v783 = vpack.c.b16 %v746, %v745
      %v784 = vpack.c.b16 %v748, %v747
      %v785 = vpack.c.b16 %v750, %v749
      %v786 = vpack.c.b16 %v752, %v751
      %v787 = vpack.c.b16 %v754, %v753
      %v788 = vpack.c.b16 %v756, %v755
      %821 = vmatpush.bf16.msra.mxu0 %v764
      %822 = vmatpush.bf16.msra.mxu0 %v763
      %823 = vmatpush.bf16.msra.mxu0 %v762
      %824 = vmatpush.bf16.msra.mxu0 %v761
      %825 = vmatpush.bf16.msra.mxu0 %v760
      %826 = vmatpush.bf16.msra.mxu0 %v759
      %827 = vmatpush.bf16.msra.mxu0 %v758
      %828 = vmatpush.bf16.msra.mxu0 %v757
      %829 = vmatmul.bf16.gmra.mxu0 %v501
      %v830 = vpop.f32.mrf.mxu0
      %v831 = vadd.f32 %v307, %v830
      %v832 = vpop.f32.mrf.mxu0
      %v833 = vadd.f32 %v307, %v832
      %834 = vmatmul.bf16.gmra.mxu0 %v505
      %v835 = vpop.f32.mrf.mxu0
      %v836 = vadd.f32 %v307, %v835
      %v837 = vpop.f32.mrf.mxu0
      %v838 = vadd.f32 %v307, %v837
      %839 = vmatmul.bf16.gmra.mxu0 %v509
      %v840 = vpop.f32.mrf.mxu0
      %v841 = vadd.f32 %v307, %v840
      %v842 = vpop.f32.mrf.mxu0
      %v843 = vadd.f32 %v307, %v842
      %844 = vmatmul.bf16.gmra.mxu0 %v513
      %v845 = vpop.f32.mrf.mxu0
      %v846 = vadd.f32 %v307, %v845
      %v847 = vpop.f32.mrf.mxu0
      %v848 = vadd.f32 %v307, %v847
      %849 = vmatmul.bf16.gmra.mxu0 %v517
      %v850 = vpop.f32.mrf.mxu0
      %v851 = vadd.f32 %v307, %v850
      %v852 = vpop.f32.mrf.mxu0
      %v853 = vadd.f32 %v307, %v852
      %854 = vmatmul.bf16.gmra.mxu0 %v521
      %v855 = vpop.f32.mrf.mxu0
      %v856 = vadd.f32 %v307, %v855
      %v857 = vpop.f32.mrf.mxu0
      %v858 = vadd.f32 %v307, %v857
      %859 = vmatmul.bf16.gmra.mxu0 %v525
      %v860 = vpop.f32.mrf.mxu0
      %v861 = vadd.f32 %v307, %v860
      %v862 = vpop.f32.mrf.mxu0
      %v863 = vadd.f32 %v307, %v862
      %864 = vmatmul.bf16.gmra.mxu0 %v529
      %v865 = vpop.f32.mrf.mxu0
      %v866 = vadd.f32 %v307, %v865
      %v867 = vpop.f32.mrf.mxu0
      %v868 = vadd.f32 %v307, %v867
      %869 = vmatmul.bf16.gmra.mxu0 %v533
      %v870 = vpop.f32.mrf.mxu0
      %v871 = vadd.f32 %v307, %v870
      %v872 = vpop.f32.mrf.mxu0
      %v873 = vadd.f32 %v307, %v872
      %874 = vmatmul.bf16.gmra.mxu0 %v537
      %v875 = vpop.f32.mrf.mxu0
      %v876 = vadd.f32 %v307, %v875
      %v877 = vpop.f32.mrf.mxu0
      %v878 = vadd.f32 %v307, %v877
      %879 = vmatmul.bf16.gmra.mxu0 %v541
      %v880 = vpop.f32.mrf.mxu0
      %v881 = vadd.f32 %v307, %v880
      %v882 = vpop.f32.mrf.mxu0
      %v883 = vadd.f32 %v307, %v882
      %884 = vmatmul.bf16.gmra.mxu0 %v545
      %v885 = vpop.f32.mrf.mxu0
      %v886 = vadd.f32 %v307, %v885
      %v887 = vpop.f32.mrf.mxu0
      %v888 = vadd.f32 %v307, %v887
      %889 = vmatmul.bf16.gmra.mxu0 %v549
      %v890 = vpop.f32.mrf.mxu0
      %v891 = vadd.f32 %v307, %v890
      %v892 = vpop.f32.mrf.mxu0
      %v893 = vadd.f32 %v307, %v892
      %894 = vmatmul.bf16.gmra.mxu0 %v553
      %v895 = vpop.f32.mrf.mxu0
      %v896 = vadd.f32 %v307, %v895
      %v897 = vpop.f32.mrf.mxu0
      %v898 = vadd.f32 %v307, %v897
      %899 = vmatmul.bf16.gmra.mxu0 %v557
      %v900 = vpop.f32.mrf.mxu0
      %v901 = vadd.f32 %v307, %v900
      %v902 = vpop.f32.mrf.mxu0
      %v903 = vadd.f32 %v307, %v902
      %904 = vmatmul.bf16.gmra.mxu0 %v561
      %v905 = vpop.f32.mrf.mxu0
      %v906 = vadd.f32 %v307, %v905
      %v907 = vpop.f32.mrf.mxu0
      %v908 = vadd.f32 %v307, %v907
      %909 = vdwg.mxu0
      %910 = vmatpush.bf16.msra.mxu0 %v772
      %911 = vmatpush.bf16.msra.mxu0 %v771
      %912 = vmatpush.bf16.msra.mxu0 %v770
      %913 = vmatpush.bf16.msra.mxu0 %v769
      %914 = vmatpush.bf16.msra.mxu0 %v768
      %915 = vmatpush.bf16.msra.mxu0 %v767
      %916 = vmatpush.bf16.msra.mxu0 %v766
      %917 = vmatpush.bf16.msra.mxu0 %v765
      %918 = vmatmul.bf16.gmra.mxu0 %v502
      %v919 = vpop.f32.mrf.mxu0
      %v920 = vadd.f32 %v831, %v919
      %v921 = vpop.f32.mrf.mxu0
      %v922 = vadd.f32 %v833, %v921
      %923 = vmatmul.bf16.gmra.mxu0 %v506
      %v924 = vpop.f32.mrf.mxu0
      %v925 = vadd.f32 %v836, %v924
      %v926 = vpop.f32.mrf.mxu0
      %v927 = vadd.f32 %v838, %v926
      %928 = vmatmul.bf16.gmra.mxu0 %v510
      %v929 = vpop.f32.mrf.mxu0
      %v930 = vadd.f32 %v841, %v929
      %v931 = vpop.f32.mrf.mxu0
      %v932 = vadd.f32 %v843, %v931
      %933 = vmatmul.bf16.gmra.mxu0 %v514
      %v934 = vpop.f32.mrf.mxu0
      %v935 = vadd.f32 %v846, %v934
      %v936 = vpop.f32.mrf.mxu0
      %v937 = vadd.f32 %v848, %v936
      %938 = vmatmul.bf16.gmra.mxu0 %v518
      %v939 = vpop.f32.mrf.mxu0
      %v940 = vadd.f32 %v851, %v939
      %v941 = vpop.f32.mrf.mxu0
      %v942 = vadd.f32 %v853, %v941
      %943 = vmatmul.bf16.gmra.mxu0 %v522
      %v944 = vpop.f32.mrf.mxu0
      %v945 = vadd.f32 %v856, %v944
      %v946 = vpop.f32.mrf.mxu0
      %v947 = vadd.f32 %v858, %v946
      %948 = vmatmul.bf16.gmra.mxu0 %v526
      %v949 = vpop.f32.mrf.mxu0
      %v950 = vadd.f32 %v861, %v949
      %v951 = vpop.f32.mrf.mxu0
      %v952 = vadd.f32 %v863, %v951
      %953 = vmatmul.bf16.gmra.mxu0 %v530
      %v954 = vpop.f32.mrf.mxu0
      %v955 = vadd.f32 %v866, %v954
      %v956 = vpop.f32.mrf.mxu0
      %v957 = vadd.f32 %v868, %v956
      %958 = vmatmul.bf16.gmra.mxu0 %v534
      %v959 = vpop.f32.mrf.mxu0
      %v960 = vadd.f32 %v871, %v959
      %v961 = vpop.f32.mrf.mxu0
      %v962 = vadd.f32 %v873, %v961
      %963 = vmatmul.bf16.gmra.mxu0 %v538
      %v964 = vpop.f32.mrf.mxu0
      %v965 = vadd.f32 %v876, %v964
      %v966 = vpop.f32.mrf.mxu0
      %v967 = vadd.f32 %v878, %v966
      %968 = vmatmul.bf16.gmra.mxu0 %v542
      %v969 = vpop.f32.mrf.mxu0
      %v970 = vadd.f32 %v881, %v969
      %v971 = vpop.f32.mrf.mxu0
      %v972 = vadd.f32 %v883, %v971
      %973 = vmatmul.bf16.gmra.mxu0 %v546
      %v974 = vpop.f32.mrf.mxu0
      %v975 = vadd.f32 %v886, %v974
      %v976 = vpop.f32.mrf.mxu0
      %v977 = vadd.f32 %v888, %v976
      %978 = vmatmul.bf16.gmra.mxu0 %v550
      %v979 = vpop.f32.mrf.mxu0
      %v980 = vadd.f32 %v891, %v979
      %v981 = vpop.f32.mrf.mxu0
      %v982 = vadd.f32 %v893, %v981
      %983 = vmatmul.bf16.gmra.mxu0 %v554
      %v984 = vpop.f32.mrf.mxu0
      %v985 = vadd.f32 %v896, %v984
      %v986 = vpop.f32.mrf.mxu0
      %v987 = vadd.f32 %v898, %v986
      %988 = vmatmul.bf16.gmra.mxu0 %v558
      %v989 = vpop.f32.mrf.mxu0
      %v990 = vadd.f32 %v901, %v989
      %v991 = vpop.f32.mrf.mxu0
      %v992 = vadd.f32 %v903, %v991
      %993 = vmatmul.bf16.gmra.mxu0 %v562
      %v994 = vpop.f32.mrf.mxu0
      %v995 = vadd.f32 %v906, %v994
      %v996 = vpop.f32.mrf.mxu0
      %v997 = vadd.f32 %v908, %v996
      %998 = vdwg.mxu0
      %999 = vmatpush.bf16.msra.mxu0 %v780
      %1000 = vmatpush.bf16.msra.mxu0 %v779
      %1001 = vmatpush.bf16.msra.mxu0 %v778
      %1002 = vmatpush.bf16.msra.mxu0 %v777
      %1003 = vmatpush.bf16.msra.mxu0 %v776
      %1004 = vmatpush.bf16.msra.mxu0 %v775
      %1005 = vmatpush.bf16.msra.mxu0 %v774
      %1006 = vmatpush.bf16.msra.mxu0 %v773
      %1007 = vmatmul.bf16.gmra.mxu0 %v503
      %v1008 = vpop.f32.mrf.mxu0
      %v1009 = vadd.f32 %v920, %v1008
      %v1010 = vpop.f32.mrf.mxu0
      %v1011 = vadd.f32 %v922, %v1010
      %1012 = vmatmul.bf16.gmra.mxu0 %v507
      %v1013 = vpop.f32.mrf.mxu0
      %v1014 = vadd.f32 %v925, %v1013
      %v1015 = vpop.f32.mrf.mxu0
      %v1016 = vadd.f32 %v927, %v1015
      %1017 = vmatmul.bf16.gmra.mxu0 %v511
      %v1018 = vpop.f32.mrf.mxu0
      %v1019 = vadd.f32 %v930, %v1018
      %v1020 = vpop.f32.mrf.mxu0
      %v1021 = vadd.f32 %v932, %v1020
      %1022 = vmatmul.bf16.gmra.mxu0 %v515
      %v1023 = vpop.f32.mrf.mxu0
      %v1024 = vadd.f32 %v935, %v1023
      %v1025 = vpop.f32.mrf.mxu0
      %v1026 = vadd.f32 %v937, %v1025
      %1027 = vmatmul.bf16.gmra.mxu0 %v519
      %v1028 = vpop.f32.mrf.mxu0
      %v1029 = vadd.f32 %v940, %v1028
      %v1030 = vpop.f32.mrf.mxu0
      %v1031 = vadd.f32 %v942, %v1030
      %1032 = vmatmul.bf16.gmra.mxu0 %v523
      %v1033 = vpop.f32.mrf.mxu0
      %v1034 = vadd.f32 %v945, %v1033
      %v1035 = vpop.f32.mrf.mxu0
      %v1036 = vadd.f32 %v947, %v1035
      %1037 = vmatmul.bf16.gmra.mxu0 %v527
      %v1038 = vpop.f32.mrf.mxu0
      %v1039 = vadd.f32 %v950, %v1038
      %v1040 = vpop.f32.mrf.mxu0
      %v1041 = vadd.f32 %v952, %v1040
      %1042 = vmatmul.bf16.gmra.mxu0 %v531
      %v1043 = vpop.f32.mrf.mxu0
      %v1044 = vadd.f32 %v955, %v1043
      %v1045 = vpop.f32.mrf.mxu0
      %v1046 = vadd.f32 %v957, %v1045
      %1047 = vmatmul.bf16.gmra.mxu0 %v535
      %v1048 = vpop.f32.mrf.mxu0
      %v1049 = vadd.f32 %v960, %v1048
      %v1050 = vpop.f32.mrf.mxu0
      %v1051 = vadd.f32 %v962, %v1050
      %1052 = vmatmul.bf16.gmra.mxu0 %v539
      %v1053 = vpop.f32.mrf.mxu0
      %v1054 = vadd.f32 %v965, %v1053
      %v1055 = vpop.f32.mrf.mxu0
      %v1056 = vadd.f32 %v967, %v1055
      %1057 = vmatmul.bf16.gmra.mxu0 %v543
      %v1058 = vpop.f32.mrf.mxu0
      %v1059 = vadd.f32 %v970, %v1058
      %v1060 = vpop.f32.mrf.mxu0
      %v1061 = vadd.f32 %v972, %v1060
      %1062 = vmatmul.bf16.gmra.mxu0 %v547
      %v1063 = vpop.f32.mrf.mxu0
      %v1064 = vadd.f32 %v975, %v1063
      %v1065 = vpop.f32.mrf.mxu0
      %v1066 = vadd.f32 %v977, %v1065
      %1067 = vmatmul.bf16.gmra.mxu0 %v551
      %v1068 = vpop.f32.mrf.mxu0
      %v1069 = vadd.f32 %v980, %v1068
      %v1070 = vpop.f32.mrf.mxu0
      %v1071 = vadd.f32 %v982, %v1070
      %1072 = vmatmul.bf16.gmra.mxu0 %v555
      %v1073 = vpop.f32.mrf.mxu0
      %v1074 = vadd.f32 %v985, %v1073
      %v1075 = vpop.f32.mrf.mxu0
      %v1076 = vadd.f32 %v987, %v1075
      %1077 = vmatmul.bf16.gmra.mxu0 %v559
      %v1078 = vpop.f32.mrf.mxu0
      %v1079 = vadd.f32 %v990, %v1078
      %v1080 = vpop.f32.mrf.mxu0
      %v1081 = vadd.f32 %v992, %v1080
      %1082 = vmatmul.bf16.gmra.mxu0 %v563
      %v1083 = vpop.f32.mrf.mxu0
      %v1084 = vadd.f32 %v995, %v1083
      %v1085 = vpop.f32.mrf.mxu0
      %v1086 = vadd.f32 %v997, %v1085
      %1087 = vdwg.mxu0
      %1088 = vmatpush.bf16.msra.mxu0 %v788
      %1089 = vmatpush.bf16.msra.mxu0 %v787
      %1090 = vmatpush.bf16.msra.mxu0 %v786
      %1091 = vmatpush.bf16.msra.mxu0 %v785
      %1092 = vmatpush.bf16.msra.mxu0 %v784
      %1093 = vmatpush.bf16.msra.mxu0 %v783
      %1094 = vmatpush.bf16.msra.mxu0 %v782
      %1095 = vmatpush.bf16.msra.mxu0 %v781
      %1096 = vmatmul.bf16.gmra.mxu0 %v504
      %v1097 = vpop.f32.mrf.mxu0
      %v1098 = vadd.f32 %v1009, %v1097
      %v1099 = vpop.f32.mrf.mxu0
      %v1100 = vadd.f32 %v1011, %v1099
      %1101 = vmatmul.bf16.gmra.mxu0 %v508
      %v1102 = vpop.f32.mrf.mxu0
      %v1103 = vadd.f32 %v1014, %v1102
      %v1104 = vpop.f32.mrf.mxu0
      %v1105 = vadd.f32 %v1016, %v1104
      %1106 = vmatmul.bf16.gmra.mxu0 %v512
      %v1107 = vpop.f32.mrf.mxu0
      %v1108 = vadd.f32 %v1019, %v1107
      %v1109 = vpop.f32.mrf.mxu0
      %v1110 = vadd.f32 %v1021, %v1109
      %1111 = vmatmul.bf16.gmra.mxu0 %v516
      %v1112 = vpop.f32.mrf.mxu0
      %v1113 = vadd.f32 %v1024, %v1112
      %v1114 = vpop.f32.mrf.mxu0
      %v1115 = vadd.f32 %v1026, %v1114
      %1116 = vmatmul.bf16.gmra.mxu0 %v520
      %v1117 = vpop.f32.mrf.mxu0
      %v1118 = vadd.f32 %v1029, %v1117
      %v1119 = vpop.f32.mrf.mxu0
      %v1120 = vadd.f32 %v1031, %v1119
      %1121 = vmatmul.bf16.gmra.mxu0 %v524
      %v1122 = vpop.f32.mrf.mxu0
      %v1123 = vadd.f32 %v1034, %v1122
      %v1124 = vpop.f32.mrf.mxu0
      %v1125 = vadd.f32 %v1036, %v1124
      %1126 = vmatmul.bf16.gmra.mxu0 %v528
      %v1127 = vpop.f32.mrf.mxu0
      %v1128 = vadd.f32 %v1039, %v1127
      %v1129 = vpop.f32.mrf.mxu0
      %v1130 = vadd.f32 %v1041, %v1129
      %1131 = vmatmul.bf16.gmra.mxu0 %v532
      %v1132 = vpop.f32.mrf.mxu0
      %v1133 = vadd.f32 %v1044, %v1132
      %v1134 = vpop.f32.mrf.mxu0
      %v1135 = vadd.f32 %v1046, %v1134
      %1136 = vmatmul.bf16.gmra.mxu0 %v536
      %v1137 = vpop.f32.mrf.mxu0
      %v1138 = vadd.f32 %v1049, %v1137
      %v1139 = vpop.f32.mrf.mxu0
      %v1140 = vadd.f32 %v1051, %v1139
      %1141 = vmatmul.bf16.gmra.mxu0 %v540
      %v1142 = vpop.f32.mrf.mxu0
      %v1143 = vadd.f32 %v1054, %v1142
      %v1144 = vpop.f32.mrf.mxu0
      %v1145 = vadd.f32 %v1056, %v1144
      %1146 = vmatmul.bf16.gmra.mxu0 %v544
      %v1147 = vpop.f32.mrf.mxu0
      %v1148 = vadd.f32 %v1059, %v1147
      %v1149 = vpop.f32.mrf.mxu0
      %v1150 = vadd.f32 %v1061, %v1149
      %1151 = vmatmul.bf16.gmra.mxu0 %v548
      %v1152 = vpop.f32.mrf.mxu0
      %v1153 = vadd.f32 %v1064, %v1152
      %v1154 = vpop.f32.mrf.mxu0
      %v1155 = vadd.f32 %v1066, %v1154
      %1156 = vmatmul.bf16.gmra.mxu0 %v552
      %v1157 = vpop.f32.mrf.mxu0
      %v1158 = vadd.f32 %v1069, %v1157
      %v1159 = vpop.f32.mrf.mxu0
      %v1160 = vadd.f32 %v1071, %v1159
      %1161 = vmatmul.bf16.gmra.mxu0 %v556
      %v1162 = vpop.f32.mrf.mxu0
      %v1163 = vadd.f32 %v1074, %v1162
      %v1164 = vpop.f32.mrf.mxu0
      %v1165 = vadd.f32 %v1076, %v1164
      %1166 = vmatmul.bf16.gmra.mxu0 %v560
      %v1167 = vpop.f32.mrf.mxu0
      %v1168 = vadd.f32 %v1079, %v1167
      %v1169 = vpop.f32.mrf.mxu0
      %v1170 = vadd.f32 %v1081, %v1169
      %1171 = vmatmul.bf16.gmra.mxu0 %v564
      %v1172 = vpop.f32.mrf.mxu0
      %v1173 = vadd.f32 %v1084, %v1172
      %v1174 = vpop.f32.mrf.mxu0
      %v1175 = vadd.f32 %v1086, %v1174
      %1176 = vdwg.mxu0
      %v1177 = vmax.f32 %v1098, 0.0
      %v1178 = vmax.f32 %v1100, 0.0
      %v1179 = vmax.f32 %v1103, 0.0
      %v1180 = vmax.f32 %v1105, 0.0
      %v1181 = vmax.f32 %v1108, 0.0
      %v1182 = vmax.f32 %v1110, 0.0
      %v1183 = vmax.f32 %v1113, 0.0
      %v1184 = vmax.f32 %v1115, 0.0
      %v1185 = vmax.f32 %v1118, 0.0
      %v1186 = vmax.f32 %v1120, 0.0
      %v1187 = vmax.f32 %v1123, 0.0
      %v1188 = vmax.f32 %v1125, 0.0
      %v1189 = vmax.f32 %v1128, 0.0
      %v1190 = vmax.f32 %v1130, 0.0
      %v1191 = vmax.f32 %v1133, 0.0
      %v1192 = vmax.f32 %v1135, 0.0
      %v1193 = vmax.f32 %v1138, 0.0
      %v1194 = vmax.f32 %v1140, 0.0
      %v1195 = vmax.f32 %v1143, 0.0
      %v1196 = vmax.f32 %v1145, 0.0
      %v1197 = vmax.f32 %v1148, 0.0
      %v1198 = vmax.f32 %v1150, 0.0
      %v1199 = vmax.f32 %v1153, 0.0
      %v1200 = vmax.f32 %v1155, 0.0
      %v1201 = vmax.f32 %v1158, 0.0
      %v1202 = vmax.f32 %v1160, 0.0
      %v1203 = vmax.f32 %v1163, 0.0
      %v1204 = vmax.f32 %v1165, 0.0
      %v1205 = vmax.f32 %v1168, 0.0
      %v1206 = vmax.f32 %v1170, 0.0
      %v1207 = vmax.f32 %v1173, 0.0
      %v1208 = vmax.f32 %v1175, 0.0
      %1209 = vst [vmem:[%s175] sm:$0xff] %v1177
      %1210 = vst [vmem:[%s175 + $0x8] sm:$0xff] %v1178
      %1211 = vst [vmem:[%s175 + $0x10] sm:$0xff] %v1179
      %1212 = vst [vmem:[%s175 + $0x18] sm:$0xff] %v1180
      %1213 = vst [vmem:[%s175 + $0x20] sm:$0xff] %v1181
      %1214 = vst [vmem:[%s175 + $0x28] sm:$0xff] %v1182
      %1215 = vst [vmem:[%s175 + $0x30] sm:$0xff] %v1183
      %1216 = vst [vmem:[%s175 + $0x38] sm:$0xff] %v1184
      %1217 = vst [vmem:[%s175 + $0x40] sm:$0xff] %v1185
      %1218 = vst [vmem:[%s175 + $0x48] sm:$0xff] %v1186
      %1219 = vst [vmem:[%s175 + $0x50] sm:$0xff] %v1187
      %1220 = vst [vmem:[%s175 + $0x58] sm:$0xff] %v1188
      %1221 = vst [vmem:[%s175 + $0x60] sm:$0xff] %v1189
      %1222 = vst [vmem:[%s175 + $0x68] sm:$0xff] %v1190
      %1223 = vst [vmem:[%s175 + $0x70] sm:$0xff] %v1191
      %1224 = vst [vmem:[%s175 + $0x78] sm:$0xff] %v1192
      %1225 = vst [vmem:[%s175 + $0x80] sm:$0xff] %v1193
      %1226 = vst [vmem:[%s175 + $0x88] sm:$0xff] %v1194
      %1227 = vst [vmem:[%s175 + $0x90] sm:$0xff] %v1195
      %1228 = vst [vmem:[%s175 + $0x98] sm:$0xff] %v1196
      %1229 = vst [vmem:[%s175 + $0xa0] sm:$0xff] %v1197
      %1230 = vst [vmem:[%s175 + $0xa8] sm:$0xff] %v1198
      %1231 = vst [vmem:[%s175 + $0xb0] sm:$0xff] %v1199
      %1232 = vst [vmem:[%s175 + $0xb8] sm:$0xff] %v1200
      %1233 = vst [vmem:[%s175 + $0xc0] sm:$0xff] %v1201
      %1234 = vst [vmem:[%s175 + $0xc8] sm:$0xff] %v1202
      %1235 = vst [vmem:[%s175 + $0xd0] sm:$0xff] %v1203
      %1236 = vst [vmem:[%s175 + $0xd8] sm:$0xff] %v1204
      %1237 = vst [vmem:[%s175 + $0xe0] sm:$0xff] %v1205
      %1238 = vst [vmem:[%s175 + $0xe8] sm:$0xff] %v1206
      %1239 = vst [vmem:[%s175 + $0xf0] sm:$0xff] %v1207
      %1240 = vst [vmem:[%s175 + $0xf8] sm:$0xff] %v1208
      %s1241 = smul.u32 32, %s14
      %p1242 = scmp.lt.s32.totalorder %s1241, 159
      %s1243 = scalar_select %p1242, %s1241, 159
      %s1244 = smul.addr %s1243, 8
      %s1245 = scalar_lea.vmem %s3, %s1244
      // Predicated region
      $region33: #{autoencoder_forward.16} parent=31 // pred_check
        %p1246 = pneg %p100
      $region34: #{autoencoder_forward.16} parent=31 // pred_check_branch
        %1248 = sbr.rel (%p1246) target = $region36
      $region35: #{autoencoder_forward.16} parent=31 // pred_region
        %s1249 = smul.u32 32, %s14
      $region36: #{autoencoder_forward.16} parent=31 // pred_fallthru
        _
    $region32: #{autoencoder_forward.16} parent=5 // pred_fallthru
      _
    %p1250 = scmp.le.s32.totalorder 2, %s9
    // Predicated region
    $region37: #{autoencoder_forward.16} parent=5 // pred_check
      %p1251 = pneg %p1250
    $region38: #{autoencoder_forward.16} parent=5 // pred_check_branch
      %1253 = sbr.rel (%p1251) target = $region40
    $region39: #{autoencoder_forward.16} parent=5 // pred_region
      %s1254 = ssub.s32 %s9, 2
      // Predicated region
      $region41: #{autoencoder_forward.16} parent=39 // pred_check
        %p1255 = pneg %p106
      $region42: #{autoencoder_forward.16} parent=39 // pred_check_branch
        %1257 = sbr.rel (%p1255) target = $region44
      $region43: #{autoencoder_forward.16} parent=39 // pred_region
        %s1258 = smul.u32 32, %s15
        %p1259 = scmp.lt.s32.totalorder %s1258, 159
        %s1260 = scalar_select %p1259, %s1258, 159
        %s1261 = smul.addr %s1260, 8
        %s1262 = scalar_lea.vmem %s3, %s1261
      $region44: #{autoencoder_forward.16} parent=39 // pred_fallthru
        _
    $region40: #{autoencoder_forward.16} parent=5 // pred_fallthru
      _
  $region6: #{autoencoder_forward.16} parent=0 // loop_footer
    %s13 = sadd.s32 1, %s9
  $region7: #{autoencoder_forward.16} parent=0 // loop_footer_branch
    %8 = sbr.rel target = $region3
  $region8: #{autoencoder_forward.16} parent=0 // loop_exit
    _

// kernel: autoencoder_forward.17
$region0: #{autoencoder_forward.17}
  #allocation0 [shape = 'u32[]', space=smem, size = 0x4, offset = 0x4, fixed_abs, tag = 'smem constant byte address 0x4 - core index']
  #allocation1 [shape = 'u32[72,128]{1,0:T(1,128)}', space=vmem, size = 0x9000, scoped, tag = 'internal scratch']
  %s0 = inlined_call_operand.vmem [shape: bf16[1792,512], index: 0, kind: input, shape index: {}]
  %s1 = inlined_call_operand.vmem [shape: bf16[512,128], index: 1, kind: input, shape index: {}]
  %s2 = inlined_call_operand.vmem [shape: f32[1,128], index: 2, kind: input, shape index: {}]
  %s3 = inlined_call_operand.vmem [shape: f32[1792,128], index: 3, kind: output, shape index: {}]
  %s4 = sld [smem:[#allocation0]]
  $region45: #{autoencoder_forward.17} parent=0
    _
  %s6 = ssub.s32 1, %s4
  %s7 = scalar_select 0, %s6, %s4
  loop: start=0, step=1, limit=9
  $region2: #{autoencoder_forward.17} parent=0 // loop_pre_header
    _
  $region3: #{autoencoder_forward.17} parent=0 // loop_header
    %s9 = sphi 0, %s13
    %p10 = scmp.ge.s32.totalorder %s9, 9
    %s19 = sphi 0, %s21
    %s22 = sphi 0, %s19
    %s23 = sphi 0, %s22
    %s39 = sphi 0, %s23
    %s43 = sphi 0, %s43
    %s45 = sphi 0, %s43
    %s46 = sphi 0, %s45
    %s60 = sphi 0, %s46
    %s64 = sphi 0, %s64
    %s66 = sphi 0, %s64
    %s67 = sphi 0, %s66
    %s81 = sphi 0, %s67
    %s87 = sphi 0, %s89
    %s90 = sphi 0, %s87
    %s91 = sphi 0, %s90
    %s107 = sphi 0, %s91
  $region4: #{autoencoder_forward.17} parent=0 // loop_header_branch
    %12 = sbr.rel (%p10) target = $region8
  $region5: #{autoencoder_forward.17} parent=0 // loop_body
    %s14 = ssub.s32 %s9, 1
    %s15 = ssub.s32 %s9, 2
    %s16 = sadd.s32 %s9, 1
    %s17 = ssub.s32 %s9, %s16
    %p18 = scmp.eq.s32.totalorder %s17, 0
    %s20 = sadd.s32 %s19, 1
    %s21 = scalar_select %p18, %s19, %s20
    %p24 = pneg %p18
    %p25 = scmp.eq.s32.totalorder %s9, 6
    %p26 = por %p24, %p25
    %p27 = scmp.ne.s32.totalorder %s19, %s22
    %p28 = scmp.eq.s32.totalorder %s9, 0
    %p29 = por %p27, %p28
    %p30 = scmp.ne.s32.totalorder %s19, %s22
    %p31 = scmp.eq.s32.totalorder %s14, 6
    %p32 = por %p30, %p31
    %p33 = scmp.ne.s32.totalorder %s22, %s23
    %p34 = scmp.eq.s32.totalorder %s14, 0
    %p35 = por %p33, %p34
    %p36 = scmp.ne.s32.totalorder %s22, %s23
    %p37 = scmp.eq.s32.totalorder %s15, 6
    %p38 = por %p36, %p37
    %p40 = scmp.ne.s32.totalorder %s23, %s39
    %p41 = scmp.eq.s32.totalorder %s15, 0
    %p42 = por %p40, %p41
    %s44 = sadd.s32 %s43, 1
    %p47 = scmp.eq.s32.totalorder %s9, 6
    %p48 = scmp.ne.s32.totalorder %s43, %s45
    %p49 = scmp.eq.s32.totalorder %s9, 0
    %p50 = por %p48, %p49
    %p51 = scmp.ne.s32.totalorder %s43, %s45
    %p52 = scmp.eq.s32.totalorder %s14, 6
    %p53 = por %p51, %p52
    %p54 = scmp.ne.s32.totalorder %s45, %s46
    %p55 = scmp.eq.s32.totalorder %s14, 0
    %p56 = por %p54, %p55
    %p57 = scmp.ne.s32.totalorder %s45, %s46
    %p58 = scmp.eq.s32.totalorder %s15, 6
    %p59 = por %p57, %p58
    %p61 = scmp.ne.s32.totalorder %s46, %s60
    %p62 = scmp.eq.s32.totalorder %s15, 0
    %p63 = por %p61, %p62
    %s65 = sadd.s32 %s64, 1
    %p68 = scmp.eq.s32.totalorder %s9, 6
    %p69 = scmp.ne.s32.totalorder %s64, %s66
    %p70 = scmp.eq.s32.totalorder %s9, 0
    %p71 = por %p69, %p70
    %p72 = scmp.ne.s32.totalorder %s64, %s66
    %p73 = scmp.eq.s32.totalorder %s14, 6
    %p74 = por %p72, %p73
    %p75 = scmp.ne.s32.totalorder %s66, %s67
    %p76 = scmp.eq.s32.totalorder %s14, 0
    %p77 = por %p75, %p76
    %p78 = scmp.ne.s32.totalorder %s66, %s67
    %p79 = scmp.eq.s32.totalorder %s15, 6
    %p80 = por %p78, %p79
    %p82 = scmp.ne.s32.totalorder %s67, %s81
    %p83 = scmp.eq.s32.totalorder %s15, 0
    %p84 = por %p82, %p83
    %s85 = ssub.s32 %s9, %s16
    %p86 = scmp.eq.s32.totalorder %s85, 0
    %s88 = sadd.s32 %s87, 1
    %s89 = scalar_select %p86, %s87, %s88
    %p92 = pneg %p86
    %p93 = scmp.eq.s32.totalorder %s9, 6
    %p94 = por %p92, %p93
    %p95 = scmp.ne.s32.totalorder %s87, %s90
    %p96 = scmp.eq.s32.totalorder %s9, 0
    %p97 = por %p95, %p96
    %p98 = scmp.ne.s32.totalorder %s87, %s90
    %p99 = scmp.eq.s32.totalorder %s14, 6
    %p100 = por %p98, %p99
    %p101 = scmp.ne.s32.totalorder %s90, %s91
    %p102 = scmp.eq.s32.totalorder %s14, 0
    %p103 = por %p101, %p102
    %p104 = scmp.ne.s32.totalorder %s90, %s91
    %p105 = scmp.eq.s32.totalorder %s15, 6
    %p106 = por %p104, %p105
    %p108 = scmp.ne.s32.totalorder %s91, %s107
    %p109 = scmp.eq.s32.totalorder %s15, 0
    %p110 = por %p108, %p109
    %p111 = scmp.le.s32.totalorder 1, %s9
    %p112 = scmp.lt.s32.totalorder %s9, 8
    %p113 = pnand %p111, %p112
    %p114 = pneg %p113
    // Predicated region
    $region9: #{autoencoder_forward.17} parent=5 // pred_check
      _
    $region10: #{autoencoder_forward.17} parent=5 // pred_check_branch
      %116 = sbr.rel (%p113) target = $region12
    $region11: #{autoencoder_forward.17} parent=5 // pred_region
      %s117 = ssub.s32 %s9, 1
      // Predicated region
      $region13: #{autoencoder_forward.17} parent=11 // pred_check
        %p118 = pneg %p56
      $region14: #{autoencoder_forward.17} parent=11 // pred_check_branch
        %120 = sbr.rel (%p118) target = $region16
      $region15: #{autoencoder_forward.17} parent=11 // pred_region
        _
      $region16: #{autoencoder_forward.17} parent=11 // pred_fallthru
        _
      // Predicated region
      $region17: #{autoencoder_forward.17} parent=11 // pred_check
        %p121 = pneg %p77
      $region18: #{autoencoder_forward.17} parent=11 // pred_check_branch
        %123 = sbr.rel (%p121) target = $region20
      $region19: #{autoencoder_forward.17} parent=11 // pred_region
        _
      $region20: #{autoencoder_forward.17} parent=11 // pred_fallthru
        _
    $region12: #{autoencoder_forward.17} parent=5 // pred_fallthru
      _
    %p124 = scmp.lt.s32.totalorder %s9, 7
    // Predicated region
    $region21: #{autoencoder_forward.17} parent=5 // pred_check
      %p125 = pneg %p124
    $region22: #{autoencoder_forward.17} parent=5 // pred_check_branch
      %127 = sbr.rel (%p125) target = $region24
    $region23: #{autoencoder_forward.17} parent=5 // pred_region
      // Predicated region
      $region25: #{autoencoder_forward.17} parent=23 // pred_check
        %p128 = pneg %p29
      $region26: #{autoencoder_forward.17} parent=23 // pred_check_branch
        %130 = sbr.rel (%p128) target = $region28
      $region27: #{autoencoder_forward.17} parent=23 // pred_region
        %s131 = smul.u32 32, %s9
        %p132 = scmp.lt.s32.totalorder %s131, 223
        %s133 = scalar_select %p132, %s131, 223
        %s134 = smul.addr %s133, 4
        %s135 = smul.addr %s134, 4
        %s136 = scalar_lea.vmem %s0, %s135
        %s137 = smul.u32 32, %s9
      $region28: #{autoencoder_forward.17} parent=23 // pred_fallthru
        _
    $region24: #{autoencoder_forward.17} parent=5 // pred_fallthru
      _
    %p138 = scmp.le.s32.totalorder 1, %s9
    %p139 = scmp.lt.s32.totalorder %s9, 8
    %p140 = pnand %p138, %p139
    %p141 = pneg %p140
    // Predicated region
    $region29: #{autoencoder_forward.17} parent=5 // pred_check
      _
    $region30: #{autoencoder_forward.17} parent=5 // pred_check_branch
      %143 = sbr.rel (%p140) target = $region32
    $region31: #{autoencoder_forward.17} parent=5 // pred_region
      %s144 = ssub.s32 %s9, 1
      %s145 = smul.u32 32, %s14
      %p146 = scmp.lt.s32.totalorder %s145, 223
      %s147 = scalar_select %p146, %s145, 223
      %s148 = smul.addr %s147, 4
      %s149 = smul.addr %s148, 4
      %s150 = scalar_lea.vmem %s0, %s149
      %p151 = pneg %p35
      %p152 = pneg %p32
      %p153 = pneg %p56
      %p154 = pneg %p53
      %p155 = pneg %p77
      %p156 = pneg %p74
      %p157 = pneg %p103
      %p158 = pneg %p100
      %s159 = smul.u32 32, %s14
      %p160 = scmp.lt.s32.totalorder %s159, 223
      %s161 = scalar_select %p160, %s159, 223
      %s162 = smul.addr %s161, 8
      %s163 = scalar_lea.vmem %s3, %s162
      %s164 = smul.u32 32, %s14
      %p165 = scmp.lt.s32.totalorder %s164, 223
      %s166 = scalar_select %p165, %s164, 223
      %s167 = smul.addr %s166, 4
      %s168 = smul.addr %s167, 4
      %s169 = scalar_lea.vmem %s0, %s168
      %s170 = smul.u32 32, %s14
      %s171 = smul.u32 32, %s14
      %p172 = scmp.lt.s32.totalorder %s171, 223
      %s173 = scalar_select %p172, %s171, 223
      %s174 = smul.addr %s173, 8
      %s175 = scalar_lea.vmem %s3, %s174
      %s176 = smul.u32 32, %s14
      %v177 = vld [vmem:[%s169] sm:$0xff]
      %v178 = vld [vmem:[%s169 + $0x8] sm:$0xff]
      %v179 = vld [vmem:[%s169 + $0x10] sm:$0xff]
      %v180 = vld [vmem:[%s169 + $0x18] sm:$0xff]
      %v181 = vld [vmem:[%s169 + $0x20] sm:$0xff]
      %v182 = vld [vmem:[%s169 + $0x28] sm:$0xff]
      %v183 = vld [vmem:[%s169 + $0x30] sm:$0xff]
      %v184 = vld [vmem:[%s169 + $0x38] sm:$0xff]
      %v185 = vld [vmem:[%s169 + $0x40] sm:$0xff]
      %v186 = vld [vmem:[%s169 + $0x48] sm:$0xff]
      %v187 = vld [vmem:[%s169 + $0x50] sm:$0xff]
      %v188 = vld [vmem:[%s169 + $0x58] sm:$0xff]
      %v189 = vld [vmem:[%s169 + $0x60] sm:$0xff]
      %v190 = vld [vmem:[%s169 + $0x68] sm:$0xff]
      %v191 = vld [vmem:[%s169 + $0x70] sm:$0xff]
      %v192 = vld [vmem:[%s169 + $0x78] sm:$0xff]
      %v193 = vld [vmem:[%s169 + $0x80] sm:$0xff]
      %v194 = vld [vmem:[%s169 + $0x88] sm:$0xff]
      %v195 = vld [vmem:[%s169 + $0x90] sm:$0xff]
      %v196 = vld [vmem:[%s169 + $0x98] sm:$0xff]
      %v197 = vld [vmem:[%s169 + $0xa0] sm:$0xff]
      %v198 = vld [vmem:[%s169 + $0xa8] sm:$0xff]
      %v199 = vld [vmem:[%s169 + $0xb0] sm:$0xff]
      %v200 = vld [vmem:[%s169 + $0xb8] sm:$0xff]
      %v201 = vld [vmem:[%s169 + $0xc0] sm:$0xff]
      %v202 = vld [vmem:[%s169 + $0xc8] sm:$0xff]
      %v203 = vld [vmem:[%s169 + $0xd0] sm:$0xff]
      %v204 = vld [vmem:[%s169 + $0xd8] sm:$0xff]
      %v205 = vld [vmem:[%s169 + $0xe0] sm:$0xff]
      %v206 = vld [vmem:[%s169 + $0xe8] sm:$0xff]
      %v207 = vld [vmem:[%s169 + $0xf0] sm:$0xff]
      %v208 = vld [vmem:[%s169 + $0xf8] sm:$0xff]
      %v209 = vld [vmem:[%s169 + $0x100] sm:$0xff]
      %v210 = vld [vmem:[%s169 + $0x108] sm:$0xff]
      %v211 = vld [vmem:[%s169 + $0x110] sm:$0xff]
      %v212 = vld [vmem:[%s169 + $0x118] sm:$0xff]
      %v213 = vld [vmem:[%s169 + $0x120] sm:$0xff]
      %v214 = vld [vmem:[%s169 + $0x128] sm:$0xff]
      %v215 = vld [vmem:[%s169 + $0x130] sm:$0xff]
      %v216 = vld [vmem:[%s169 + $0x138] sm:$0xff]
      %v217 = vld [vmem:[%s169 + $0x140] sm:$0xff]
      %v218 = vld [vmem:[%s169 + $0x148] sm:$0xff]
      %v219 = vld [vmem:[%s169 + $0x150] sm:$0xff]
      %v220 = vld [vmem:[%s169 + $0x158] sm:$0xff]
      %v221 = vld [vmem:[%s169 + $0x160] sm:$0xff]
      %v222 = vld [vmem:[%s169 + $0x168] sm:$0xff]
      %v223 = vld [vmem:[%s169 + $0x170] sm:$0xff]
      %v224 = vld [vmem:[%s169 + $0x178] sm:$0xff]
      %v225 = vld [vmem:[%s169 + $0x180] sm:$0xff]
      %v226 = vld [vmem:[%s169 + $0x188] sm:$0xff]
      %v227 = vld [vmem:[%s169 + $0x190] sm:$0xff]
      %v228 = vld [vmem:[%s169 + $0x198] sm:$0xff]
      %v229 = vld [vmem:[%s169 + $0x1a0] sm:$0xff]
      %v230 = vld [vmem:[%s169 + $0x1a8] sm:$0xff]
      %v231 = vld [vmem:[%s169 + $0x1b0] sm:$0xff]
      %v232 = vld [vmem:[%s169 + $0x1b8] sm:$0xff]
      %v233 = vld [vmem:[%s169 + $0x1c0] sm:$0xff]
      %v234 = vld [vmem:[%s169 + $0x1c8] sm:$0xff]
      %v235 = vld [vmem:[%s169 + $0x1d0] sm:$0xff]
      %v236 = vld [vmem:[%s169 + $0x1d8] sm:$0xff]
      %v237 = vld [vmem:[%s169 + $0x1e0] sm:$0xff]
      %v238 = vld [vmem:[%s169 + $0x1e8] sm:$0xff]
      %v239 = vld [vmem:[%s169 + $0x1f0] sm:$0xff]
      %v240 = vld [vmem:[%s169 + $0x1f8] sm:$0xff]
      %v241 = vld [vmem:[%s1] sm:$0xf]
      %v242 = vld [vmem:[%s1 + $0x4] sm:$0xf]
      %v243 = vld [vmem:[%s1 + $0x8] sm:$0xf]
      %v244 = vld [vmem:[%s1 + $0xc] sm:$0xf]
      %v245 = vld [vmem:[%s1 + $0x10] sm:$0xf]
      %v246 = vld [vmem:[%s1 + $0x14] sm:$0xf]
      %v247 = vld [vmem:[%s1 + $0x18] sm:$0xf]
      %v248 = vld [vmem:[%s1 + $0x1c] sm:$0xf]
      %v249 = vld [vmem:[%s1 + $0x20] sm:$0xf]
      %v250 = vld [vmem:[%s1 + $0x24] sm:$0xf]
      %v251 = vld [vmem:[%s1 + $0x28] sm:$0xf]
      %v252 = vld [vmem:[%s1 + $0x2c] sm:$0xf]
      %v253 = vld [vmem:[%s1 + $0x30] sm:$0xf]
      %v254 = vld [vmem:[%s1 + $0x34] sm:$0xf]
      %v255 = vld [vmem:[%s1 + $0x38] sm:$0xf]
      %v256 = vld [vmem:[%s1 + $0x3c] sm:$0xf]
      %v257 = vld [vmem:[%s1 + $0x40] sm:$0xf]
      %v258 = vld [vmem:[%s1 + $0x44] sm:$0xf]
      %v259 = vld [vmem:[%s1 + $0x48] sm:$0xf]
      %v260 = vld [vmem:[%s1 + $0x4c] sm:$0xf]
      %v261 = vld [vmem:[%s1 + $0x50] sm:$0xf]
      %v262 = vld [vmem:[%s1 + $0x54] sm:$0xf]
      %v263 = vld [vmem:[%s1 + $0x58] sm:$0xf]
      %v264 = vld [vmem:[%s1 + $0x5c] sm:$0xf]
      %v265 = vld [vmem:[%s1 + $0x60] sm:$0xf]
      %v266 = vld [vmem:[%s1 + $0x64] sm:$0xf]
      %v267 = vld [vmem:[%s1 + $0x68] sm:$0xf]
      %v268 = vld [vmem:[%s1 + $0x6c] sm:$0xf]
      %v269 = vld [vmem:[%s1 + $0x70] sm:$0xf]
      %v270 = vld [vmem:[%s1 + $0x74] sm:$0xf]
      %v271 = vld [vmem:[%s1 + $0x78] sm:$0xf]
      %v272 = vld [vmem:[%s1 + $0x7c] sm:$0xf]
      %v273 = vld [vmem:[%s1 + $0x80] sm:$0xf]
      %v274 = vld [vmem:[%s1 + $0x84] sm:$0xf]
      %v275 = vld [vmem:[%s1 + $0x88] sm:$0xf]
      %v276 = vld [vmem:[%s1 + $0x8c] sm:$0xf]
      %v277 = vld [vmem:[%s1 + $0x90] sm:$0xf]
      %v278 = vld [vmem:[%s1 + $0x94] sm:$0xf]
      %v279 = vld [vmem:[%s1 + $0x98] sm:$0xf]
      %v280 = vld [vmem:[%s1 + $0x9c] sm:$0xf]
      %v281 = vld [vmem:[%s1 + $0xa0] sm:$0xf]
      %v282 = vld [vmem:[%s1 + $0xa4] sm:$0xf]
      %v283 = vld [vmem:[%s1 + $0xa8] sm:$0xf]
      %v284 = vld [vmem:[%s1 + $0xac] sm:$0xf]
      %v285 = vld [vmem:[%s1 + $0xb0] sm:$0xf]
      %v286 = vld [vmem:[%s1 + $0xb4] sm:$0xf]
      %v287 = vld [vmem:[%s1 + $0xb8] sm:$0xf]
      %v288 = vld [vmem:[%s1 + $0xbc] sm:$0xf]
      %v289 = vld [vmem:[%s1 + $0xc0] sm:$0xf]
      %v290 = vld [vmem:[%s1 + $0xc4] sm:$0xf]
      %v291 = vld [vmem:[%s1 + $0xc8] sm:$0xf]
      %v292 = vld [vmem:[%s1 + $0xcc] sm:$0xf]
      %v293 = vld [vmem:[%s1 + $0xd0] sm:$0xf]
      %v294 = vld [vmem:[%s1 + $0xd4] sm:$0xf]
      %v295 = vld [vmem:[%s1 + $0xd8] sm:$0xf]
      %v296 = vld [vmem:[%s1 + $0xdc] sm:$0xf]
      %v297 = vld [vmem:[%s1 + $0xe0] sm:$0xf]
      %v298 = vld [vmem:[%s1 + $0xe4] sm:$0xf]
      %v299 = vld [vmem:[%s1 + $0xe8] sm:$0xf]
      %v300 = vld [vmem:[%s1 + $0xec] sm:$0xf]
      %v301 = vld [vmem:[%s1 + $0xf0] sm:$0xf]
      %v302 = vld [vmem:[%s1 + $0xf4] sm:$0xf]
      %v303 = vld [vmem:[%s1 + $0xf8] sm:$0xf]
      %v304 = vld [vmem:[%s1 + $0xfc] sm:$0xf]
      %v305 = vld [vmem:[%s2] sm:$0x1]
      %v307 = vperm.slane %v305, 0
      %v373 = vunpack.c.l.b16 %v177
      %v374 = vunpack.c.h.b16 %v177
      %v375 = vunpack.c.l.b16 %v178
      %v376 = vunpack.c.h.b16 %v178
      %v377 = vunpack.c.l.b16 %v179
      %v378 = vunpack.c.h.b16 %v179
      %v379 = vunpack.c.l.b16 %v180
      %v380 = vunpack.c.h.b16 %v180
      %v381 = vunpack.c.l.b16 %v181
      %v382 = vunpack.c.h.b16 %v181
      %v383 = vunpack.c.l.b16 %v182
      %v384 = vunpack.c.h.b16 %v182
      %v385 = vunpack.c.l.b16 %v183
      %v386 = vunpack.c.h.b16 %v183
      %v387 = vunpack.c.l.b16 %v184
      %v388 = vunpack.c.h.b16 %v184
      %v389 = vunpack.c.l.b16 %v185
      %v390 = vunpack.c.h.b16 %v185
      %v391 = vunpack.c.l.b16 %v186
      %v392 = vunpack.c.h.b16 %v186
      %v393 = vunpack.c.l.b16 %v187
      %v394 = vunpack.c.h.b16 %v187
      %v395 = vunpack.c.l.b16 %v188
      %v396 = vunpack.c.h.b16 %v188
      %v397 = vunpack.c.l.b16 %v189
      %v398 = vunpack.c.h.b16 %v189
      %v399 = vunpack.c.l.b16 %v190
      %v400 = vunpack.c.h.b16 %v190
      %v401 = vunpack.c.l.b16 %v191
      %v402 = vunpack.c.h.b16 %v191
      %v403 = vunpack.c.l.b16 %v192
      %v404 = vunpack.c.h.b16 %v192
      %v405 = vunpack.c.l.b16 %v193
      %v406 = vunpack.c.h.b16 %v193
      %v407 = vunpack.c.l.b16 %v194
      %v408 = vunpack.c.h.b16 %v194
      %v409 = vunpack.c.l.b16 %v195
      %v410 = vunpack.c.h.b16 %v195
      %v411 = vunpack.c.l.b16 %v196
      %v412 = vunpack.c.h.b16 %v196
      %v413 = vunpack.c.l.b16 %v197
      %v414 = vunpack.c.h.b16 %v197
      %v415 = vunpack.c.l.b16 %v198
      %v416 = vunpack.c.h.b16 %v198
      %v417 = vunpack.c.l.b16 %v199
      %v418 = vunpack.c.h.b16 %v199
      %v419 = vunpack.c.l.b16 %v200
      %v420 = vunpack.c.h.b16 %v200
      %v421 = vunpack.c.l.b16 %v201
      %v422 = vunpack.c.h.b16 %v201
      %v423 = vunpack.c.l.b16 %v202
      %v424 = vunpack.c.h.b16 %v202
      %v425 = vunpack.c.l.b16 %v203
      %v426 = vunpack.c.h.b16 %v203
      %v427 = vunpack.c.l.b16 %v204
      %v428 = vunpack.c.h.b16 %v204
      %v429 = vunpack.c.l.b16 %v205
      %v430 = vunpack.c.h.b16 %v205
      %v431 = vunpack.c.l.b16 %v206
      %v432 = vunpack.c.h.b16 %v206
      %v433 = vunpack.c.l.b16 %v207
      %v434 = vunpack.c.h.b16 %v207
      %v435 = vunpack.c.l.b16 %v208
      %v436 = vunpack.c.h.b16 %v208
      %v437 = vunpack.c.l.b16 %v209
      %v438 = vunpack.c.h.b16 %v209
      %v439 = vunpack.c.l.b16 %v210
      %v440 = vunpack.c.h.b16 %v210
      %v441 = vunpack.c.l.b16 %v211
      %v442 = vunpack.c.h.b16 %v211
      %v443 = vunpack.c.l.b16 %v212
      %v444 = vunpack.c.h.b16 %v212
      %v445 = vunpack.c.l.b16 %v213
      %v446 = vunpack.c.h.b16 %v213
      %v447 = vunpack.c.l.b16 %v214
      %v448 = vunpack.c.h.b16 %v214
      %v449 = vunpack.c.l.b16 %v215
      %v450 = vunpack.c.h.b16 %v215
      %v451 = vunpack.c.l.b16 %v216
      %v452 = vunpack.c.h.b16 %v216
      %v453 = vunpack.c.l.b16 %v217
      %v454 = vunpack.c.h.b16 %v217
      %v455 = vunpack.c.l.b16 %v218
      %v456 = vunpack.c.h.b16 %v218
      %v457 = vunpack.c.l.b16 %v219
      %v458 = vunpack.c.h.b16 %v219
      %v459 = vunpack.c.l.b16 %v220
      %v460 = vunpack.c.h.b16 %v220
      %v461 = vunpack.c.l.b16 %v221
      %v462 = vunpack.c.h.b16 %v221
      %v463 = vunpack.c.l.b16 %v222
      %v464 = vunpack.c.h.b16 %v222
      %v465 = vunpack.c.l.b16 %v223
      %v466 = vunpack.c.h.b16 %v223
      %v467 = vunpack.c.l.b16 %v224
      %v468 = vunpack.c.h.b16 %v224
      %v469 = vunpack.c.l.b16 %v225
      %v470 = vunpack.c.h.b16 %v225
      %v471 = vunpack.c.l.b16 %v226
      %v472 = vunpack.c.h.b16 %v226
      %v473 = vunpack.c.l.b16 %v227
      %v474 = vunpack.c.h.b16 %v227
      %v475 = vunpack.c.l.b16 %v228
      %v476 = vunpack.c.h.b16 %v228
      %v477 = vunpack.c.l.b16 %v229
      %v478 = vunpack.c.h.b16 %v229
      %v479 = vunpack.c.l.b16 %v230
      %v480 = vunpack.c.h.b16 %v230
      %v481 = vunpack.c.l.b16 %v231
      %v482 = vunpack.c.h.b16 %v231
      %v483 = vunpack.c.l.b16 %v232
      %v484 = vunpack.c.h.b16 %v232
      %v485 = vunpack.c.l.b16 %v233
      %v486 = vunpack.c.h.b16 %v233
      %v487 = vunpack.c.l.b16 %v234
      %v488 = vunpack.c.h.b16 %v234
      %v489 = vunpack.c.l.b16 %v235
      %v490 = vunpack.c.h.b16 %v235
      %v491 = vunpack.c.l.b16 %v236
      %v492 = vunpack.c.h.b16 %v236
      %v493 = vunpack.c.l.b16 %v237
      %v494 = vunpack.c.h.b16 %v237
      %v495 = vunpack.c.l.b16 %v238
      %v496 = vunpack.c.h.b16 %v238
      %v497 = vunpack.c.l.b16 %v239
      %v498 = vunpack.c.h.b16 %v239
      %v499 = vunpack.c.l.b16 %v240
      %v500 = vunpack.c.h.b16 %v240
      %v501 = vpack.c.b16 %v377, %v373
      %v502 = vpack.c.b16 %v378, %v374
      %v503 = vpack.c.b16 %v379, %v375
      %v504 = vpack.c.b16 %v380, %v376
      %v505 = vpack.c.b16 %v385, %v381
      %v506 = vpack.c.b16 %v386, %v382
      %v507 = vpack.c.b16 %v387, %v383
      %v508 = vpack.c.b16 %v388, %v384
      %v509 = vpack.c.b16 %v393, %v389
      %v510 = vpack.c.b16 %v394, %v390
      %v511 = vpack.c.b16 %v395, %v391
      %v512 = vpack.c.b16 %v396, %v392
      %v513 = vpack.c.b16 %v401, %v397
      %v514 = vpack.c.b16 %v402, %v398
      %v515 = vpack.c.b16 %v403, %v399
      %v516 = vpack.c.b16 %v404, %v400
      %v517 = vpack.c.b16 %v409, %v405
      %v518 = vpack.c.b16 %v410, %v406
      %v519 = vpack.c.b16 %v411, %v407
      %v520 = vpack.c.b16 %v412, %v408
      %v521 = vpack.c.b16 %v417, %v413
      %v522 = vpack.c.b16 %v418, %v414
      %v523 = vpack.c.b16 %v419, %v415
      %v524 = vpack.c.b16 %v420, %v416
      %v525 = vpack.c.b16 %v425, %v421
      %v526 = vpack.c.b16 %v426, %v422
      %v527 = vpack.c.b16 %v427, %v423
      %v528 = vpack.c.b16 %v428, %v424
      %v529 = vpack.c.b16 %v433, %v429
      %v530 = vpack.c.b16 %v434, %v430
      %v531 = vpack.c.b16 %v435, %v431
      %v532 = vpack.c.b16 %v436, %v432
      %v533 = vpack.c.b16 %v441, %v437
      %v534 = vpack.c.b16 %v442, %v438
      %v535 = vpack.c.b16 %v443, %v439
      %v536 = vpack.c.b16 %v444, %v440
      %v537 = vpack.c.b16 %v449, %v445
      %v538 = vpack.c.b16 %v450, %v446
      %v539 = vpack.c.b16 %v451, %v447
      %v540 = vpack.c.b16 %v452, %v448
      %v541 = vpack.c.b16 %v457, %v453
      %v542 = vpack.c.b16 %v458, %v454
      %v543 = vpack.c.b16 %v459, %v455
      %v544 = vpack.c.b16 %v460, %v456
      %v545 = vpack.c.b16 %v465, %v461
      %v546 = vpack.c.b16 %v466, %v462
      %v547 = vpack.c.b16 %v467, %v463
      %v548 = vpack.c.b16 %v468, %v464
      %v549 = vpack.c.b16 %v473, %v469
      %v550 = vpack.c.b16 %v474, %v470
      %v551 = vpack.c.b16 %v475, %v471
      %v552 = vpack.c.b16 %v476, %v472
      %v553 = vpack.c.b16 %v481, %v477
      %v554 = vpack.c.b16 %v482, %v478
      %v555 = vpack.c.b16 %v483, %v479
      %v556 = vpack.c.b16 %v484, %v480
      %v557 = vpack.c.b16 %v489, %v485
      %v558 = vpack.c.b16 %v490, %v486
      %v559 = vpack.c.b16 %v491, %v487
      %v560 = vpack.c.b16 %v492, %v488
      %v561 = vpack.c.b16 %v497, %v493
      %v562 = vpack.c.b16 %v498, %v494
      %v563 = vpack.c.b16 %v499, %v495
      %v564 = vpack.c.b16 %v500, %v496
      %v693 = vunpack.c.l.b16 %v241
      %v694 = vunpack.c.l.b16 %v242
      %v695 = vunpack.c.l.b16 %v243
      %v696 = vunpack.c.l.b16 %v244
      %v697 = vunpack.c.l.b16 %v245
      %v698 = vunpack.c.l.b16 %v246
      %v699 = vunpack.c.l.b16 %v247
      %v700 = vunpack.c.l.b16 %v248
      %v701 = vunpack.c.l.b16 %v249
      %v702 = vunpack.c.l.b16 %v250
      %v703 = vunpack.c.l.b16 %v251
      %v704 = vunpack.c.l.b16 %v252
      %v705 = vunpack.c.l.b16 %v253
      %v706 = vunpack.c.l.b16 %v254
      %v707 = vunpack.c.l.b16 %v255
      %v708 = vunpack.c.l.b16 %v256
      %v709 = vunpack.c.l.b16 %v257
      %v710 = vunpack.c.l.b16 %v258
      %v711 = vunpack.c.l.b16 %v259
      %v712 = vunpack.c.l.b16 %v260
      %v713 = vunpack.c.l.b16 %v261
      %v714 = vunpack.c.l.b16 %v262
      %v715 = vunpack.c.l.b16 %v263
      %v716 = vunpack.c.l.b16 %v264
      %v717 = vunpack.c.l.b16 %v265
      %v718 = vunpack.c.l.b16 %v266
      %v719 = vunpack.c.l.b16 %v267
      %v720 = vunpack.c.l.b16 %v268
      %v721 = vunpack.c.l.b16 %v269
      %v722 = vunpack.c.l.b16 %v270
      %v723 = vunpack.c.l.b16 %v271
      %v724 = vunpack.c.l.b16 %v272
      %v725 = vunpack.c.l.b16 %v273
      %v726 = vunpack.c.l.b16 %v274
      %v727 = vunpack.c.l.b16 %v275
      %v728 = vunpack.c.l.b16 %v276
      %v729 = vunpack.c.l.b16 %v277
      %v730 = vunpack.c.l.b16 %v278
      %v731 = vunpack.c.l.b16 %v279
      %v732 = vunpack.c.l.b16 %v280
      %v733 = vunpack.c.l.b16 %v281
      %v734 = vunpack.c.l.b16 %v282
      %v735 = vunpack.c.l.b16 %v283
      %v736 = vunpack.c.l.b16 %v284
      %v737 = vunpack.c.l.b16 %v285
      %v738 = vunpack.c.l.b16 %v286
      %v739 = vunpack.c.l.b16 %v287
      %v740 = vunpack.c.l.b16 %v288
      %v741 = vunpack.c.l.b16 %v289
      %v742 = vunpack.c.l.b16 %v290
      %v743 = vunpack.c.l.b16 %v291
      %v744 = vunpack.c.l.b16 %v292
      %v745 = vunpack.c.l.b16 %v293
      %v746 = vunpack.c.l.b16 %v294
      %v747 = vunpack.c.l.b16 %v295
      %v748 = vunpack.c.l.b16 %v296
      %v749 = vunpack.c.l.b16 %v297
      %v750 = vunpack.c.l.b16 %v298
      %v751 = vunpack.c.l.b16 %v299
      %v752 = vunpack.c.l.b16 %v300
      %v753 = vunpack.c.l.b16 %v301
      %v754 = vunpack.c.l.b16 %v302
      %v755 = vunpack.c.l.b16 %v303
      %v756 = vunpack.c.l.b16 %v304
      %v757 = vpack.c.b16 %v694, %v693
      %v758 = vpack.c.b16 %v696, %v695
      %v759 = vpack.c.b16 %v698, %v697
      %v760 = vpack.c.b16 %v700, %v699
      %v761 = vpack.c.b16 %v702, %v701
      %v762 = vpack.c.b16 %v704, %v703
      %v763 = vpack.c.b16 %v706, %v705
      %v764 = vpack.c.b16 %v708, %v707
      %v765 = vpack.c.b16 %v710, %v709
      %v766 = vpack.c.b16 %v712, %v711
      %v767 = vpack.c.b16 %v714, %v713
      %v768 = vpack.c.b16 %v716, %v715
      %v769 = vpack.c.b16 %v718, %v717
      %v770 = vpack.c.b16 %v720, %v719
      %v771 = vpack.c.b16 %v722, %v721
      %v772 = vpack.c.b16 %v724, %v723
      %v773 = vpack.c.b16 %v726, %v725
      %v774 = vpack.c.b16 %v728, %v727
      %v775 = vpack.c.b16 %v730, %v729
      %v776 = vpack.c.b16 %v732, %v731
      %v777 = vpack.c.b16 %v734, %v733
      %v778 = vpack.c.b16 %v736, %v735
      %v779 = vpack.c.b16 %v738, %v737
      %v780 = vpack.c.b16 %v740, %v739
      %v781 = vpack.c.b16 %v742, %v741
      %v782 = vpack.c.b16 %v744, %v743
      %v783 = vpack.c.b16 %v746, %v745
      %v784 = vpack.c.b16 %v748, %v747
      %v785 = vpack.c.b16 %v750, %v749
      %v786 = vpack.c.b16 %v752, %v751
      %v787 = vpack.c.b16 %v754, %v753
      %v788 = vpack.c.b16 %v756, %v755
      %821 = vmatpush.bf16.msra.mxu0 %v764
      %822 = vmatpush.bf16.msra.mxu0 %v763
      %823 = vmatpush.bf16.msra.mxu0 %v762
      %824 = vmatpush.bf16.msra.mxu0 %v761
      %825 = vmatpush.bf16.msra.mxu0 %v760
      %826 = vmatpush.bf16.msra.mxu0 %v759
      %827 = vmatpush.bf16.msra.mxu0 %v758
      %828 = vmatpush.bf16.msra.mxu0 %v757
      %829 = vmatmul.bf16.gmra.mxu0 %v501
      %v830 = vpop.f32.mrf.mxu0
      %v831 = vadd.f32 %v307, %v830
      %v832 = vpop.f32.mrf.mxu0
      %v833 = vadd.f32 %v307, %v832
      %834 = vmatmul.bf16.gmra.mxu0 %v505
      %v835 = vpop.f32.mrf.mxu0
      %v836 = vadd.f32 %v307, %v835
      %v837 = vpop.f32.mrf.mxu0
      %v838 = vadd.f32 %v307, %v837
      %839 = vmatmul.bf16.gmra.mxu0 %v509
      %v840 = vpop.f32.mrf.mxu0
      %v841 = vadd.f32 %v307, %v840
      %v842 = vpop.f32.mrf.mxu0
      %v843 = vadd.f32 %v307, %v842
      %844 = vmatmul.bf16.gmra.mxu0 %v513
      %v845 = vpop.f32.mrf.mxu0
      %v846 = vadd.f32 %v307, %v845
      %v847 = vpop.f32.mrf.mxu0
      %v848 = vadd.f32 %v307, %v847
      %849 = vmatmul.bf16.gmra.mxu0 %v517
      %v850 = vpop.f32.mrf.mxu0
      %v851 = vadd.f32 %v307, %v850
      %v852 = vpop.f32.mrf.mxu0
      %v853 = vadd.f32 %v307, %v852
      %854 = vmatmul.bf16.gmra.mxu0 %v521
      %v855 = vpop.f32.mrf.mxu0
      %v856 = vadd.f32 %v307, %v855
      %v857 = vpop.f32.mrf.mxu0
      %v858 = vadd.f32 %v307, %v857
      %859 = vmatmul.bf16.gmra.mxu0 %v525
      %v860 = vpop.f32.mrf.mxu0
      %v861 = vadd.f32 %v307, %v860
      %v862 = vpop.f32.mrf.mxu0
      %v863 = vadd.f32 %v307, %v862
      %864 = vmatmul.bf16.gmra.mxu0 %v529
      %v865 = vpop.f32.mrf.mxu0
      %v866 = vadd.f32 %v307, %v865
      %v867 = vpop.f32.mrf.mxu0
      %v868 = vadd.f32 %v307, %v867
      %869 = vmatmul.bf16.gmra.mxu0 %v533
      %v870 = vpop.f32.mrf.mxu0
      %v871 = vadd.f32 %v307, %v870
      %v872 = vpop.f32.mrf.mxu0
      %v873 = vadd.f32 %v307, %v872
      %874 = vmatmul.bf16.gmra.mxu0 %v537
      %v875 = vpop.f32.mrf.mxu0
      %v876 = vadd.f32 %v307, %v875
      %v877 = vpop.f32.mrf.mxu0
      %v878 = vadd.f32 %v307, %v877
      %879 = vmatmul.bf16.gmra.mxu0 %v541
      %v880 = vpop.f32.mrf.mxu0
      %v881 = vadd.f32 %v307, %v880
      %v882 = vpop.f32.mrf.mxu0
      %v883 = vadd.f32 %v307, %v882
      %884 = vmatmul.bf16.gmra.mxu0 %v545
      %v885 = vpop.f32.mrf.mxu0
      %v886 = vadd.f32 %v307, %v885
      %v887 = vpop.f32.mrf.mxu0
      %v888 = vadd.f32 %v307, %v887
      %889 = vmatmul.bf16.gmra.mxu0 %v549
      %v890 = vpop.f32.mrf.mxu0
      %v891 = vadd.f32 %v307, %v890
      %v892 = vpop.f32.mrf.mxu0
      %v893 = vadd.f32 %v307, %v892
      %894 = vmatmul.bf16.gmra.mxu0 %v553
      %v895 = vpop.f32.mrf.mxu0
      %v896 = vadd.f32 %v307, %v895
      %v897 = vpop.f32.mrf.mxu0
      %v898 = vadd.f32 %v307, %v897
      %899 = vmatmul.bf16.gmra.mxu0 %v557
      %v900 = vpop.f32.mrf.mxu0
      %v901 = vadd.f32 %v307, %v900
      %v902 = vpop.f32.mrf.mxu0
      %v903 = vadd.f32 %v307, %v902
      %904 = vmatmul.bf16.gmra.mxu0 %v561
      %v905 = vpop.f32.mrf.mxu0
      %v906 = vadd.f32 %v307, %v905
      %v907 = vpop.f32.mrf.mxu0
      %v908 = vadd.f32 %v307, %v907
      %909 = vdwg.mxu0
      %910 = vmatpush.bf16.msra.mxu0 %v772
      %911 = vmatpush.bf16.msra.mxu0 %v771
      %912 = vmatpush.bf16.msra.mxu0 %v770
      %913 = vmatpush.bf16.msra.mxu0 %v769
      %914 = vmatpush.bf16.msra.mxu0 %v768
      %915 = vmatpush.bf16.msra.mxu0 %v767
      %916 = vmatpush.bf16.msra.mxu0 %v766
      %917 = vmatpush.bf16.msra.mxu0 %v765
      %918 = vmatmul.bf16.gmra.mxu0 %v502
      %v919 = vpop.f32.mrf.mxu0
      %v920 = vadd.f32 %v831, %v919
      %v921 = vpop.f32.mrf.mxu0
      %v922 = vadd.f32 %v833, %v921
      %923 = vmatmul.bf16.gmra.mxu0 %v506
      %v924 = vpop.f32.mrf.mxu0
      %v925 = vadd.f32 %v836, %v924
      %v926 = vpop.f32.mrf.mxu0
      %v927 = vadd.f32 %v838, %v926
      %928 = vmatmul.bf16.gmra.mxu0 %v510
      %v929 = vpop.f32.mrf.mxu0
      %v930 = vadd.f32 %v841, %v929
      %v931 = vpop.f32.mrf.mxu0
      %v932 = vadd.f32 %v843, %v931
      %933 = vmatmul.bf16.gmra.mxu0 %v514
      %v934 = vpop.f32.mrf.mxu0
      %v935 = vadd.f32 %v846, %v934
      %v936 = vpop.f32.mrf.mxu0
      %v937 = vadd.f32 %v848, %v936
      %938 = vmatmul.bf16.gmra.mxu0 %v518
      %v939 = vpop.f32.mrf.mxu0
      %v940 = vadd.f32 %v851, %v939
      %v941 = vpop.f32.mrf.mxu0
      %v942 = vadd.f32 %v853, %v941
      %943 = vmatmul.bf16.gmra.mxu0 %v522
      %v944 = vpop.f32.mrf.mxu0
      %v945 = vadd.f32 %v856, %v944
      %v946 = vpop.f32.mrf.mxu0
      %v947 = vadd.f32 %v858, %v946
      %948 = vmatmul.bf16.gmra.mxu0 %v526
      %v949 = vpop.f32.mrf.mxu0
      %v950 = vadd.f32 %v861, %v949
      %v951 = vpop.f32.mrf.mxu0
      %v952 = vadd.f32 %v863, %v951
      %953 = vmatmul.bf16.gmra.mxu0 %v530
      %v954 = vpop.f32.mrf.mxu0
      %v955 = vadd.f32 %v866, %v954
      %v956 = vpop.f32.mrf.mxu0
      %v957 = vadd.f32 %v868, %v956
      %958 = vmatmul.bf16.gmra.mxu0 %v534
      %v959 = vpop.f32.mrf.mxu0
      %v960 = vadd.f32 %v871, %v959
      %v961 = vpop.f32.mrf.mxu0
      %v962 = vadd.f32 %v873, %v961
      %963 = vmatmul.bf16.gmra.mxu0 %v538
      %v964 = vpop.f32.mrf.mxu0
      %v965 = vadd.f32 %v876, %v964
      %v966 = vpop.f32.mrf.mxu0
      %v967 = vadd.f32 %v878, %v966
      %968 = vmatmul.bf16.gmra.mxu0 %v542
      %v969 = vpop.f32.mrf.mxu0
      %v970 = vadd.f32 %v881, %v969
      %v971 = vpop.f32.mrf.mxu0
      %v972 = vadd.f32 %v883, %v971
      %973 = vmatmul.bf16.gmra.mxu0 %v546
      %v974 = vpop.f32.mrf.mxu0
      %v975 = vadd.f32 %v886, %v974
      %v976 = vpop.f32.mrf.mxu0
      %v977 = vadd.f32 %v888, %v976
      %978 = vmatmul.bf16.gmra.mxu0 %v550
      %v979 = vpop.f32.mrf.mxu0
      %v980 = vadd.f32 %v891, %v979
      %v981 = vpop.f32.mrf.mxu0
      %v982 = vadd.f32 %v893, %v981
      %983 = vmatmul.bf16.gmra.mxu0 %v554
      %v984 = vpop.f32.mrf.mxu0
      %v985 = vadd.f32 %v896, %v984
      %v986 = vpop.f32.mrf.mxu0
      %v987 = vadd.f32 %v898, %v986
      %988 = vmatmul.bf16.gmra.mxu0 %v558
      %v989 = vpop.f32.mrf.mxu0
      %v990 = vadd.f32 %v901, %v989
      %v991 = vpop.f32.mrf.mxu0
      %v992 = vadd.f32 %v903, %v991
      %993 = vmatmul.bf16.gmra.mxu0 %v562
      %v994 = vpop.f32.mrf.mxu0
      %v995 = vadd.f32 %v906, %v994
      %v996 = vpop.f32.mrf.mxu0
      %v997 = vadd.f32 %v908, %v996
      %998 = vdwg.mxu0
      %999 = vmatpush.bf16.msra.mxu0 %v780
      %1000 = vmatpush.bf16.msra.mxu0 %v779
      %1001 = vmatpush.bf16.msra.mxu0 %v778
      %1002 = vmatpush.bf16.msra.mxu0 %v777
      %1003 = vmatpush.bf16.msra.mxu0 %v776
      %1004 = vmatpush.bf16.msra.mxu0 %v775
      %1005 = vmatpush.bf16.msra.mxu0 %v774
      %1006 = vmatpush.bf16.msra.mxu0 %v773
      %1007 = vmatmul.bf16.gmra.mxu0 %v503
      %v1008 = vpop.f32.mrf.mxu0
      %v1009 = vadd.f32 %v920, %v1008
      %v1010 = vpop.f32.mrf.mxu0
      %v1011 = vadd.f32 %v922, %v1010
      %1012 = vmatmul.bf16.gmra.mxu0 %v507
      %v1013 = vpop.f32.mrf.mxu0
      %v1014 = vadd.f32 %v925, %v1013
      %v1015 = vpop.f32.mrf.mxu0
      %v1016 = vadd.f32 %v927, %v1015
      %1017 = vmatmul.bf16.gmra.mxu0 %v511
      %v1018 = vpop.f32.mrf.mxu0
      %v1019 = vadd.f32 %v930, %v1018
      %v1020 = vpop.f32.mrf.mxu0
      %v1021 = vadd.f32 %v932, %v1020
      %1022 = vmatmul.bf16.gmra.mxu0 %v515
      %v1023 = vpop.f32.mrf.mxu0
      %v1024 = vadd.f32 %v935, %v1023
      %v1025 = vpop.f32.mrf.mxu0
      %v1026 = vadd.f32 %v937, %v1025
      %1027 = vmatmul.bf16.gmra.mxu0 %v519
      %v1028 = vpop.f32.mrf.mxu0
      %v1029 = vadd.f32 %v940, %v1028
      %v1030 = vpop.f32.mrf.mxu0
      %v1031 = vadd.f32 %v942, %v1030
      %1032 = vmatmul.bf16.gmra.mxu0 %v523
      %v1033 = vpop.f32.mrf.mxu0
      %v1034 = vadd.f32 %v945, %v1033
      %v1035 = vpop.f32.mrf.mxu0
      %v1036 = vadd.f32 %v947, %v1035
      %1037 = vmatmul.bf16.gmra.mxu0 %v527
      %v1038 = vpop.f32.mrf.mxu0
      %v1039 = vadd.f32 %v950, %v1038
      %v1040 = vpop.f32.mrf.mxu0
      %v1041 = vadd.f32 %v952, %v1040
      %1042 = vmatmul.bf16.gmra.mxu0 %v531
      %v1043 = vpop.f32.mrf.mxu0
      %v1044 = vadd.f32 %v955, %v1043
      %v1045 = vpop.f32.mrf.mxu0
      %v1046 = vadd.f32 %v957, %v1045
      %1047 = vmatmul.bf16.gmra.mxu0 %v535
      %v1048 = vpop.f32.mrf.mxu0
      %v1049 = vadd.f32 %v960, %v1048
      %v1050 = vpop.f32.mrf.mxu0
      %v1051 = vadd.f32 %v962, %v1050
      %1052 = vmatmul.bf16.gmra.mxu0 %v539
      %v1053 = vpop.f32.mrf.mxu0
      %v1054 = vadd.f32 %v965, %v1053
      %v1055 = vpop.f32.mrf.mxu0
      %v1056 = vadd.f32 %v967, %v1055
      %1057 = vmatmul.bf16.gmra.mxu0 %v543
      %v1058 = vpop.f32.mrf.mxu0
      %v1059 = vadd.f32 %v970, %v1058
      %v1060 = vpop.f32.mrf.mxu0
      %v1061 = vadd.f32 %v972, %v1060
      %1062 = vmatmul.bf16.gmra.mxu0 %v547
      %v1063 = vpop.f32.mrf.mxu0
      %v1064 = vadd.f32 %v975, %v1063
      %v1065 = vpop.f32.mrf.mxu0
      %v1066 = vadd.f32 %v977, %v1065
      %1067 = vmatmul.bf16.gmra.mxu0 %v551
      %v1068 = vpop.f32.mrf.mxu0
      %v1069 = vadd.f32 %v980, %v1068
      %v1070 = vpop.f32.mrf.mxu0
      %v1071 = vadd.f32 %v982, %v1070
      %1072 = vmatmul.bf16.gmra.mxu0 %v555
      %v1073 = vpop.f32.mrf.mxu0
      %v1074 = vadd.f32 %v985, %v1073
      %v1075 = vpop.f32.mrf.mxu0
      %v1076 = vadd.f32 %v987, %v1075
      %1077 = vmatmul.bf16.gmra.mxu0 %v559
      %v1078 = vpop.f32.mrf.mxu0
      %v1079 = vadd.f32 %v990, %v1078
      %v1080 = vpop.f32.mrf.mxu0
      %v1081 = vadd.f32 %v992, %v1080
      %1082 = vmatmul.bf16.gmra.mxu0 %v563
      %v1083 = vpop.f32.mrf.mxu0
      %v1084 = vadd.f32 %v995, %v1083
      %v1085 = vpop.f32.mrf.mxu0
      %v1086 = vadd.f32 %v997, %v1085
      %1087 = vdwg.mxu0
      %1088 = vmatpush.bf16.msra.mxu0 %v788
      %1089 = vmatpush.bf16.msra.mxu0 %v787
      %1090 = vmatpush.bf16.msra.mxu0 %v786
      %1091 = vmatpush.bf16.msra.mxu0 %v785
      %1092 = vmatpush.bf16.msra.mxu0 %v784
      %1093 = vmatpush.bf16.msra.mxu0 %v783
      %1094 = vmatpush.bf16.msra.mxu0 %v782
      %1095 = vmatpush.bf16.msra.mxu0 %v781
      %1096 = vmatmul.bf16.gmra.mxu0 %v504
      %v1097 = vpop.f32.mrf.mxu0
      %v1098 = vadd.f32 %v1009, %v1097
      %v1099 = vpop.f32.mrf.mxu0
      %v1100 = vadd.f32 %v1011, %v1099
      %1101 = vmatmul.bf16.gmra.mxu0 %v508
      %v1102 = vpop.f32.mrf.mxu0
      %v1103 = vadd.f32 %v1014, %v1102
      %v1104 = vpop.f32.mrf.mxu0
      %v1105 = vadd.f32 %v1016, %v1104
      %1106 = vmatmul.bf16.gmra.mxu0 %v512
      %v1107 = vpop.f32.mrf.mxu0
      %v1108 = vadd.f32 %v1019, %v1107
      %v1109 = vpop.f32.mrf.mxu0
      %v1110 = vadd.f32 %v1021, %v1109
      %1111 = vmatmul.bf16.gmra.mxu0 %v516
      %v1112 = vpop.f32.mrf.mxu0
      %v1113 = vadd.f32 %v1024, %v1112
      %v1114 = vpop.f32.mrf.mxu0
      %v1115 = vadd.f32 %v1026, %v1114
      %1116 = vmatmul.bf16.gmra.mxu0 %v520
      %v1117 = vpop.f32.mrf.mxu0
      %v1118 = vadd.f32 %v1029, %v1117
      %v1119 = vpop.f32.mrf.mxu0
      %v1120 = vadd.f32 %v1031, %v1119
      %1121 = vmatmul.bf16.gmra.mxu0 %v524
      %v1122 = vpop.f32.mrf.mxu0
      %v1123 = vadd.f32 %v1034, %v1122
      %v1124 = vpop.f32.mrf.mxu0
      %v1125 = vadd.f32 %v1036, %v1124
      %1126 = vmatmul.bf16.gmra.mxu0 %v528
      %v1127 = vpop.f32.mrf.mxu0
      %v1128 = vadd.f32 %v1039, %v1127
      %v1129 = vpop.f32.mrf.mxu0
      %v1130 = vadd.f32 %v1041, %v1129
      %1131 = vmatmul.bf16.gmra.mxu0 %v532
      %v1132 = vpop.f32.mrf.mxu0
      %v1133 = vadd.f32 %v1044, %v1132
      %v1134 = vpop.f32.mrf.mxu0
      %v1135 = vadd.f32 %v1046, %v1134
      %1136 = vmatmul.bf16.gmra.mxu0 %v536
      %v1137 = vpop.f32.mrf.mxu0
      %v1138 = vadd.f32 %v1049, %v1137
      %v1139 = vpop.f32.mrf.mxu0
      %v1140 = vadd.f32 %v1051, %v1139
      %1141 = vmatmul.bf16.gmra.mxu0 %v540
      %v1142 = vpop.f32.mrf.mxu0
      %v1143 = vadd.f32 %v1054, %v1142
      %v1144 = vpop.f32.mrf.mxu0
      %v1145 = vadd.f32 %v1056, %v1144
      %1146 = vmatmul.bf16.gmra.mxu0 %v544
      %v1147 = vpop.f32.mrf.mxu0
      %v1148 = vadd.f32 %v1059, %v1147
      %v1149 = vpop.f32.mrf.mxu0
      %v1150 = vadd.f32 %v1061, %v1149
      %1151 = vmatmul.bf16.gmra.mxu0 %v548
      %v1152 = vpop.f32.mrf.mxu0
      %v1153 = vadd.f32 %v1064, %v1152
      %v1154 = vpop.f32.mrf.mxu0
      %v1155 = vadd.f32 %v1066, %v1154
      %1156 = vmatmul.bf16.gmra.mxu0 %v552
      %v1157 = vpop.f32.mrf.mxu0
      %v1158 = vadd.f32 %v1069, %v1157
      %v1159 = vpop.f32.mrf.mxu0
      %v1160 = vadd.f32 %v1071, %v1159
      %1161 = vmatmul.bf16.gmra.mxu0 %v556
      %v1162 = vpop.f32.mrf.mxu0
      %v1163 = vadd.f32 %v1074, %v1162
      %v1164 = vpop.f32.mrf.mxu0
      %v1165 = vadd.f32 %v1076, %v1164
      %1166 = vmatmul.bf16.gmra.mxu0 %v560
      %v1167 = vpop.f32.mrf.mxu0
      %v1168 = vadd.f32 %v1079, %v1167
      %v1169 = vpop.f32.mrf.mxu0
      %v1170 = vadd.f32 %v1081, %v1169
      %1171 = vmatmul.bf16.gmra.mxu0 %v564
      %v1172 = vpop.f32.mrf.mxu0
      %v1173 = vadd.f32 %v1084, %v1172
      %v1174 = vpop.f32.mrf.mxu0
      %v1175 = vadd.f32 %v1086, %v1174
      %1176 = vdwg.mxu0
      %v1177 = vxor.u32 %v1098, 2147483648
      %v1178 = vxor.u32 %v1100, 2147483648
      %v1179 = vxor.u32 %v1103, 2147483648
      %v1180 = vxor.u32 %v1105, 2147483648
      %v1181 = vxor.u32 %v1108, 2147483648
      %v1182 = vxor.u32 %v1110, 2147483648
      %v1183 = vxor.u32 %v1113, 2147483648
      %v1184 = vxor.u32 %v1115, 2147483648
      %v1185 = vxor.u32 %v1118, 2147483648
      %v1186 = vxor.u32 %v1120, 2147483648
      %v1187 = vxor.u32 %v1123, 2147483648
      %v1188 = vxor.u32 %v1125, 2147483648
      %v1189 = vxor.u32 %v1128, 2147483648
      %v1190 = vxor.u32 %v1130, 2147483648
      %v1191 = vxor.u32 %v1133, 2147483648
      %v1192 = vxor.u32 %v1135, 2147483648
      %v1193 = vxor.u32 %v1138, 2147483648
      %v1194 = vxor.u32 %v1140, 2147483648
      %v1195 = vxor.u32 %v1143, 2147483648
      %v1196 = vxor.u32 %v1145, 2147483648
      %v1197 = vxor.u32 %v1148, 2147483648
      %v1198 = vxor.u32 %v1150, 2147483648
      %v1199 = vxor.u32 %v1153, 2147483648
      %v1200 = vxor.u32 %v1155, 2147483648
      %v1201 = vxor.u32 %v1158, 2147483648
      %v1202 = vxor.u32 %v1160, 2147483648
      %v1203 = vxor.u32 %v1163, 2147483648
      %v1204 = vxor.u32 %v1165, 2147483648
      %v1205 = vxor.u32 %v1168, 2147483648
      %v1206 = vxor.u32 %v1170, 2147483648
      %v1207 = vxor.u32 %v1173, 2147483648
      %v1208 = vxor.u32 %v1175, 2147483648
      %v1209 = vmul.f32 %v1177, 1.442695
      %v1210 = vpow.pop %v1209
      %v1211 = vmul.f32 %v1178, 1.442695
      %v1212 = vpow.pop %v1211
      %v1213 = vmul.f32 %v1179, 1.442695
      %v1214 = vpow.pop %v1213
      %v1215 = vmul.f32 %v1180, 1.442695
      %v1216 = vpow.pop %v1215
      %v1217 = vmul.f32 %v1181, 1.442695
      %v1218 = vpow.pop %v1217
      %v1219 = vmul.f32 %v1182, 1.442695
      %v1220 = vpow.pop %v1219
      %v1221 = vmul.f32 %v1183, 1.442695
      %v1222 = vpow.pop %v1221
      %v1223 = vmul.f32 %v1184, 1.442695
      %v1224 = vpow.pop %v1223
      %v1225 = vmul.f32 %v1185, 1.442695
      %v1226 = vpow.pop %v1225
      %v1227 = vmul.f32 %v1186, 1.442695
      %v1228 = vpow.pop %v1227
      %v1229 = vmul.f32 %v1187, 1.442695
      %v1230 = vpow.pop %v1229
      %v1231 = vmul.f32 %v1188, 1.442695
      %v1232 = vpow.pop %v1231
      %v1233 = vmul.f32 %v1189, 1.442695
      %v1234 = vpow.pop %v1233
      %v1235 = vmul.f32 %v1190, 1.442695
      %v1236 = vpow.pop %v1235
      %v1237 = vmul.f32 %v1191, 1.442695
      %v1238 = vpow.pop %v1237
      %v1239 = vmul.f32 %v1192, 1.442695
      %v1240 = vpow.pop %v1239
      %v1241 = vmul.f32 %v1193, 1.442695
      %v1242 = vpow.pop %v1241
      %v1243 = vmul.f32 %v1194, 1.442695
      %v1244 = vpow.pop %v1243
      %v1245 = vmul.f32 %v1195, 1.442695
      %v1246 = vpow.pop %v1245
      %v1247 = vmul.f32 %v1196, 1.442695
      %v1248 = vpow.pop %v1247
      %v1249 = vmul.f32 %v1197, 1.442695
      %v1250 = vpow.pop %v1249
      %v1251 = vmul.f32 %v1198, 1.442695
      %v1252 = vpow.pop %v1251
      %v1253 = vmul.f32 %v1199, 1.442695
      %v1254 = vpow.pop %v1253
      %v1255 = vmul.f32 %v1200, 1.442695
      %v1256 = vpow.pop %v1255
      %v1257 = vmul.f32 %v1201, 1.442695
      %v1258 = vpow.pop %v1257
      %v1259 = vmul.f32 %v1202, 1.442695
      %v1260 = vpow.pop %v1259
      %v1261 = vmul.f32 %v1203, 1.442695
      %v1262 = vpow.pop %v1261
      %v1263 = vmul.f32 %v1204, 1.442695
      %v1264 = vpow.pop %v1263
      %v1265 = vmul.f32 %v1205, 1.442695
      %v1266 = vpow.pop %v1265
      %v1267 = vmul.f32 %v1206, 1.442695
      %v1268 = vpow.pop %v1267
      %v1269 = vmul.f32 %v1207, 1.442695
      %v1270 = vpow.pop %v1269
      %v1271 = vmul.f32 %v1208, 1.442695
      %v1272 = vpow.pop %v1271
      %v1273 = vadd.f32 %v1210, 1.0
      %v1274 = vadd.f32 %v1212, 1.0
      %v1275 = vadd.f32 %v1214, 1.0
      %v1276 = vadd.f32 %v1216, 1.0
      %v1277 = vadd.f32 %v1218, 1.0
      %v1278 = vadd.f32 %v1220, 1.0
      %v1279 = vadd.f32 %v1222, 1.0
      %v1280 = vadd.f32 %v1224, 1.0
      %v1281 = vadd.f32 %v1226, 1.0
      %v1282 = vadd.f32 %v1228, 1.0
      %v1283 = vadd.f32 %v1230, 1.0
      %v1284 = vadd.f32 %v1232, 1.0
      %v1285 = vadd.f32 %v1234, 1.0
      %v1286 = vadd.f32 %v1236, 1.0
      %v1287 = vadd.f32 %v1238, 1.0
      %v1288 = vadd.f32 %v1240, 1.0
      %v1289 = vadd.f32 %v1242, 1.0
      %v1290 = vadd.f32 %v1244, 1.0
      %v1291 = vadd.f32 %v1246, 1.0
      %v1292 = vadd.f32 %v1248, 1.0
      %v1293 = vadd.f32 %v1250, 1.0
      %v1294 = vadd.f32 %v1252, 1.0
      %v1295 = vadd.f32 %v1254, 1.0
      %v1296 = vadd.f32 %v1256, 1.0
      %v1297 = vadd.f32 %v1258, 1.0
      %v1298 = vadd.f32 %v1260, 1.0
      %v1299 = vadd.f32 %v1262, 1.0
      %v1300 = vadd.f32 %v1264, 1.0
      %v1301 = vadd.f32 %v1266, 1.0
      %v1302 = vadd.f32 %v1268, 1.0
      %v1303 = vadd.f32 %v1270, 1.0
      %v1304 = vadd.f32 %v1272, 1.0
      %v1305 = vrcp.pop %v1273
      %v1306 = vmul.f32 %v1273, %v1305
      %v1307 = vsub.f32 1.0, %v1306
      %v1308 = vmul.f32 %v1305, %v1307
      %v1309 = vadd.f32 %v1305, %v1308
      %vm1310 = vweird.f32 %v1273
      %vm1311 = vweird.f32 %v1305
      %vm1312 = vmor %vm1310, %vm1311
      %v1313 = vsel %vm1312, %v1305, %v1309
      %v1314 = vand.u32 2147483647, %v1273
      %vm1315 = vcmp.eq.f32.partialorder %v1314, 8.507059e+37
      %v1316 = vand.u32 %v1273, 2147483648
      %v1317 = vor.u32 1.1754944e-38, %v1316
      %v1318 = vsel %vm1315, %v1317, %v1313
      %v1319 = vmul.f32 1.0, %v1318
      %v1320 = vrcp.pop %v1274
      %v1321 = vmul.f32 %v1274, %v1320
      %v1322 = vsub.f32 1.0, %v1321
      %v1323 = vmul.f32 %v1320, %v1322
      %v1324 = vadd.f32 %v1320, %v1323
      %vm1325 = vweird.f32 %v1274
      %vm1326 = vweird.f32 %v1320
      %vm1327 = vmor %vm1325, %vm1326
      %v1328 = vsel %vm1327, %v1320, %v1324
      %v1329 = vand.u32 2147483647, %v1274
      %vm1330 = vcmp.eq.f32.partialorder %v1329, 8.507059e+37
      %v1331 = vand.u32 %v1274, 2147483648
      %v1332 = vor.u32 1.1754944e-38, %v1331
      %v1333 = vsel %vm1330, %v1332, %v1328
      %v1334 = vmul.f32 1.0, %v1333
      %v1335 = vrcp.pop %v1275
      %v1336 = vmul.f32 %v1275, %v1335
      %v1337 = vsub.f32 1.0, %v1336
      %v1338 = vmul.f32 %v1335, %v1337
      %v1339 = vadd.f32 %v1335, %v1338
      %vm1340 = vweird.f32 %v1275
      %vm1341 = vweird.f32 %v1335
      %vm1342 = vmor %vm1340, %vm1341
      %v1343 = vsel %vm1342, %v1335, %v1339
      %v1344 = vand.u32 2147483647, %v1275
      %vm1345 = vcmp.eq.f32.partialorder %v1344, 8.507059e+37
      %v1346 = vand.u32 %v1275, 2147483648
      %v1347 = vor.u32 1.1754944e-38, %v1346
      %v1348 = vsel %vm1345, %v1347, %v1343
      %v1349 = vmul.f32 1.0, %v1348
      %v1350 = vrcp.pop %v1276
      %v1351 = vmul.f32 %v1276, %v1350
      %v1352 = vsub.f32 1.0, %v1351
      %v1353 = vmul.f32 %v1350, %v1352
      %v1354 = vadd.f32 %v1350, %v1353
      %vm1355 = vweird.f32 %v1276
      %vm1356 = vweird.f32 %v1350
      %vm1357 = vmor %vm1355, %vm1356
      %v1358 = vsel %vm1357, %v1350, %v1354
      %v1359 = vand.u32 2147483647, %v1276
      %vm1360 = vcmp.eq.f32.partialorder %v1359, 8.507059e+37
      %v1361 = vand.u32 %v1276, 2147483648
      %v1362 = vor.u32 1.1754944e-38, %v1361
      %v1363 = vsel %vm1360, %v1362, %v1358
      %v1364 = vmul.f32 1.0, %v1363
      %v1365 = vrcp.pop %v1277
      %v1366 = vmul.f32 %v1277, %v1365
      %v1367 = vsub.f32 1.0, %v1366
      %v1368 = vmul.f32 %v1365, %v1367
      %v1369 = vadd.f32 %v1365, %v1368
      %vm1370 = vweird.f32 %v1277
      %vm1371 = vweird.f32 %v1365
      %vm1372 = vmor %vm1370, %vm1371
      %v1373 = vsel %vm1372, %v1365, %v1369
      %v1374 = vand.u32 2147483647, %v1277
      %vm1375 = vcmp.eq.f32.partialorder %v1374, 8.507059e+37
      %v1376 = vand.u32 %v1277, 2147483648
      %v1377 = vor.u32 1.1754944e-38, %v1376
      %v1378 = vsel %vm1375, %v1377, %v1373
      %v1379 = vmul.f32 1.0, %v1378
      %v1380 = vrcp.pop %v1278
      %v1381 = vmul.f32 %v1278, %v1380
      %v1382 = vsub.f32 1.0, %v1381
      %v1383 = vmul.f32 %v1380, %v1382
      %v1384 = vadd.f32 %v1380, %v1383
      %vm1385 = vweird.f32 %v1278
      %vm1386 = vweird.f32 %v1380
      %vm1387 = vmor %vm1385, %vm1386
      %v1388 = vsel %vm1387, %v1380, %v1384
      %v1389 = vand.u32 2147483647, %v1278
      %vm1390 = vcmp.eq.f32.partialorder %v1389, 8.507059e+37
      %v1391 = vand.u32 %v1278, 2147483648
      %v1392 = vor.u32 1.1754944e-38, %v1391
      %v1393 = vsel %vm1390, %v1392, %v1388
      %v1394 = vmul.f32 1.0, %v1393
      %v1395 = vrcp.pop %v1279
      %v1396 = vmul.f32 %v1279, %v1395
      %v1397 = vsub.f32 1.0, %v1396
      %v1398 = vmul.f32 %v1395, %v1397
      %v1399 = vadd.f32 %v1395, %v1398
      %vm1400 = vweird.f32 %v1279
      %vm1401 = vweird.f32 %v1395
      %vm1402 = vmor %vm1400, %vm1401
      %v1403 = vsel %vm1402, %v1395, %v1399
      %v1404 = vand.u32 2147483647, %v1279
      %vm1405 = vcmp.eq.f32.partialorder %v1404, 8.507059e+37
      %v1406 = vand.u32 %v1279, 2147483648
      %v1407 = vor.u32 1.1754944e-38, %v1406
      %v1408 = vsel %vm1405, %v1407, %v1403
      %v1409 = vmul.f32 1.0, %v1408
      %v1410 = vrcp.pop %v1280
      %v1411 = vmul.f32 %v1280, %v1410
      %v1412 = vsub.f32 1.0, %v1411
      %v1413 = vmul.f32 %v1410, %v1412
      %v1414 = vadd.f32 %v1410, %v1413
      %vm1415 = vweird.f32 %v1280
      %vm1416 = vweird.f32 %v1410
      %vm1417 = vmor %vm1415, %vm1416
      %v1418 = vsel %vm1417, %v1410, %v1414
      %v1419 = vand.u32 2147483647, %v1280
      %vm1420 = vcmp.eq.f32.partialorder %v1419, 8.507059e+37
      %v1421 = vand.u32 %v1280, 2147483648
      %v1422 = vor.u32 1.1754944e-38, %v1421
      %v1423 = vsel %vm1420, %v1422, %v1418
      %v1424 = vmul.f32 1.0, %v1423
      %v1425 = vrcp.pop %v1281
      %v1426 = vmul.f32 %v1281, %v1425
      %v1427 = vsub.f32 1.0, %v1426
      %v1428 = vmul.f32 %v1425, %v1427
      %v1429 = vadd.f32 %v1425, %v1428
      %vm1430 = vweird.f32 %v1281
      %vm1431 = vweird.f32 %v1425
      %vm1432 = vmor %vm1430, %vm1431
      %v1433 = vsel %vm1432, %v1425, %v1429
      %v1434 = vand.u32 2147483647, %v1281
      %vm1435 = vcmp.eq.f32.partialorder %v1434, 8.507059e+37
      %v1436 = vand.u32 %v1281, 2147483648
      %v1437 = vor.u32 1.1754944e-38, %v1436
      %v1438 = vsel %vm1435, %v1437, %v1433
      %v1439 = vmul.f32 1.0, %v1438
      %v1440 = vrcp.pop %v1282
      %v1441 = vmul.f32 %v1282, %v1440
      %v1442 = vsub.f32 1.0, %v1441
      %v1443 = vmul.f32 %v1440, %v1442
      %v1444 = vadd.f32 %v1440, %v1443
      %vm1445 = vweird.f32 %v1282
      %vm1446 = vweird.f32 %v1440
      %vm1447 = vmor %vm1445, %vm1446
      %v1448 = vsel %vm1447, %v1440, %v1444
      %v1449 = vand.u32 2147483647, %v1282
      %vm1450 = vcmp.eq.f32.partialorder %v1449, 8.507059e+37
      %v1451 = vand.u32 %v1282, 2147483648
      %v1452 = vor.u32 1.1754944e-38, %v1451
      %v1453 = vsel %vm1450, %v1452, %v1448
      %v1454 = vmul.f32 1.0, %v1453
      %v1455 = vrcp.pop %v1283
      %v1456 = vmul.f32 %v1283, %v1455
      %v1457 = vsub.f32 1.0, %v1456
      %v1458 = vmul.f32 %v1455, %v1457
      %v1459 = vadd.f32 %v1455, %v1458
      %vm1460 = vweird.f32 %v1283
      %vm1461 = vweird.f32 %v1455
      %vm1462 = vmor %vm1460, %vm1461
      %v1463 = vsel %vm1462, %v1455, %v1459
      %v1464 = vand.u32 2147483647, %v1283
      %vm1465 = vcmp.eq.f32.partialorder %v1464, 8.507059e+37
      %v1466 = vand.u32 %v1283, 2147483648
      %v1467 = vor.u32 1.1754944e-38, %v1466
      %v1468 = vsel %vm1465, %v1467, %v1463
      %v1469 = vmul.f32 1.0, %v1468
      %v1470 = vrcp.pop %v1284
      %v1471 = vmul.f32 %v1284, %v1470
      %v1472 = vsub.f32 1.0, %v1471
      %v1473 = vmul.f32 %v1470, %v1472
      %v1474 = vadd.f32 %v1470, %v1473
      %vm1475 = vweird.f32 %v1284
      %vm1476 = vweird.f32 %v1470
      %vm1477 = vmor %vm1475, %vm1476
      %v1478 = vsel %vm1477, %v1470, %v1474
      %v1479 = vand.u32 2147483647, %v1284
      %vm1480 = vcmp.eq.f32.partialorder %v1479, 8.507059e+37
      %v1481 = vand.u32 %v1284, 2147483648
      %v1482 = vor.u32 1.1754944e-38, %v1481
      %v1483 = vsel %vm1480, %v1482, %v1478
      %v1484 = vmul.f32 1.0, %v1483
      %v1485 = vrcp.pop %v1285
      %v1486 = vmul.f32 %v1285, %v1485
      %v1487 = vsub.f32 1.0, %v1486
      %v1488 = vmul.f32 %v1485, %v1487
      %v1489 = vadd.f32 %v1485, %v1488
      %vm1490 = vweird.f32 %v1285
      %vm1491 = vweird.f32 %v1485
      %vm1492 = vmor %vm1490, %vm1491
      %v1493 = vsel %vm1492, %v1485, %v1489
      %v1494 = vand.u32 2147483647, %v1285
      %vm1495 = vcmp.eq.f32.partialorder %v1494, 8.507059e+37
      %v1496 = vand.u32 %v1285, 2147483648
      %v1497 = vor.u32 1.1754944e-38, %v1496
      %v1498 = vsel %vm1495, %v1497, %v1493
      %v1499 = vmul.f32 1.0, %v1498
      %v1500 = vrcp.pop %v1286
      %v1501 = vmul.f32 %v1286, %v1500
      %v1502 = vsub.f32 1.0, %v1501
      %v1503 = vmul.f32 %v1500, %v1502
      %v1504 = vadd.f32 %v1500, %v1503
      %vm1505 = vweird.f32 %v1286
      %vm1506 = vweird.f32 %v1500
      %vm1507 = vmor %vm1505, %vm1506
      %v1508 = vsel %vm1507, %v1500, %v1504
      %v1509 = vand.u32 2147483647, %v1286
      %vm1510 = vcmp.eq.f32.partialorder %v1509, 8.507059e+37
      %v1511 = vand.u32 %v1286, 2147483648
      %v1512 = vor.u32 1.1754944e-38, %v1511
      %v1513 = vsel %vm1510, %v1512, %v1508
      %v1514 = vmul.f32 1.0, %v1513
      %v1515 = vrcp.pop %v1287
      %v1516 = vmul.f32 %v1287, %v1515
      %v1517 = vsub.f32 1.0, %v1516
      %v1518 = vmul.f32 %v1515, %v1517
      %v1519 = vadd.f32 %v1515, %v1518
      %vm1520 = vweird.f32 %v1287
      %vm1521 = vweird.f32 %v1515
      %vm1522 = vmor %vm1520, %vm1521
      %v1523 = vsel %vm1522, %v1515, %v1519
      %v1524 = vand.u32 2147483647, %v1287
      %vm1525 = vcmp.eq.f32.partialorder %v1524, 8.507059e+37
      %v1526 = vand.u32 %v1287, 2147483648
      %v1527 = vor.u32 1.1754944e-38, %v1526
      %v1528 = vsel %vm1525, %v1527, %v1523
      %v1529 = vmul.f32 1.0, %v1528
      %v1530 = vrcp.pop %v1288
      %v1531 = vmul.f32 %v1288, %v1530
      %v1532 = vsub.f32 1.0, %v1531
      %v1533 = vmul.f32 %v1530, %v1532
      %v1534 = vadd.f32 %v1530, %v1533
      %vm1535 = vweird.f32 %v1288
      %vm1536 = vweird.f32 %v1530
      %vm1537 = vmor %vm1535, %vm1536
      %v1538 = vsel %vm1537, %v1530, %v1534
      %v1539 = vand.u32 2147483647, %v1288
      %vm1540 = vcmp.eq.f32.partialorder %v1539, 8.507059e+37
      %v1541 = vand.u32 %v1288, 2147483648
      %v1542 = vor.u32 1.1754944e-38, %v1541
      %v1543 = vsel %vm1540, %v1542, %v1538
      %v1544 = vmul.f32 1.0, %v1543
      %v1545 = vrcp.pop %v1289
      %v1546 = vmul.f32 %v1289, %v1545
      %v1547 = vsub.f32 1.0, %v1546
      %v1548 = vmul.f32 %v1545, %v1547
      %v1549 = vadd.f32 %v1545, %v1548
      %vm1550 = vweird.f32 %v1289
      %vm1551 = vweird.f32 %v1545
      %vm1552 = vmor %vm1550, %vm1551
      %v1553 = vsel %vm1552, %v1545, %v1549
      %v1554 = vand.u32 2147483647, %v1289
      %vm1555 = vcmp.eq.f32.partialorder %v1554, 8.507059e+37
      %v1556 = vand.u32 %v1289, 2147483648
      %v1557 = vor.u32 1.1754944e-38, %v1556
      %v1558 = vsel %vm1555, %v1557, %v1553
      %v1559 = vmul.f32 1.0, %v1558
      %v1560 = vrcp.pop %v1290
      %v1561 = vmul.f32 %v1290, %v1560
      %v1562 = vsub.f32 1.0, %v1561
      %v1563 = vmul.f32 %v1560, %v1562
      %v1564 = vadd.f32 %v1560, %v1563
      %vm1565 = vweird.f32 %v1290
      %vm1566 = vweird.f32 %v1560
      %vm1567 = vmor %vm1565, %vm1566
      %v1568 = vsel %vm1567, %v1560, %v1564
      %v1569 = vand.u32 2147483647, %v1290
      %vm1570 = vcmp.eq.f32.partialorder %v1569, 8.507059e+37
      %v1571 = vand.u32 %v1290, 2147483648
      %v1572 = vor.u32 1.1754944e-38, %v1571
      %v1573 = vsel %vm1570, %v1572, %v1568
      %v1574 = vmul.f32 1.0, %v1573
      %v1575 = vrcp.pop %v1291
      %v1576 = vmul.f32 %v1291, %v1575
      %v1577 = vsub.f32 1.0, %v1576
      %v1578 = vmul.f32 %v1575, %v1577
      %v1579 = vadd.f32 %v1575, %v1578
      %vm1580 = vweird.f32 %v1291
      %vm1581 = vweird.f32 %v1575
      %vm1582 = vmor %vm1580, %vm1581
      %v1583 = vsel %vm1582, %v1575, %v1579
      %v1584 = vand.u32 2147483647, %v1291
      %vm1585 = vcmp.eq.f32.partialorder %v1584, 8.507059e+37
      %v1586 = vand.u32 %v1291, 2147483648
      %v1587 = vor.u32 1.1754944e-38, %v1586
      %v1588 = vsel %vm1585, %v1587, %v1583
      %v1589 = vmul.f32 1.0, %v1588
      %v1590 = vrcp.pop %v1292
      %v1591 = vmul.f32 %v1292, %v1590
      %v1592 = vsub.f32 1.0, %v1591
      %v1593 = vmul.f32 %v1590, %v1592
      %v1594 = vadd.f32 %v1590, %v1593
      %vm1595 = vweird.f32 %v1292
      %vm1596 = vweird.f32 %v1590
      %vm1597 = vmor %vm1595, %vm1596
      %v1598 = vsel %vm1597, %v1590, %v1594
      %v1599 = vand.u32 2147483647, %v1292
      %vm1600 = vcmp.eq.f32.partialorder %v1599, 8.507059e+37
      %v1601 = vand.u32 %v1292, 2147483648
      %v1602 = vor.u32 1.1754944e-38, %v1601
      %v1603 = vsel %vm1600, %v1602, %v1598
      %v1604 = vmul.f32 1.0, %v1603
      %v1605 = vrcp.pop %v1293
      %v1606 = vmul.f32 %v1293, %v1605
      %v1607 = vsub.f32 1.0, %v1606
      %v1608 = vmul.f32 %v1605, %v1607
      %v1609 = vadd.f32 %v1605, %v1608
      %vm1610 = vweird.f32 %v1293
      %vm1611 = vweird.f32 %v1605
      %vm1612 = vmor %vm1610, %vm1611
      %v1613 = vsel %vm1612, %v1605, %v1609
      %v1614 = vand.u32 2147483647, %v1293
      %vm1615 = vcmp.eq.f32.partialorder %v1614, 8.507059e+37
      %v1616 = vand.u32 %v1293, 2147483648
      %v1617 = vor.u32 1.1754944e-38, %v1616
      %v1618 = vsel %vm1615, %v1617, %v1613
      %v1619 = vmul.f32 1.0, %v1618
      %v1620 = vrcp.pop %v1294
      %v1621 = vmul.f32 %v1294, %v1620
      %v1622 = vsub.f32 1.0, %v1621
      %v1623 = vmul.f32 %v1620, %v1622
      %v1624 = vadd.f32 %v1620, %v1623
      %vm1625 = vweird.f32 %v1294
      %vm1626 = vweird.f32 %v1620
      %vm1627 = vmor %vm1625, %vm1626
      %v1628 = vsel %vm1627, %v1620, %v1624
      %v1629 = vand.u32 2147483647, %v1294
      %vm1630 = vcmp.eq.f32.partialorder %v1629, 8.507059e+37
      %v1631 = vand.u32 %v1294, 2147483648
      %v1632 = vor.u32 1.1754944e-38, %v1631
      %v1633 = vsel %vm1630, %v1632, %v1628
      %v1634 = vmul.f32 1.0, %v1633
      %v1635 = vrcp.pop %v1295
      %v1636 = vmul.f32 %v1295, %v1635
      %v1637 = vsub.f32 1.0, %v1636
      %v1638 = vmul.f32 %v1635, %v1637
      %v1639 = vadd.f32 %v1635, %v1638
      %vm1640 = vweird.f32 %v1295
      %vm1641 = vweird.f32 %v1635
      %vm1642 = vmor %vm1640, %vm1641
      %v1643 = vsel %vm1642, %v1635, %v1639
      %v1644 = vand.u32 2147483647, %v1295
      %vm1645 = vcmp.eq.f32.partialorder %v1644, 8.507059e+37
      %v1646 = vand.u32 %v1295, 2147483648
      %v1647 = vor.u32 1.1754944e-38, %v1646
      %v1648 = vsel %vm1645, %v1647, %v1643
      %v1649 = vmul.f32 1.0, %v1648
      %v1650 = vrcp.pop %v1296
      %v1651 = vmul.f32 %v1296, %v1650
      %v1652 = vsub.f32 1.0, %v1651
      %v1653 = vmul.f32 %v1650, %v1652
      %v1654 = vadd.f32 %v1650, %v1653
      %vm1655 = vweird.f32 %v1296
      %vm1656 = vweird.f32 %v1650
      %vm1657 = vmor %vm1655, %vm1656
      %v1658 = vsel %vm1657, %v1650, %v1654
      %v1659 = vand.u32 2147483647, %v1296
      %vm1660 = vcmp.eq.f32.partialorder %v1659, 8.507059e+37
      %v1661 = vand.u32 %v1296, 2147483648
      %v1662 = vor.u32 1.1754944e-38, %v1661
      %v1663 = vsel %vm1660, %v1662, %v1658
      %v1664 = vmul.f32 1.0, %v1663
      %v1665 = vrcp.pop %v1297
      %v1666 = vmul.f32 %v1297, %v1665
      %v1667 = vsub.f32 1.0, %v1666
      %v1668 = vmul.f32 %v1665, %v1667
      %v1669 = vadd.f32 %v1665, %v1668
      %vm1670 = vweird.f32 %v1297
      %vm1671 = vweird.f32 %v1665
      %vm1672 = vmor %vm1670, %vm1671
      %v1673 = vsel %vm1672, %v1665, %v1669
      %v1674 = vand.u32 2147483647, %v1297
      %vm1675 = vcmp.eq.f32.partialorder %v1674, 8.507059e+37
      %v1676 = vand.u32 %v1297, 2147483648
      %v1677 = vor.u32 1.1754944e-38, %v1676
      %v1678 = vsel %vm1675, %v1677, %v1673
      %v1679 = vmul.f32 1.0, %v1678
      %v1680 = vrcp.pop %v1298
      %v1681 = vmul.f32 %v1298, %v1680
      %v1682 = vsub.f32 1.0, %v1681
      %v1683 = vmul.f32 %v1680, %v1682
      %v1684 = vadd.f32 %v1680, %v1683
      %vm1685 = vweird.f32 %v1298
      %vm1686 = vweird.f32 %v1680
      %vm1687 = vmor %vm1685, %vm1686
      %v1688 = vsel %vm1687, %v1680, %v1684
      %v1689 = vand.u32 2147483647, %v1298
      %vm1690 = vcmp.eq.f32.partialorder %v1689, 8.507059e+37
      %v1691 = vand.u32 %v1298, 2147483648
      %v1692 = vor.u32 1.1754944e-38, %v1691
      %v1693 = vsel %vm1690, %v1692, %v1688
      %v1694 = vmul.f32 1.0, %v1693
      %v1695 = vrcp.pop %v1299
      %v1696 = vmul.f32 %v1299, %v1695
      %v1697 = vsub.f32 1.0, %v1696
      %v1698 = vmul.f32 %v1695, %v1697
      %v1699 = vadd.f32 %v1695, %v1698
      %vm1700 = vweird.f32 %v1299
      %vm1701 = vweird.f32 %v1695
      %vm1702 = vmor %vm1700, %vm1701
      %v1703 = vsel %vm1702, %v1695, %v1699
      %v1704 = vand.u32 2147483647, %v1299
      %vm1705 = vcmp.eq.f32.partialorder %v1704, 8.507059e+37
      %v1706 = vand.u32 %v1299, 2147483648
      %v1707 = vor.u32 1.1754944e-38, %v1706
      %v1708 = vsel %vm1705, %v1707, %v1703
      %v1709 = vmul.f32 1.0, %v1708
      %v1710 = vrcp.pop %v1300
      %v1711 = vmul.f32 %v1300, %v1710
      %v1712 = vsub.f32 1.0, %v1711
      %v1713 = vmul.f32 %v1710, %v1712
      %v1714 = vadd.f32 %v1710, %v1713
      %vm1715 = vweird.f32 %v1300
      %vm1716 = vweird.f32 %v1710
      %vm1717 = vmor %vm1715, %vm1716
      %v1718 = vsel %vm1717, %v1710, %v1714
      %v1719 = vand.u32 2147483647, %v1300
      %vm1720 = vcmp.eq.f32.partialorder %v1719, 8.507059e+37
      %v1721 = vand.u32 %v1300, 2147483648
      %v1722 = vor.u32 1.1754944e-38, %v1721
      %v1723 = vsel %vm1720, %v1722, %v1718
      %v1724 = vmul.f32 1.0, %v1723
      %v1725 = vrcp.pop %v1301
      %v1726 = vmul.f32 %v1301, %v1725
      %v1727 = vsub.f32 1.0, %v1726
      %v1728 = vmul.f32 %v1725, %v1727
      %v1729 = vadd.f32 %v1725, %v1728
      %vm1730 = vweird.f32 %v1301
      %vm1731 = vweird.f32 %v1725
      %vm1732 = vmor %vm1730, %vm1731
      %v1733 = vsel %vm1732, %v1725, %v1729
      %v1734 = vand.u32 2147483647, %v1301
      %vm1735 = vcmp.eq.f32.partialorder %v1734, 8.507059e+37
      %v1736 = vand.u32 %v1301, 2147483648
      %v1737 = vor.u32 1.1754944e-38, %v1736
      %v1738 = vsel %vm1735, %v1737, %v1733
      %v1739 = vmul.f32 1.0, %v1738
      %v1740 = vrcp.pop %v1302
      %v1741 = vmul.f32 %v1302, %v1740
      %v1742 = vsub.f32 1.0, %v1741
      %v1743 = vmul.f32 %v1740, %v1742
      %v1744 = vadd.f32 %v1740, %v1743
      %vm1745 = vweird.f32 %v1302
      %vm1746 = vweird.f32 %v1740
      %vm1747 = vmor %vm1745, %vm1746
      %v1748 = vsel %vm1747, %v1740, %v1744
      %v1749 = vand.u32 2147483647, %v1302
      %vm1750 = vcmp.eq.f32.partialorder %v1749, 8.507059e+37
      %v1751 = vand.u32 %v1302, 2147483648
      %v1752 = vor.u32 1.1754944e-38, %v1751
      %v1753 = vsel %vm1750, %v1752, %v1748
      %v1754 = vmul.f32 1.0, %v1753
      %v1755 = vrcp.pop %v1303
      %v1756 = vmul.f32 %v1303, %v1755
      %v1757 = vsub.f32 1.0, %v1756
      %v1758 = vmul.f32 %v1755, %v1757
      %v1759 = vadd.f32 %v1755, %v1758
      %vm1760 = vweird.f32 %v1303
      %vm1761 = vweird.f32 %v1755
      %vm1762 = vmor %vm1760, %vm1761
      %v1763 = vsel %vm1762, %v1755, %v1759
      %v1764 = vand.u32 2147483647, %v1303
      %vm1765 = vcmp.eq.f32.partialorder %v1764, 8.507059e+37
      %v1766 = vand.u32 %v1303, 2147483648
      %v1767 = vor.u32 1.1754944e-38, %v1766
      %v1768 = vsel %vm1765, %v1767, %v1763
      %v1769 = vmul.f32 1.0, %v1768
      %v1770 = vrcp.pop %v1304
      %v1771 = vmul.f32 %v1304, %v1770
      %v1772 = vsub.f32 1.0, %v1771
      %v1773 = vmul.f32 %v1770, %v1772
      %v1774 = vadd.f32 %v1770, %v1773
      %vm1775 = vweird.f32 %v1304
      %vm1776 = vweird.f32 %v1770
      %vm1777 = vmor %vm1775, %vm1776
      %v1778 = vsel %vm1777, %v1770, %v1774
      %v1779 = vand.u32 2147483647, %v1304
      %vm1780 = vcmp.eq.f32.partialorder %v1779, 8.507059e+37
      %v1781 = vand.u32 %v1304, 2147483648
      %v1782 = vor.u32 1.1754944e-38, %v1781
      %v1783 = vsel %vm1780, %v1782, %v1778
      %v1784 = vmul.f32 1.0, %v1783
      %1785 = vst [vmem:[%s175] sm:$0xff] %v1319
      %1786 = vst [vmem:[%s175 + $0x8] sm:$0xff] %v1334
      %1787 = vst [vmem:[%s175 + $0x10] sm:$0xff] %v1349
      %1788 = vst [vmem:[%s175 + $0x18] sm:$0xff] %v1364
      %1789 = vst [vmem:[%s175 + $0x20] sm:$0xff] %v1379
      %1790 = vst [vmem:[%s175 + $0x28] sm:$0xff] %v1394
      %1791 = vst [vmem:[%s175 + $0x30] sm:$0xff] %v1409
      %1792 = vst [vmem:[%s175 + $0x38] sm:$0xff] %v1424
      %1793 = vst [vmem:[%s175 + $0x40] sm:$0xff] %v1439
      %1794 = vst [vmem:[%s175 + $0x48] sm:$0xff] %v1454
      %1795 = vst [vmem:[%s175 + $0x50] sm:$0xff] %v1469
      %1796 = vst [vmem:[%s175 + $0x58] sm:$0xff] %v1484
      %1797 = vst [vmem:[%s175 + $0x60] sm:$0xff] %v1499
      %1798 = vst [vmem:[%s175 + $0x68] sm:$0xff] %v1514
      %1799 = vst [vmem:[%s175 + $0x70] sm:$0xff] %v1529
      %1800 = vst [vmem:[%s175 + $0x78] sm:$0xff] %v1544
      %1801 = vst [vmem:[%s175 + $0x80] sm:$0xff] %v1559
      %1802 = vst [vmem:[%s175 + $0x88] sm:$0xff] %v1574
      %1803 = vst [vmem:[%s175 + $0x90] sm:$0xff] %v1589
      %1804 = vst [vmem:[%s175 + $0x98] sm:$0xff] %v1604
      %1805 = vst [vmem:[%s175 + $0xa0] sm:$0xff] %v1619
      %1806 = vst [vmem:[%s175 + $0xa8] sm:$0xff] %v1634
      %1807 = vst [vmem:[%s175 + $0xb0] sm:$0xff] %v1649
      %1808 = vst [vmem:[%s175 + $0xb8] sm:$0xff] %v1664
      %1809 = vst [vmem:[%s175 + $0xc0] sm:$0xff] %v1679
      %1810 = vst [vmem:[%s175 + $0xc8] sm:$0xff] %v1694
      %1811 = vst [vmem:[%s175 + $0xd0] sm:$0xff] %v1709
      %1812 = vst [vmem:[%s175 + $0xd8] sm:$0xff] %v1724
      %1813 = vst [vmem:[%s175 + $0xe0] sm:$0xff] %v1739
      %1814 = vst [vmem:[%s175 + $0xe8] sm:$0xff] %v1754
      %1815 = vst [vmem:[%s175 + $0xf0] sm:$0xff] %v1769
      %1816 = vst [vmem:[%s175 + $0xf8] sm:$0xff] %v1784
      %s1817 = smul.u32 32, %s14
      %p1818 = scmp.lt.s32.totalorder %s1817, 223
      %s1819 = scalar_select %p1818, %s1817, 223
      %s1820 = smul.addr %s1819, 8
      %s1821 = scalar_lea.vmem %s3, %s1820
      // Predicated region
      $region33: #{autoencoder_forward.17} parent=31 // pred_check
        %p1822 = pneg %p100
      $region34: #{autoencoder_forward.17} parent=31 // pred_check_branch
        %1824 = sbr.rel (%p1822) target = $region36
      $region35: #{autoencoder_forward.17} parent=31 // pred_region
        %s1825 = smul.u32 32, %s14
      $region36: #{autoencoder_forward.17} parent=31 // pred_fallthru
        _
    $region32: #{autoencoder_forward.17} parent=5 // pred_fallthru
      _
    %p1826 = scmp.le.s32.totalorder 2, %s9
    // Predicated region
    $region37: #{autoencoder_forward.17} parent=5 // pred_check
      %p1827 = pneg %p1826
    $region38: #{autoencoder_forward.17} parent=5 // pred_check_branch
      %1829 = sbr.rel (%p1827) target = $region40
    $region39: #{autoencoder_forward.17} parent=5 // pred_region
      %s1830 = ssub.s32 %s9, 2
      // Predicated region
      $region41: #{autoencoder_forward.17} parent=39 // pred_check
        %p1831 = pneg %p106
      $region42: #{autoencoder_forward.17} parent=39 // pred_check_branch
        %1833 = sbr.rel (%p1831) target = $region44
      $region43: #{autoencoder_forward.17} parent=39 // pred_region
        %s1834 = smul.u32 32, %s15
        %p1835 = scmp.lt.s32.totalorder %s1834, 223
        %s1836 = scalar_select %p1835, %s1834, 223
        %s1837 = smul.addr %s1836, 8
        %s1838 = scalar_lea.vmem %s3, %s1837
      $region44: #{autoencoder_forward.17} parent=39 // pred_fallthru
        _
    $region40: #{autoencoder_forward.17} parent=5 // pred_fallthru
      _
  $region6: #{autoencoder_forward.17} parent=0 // loop_footer
    %s13 = sadd.s32 1, %s9
  $region7: #{autoencoder_forward.17} parent=0 // loop_footer_branch
    %8 = sbr.rel target = $region3
  $region8: #{autoencoder_forward.17} parent=0 // loop_exit
    _

</llo_original>
